<compile_context>
chip_gen: v7x
topology: tpu7x:2x2x1
jax: 0.10.0
libtpu: 0.0.40
codegen_flags: <defaults>
</compile_context>

<pallas_src>
import jax
import jax.numpy as jnp
from jax.experimental import pallas as pl
from jax.experimental.pallas import tpu as pltpu

EPS = 1e-5  # PyTorch InstanceNorm2d default eps


def _resblock_kernel(x_ref, w1_ref, w2_ref, g1_ref, b1_ref, g2_ref, b2_ref,
                     o_ref, pad_ref):
    # x_ref / o_ref blocks: (1, H, W, C); w*_ref: (9, C, C) (tap-major, Cin x Cout);
    # g*/b*: (1, C); pad_ref: persistent VMEM scratch (H+2, W+2, C) acting as the
    # zero-padded staging buffer for both convolutions.
    _, H, W, C = o_ref.shape
    HW = H * W

    # Keep the 1-pixel halo at zero.  The interior is fully overwritten every step, so only
    # the border strips need refreshing; re-zeroing them every step (instead of only at
    # program_id==0) stays correct when the batch axis is sharded across cores ("parallel").
    zrow = jnp.zeros((1, W + 2, C), jnp.float32)
    zcol = jnp.zeros((H + 2, 1, C), jnp.float32)
    pad_ref[0:1, :, :] = zrow
    pad_ref[H + 1:H + 2, :, :] = zrow
    pad_ref[:, 0:1, :] = zcol
    pad_ref[:, W + 1:W + 2, :] = zcol

    x = x_ref[0].astype(jnp.float32)  # (H, W, C)

    def conv3x3(w_ref):
        # Reads the zero-padded activation currently staged in pad_ref and accumulates the
        # 9 taps as 9 MXU matmuls: sum_{dy,dx} shift(src, dy, dx) @ w[dy*3+dx].
        src = pad_ref[...]  # (H+2, W+2, C)
        acc = None
        for dy in range(3):
            for dx in range(3):
                tap = src[dy:dy + H, dx:dx + W, :].reshape(HW, C)
                part = jnp.dot(tap, w_ref[dy * 3 + dx],
                               preferred_element_type=jnp.float32)
                acc = part if acc is None else acc + part
        # NOTE: on v6e/v7x casting `tap` / weights to bf16 (keeping the f32 accumulator)
        # roughly doubles MXU throughput; kept in f32 here to match the reference to ~1e-4.
        return acc  # (HW, C)

    def inorm_affine(y, g_ref, b_ref, relu):
        # Single-pass InstanceNorm statistics over the spatial axis (biased variance,
        # PyTorch batch-stats semantics), fused with the affine transform (+ optional ReLU).
        inv_hw = 1.0 / HW
        mean = jnp.sum(y, axis=0, keepdims=True) * inv_hw                       # (1, C)
        var = jnp.maximum(
            jnp.sum(y * y, axis=0, keepdims=True) * inv_hw - mean * mean, 0.0)   # (1, C)
        scale = g_ref[...] * jax.lax.rsqrt(var + EPS)
        shift = b_ref[...] - mean * scale
        out = y * scale + shift
        return jnp.maximum(out, 0.0) if relu else out

    # conv1 -> IN1 -> ReLU
    pad_ref[pl.ds(1, H), pl.ds(1, W), :] = x
    y1 = inorm_affine(conv3x3(w1_ref), g1_ref, b1_ref, relu=True)     # (H*W, C)

    # conv2 -> IN2
    pad_ref[pl.ds(1, H), pl.ds(1, W), :] = y1.reshape(H, W, C)
    y2 = inorm_affine(conv3x3(w2_ref), g2_ref, b2_ref, relu=False)    # (H*W, C)

    # residual add against the original (unpadded) input
    o_ref[0] = (x + y2.reshape(H, W, C)).astype(o_ref.dtype)


def residual_block(x_nchw, params):
    """x_nchw: (N, C, H, W). params: (w1, w2, g1, b1, g2, b2) with w*: (3,3,C,C) HWIO,
    g*/b*: (1, C)."""
    w1, w2, g1, b1, g2, b2 = params
    N, C, H, W = x_nchw.shape
    x_nhwc = jnp.transpose(x_nchw, (0, 2, 3, 1))

    # Tap-major weight layout: (3,3,Cin,Cout) -> (9, Cin, Cout); tap index k = dy*3 + dx,
    # matching the in-kernel shift order.
    w1t = w1.reshape(9, C, C)
    w2t = w2.reshape(9, C, C)

    # Explicit scoped-VMEM budget for the chosen (full-image) blocks, with headroom for the
    # double-buffered I/O, the padded scratch and the conv accumulator / tap temporaries.
    itemsize = 4
    block_bytes = (4 * H * W * C              # 2x input + 2x output blocks (double-buffered)
                   + 4 * 9 * C * C            # two tap-major weights, double-buffered
                   + (H + 2) * (W + 2) * C    # padded scratch
                   + 4 * H * W * C            # conv accumulator + tap / epilogue temporaries
                   ) * itemsize
    vmem_limit = int(min(120 * 1024 * 1024, max(32 * 1024 * 1024, 4 * block_bytes)))
    # TODO(synk): for very large H/W/C on v7x (64 MiB VMEM/TC), add an H-row-tiled grid axis
    # with a 1-row halo instead of whole-image blocks.

    out_nhwc = pl.pallas_call(
        _resblock_kernel,
        out_shape=jax.ShapeDtypeStruct((N, H, W, C), x_nchw.dtype),
        grid_spec=pltpu.PrefetchScalarGridSpec(
            num_scalar_prefetch=0,
            grid=(N,),
            in_specs=[
                pl.BlockSpec((1, H, W, C), lambda n: (n, 0, 0, 0)),
                pl.BlockSpec((9, C, C), lambda n: (0, 0, 0)),
                pl.BlockSpec((9, C, C), lambda n: (0, 0, 0)),
                pl.BlockSpec((1, C), lambda n: (0, 0)),
                pl.BlockSpec((1, C), lambda n: (0, 0)),
                pl.BlockSpec((1, C), lambda n: (0, 0)),
                pl.BlockSpec((1, C), lambda n: (0, 0)),
            ],
            out_specs=pl.BlockSpec((1, H, W, C), lambda n: (n, 0, 0, 0)),
            scratch_shapes=[pltpu.VMEM((H + 2, W + 2, C), jnp.float32)],
        ),
        compiler_params=pltpu.CompilerParams(
            dimension_semantics=("parallel",),   # disjoint per-batch outputs -> megacore OK
            vmem_limit_bytes=vmem_limit,
        ),
    )(x_nhwc, w1t, w2t, g1, b1, g2, b2)

    return jnp.transpose(out_nhwc, (0, 3, 1, 2))


def _reference_forward(x_nchw, params):
    # pure-JAX reference mirroring the PyTorch module (batch-stats InstanceNorm)
    w1, w2, g1, b1, g2, b2 = params
    x = jnp.transpose(x_nchw, (0, 2, 3, 1))

    def conv(y, w):
        return jax.lax.conv_general_dilated(
            y, w, window_strides=(1, 1), padding="SAME",
            dimension_numbers=("NHWC", "HWIO", "NHWC"))

    def inorm(y, g, b):
        m = jnp.mean(y, axis=(1, 2), keepdims=True)
        v = jnp.mean((y - m) ** 2, axis=(1, 2), keepdims=True)
        return (y - m) * jax.lax.rsqrt(v + EPS) * g.reshape(1, 1, 1, -1) \
            + b.reshape(1, 1, 1, -1)

    y = conv(x, w1)
    y = inorm(y, g1, b1)
    y = jnp.maximum(y, 0.0)
    y = conv(y, w2)
    y = inorm(y, g2, b2)
    return jnp.transpose(x + y, (0, 3, 1, 2))


if __name__ == "__main__":
    N, C, H, W = 2, 4, 16, 16
    key = jax.random.PRNGKey(0)
    kx, kw1, kw2, kg1, kb1, kg2, kb2 = jax.random.split(key, 7)

    x = jax.random.normal(kx, (N, C, H, W), jnp.float32)

    # Conv2d(in_features, in_features, 3, bias=False) weights, stored as HWIO.
    scale = 1.0 / (3 * 3 * C) ** 0.5
    w1 = jax.random.normal(kw1, (3, 3, C, C), jnp.float32) * scale
    w2 = jax.random.normal(kw2, (3, 3, C, C), jnp.float32) * scale
    # InstanceNorm2d affine params (default init is ones/zeros; perturb deterministically).
    g1 = 1.0 + 0.1 * jax.random.normal(kg1, (1, C), jnp.float32)
    b1 = 0.1 * jax.random.normal(kb1, (1, C), jnp.float32)
    g2 = 1.0 + 0.1 * jax.random.normal(kg2, (1, C), jnp.float32)
    b2 = 0.1 * jax.random.normal(kb2, (1, C), jnp.float32)
    params = (w1, w2, g1, b1, g2, b2)

    out = residual_block(x, params)
    out = jax.block_until_ready(out)

    ref = jax.block_until_ready(_reference_forward(x, params))
    assert out.shape == (N, C, H, W)
    assert jnp.allclose(out, ref, atol=2e-4, rtol=2e-4), \
        float(jnp.max(jnp.abs(out - ref)))

    print("KERNEL_OK")
</pallas_src>

<mosaic_0001>
module attributes {stable_mosaic.version = 11 : i64} {
  func.func @_resblock_kernel(%arg0: i32, %arg1: memref<1x16x16x4xf32, #tpu.memory_space<vmem>>, %arg2: memref<9x4x4xf32, #tpu.memory_space<vmem>>, %arg3: memref<9x4x4xf32, #tpu.memory_space<vmem>>, %arg4: memref<1x4xf32, #tpu.memory_space<vmem>>, %arg5: memref<1x4xf32, #tpu.memory_space<vmem>>, %arg6: memref<1x4xf32, #tpu.memory_space<vmem>>, %arg7: memref<1x4xf32, #tpu.memory_space<vmem>>, %arg8: memref<1x16x16x4xf32, #tpu.memory_space<vmem>>, %arg9: memref<18x18x4xf32, #tpu.memory_space<vmem>>) attributes {dimension_semantics = [#tpu.dimension_semantics<parallel>], iteration_bounds = array<i64: 2>, scalar_prefetch = 0 : i64, scratch_operands = 1 : i64, tpu.core_type = #tpu.core_type<tc>, window_params = [{transform_indices = @transform_0, window_bounds = array<i64: 1, 16, 16, 4>}, {pipeline_mode = #tpu.pipeline_mode<synchronous>, transform_indices = @transform_1, window_bounds = array<i64: 9, 4, 4>}, {pipeline_mode = #tpu.pipeline_mode<synchronous>, transform_indices = @transform_2, window_bounds = array<i64: 9, 4, 4>}, {pipeline_mode = #tpu.pipeline_mode<synchronous>, transform_indices = @transform_3, window_bounds = array<i64: 1, 4>}, {pipeline_mode = #tpu.pipeline_mode<synchronous>, transform_indices = @transform_4, window_bounds = array<i64: 1, 4>}, {pipeline_mode = #tpu.pipeline_mode<synchronous>, transform_indices = @transform_5, window_bounds = array<i64: 1, 4>}, {pipeline_mode = #tpu.pipeline_mode<synchronous>, transform_indices = @transform_6, window_bounds = array<i64: 1, 4>}, {transform_indices = @transform_7, window_bounds = array<i64: 1, 16, 16, 4>}]} {
    %cst = arith.constant 0.000000e+00 : f32
    %0 = vector.broadcast %cst : f32 to vector<1x18x4xf32>
    %cst_0 = arith.constant 0.000000e+00 : f32
    %1 = vector.broadcast %cst_0 : f32 to vector<18x1x4xf32>
    %c0 = arith.constant 0 : index
    %c0_1 = arith.constant 0 : index
    %c0_2 = arith.constant 0 : index
    %2 = vector.load %arg9[%c0, %c0_1, %c0_2] : memref<18x18x4xf32, #tpu.memory_space<vmem>>, vector<1x18x4xf32>
    tpu.vector_store %arg9[%c0, %c0_1, %c0_2], %0 {strides = array<i32>} : memref<18x18x4xf32, #tpu.memory_space<vmem>>, vector<1x18x4xf32>,
    %c17 = arith.constant 17 : index
    %c0_3 = arith.constant 0 : index
    %c0_4 = arith.constant 0 : index
    %3 = vector.load %arg9[%c17, %c0_3, %c0_4] : memref<18x18x4xf32, #tpu.memory_space<vmem>>, vector<1x18x4xf32>
    tpu.vector_store %arg9[%c17, %c0_3, %c0_4], %0 {strides = array<i32>} : memref<18x18x4xf32, #tpu.memory_space<vmem>>, vector<1x18x4xf32>,
    %c0_5 = arith.constant 0 : index
    %c0_6 = arith.constant 0 : index
    %c0_7 = arith.constant 0 : index
    %4 = vector.load %arg9[%c0_5, %c0_6, %c0_7] : memref<18x18x4xf32, #tpu.memory_space<vmem>>, vector<18x1x4xf32>
    tpu.vector_store %arg9[%c0_5, %c0_6, %c0_7], %1 {strides = array<i32>} : memref<18x18x4xf32, #tpu.memory_space<vmem>>, vector<18x1x4xf32>,
    %c0_8 = arith.constant 0 : index
    %c17_9 = arith.constant 17 : index
    %c0_10 = arith.constant 0 : index
    %5 = vector.load %arg9[%c0_8, %c17_9, %c0_10] : memref<18x18x4xf32, #tpu.memory_space<vmem>>, vector<18x1x4xf32>
    tpu.vector_store %arg9[%c0_8, %c17_9, %c0_10], %1 {strides = array<i32>} : memref<18x18x4xf32, #tpu.memory_space<vmem>>, vector<18x1x4xf32>,
    %c0_11 = arith.constant 0 : index
    %c0_12 = arith.constant 0 : index
    %c0_13 = arith.constant 0 : index
    %c0_14 = arith.constant 0 : index
    %6 = vector.load %arg1[%c0_11, %c0_12, %c0_13, %c0_14] : memref<1x16x16x4xf32, #tpu.memory_space<vmem>>, vector<1x16x16x4xf32>
    %7 = vector.shape_cast %6 : vector<1x16x16x4xf32> to vector<16x16x4xf32>
    %c1 = arith.constant 1 : index
    %c1_15 = arith.constant 1 : index
    %c0_16 = arith.constant 0 : index
    %8 = vector.load %arg9[%c1, %c1_15, %c0_16] : memref<18x18x4xf32, #tpu.memory_space<vmem>>, vector<16x16x4xf32>
    tpu.vector_store %arg9[%c1, %c1_15, %c0_16], %7 {strides = array<i32>} : memref<18x18x4xf32, #tpu.memory_space<vmem>>, vector<16x16x4xf32>,
    %c0_17 = arith.constant 0 : index
    %c0_18 = arith.constant 0 : index
    %c0_19 = arith.constant 0 : index
    %9 = vector.load %arg9[%c0_17, %c0_18, %c0_19] : memref<18x18x4xf32, #tpu.memory_space<vmem>>, vector<18x18x4xf32>
    %10 = vector.extract_strided_slice %9 {offsets = [0, 0, 0], sizes = [16, 16, 4], strides = [1, 1, 1]} : vector<18x18x4xf32> to vector<16x16x4xf32>
    %11 = vector.shape_cast %10 : vector<16x16x4xf32> to vector<256x4xf32>
    %c0_20 = arith.constant 0 : index
    %c0_21 = arith.constant 0 : index
    %c0_22 = arith.constant 0 : index
    %12 = vector.load %arg2[%c0_20, %c0_21, %c0_22] : memref<9x4x4xf32, #tpu.memory_space<vmem>>, vector<1x4x4xf32>
    %13 = vector.shape_cast %12 : vector<1x4x4xf32> to vector<4x4xf32>
    %cst_23 = arith.constant dense<0.000000e+00> : vector<256x4xf32>
    %14 = tpu.matmul %11, %13, %cst_23 {dimension_numbers = #tpu.dot_dimension_numbers<[1], [0], [0], [1], [0, 0, 1, 1], [], []>} : vector<256x4xf32>, vector<4x4xf32>, vector<256x4xf32> -> vector<256x4xf32>
    %15 = vector.extract_strided_slice %9 {offsets = [0, 1, 0], sizes = [16, 16, 4], strides = [1, 1, 1]} : vector<18x18x4xf32> to vector<16x16x4xf32>
    %16 = vector.shape_cast %15 : vector<16x16x4xf32> to vector<256x4xf32>
    %c1_24 = arith.constant 1 : index
    %c0_25 = arith.constant 0 : index
    %c0_26 = arith.constant 0 : index
    %17 = vector.load %arg2[%c1_24, %c0_25, %c0_26] : memref<9x4x4xf32, #tpu.memory_space<vmem>>, vector<1x4x4xf32>
    %18 = vector.shape_cast %17 : vector<1x4x4xf32> to vector<4x4xf32>
    %cst_27 = arith.constant dense<0.000000e+00> : vector<256x4xf32>
    %19 = tpu.matmul %16, %18, %cst_27 {dimension_numbers = #tpu.dot_dimension_numbers<[1], [0], [0], [1], [0, 0, 1, 1], [], []>} : vector<256x4xf32>, vector<4x4xf32>, vector<256x4xf32> -> vector<256x4xf32>
    %20 = arith.addf %14, %19 : vector<256x4xf32>
    %21 = vector.extract_strided_slice %9 {offsets = [0, 2, 0], sizes = [16, 16, 4], strides = [1, 1, 1]} : vector<18x18x4xf32> to vector<16x16x4xf32>
    %22 = vector.shape_cast %21 : vector<16x16x4xf32> to vector<256x4xf32>
    %c2 = arith.constant 2 : index
    %c0_28 = arith.constant 0 : index
    %c0_29 = arith.constant 0 : index
    %23 = vector.load %arg2[%c2, %c0_28, %c0_29] : memref<9x4x4xf32, #tpu.memory_space<vmem>>, vector<1x4x4xf32>
    %24 = vector.shape_cast %23 : vector<1x4x4xf32> to vector<4x4xf32>
    %cst_30 = arith.constant dense<0.000000e+00> : vector<256x4xf32>
    %25 = tpu.matmul %22, %24, %cst_30 {dimension_numbers = #tpu.dot_dimension_numbers<[1], [0], [0], [1], [0, 0, 1, 1], [], []>} : vector<256x4xf32>, vector<4x4xf32>, vector<256x4xf32> -> vector<256x4xf32>
    %26 = arith.addf %20, %25 : vector<256x4xf32>
    %27 = vector.extract_strided_slice %9 {offsets = [1, 0, 0], sizes = [16, 16, 4], strides = [1, 1, 1]} : vector<18x18x4xf32> to vector<16x16x4xf32>
    %28 = vector.shape_cast %27 : vector<16x16x4xf32> to vector<256x4xf32>
    %c3 = arith.constant 3 : index
    %c0_31 = arith.constant 0 : index
    %c0_32 = arith.constant 0 : index
    %29 = vector.load %arg2[%c3, %c0_31, %c0_32] : memref<9x4x4xf32, #tpu.memory_space<vmem>>, vector<1x4x4xf32>
    %30 = vector.shape_cast %29 : vector<1x4x4xf32> to vector<4x4xf32>
    %cst_33 = arith.constant dense<0.000000e+00> : vector<256x4xf32>
    %31 = tpu.matmul %28, %30, %cst_33 {dimension_numbers = #tpu.dot_dimension_numbers<[1], [0], [0], [1], [0, 0, 1, 1], [], []>} : vector<256x4xf32>, vector<4x4xf32>, vector<256x4xf32> -> vector<256x4xf32>
    %32 = arith.addf %26, %31 : vector<256x4xf32>
    %33 = vector.extract_strided_slice %9 {offsets = [1, 1, 0], sizes = [16, 16, 4], strides = [1, 1, 1]} : vector<18x18x4xf32> to vector<16x16x4xf32>
    %34 = vector.shape_cast %33 : vector<16x16x4xf32> to vector<256x4xf32>
    %c4 = arith.constant 4 : index
    %c0_34 = arith.constant 0 : index
    %c0_35 = arith.constant 0 : index
    %35 = vector.load %arg2[%c4, %c0_34, %c0_35] : memref<9x4x4xf32, #tpu.memory_space<vmem>>, vector<1x4x4xf32>
    %36 = vector.shape_cast %35 : vector<1x4x4xf32> to vector<4x4xf32>
    %cst_36 = arith.constant dense<0.000000e+00> : vector<256x4xf32>
    %37 = tpu.matmul %34, %36, %cst_36 {dimension_numbers = #tpu.dot_dimension_numbers<[1], [0], [0], [1], [0, 0, 1, 1], [], []>} : vector<256x4xf32>, vector<4x4xf32>, vector<256x4xf32> -> vector<256x4xf32>
    %38 = arith.addf %32, %37 : vector<256x4xf32>
    %39 = vector.extract_strided_slice %9 {offsets = [1, 2, 0], sizes = [16, 16, 4], strides = [1, 1, 1]} : vector<18x18x4xf32> to vector<16x16x4xf32>
    %40 = vector.shape_cast %39 : vector<16x16x4xf32> to vector<256x4xf32>
    %c5 = arith.constant 5 : index
    %c0_37 = arith.constant 0 : index
    %c0_38 = arith.constant 0 : index
    %41 = vector.load %arg2[%c5, %c0_37, %c0_38] : memref<9x4x4xf32, #tpu.memory_space<vmem>>, vector<1x4x4xf32>
    %42 = vector.shape_cast %41 : vector<1x4x4xf32> to vector<4x4xf32>
    %cst_39 = arith.constant dense<0.000000e+00> : vector<256x4xf32>
    %43 = tpu.matmul %40, %42, %cst_39 {dimension_numbers = #tpu.dot_dimension_numbers<[1], [0], [0], [1], [0, 0, 1, 1], [], []>} : vector<256x4xf32>, vector<4x4xf32>, vector<256x4xf32> -> vector<256x4xf32>
    %44 = arith.addf %38, %43 : vector<256x4xf32>
    %45 = vector.extract_strided_slice %9 {offsets = [2, 0, 0], sizes = [16, 16, 4], strides = [1, 1, 1]} : vector<18x18x4xf32> to vector<16x16x4xf32>
    %46 = vector.shape_cast %45 : vector<16x16x4xf32> to vector<256x4xf32>
    %c6 = arith.constant 6 : index
    %c0_40 = arith.constant 0 : index
    %c0_41 = arith.constant 0 : index
    %47 = vector.load %arg2[%c6, %c0_40, %c0_41] : memref<9x4x4xf32, #tpu.memory_space<vmem>>, vector<1x4x4xf32>
    %48 = vector.shape_cast %47 : vector<1x4x4xf32> to vector<4x4xf32>
    %cst_42 = arith.constant dense<0.000000e+00> : vector<256x4xf32>
    %49 = tpu.matmul %46, %48, %cst_42 {dimension_numbers = #tpu.dot_dimension_numbers<[1], [0], [0], [1], [0, 0, 1, 1], [], []>} : vector<256x4xf32>, vector<4x4xf32>, vector<256x4xf32> -> vector<256x4xf32>
    %50 = arith.addf %44, %49 : vector<256x4xf32>
    %51 = vector.extract_strided_slice %9 {offsets = [2, 1, 0], sizes = [16, 16, 4], strides = [1, 1, 1]} : vector<18x18x4xf32> to vector<16x16x4xf32>
    %52 = vector.shape_cast %51 : vector<16x16x4xf32> to vector<256x4xf32>
    %c7 = arith.constant 7 : index
    %c0_43 = arith.constant 0 : index
    %c0_44 = arith.constant 0 : index
    %53 = vector.load %arg2[%c7, %c0_43, %c0_44] : memref<9x4x4xf32, #tpu.memory_space<vmem>>, vector<1x4x4xf32>
    %54 = vector.shape_cast %53 : vector<1x4x4xf32> to vector<4x4xf32>
    %cst_45 = arith.constant dense<0.000000e+00> : vector<256x4xf32>
    %55 = tpu.matmul %52, %54, %cst_45 {dimension_numbers = #tpu.dot_dimension_numbers<[1], [0], [0], [1], [0, 0, 1, 1], [], []>} : vector<256x4xf32>, vector<4x4xf32>, vector<256x4xf32> -> vector<256x4xf32>
    %56 = arith.addf %50, %55 : vector<256x4xf32>
    %57 = vector.extract_strided_slice %9 {offsets = [2, 2, 0], sizes = [16, 16, 4], strides = [1, 1, 1]} : vector<18x18x4xf32> to vector<16x16x4xf32>
    %58 = vector.shape_cast %57 : vector<16x16x4xf32> to vector<256x4xf32>
    %c8 = arith.constant 8 : index
    %c0_46 = arith.constant 0 : index
    %c0_47 = arith.constant 0 : index
    %59 = vector.load %arg2[%c8, %c0_46, %c0_47] : memref<9x4x4xf32, #tpu.memory_space<vmem>>, vector<1x4x4xf32>
    %60 = vector.shape_cast %59 : vector<1x4x4xf32> to vector<4x4xf32>
    %cst_48 = arith.constant dense<0.000000e+00> : vector<256x4xf32>
    %61 = tpu.matmul %58, %60, %cst_48 {dimension_numbers = #tpu.dot_dimension_numbers<[1], [0], [0], [1], [0, 0, 1, 1], [], []>} : vector<256x4xf32>, vector<4x4xf32>, vector<256x4xf32> -> vector<256x4xf32>
    %62 = arith.addf %56, %61 : vector<256x4xf32>
    %cst_49 = arith.constant dense<0.000000e+00> : vector<4xf32>
    %63 = vector.multi_reduction <add>, %62, %cst_49 [0] : vector<256x4xf32> to vector<4xf32>
    %64 = vector.shape_cast %63 : vector<4xf32> to vector<1x4xf32>
    %cst_50 = arith.constant 3.906250e-03 : f32
    %65 = vector.broadcast %cst_50 : f32 to vector<1x4xf32>
    %66 = arith.mulf %64, %65 : vector<1x4xf32>
    %67 = arith.mulf %62, %62 : vector<256x4xf32>
    %cst_51 = arith.constant dense<0.000000e+00> : vector<4xf32>
    %68 = vector.multi_reduction <add>, %67, %cst_51 [0] : vector<256x4xf32> to vector<4xf32>
    %69 = vector.shape_cast %68 : vector<4xf32> to vector<1x4xf32>
    %cst_52 = arith.constant 3.906250e-03 : f32
    %70 = vector.broadcast %cst_52 : f32 to vector<1x4xf32>
    %71 = arith.mulf %69, %70 : vector<1x4xf32>
    %72 = arith.mulf %66, %66 : vector<1x4xf32>
    %73 = arith.subf %71, %72 : vector<1x4xf32>
    %cst_53 = arith.constant 0.000000e+00 : f32
    %74 = vector.broadcast %cst_53 : f32 to vector<1x4xf32>
    %75 = arith.maximumf %73, %74 : vector<1x4xf32>
    %c0_54 = arith.constant 0 : index
    %c0_55 = arith.constant 0 : index
    %76 = vector.load %arg4[%c0_54, %c0_55] : memref<1x4xf32, #tpu.memory_space<vmem>>, vector<1x4xf32>
    %cst_56 = arith.constant 9.99999974E-6 : f32
    %77 = vector.broadcast %cst_56 : f32 to vector<1x4xf32>
    %78 = arith.addf %75, %77 : vector<1x4xf32>
    %79 = math.rsqrt %78 : vector<1x4xf32>
    %80 = arith.mulf %76, %79 : vector<1x4xf32>
    %c0_57 = arith.constant 0 : index
    %c0_58 = arith.constant 0 : index
    %81 = vector.load %arg5[%c0_57, %c0_58] : memref<1x4xf32, #tpu.memory_space<vmem>>, vector<1x4xf32>
    %82 = arith.mulf %66, %80 : vector<1x4xf32>
    %83 = arith.subf %81, %82 : vector<1x4xf32>
    %84 = vector.broadcast %80 : vector<1x4xf32> to vector<256x4xf32>
    %85 = arith.mulf %62, %84 : vector<256x4xf32>
    %86 = vector.broadcast %83 : vector<1x4xf32> to vector<256x4xf32>
    %87 = arith.addf %85, %86 : vector<256x4xf32>
    %cst_59 = arith.constant 0.000000e+00 : f32
    %88 = vector.broadcast %cst_59 : f32 to vector<256x4xf32>
    %89 = arith.maximumf %87, %88 : vector<256x4xf32>
    %90 = vector.shape_cast %89 : vector<256x4xf32> to vector<16x16x4xf32>
    %c1_60 = arith.constant 1 : index
    %c1_61 = arith.constant 1 : index
    %c0_62 = arith.constant 0 : index
    %91 = vector.load %arg9[%c1_60, %c1_61, %c0_62] : memref<18x18x4xf32, #tpu.memory_space<vmem>>, vector<16x16x4xf32>
    tpu.vector_store %arg9[%c1_60, %c1_61, %c0_62], %90 {strides = array<i32>} : memref<18x18x4xf32, #tpu.memory_space<vmem>>, vector<16x16x4xf32>,
    %c0_63 = arith.constant 0 : index
    %c0_64 = arith.constant 0 : index
    %c0_65 = arith.constant 0 : index
    %92 = vector.load %arg9[%c0_63, %c0_64, %c0_65] : memref<18x18x4xf32, #tpu.memory_space<vmem>>, vector<18x18x4xf32>
    %93 = vector.extract_strided_slice %92 {offsets = [0, 0, 0], sizes = [16, 16, 4], strides = [1, 1, 1]} : vector<18x18x4xf32> to vector<16x16x4xf32>
    %94 = vector.shape_cast %93 : vector<16x16x4xf32> to vector<256x4xf32>
    %c0_66 = arith.constant 0 : index
    %c0_67 = arith.constant 0 : index
    %c0_68 = arith.constant 0 : index
    %95 = vector.load %arg3[%c0_66, %c0_67, %c0_68] : memref<9x4x4xf32, #tpu.memory_space<vmem>>, vector<1x4x4xf32>
    %96 = vector.shape_cast %95 : vector<1x4x4xf32> to vector<4x4xf32>
    %cst_69 = arith.constant dense<0.000000e+00> : vector<256x4xf32>
    %97 = tpu.matmul %94, %96, %cst_69 {dimension_numbers = #tpu.dot_dimension_numbers<[1], [0], [0], [1], [0, 0, 1, 1], [], []>} : vector<256x4xf32>, vector<4x4xf32>, vector<256x4xf32> -> vector<256x4xf32>
    %98 = vector.extract_strided_slice %92 {offsets = [0, 1, 0], sizes = [16, 16, 4], strides = [1, 1, 1]} : vector<18x18x4xf32> to vector<16x16x4xf32>
    %99 = vector.shape_cast %98 : vector<16x16x4xf32> to vector<256x4xf32>
    %c1_70 = arith.constant 1 : index
    %c0_71 = arith.constant 0 : index
    %c0_72 = arith.constant 0 : index
    %100 = vector.load %arg3[%c1_70, %c0_71, %c0_72] : memref<9x4x4xf32, #tpu.memory_space<vmem>>, vector<1x4x4xf32>
    %101 = vector.shape_cast %100 : vector<1x4x4xf32> to vector<4x4xf32>
    %cst_73 = arith.constant dense<0.000000e+00> : vector<256x4xf32>
    %102 = tpu.matmul %99, %101, %cst_73 {dimension_numbers = #tpu.dot_dimension_numbers<[1], [0], [0], [1], [0, 0, 1, 1], [], []>} : vector<256x4xf32>, vector<4x4xf32>, vector<256x4xf32> -> vector<256x4xf32>
    %103 = arith.addf %97, %102 : vector<256x4xf32>
    %104 = vector.extract_strided_slice %92 {offsets = [0, 2, 0], sizes = [16, 16, 4], strides = [1, 1, 1]} : vector<18x18x4xf32> to vector<16x16x4xf32>
    %105 = vector.shape_cast %104 : vector<16x16x4xf32> to vector<256x4xf32>
    %c2_74 = arith.constant 2 : index
    %c0_75 = arith.constant 0 : index
    %c0_76 = arith.constant 0 : index
    %106 = vector.load %arg3[%c2_74, %c0_75, %c0_76] : memref<9x4x4xf32, #tpu.memory_space<vmem>>, vector<1x4x4xf32>
    %107 = vector.shape_cast %106 : vector<1x4x4xf32> to vector<4x4xf32>
    %cst_77 = arith.constant dense<0.000000e+00> : vector<256x4xf32>
    %108 = tpu.matmul %105, %107, %cst_77 {dimension_numbers = #tpu.dot_dimension_numbers<[1], [0], [0], [1], [0, 0, 1, 1], [], []>} : vector<256x4xf32>, vector<4x4xf32>, vector<256x4xf32> -> vector<256x4xf32>
    %109 = arith.addf %103, %108 : vector<256x4xf32>
    %110 = vector.extract_strided_slice %92 {offsets = [1, 0, 0], sizes = [16, 16, 4], strides = [1, 1, 1]} : vector<18x18x4xf32> to vector<16x16x4xf32>
    %111 = vector.shape_cast %110 : vector<16x16x4xf32> to vector<256x4xf32>
    %c3_78 = arith.constant 3 : index
    %c0_79 = arith.constant 0 : index
    %c0_80 = arith.constant 0 : index
    %112 = vector.load %arg3[%c3_78, %c0_79, %c0_80] : memref<9x4x4xf32, #tpu.memory_space<vmem>>, vector<1x4x4xf32>
    %113 = vector.shape_cast %112 : vector<1x4x4xf32> to vector<4x4xf32>
    %cst_81 = arith.constant dense<0.000000e+00> : vector<256x4xf32>
    %114 = tpu.matmul %111, %113, %cst_81 {dimension_numbers = #tpu.dot_dimension_numbers<[1], [0], [0], [1], [0, 0, 1, 1], [], []>} : vector<256x4xf32>, vector<4x4xf32>, vector<256x4xf32> -> vector<256x4xf32>
    %115 = arith.addf %109, %114 : vector<256x4xf32>
    %116 = vector.extract_strided_slice %92 {offsets = [1, 1, 0], sizes = [16, 16, 4], strides = [1, 1, 1]} : vector<18x18x4xf32> to vector<16x16x4xf32>
    %117 = vector.shape_cast %116 : vector<16x16x4xf32> to vector<256x4xf32>
    %c4_82 = arith.constant 4 : index
    %c0_83 = arith.constant 0 : index
    %c0_84 = arith.constant 0 : index
    %118 = vector.load %arg3[%c4_82, %c0_83, %c0_84] : memref<9x4x4xf32, #tpu.memory_space<vmem>>, vector<1x4x4xf32>
    %119 = vector.shape_cast %118 : vector<1x4x4xf32> to vector<4x4xf32>
    %cst_85 = arith.constant dense<0.000000e+00> : vector<256x4xf32>
    %120 = tpu.matmul %117, %119, %cst_85 {dimension_numbers = #tpu.dot_dimension_numbers<[1], [0], [0], [1], [0, 0, 1, 1], [], []>} : vector<256x4xf32>, vector<4x4xf32>, vector<256x4xf32> -> vector<256x4xf32>
    %121 = arith.addf %115, %120 : vector<256x4xf32>
    %122 = vector.extract_strided_slice %92 {offsets = [1, 2, 0], sizes = [16, 16, 4], strides = [1, 1, 1]} : vector<18x18x4xf32> to vector<16x16x4xf32>
    %123 = vector.shape_cast %122 : vector<16x16x4xf32> to vector<256x4xf32>
    %c5_86 = arith.constant 5 : index
    %c0_87 = arith.constant 0 : index
    %c0_88 = arith.constant 0 : index
    %124 = vector.load %arg3[%c5_86, %c0_87, %c0_88] : memref<9x4x4xf32, #tpu.memory_space<vmem>>, vector<1x4x4xf32>
    %125 = vector.shape_cast %124 : vector<1x4x4xf32> to vector<4x4xf32>
    %cst_89 = arith.constant dense<0.000000e+00> : vector<256x4xf32>
    %126 = tpu.matmul %123, %125, %cst_89 {dimension_numbers = #tpu.dot_dimension_numbers<[1], [0], [0], [1], [0, 0, 1, 1], [], []>} : vector<256x4xf32>, vector<4x4xf32>, vector<256x4xf32> -> vector<256x4xf32>
    %127 = arith.addf %121, %126 : vector<256x4xf32>
    %128 = vector.extract_strided_slice %92 {offsets = [2, 0, 0], sizes = [16, 16, 4], strides = [1, 1, 1]} : vector<18x18x4xf32> to vector<16x16x4xf32>
    %129 = vector.shape_cast %128 : vector<16x16x4xf32> to vector<256x4xf32>
    %c6_90 = arith.constant 6 : index
    %c0_91 = arith.constant 0 : index
    %c0_92 = arith.constant 0 : index
    %130 = vector.load %arg3[%c6_90, %c0_91, %c0_92] : memref<9x4x4xf32, #tpu.memory_space<vmem>>, vector<1x4x4xf32>
    %131 = vector.shape_cast %130 : vector<1x4x4xf32> to vector<4x4xf32>
    %cst_93 = arith.constant dense<0.000000e+00> : vector<256x4xf32>
    %132 = tpu.matmul %129, %131, %cst_93 {dimension_numbers = #tpu.dot_dimension_numbers<[1], [0], [0], [1], [0, 0, 1, 1], [], []>} : vector<256x4xf32>, vector<4x4xf32>, vector<256x4xf32> -> vector<256x4xf32>
    %133 = arith.addf %127, %132 : vector<256x4xf32>
    %134 = vector.extract_strided_slice %92 {offsets = [2, 1, 0], sizes = [16, 16, 4], strides = [1, 1, 1]} : vector<18x18x4xf32> to vector<16x16x4xf32>
    %135 = vector.shape_cast %134 : vector<16x16x4xf32> to vector<256x4xf32>
    %c7_94 = arith.constant 7 : index
    %c0_95 = arith.constant 0 : index
    %c0_96 = arith.constant 0 : index
    %136 = vector.load %arg3[%c7_94, %c0_95, %c0_96] : memref<9x4x4xf32, #tpu.memory_space<vmem>>, vector<1x4x4xf32>
    %137 = vector.shape_cast %136 : vector<1x4x4xf32> to vector<4x4xf32>
    %cst_97 = arith.constant dense<0.000000e+00> : vector<256x4xf32>
    %138 = tpu.matmul %135, %137, %cst_97 {dimension_numbers = #tpu.dot_dimension_numbers<[1], [0], [0], [1], [0, 0, 1, 1], [], []>} : vector<256x4xf32>, vector<4x4xf32>, vector<256x4xf32> -> vector<256x4xf32>
    %139 = arith.addf %133, %138 : vector<256x4xf32>
    %140 = vector.extract_strided_slice %92 {offsets = [2, 2, 0], sizes = [16, 16, 4], strides = [1, 1, 1]} : vector<18x18x4xf32> to vector<16x16x4xf32>
    %141 = vector.shape_cast %140 : vector<16x16x4xf32> to vector<256x4xf32>
    %c8_98 = arith.constant 8 : index
    %c0_99 = arith.constant 0 : index
    %c0_100 = arith.constant 0 : index
    %142 = vector.load %arg3[%c8_98, %c0_99, %c0_100] : memref<9x4x4xf32, #tpu.memory_space<vmem>>, vector<1x4x4xf32>
    %143 = vector.shape_cast %142 : vector<1x4x4xf32> to vector<4x4xf32>
    %cst_101 = arith.constant dense<0.000000e+00> : vector<256x4xf32>
    %144 = tpu.matmul %141, %143, %cst_101 {dimension_numbers = #tpu.dot_dimension_numbers<[1], [0], [0], [1], [0, 0, 1, 1], [], []>} : vector<256x4xf32>, vector<4x4xf32>, vector<256x4xf32> -> vector<256x4xf32>
    %145 = arith.addf %139, %144 : vector<256x4xf32>
    %cst_102 = arith.constant dense<0.000000e+00> : vector<4xf32>
    %146 = vector.multi_reduction <add>, %145, %cst_102 [0] : vector<256x4xf32> to vector<4xf32>
    %147 = vector.shape_cast %146 : vector<4xf32> to vector<1x4xf32>
    %cst_103 = arith.constant 3.906250e-03 : f32
    %148 = vector.broadcast %cst_103 : f32 to vector<1x4xf32>
    %149 = arith.mulf %147, %148 : vector<1x4xf32>
    %150 = arith.mulf %145, %145 : vector<256x4xf32>
    %cst_104 = arith.constant dense<0.000000e+00> : vector<4xf32>
    %151 = vector.multi_reduction <add>, %150, %cst_104 [0] : vector<256x4xf32> to vector<4xf32>
    %152 = vector.shape_cast %151 : vector<4xf32> to vector<1x4xf32>
    %cst_105 = arith.constant 3.906250e-03 : f32
    %153 = vector.broadcast %cst_105 : f32 to vector<1x4xf32>
    %154 = arith.mulf %152, %153 : vector<1x4xf32>
    %155 = arith.mulf %149, %149 : vector<1x4xf32>
    %156 = arith.subf %154, %155 : vector<1x4xf32>
    %cst_106 = arith.constant 0.000000e+00 : f32
    %157 = vector.broadcast %cst_106 : f32 to vector<1x4xf32>
    %158 = arith.maximumf %156, %157 : vector<1x4xf32>
    %c0_107 = arith.constant 0 : index
    %c0_108 = arith.constant 0 : index
    %159 = vector.load %arg6[%c0_107, %c0_108] : memref<1x4xf32, #tpu.memory_space<vmem>>, vector<1x4xf32>
    %cst_109 = arith.constant 9.99999974E-6 : f32
    %160 = vector.broadcast %cst_109 : f32 to vector<1x4xf32>
    %161 = arith.addf %158, %160 : vector<1x4xf32>
    %162 = math.rsqrt %161 : vector<1x4xf32>
    %163 = arith.mulf %159, %162 : vector<1x4xf32>
    %c0_110 = arith.constant 0 : index
    %c0_111 = arith.constant 0 : index
    %164 = vector.load %arg7[%c0_110, %c0_111] : memref<1x4xf32, #tpu.memory_space<vmem>>, vector<1x4xf32>
    %165 = arith.mulf %149, %163 : vector<1x4xf32>
    %166 = arith.subf %164, %165 : vector<1x4xf32>
    %167 = vector.broadcast %163 : vector<1x4xf32> to vector<256x4xf32>
    %168 = arith.mulf %145, %167 : vector<256x4xf32>
    %169 = vector.broadcast %166 : vector<1x4xf32> to vector<256x4xf32>
    %170 = arith.addf %168, %169 : vector<256x4xf32>
    %171 = vector.shape_cast %170 : vector<256x4xf32> to vector<16x16x4xf32>
    %172 = arith.addf %7, %171 : vector<16x16x4xf32>
    %c0_112 = arith.constant 0 : index
    %c0_113 = arith.constant 0 : index
    %c0_114 = arith.constant 0 : index
    %c0_115 = arith.constant 0 : index
    %173 = vector.load %arg8[%c0_112, %c0_113, %c0_114, %c0_115] : memref<1x16x16x4xf32, #tpu.memory_space<vmem>>, vector<1x16x16x4xf32>
    %174 = vector.shape_cast %173 : vector<1x16x16x4xf32> to vector<16x16x4xf32>
    %175 = vector.shape_cast %172 : vector<16x16x4xf32> to vector<1x16x16x4xf32>
    tpu.vector_store %arg8[%c0_112, %c0_113, %c0_114, %c0_115], %175 {strides = array<i32>} : memref<1x16x16x4xf32, #tpu.memory_space<vmem>>, vector<1x16x16x4xf32>,
    return
  }
  func.func @transform_0(%arg0: i32) -> (i32, i32, i32, i32) {
    %c0_i32 = arith.constant 0 : i32
    %c0_i32_0 = arith.constant 0 : i32
    %c0_i32_1 = arith.constant 0 : i32
    %c0_i32_2 = arith.constant 0 : i32
    return %arg0, %c0_i32, %c0_i32_0, %c0_i32_1 : i32, i32, i32, i32
  }
  func.func @transform_1(%arg0: i32) -> (i32, i32, i32) {
    %c0_i32 = arith.constant 0 : i32
    %c0_i32_0 = arith.constant 0 : i32
    %c0_i32_1 = arith.constant 0 : i32
    %c0_i32_2 = arith.constant 0 : i32
    return %c0_i32, %c0_i32_0, %c0_i32_1 : i32, i32, i32
  }
  func.func @transform_2(%arg0: i32) -> (i32, i32, i32) {
    %c0_i32 = arith.constant 0 : i32
    %c0_i32_0 = arith.constant 0 : i32
    %c0_i32_1 = arith.constant 0 : i32
    %c0_i32_2 = arith.constant 0 : i32
    return %c0_i32, %c0_i32_0, %c0_i32_1 : i32, i32, i32
  }
  func.func @transform_3(%arg0: i32) -> (i32, i32) {
    %c0_i32 = arith.constant 0 : i32
    %c0_i32_0 = arith.constant 0 : i32
    %c0_i32_1 = arith.constant 0 : i32
    return %c0_i32, %c0_i32_0 : i32, i32
  }
  func.func @transform_4(%arg0: i32) -> (i32, i32) {
    %c0_i32 = arith.constant 0 : i32
    %c0_i32_0 = arith.constant 0 : i32
    %c0_i32_1 = arith.constant 0 : i32
    return %c0_i32, %c0_i32_0 : i32, i32
  }
  func.func @transform_5(%arg0: i32) -> (i32, i32) {
    %c0_i32 = arith.constant 0 : i32
    %c0_i32_0 = arith.constant 0 : i32
    %c0_i32_1 = arith.constant 0 : i32
    return %c0_i32, %c0_i32_0 : i32, i32
  }
  func.func @transform_6(%arg0: i32) -> (i32, i32) {
    %c0_i32 = arith.constant 0 : i32
    %c0_i32_0 = arith.constant 0 : i32
    %c0_i32_1 = arith.constant 0 : i32
    return %c0_i32, %c0_i32_0 : i32, i32
  }
  func.func @transform_7(%arg0: i32) -> (i32, i32, i32, i32) {
    %c0_i32 = arith.constant 0 : i32
    %c0_i32_0 = arith.constant 0 : i32
    %c0_i32_1 = arith.constant 0 : i32
    %c0_i32_2 = arith.constant 0 : i32
    return %arg0, %c0_i32, %c0_i32_0, %c0_i32_1 : i32, i32, i32, i32
  }
}

</mosaic_0001>

<llo_original>
// kernel: tpu_custom_call.1
$region0: #{tpu_custom_call.1}
  #allocation0 [shape = 'u32[]', space=smem, size = 0x4, offset = 0x4, fixed_abs, tag = 'smem constant byte address 0x4 - core index']
  #allocation1 [shape = 'u32[144,128]{1,0:T(1,128)}', space=vmem, size = 0x12000, scoped, tag = 'internal scratch']
  #allocation2 [shape = 'f32[18,18,4]{2,1,0:T(8,128)}', space=vmem, size = 0x36000, scoped, tag = 'scratch operand']
  %s0 = inlined_call_operand.vmem [shape: f32[2,16,16,4], index: 0, kind: input, shape index: {}]
  %s1 = inlined_call_operand.vmem [shape: f32[9,4,4], index: 1, kind: input, shape index: {}]
  %s2 = inlined_call_operand.vmem [shape: f32[9,4,4], index: 2, kind: input, shape index: {}]
  %s3 = inlined_call_operand.vmem [shape: f32[1,4], index: 3, kind: input, shape index: {}]
  %s4 = inlined_call_operand.vmem [shape: f32[1,4], index: 4, kind: input, shape index: {}]
  %s5 = inlined_call_operand.vmem [shape: f32[1,4], index: 5, kind: input, shape index: {}]
  %s6 = inlined_call_operand.vmem [shape: f32[1,4], index: 6, kind: input, shape index: {}]
  %s7 = inlined_call_operand.vmem [shape: f32[2,16,16,4], index: 7, kind: output, shape index: {}]
  %s8 = sld [smem:[#allocation0]]
  $region61: #{tpu_custom_call.1} parent=0
    _
  %s10 = ssub.s32 1, %s8
  %s11 = scalar_select 0, %s10, %s8
  loop: start=0, step=1, limit=4
  $region2: #{tpu_custom_call.1} parent=0 // loop_pre_header
    _
  $region3: #{tpu_custom_call.1} parent=0 // loop_header
    %s13 = sphi 0, %s17
    %p14 = scmp.ge.s32.totalorder %s13, 4
    %s23 = sphi 0, %s25
    %s26 = sphi 0, %s23
    %s27 = sphi 0, %s26
    %s43 = sphi 0, %s27
    %s47 = sphi 0, %s47
    %s49 = sphi 0, %s47
    %s50 = sphi 0, %s49
    %s64 = sphi 0, %s50
    %s68 = sphi 0, %s68
    %s70 = sphi 0, %s68
    %s71 = sphi 0, %s70
    %s85 = sphi 0, %s71
    %s89 = sphi 0, %s89
    %s91 = sphi 0, %s89
    %s92 = sphi 0, %s91
    %s106 = sphi 0, %s92
    %s110 = sphi 0, %s110
    %s112 = sphi 0, %s110
    %s113 = sphi 0, %s112
    %s127 = sphi 0, %s113
    %s131 = sphi 0, %s131
    %s133 = sphi 0, %s131
    %s134 = sphi 0, %s133
    %s148 = sphi 0, %s134
    %s152 = sphi 0, %s152
    %s154 = sphi 0, %s152
    %s155 = sphi 0, %s154
    %s169 = sphi 0, %s155
    %s175 = sphi 0, %s177
    %s178 = sphi 0, %s175
    %s179 = sphi 0, %s178
    %s195 = sphi 0, %s179
  $region4: #{tpu_custom_call.1} parent=0 // loop_header_branch
    %16 = sbr.rel (%p14) target = $region8
  $region5: #{tpu_custom_call.1} parent=0 // loop_body
    %s18 = ssub.s32 %s13, 1
    %s19 = ssub.s32 %s13, 2
    %s20 = sadd.s32 %s13, 1
    %s21 = ssub.s32 %s13, %s20
    %p22 = scmp.eq.s32.totalorder %s21, 0
    %s24 = sadd.s32 %s23, 1
    %s25 = scalar_select %p22, %s23, %s24
    %p28 = pneg %p22
    %p29 = scmp.eq.s32.totalorder %s13, 1
    %p30 = por %p28, %p29
    %p31 = scmp.ne.s32.totalorder %s23, %s26
    %p32 = scmp.eq.s32.totalorder %s13, 0
    %p33 = por %p31, %p32
    %p34 = scmp.ne.s32.totalorder %s23, %s26
    %p35 = scmp.eq.s32.totalorder %s18, 1
    %p36 = por %p34, %p35
    %p37 = scmp.ne.s32.totalorder %s26, %s27
    %p38 = scmp.eq.s32.totalorder %s18, 0
    %p39 = por %p37, %p38
    %p40 = scmp.ne.s32.totalorder %s26, %s27
    %p41 = scmp.eq.s32.totalorder %s19, 1
    %p42 = por %p40, %p41
    %p44 = scmp.ne.s32.totalorder %s27, %s43
    %p45 = scmp.eq.s32.totalorder %s19, 0
    %p46 = por %p44, %p45
    %s48 = sadd.s32 %s47, 1
    %p51 = scmp.eq.s32.totalorder %s13, 1
    %p52 = scmp.ne.s32.totalorder %s47, %s49
    %p53 = scmp.eq.s32.totalorder %s13, 0
    %p54 = por %p52, %p53
    %p55 = scmp.ne.s32.totalorder %s47, %s49
    %p56 = scmp.eq.s32.totalorder %s18, 1
    %p57 = por %p55, %p56
    %p58 = scmp.ne.s32.totalorder %s49, %s50
    %p59 = scmp.eq.s32.totalorder %s18, 0
    %p60 = por %p58, %p59
    %p61 = scmp.ne.s32.totalorder %s49, %s50
    %p62 = scmp.eq.s32.totalorder %s19, 1
    %p63 = por %p61, %p62
    %p65 = scmp.ne.s32.totalorder %s50, %s64
    %p66 = scmp.eq.s32.totalorder %s19, 0
    %p67 = por %p65, %p66
    %s69 = sadd.s32 %s68, 1
    %p72 = scmp.eq.s32.totalorder %s13, 1
    %p73 = scmp.ne.s32.totalorder %s68, %s70
    %p74 = scmp.eq.s32.totalorder %s13, 0
    %p75 = por %p73, %p74
    %p76 = scmp.ne.s32.totalorder %s68, %s70
    %p77 = scmp.eq.s32.totalorder %s18, 1
    %p78 = por %p76, %p77
    %p79 = scmp.ne.s32.totalorder %s70, %s71
    %p80 = scmp.eq.s32.totalorder %s18, 0
    %p81 = por %p79, %p80
    %p82 = scmp.ne.s32.totalorder %s70, %s71
    %p83 = scmp.eq.s32.totalorder %s19, 1
    %p84 = por %p82, %p83
    %p86 = scmp.ne.s32.totalorder %s71, %s85
    %p87 = scmp.eq.s32.totalorder %s19, 0
    %p88 = por %p86, %p87
    %s90 = sadd.s32 %s89, 1
    %p93 = scmp.eq.s32.totalorder %s13, 1
    %p94 = scmp.ne.s32.totalorder %s89, %s91
    %p95 = scmp.eq.s32.totalorder %s13, 0
    %p96 = por %p94, %p95
    %p97 = scmp.ne.s32.totalorder %s89, %s91
    %p98 = scmp.eq.s32.totalorder %s18, 1
    %p99 = por %p97, %p98
    %p100 = scmp.ne.s32.totalorder %s91, %s92
    %p101 = scmp.eq.s32.totalorder %s18, 0
    %p102 = por %p100, %p101
    %p103 = scmp.ne.s32.totalorder %s91, %s92
    %p104 = scmp.eq.s32.totalorder %s19, 1
    %p105 = por %p103, %p104
    %p107 = scmp.ne.s32.totalorder %s92, %s106
    %p108 = scmp.eq.s32.totalorder %s19, 0
    %p109 = por %p107, %p108
    %s111 = sadd.s32 %s110, 1
    %p114 = scmp.eq.s32.totalorder %s13, 1
    %p115 = scmp.ne.s32.totalorder %s110, %s112
    %p116 = scmp.eq.s32.totalorder %s13, 0
    %p117 = por %p115, %p116
    %p118 = scmp.ne.s32.totalorder %s110, %s112
    %p119 = scmp.eq.s32.totalorder %s18, 1
    %p120 = por %p118, %p119
    %p121 = scmp.ne.s32.totalorder %s112, %s113
    %p122 = scmp.eq.s32.totalorder %s18, 0
    %p123 = por %p121, %p122
    %p124 = scmp.ne.s32.totalorder %s112, %s113
    %p125 = scmp.eq.s32.totalorder %s19, 1
    %p126 = por %p124, %p125
    %p128 = scmp.ne.s32.totalorder %s113, %s127
    %p129 = scmp.eq.s32.totalorder %s19, 0
    %p130 = por %p128, %p129
    %s132 = sadd.s32 %s131, 1
    %p135 = scmp.eq.s32.totalorder %s13, 1
    %p136 = scmp.ne.s32.totalorder %s131, %s133
    %p137 = scmp.eq.s32.totalorder %s13, 0
    %p138 = por %p136, %p137
    %p139 = scmp.ne.s32.totalorder %s131, %s133
    %p140 = scmp.eq.s32.totalorder %s18, 1
    %p141 = por %p139, %p140
    %p142 = scmp.ne.s32.totalorder %s133, %s134
    %p143 = scmp.eq.s32.totalorder %s18, 0
    %p144 = por %p142, %p143
    %p145 = scmp.ne.s32.totalorder %s133, %s134
    %p146 = scmp.eq.s32.totalorder %s19, 1
    %p147 = por %p145, %p146
    %p149 = scmp.ne.s32.totalorder %s134, %s148
    %p150 = scmp.eq.s32.totalorder %s19, 0
    %p151 = por %p149, %p150
    %s153 = sadd.s32 %s152, 1
    %p156 = scmp.eq.s32.totalorder %s13, 1
    %p157 = scmp.ne.s32.totalorder %s152, %s154
    %p158 = scmp.eq.s32.totalorder %s13, 0
    %p159 = por %p157, %p158
    %p160 = scmp.ne.s32.totalorder %s152, %s154
    %p161 = scmp.eq.s32.totalorder %s18, 1
    %p162 = por %p160, %p161
    %p163 = scmp.ne.s32.totalorder %s154, %s155
    %p164 = scmp.eq.s32.totalorder %s18, 0
    %p165 = por %p163, %p164
    %p166 = scmp.ne.s32.totalorder %s154, %s155
    %p167 = scmp.eq.s32.totalorder %s19, 1
    %p168 = por %p166, %p167
    %p170 = scmp.ne.s32.totalorder %s155, %s169
    %p171 = scmp.eq.s32.totalorder %s19, 0
    %p172 = por %p170, %p171
    %s173 = ssub.s32 %s13, %s20
    %p174 = scmp.eq.s32.totalorder %s173, 0
    %s176 = sadd.s32 %s175, 1
    %s177 = scalar_select %p174, %s175, %s176
    %p180 = pneg %p174
    %p181 = scmp.eq.s32.totalorder %s13, 1
    %p182 = por %p180, %p181
    %p183 = scmp.ne.s32.totalorder %s175, %s178
    %p184 = scmp.eq.s32.totalorder %s13, 0
    %p185 = por %p183, %p184
    %p186 = scmp.ne.s32.totalorder %s175, %s178
    %p187 = scmp.eq.s32.totalorder %s18, 1
    %p188 = por %p186, %p187
    %p189 = scmp.ne.s32.totalorder %s178, %s179
    %p190 = scmp.eq.s32.totalorder %s18, 0
    %p191 = por %p189, %p190
    %p192 = scmp.ne.s32.totalorder %s178, %s179
    %p193 = scmp.eq.s32.totalorder %s19, 1
    %p194 = por %p192, %p193
    %p196 = scmp.ne.s32.totalorder %s179, %s195
    %p197 = scmp.eq.s32.totalorder %s19, 0
    %p198 = por %p196, %p197
    %p199 = scmp.le.s32.totalorder 1, %s13
    %p200 = scmp.lt.s32.totalorder %s13, 3
    %p201 = pnand %p199, %p200
    %p202 = pneg %p201
    // Predicated region
    $region9: #{tpu_custom_call.1} parent=5 // pred_check
      _
    $region10: #{tpu_custom_call.1} parent=5 // pred_check_branch
      %204 = sbr.rel (%p201) target = $region12
    $region11: #{tpu_custom_call.1} parent=5 // pred_region
      %s205 = ssub.s32 %s13, 1
      // Predicated region
      $region13: #{tpu_custom_call.1} parent=11 // pred_check
        %p206 = pneg %p60
      $region14: #{tpu_custom_call.1} parent=11 // pred_check_branch
        %208 = sbr.rel (%p206) target = $region16
      $region15: #{tpu_custom_call.1} parent=11 // pred_region
        _
      $region16: #{tpu_custom_call.1} parent=11 // pred_fallthru
        _
      // Predicated region
      $region17: #{tpu_custom_call.1} parent=11 // pred_check
        %p209 = pneg %p81
      $region18: #{tpu_custom_call.1} parent=11 // pred_check_branch
        %211 = sbr.rel (%p209) target = $region20
      $region19: #{tpu_custom_call.1} parent=11 // pred_region
        _
      $region20: #{tpu_custom_call.1} parent=11 // pred_fallthru
        _
      // Predicated region
      $region21: #{tpu_custom_call.1} parent=11 // pred_check
        %p212 = pneg %p102
      $region22: #{tpu_custom_call.1} parent=11 // pred_check_branch
        %214 = sbr.rel (%p212) target = $region24
      $region23: #{tpu_custom_call.1} parent=11 // pred_region
        _
      $region24: #{tpu_custom_call.1} parent=11 // pred_fallthru
        _
      // Predicated region
      $region25: #{tpu_custom_call.1} parent=11 // pred_check
        %p215 = pneg %p123
      $region26: #{tpu_custom_call.1} parent=11 // pred_check_branch
        %217 = sbr.rel (%p215) target = $region28
      $region27: #{tpu_custom_call.1} parent=11 // pred_region
        _
      $region28: #{tpu_custom_call.1} parent=11 // pred_fallthru
        _
      // Predicated region
      $region29: #{tpu_custom_call.1} parent=11 // pred_check
        %p218 = pneg %p144
      $region30: #{tpu_custom_call.1} parent=11 // pred_check_branch
        %220 = sbr.rel (%p218) target = $region32
      $region31: #{tpu_custom_call.1} parent=11 // pred_region
        _
      $region32: #{tpu_custom_call.1} parent=11 // pred_fallthru
        _
      // Predicated region
      $region33: #{tpu_custom_call.1} parent=11 // pred_check
        %p221 = pneg %p165
      $region34: #{tpu_custom_call.1} parent=11 // pred_check_branch
        %223 = sbr.rel (%p221) target = $region36
      $region35: #{tpu_custom_call.1} parent=11 // pred_region
        _
      $region36: #{tpu_custom_call.1} parent=11 // pred_fallthru
        _
    $region12: #{tpu_custom_call.1} parent=5 // pred_fallthru
      _
    %p224 = scmp.lt.s32.totalorder %s13, 2
    // Predicated region
    $region37: #{tpu_custom_call.1} parent=5 // pred_check
      %p225 = pneg %p224
    $region38: #{tpu_custom_call.1} parent=5 // pred_check_branch
      %227 = sbr.rel (%p225) target = $region40
    $region39: #{tpu_custom_call.1} parent=5 // pred_region
      // Predicated region
      $region41: #{tpu_custom_call.1} parent=39 // pred_check
        %p228 = pneg %p33
      $region42: #{tpu_custom_call.1} parent=39 // pred_check_branch
        %230 = sbr.rel (%p228) target = $region44
      $region43: #{tpu_custom_call.1} parent=39 // pred_region
        %p231 = scmp.lt.s32.totalorder %s13, 1
        %s232 = scalar_select %p231, %s13, 1
        %s233 = smul.addr %s232, 32
        %s234 = smul.addr %s233, 8
        %s235 = scalar_lea.vmem %s0, %s234
      $region44: #{tpu_custom_call.1} parent=39 // pred_fallthru
        _
    $region40: #{tpu_custom_call.1} parent=5 // pred_fallthru
      _
    %p236 = scmp.le.s32.totalorder 1, %s13
    %p237 = scmp.lt.s32.totalorder %s13, 3
    %p238 = pnand %p236, %p237
    %p239 = pneg %p238
    // Predicated region
    $region45: #{tpu_custom_call.1} parent=5 // pred_check
      _
    $region46: #{tpu_custom_call.1} parent=5 // pred_check_branch
      %241 = sbr.rel (%p238) target = $region48
    $region47: #{tpu_custom_call.1} parent=5 // pred_region
      %s242 = ssub.s32 %s13, 1
      %p243 = scmp.lt.s32.totalorder %s18, 1
      %s244 = scalar_select %p243, %s18, 1
      %s245 = smul.addr %s244, 32
      %s246 = smul.addr %s245, 8
      %s247 = scalar_lea.vmem %s0, %s246
      %p248 = pneg %p39
      %p249 = pneg %p36
      %p250 = pneg %p60
      %p251 = pneg %p57
      %p252 = pneg %p81
      %p253 = pneg %p78
      %p254 = pneg %p102
      %p255 = pneg %p99
      %p256 = pneg %p123
      %p257 = pneg %p120
      %p258 = pneg %p144
      %p259 = pneg %p141
      %p260 = pneg %p165
      %p261 = pneg %p162
      %p262 = pneg %p191
      %p263 = pneg %p188
      %p264 = scmp.lt.s32.totalorder %s18, 1
      %s265 = scalar_select %p264, %s18, 1
      %s266 = smul.addr %s265, 32
      %s267 = smul.addr %s266, 8
      %s268 = scalar_lea.vmem %s7, %s267
      %p269 = scmp.lt.s32.totalorder %s18, 1
      %s270 = scalar_select %p269, %s18, 1
      %s271 = smul.addr %s270, 32
      %s272 = smul.addr %s271, 8
      %s273 = scalar_lea.vmem %s0, %s272
      %p274 = scmp.lt.s32.totalorder %s18, 1
      %s275 = scalar_select %p274, %s18, 1
      %s276 = smul.addr %s275, 32
      %s277 = smul.addr %s276, 8
      %s278 = scalar_lea.vmem %s7, %s277
      %vm279 = vcmask 31744
      %280 = vst.msk [vmem:[#allocation2] sm:$0xff] %vm279, 0.0
      %281 = vst.msk [vmem:[#allocation2 + $0x8] sm:$0xff] %vm279, 0.0
      %vm282 = vcmask 25600
      %283 = vst.msk [vmem:[#allocation2 + $0x10] sm:$0x3] %vm282, 0.0
      %s284 = scalar_lea.vmem [#allocation2], 408
      %285 = vst.msk [vmem:[%s284] sm:$0xff] %vm279, 0.0
      %286 = vst.msk [vmem:[%s284 + $0x8] sm:$0xff] %vm279, 0.0
      %287 = vst.msk [vmem:[%s284 + $0x10] sm:$0x3] %vm282, 0.0
      %vm288 = vcmask 24576
      %289 = vst.msk [vmem:[#allocation2] sm:$0x1] %vm288, 0.0
      %290 = vst.msk [vmem:[#allocation2 + $0x18] sm:$0x1] %vm288, 0.0
      %291 = vst.msk [vmem:[#allocation2 + $0x30] sm:$0x1] %vm288, 0.0
      %292 = vst.msk [vmem:[#allocation2 + $0x48] sm:$0x1] %vm288, 0.0
      %293 = vst.msk [vmem:[#allocation2 + $0x60] sm:$0x1] %vm288, 0.0
      %294 = vst.msk [vmem:[#allocation2 + $0x78] sm:$0x1] %vm288, 0.0
      %295 = vst.msk [vmem:[#allocation2 + $0x90] sm:$0x1] %vm288, 0.0
      %296 = vst.msk [vmem:[#allocation2 + $0xa8] sm:$0x1] %vm288, 0.0
      %297 = vst.msk [vmem:[#allocation2 + $0xc0] sm:$0x1] %vm288, 0.0
      %298 = vst.msk [vmem:[#allocation2 + $0xd8] sm:$0x1] %vm288, 0.0
      %299 = vst.msk [vmem:[#allocation2 + $0xf0] sm:$0x1] %vm288, 0.0
      %300 = vst.msk [vmem:[#allocation2 + $0x108] sm:$0x1] %vm288, 0.0
      %301 = vst.msk [vmem:[#allocation2 + $0x120] sm:$0x1] %vm288, 0.0
      %302 = vst.msk [vmem:[#allocation2 + $0x138] sm:$0x1] %vm288, 0.0
      %303 = vst.msk [vmem:[#allocation2 + $0x150] sm:$0x1] %vm288, 0.0
      %304 = vst.msk [vmem:[#allocation2 + $0x168] sm:$0x1] %vm288, 0.0
      %305 = vst.msk [vmem:[#allocation2 + $0x180] sm:$0x1] %vm288, 0.0
      %306 = vst.msk [vmem:[#allocation2 + $0x198] sm:$0x1] %vm288, 0.0
      %307 = vst.msk [vmem:[#allocation2 + $0x11] sm:$0x1] %vm288, 0.0
      %308 = vst.msk [vmem:[#allocation2 + $0x29] sm:$0x1] %vm288, 0.0
      %309 = vst.msk [vmem:[#allocation2 + $0x41] sm:$0x1] %vm288, 0.0
      %310 = vst.msk [vmem:[#allocation2 + $0x59] sm:$0x1] %vm288, 0.0
      %311 = vst.msk [vmem:[#allocation2 + $0x71] sm:$0x1] %vm288, 0.0
      %312 = vst.msk [vmem:[#allocation2 + $0x89] sm:$0x1] %vm288, 0.0
      %313 = vst.msk [vmem:[#allocation2 + $0xa1] sm:$0x1] %vm288, 0.0
      %314 = vst.msk [vmem:[#allocation2 + $0xb9] sm:$0x1] %vm288, 0.0
      %315 = vst.msk [vmem:[#allocation2 + $0xd1] sm:$0x1] %vm288, 0.0
      %316 = vst.msk [vmem:[#allocation2 + $0xe9] sm:$0x1] %vm288, 0.0
      %317 = vst.msk [vmem:[#allocation2 + $0x101] sm:$0x1] %vm288, 0.0
      %318 = vst.msk [vmem:[#allocation2 + $0x119] sm:$0x1] %vm288, 0.0
      %319 = vst.msk [vmem:[#allocation2 + $0x131] sm:$0x1] %vm288, 0.0
      %320 = vst.msk [vmem:[#allocation2 + $0x149] sm:$0x1] %vm288, 0.0
      %321 = vst.msk [vmem:[#allocation2 + $0x161] sm:$0x1] %vm288, 0.0
      %322 = vst.msk [vmem:[#allocation2 + $0x179] sm:$0x1] %vm288, 0.0
      %323 = vst.msk [vmem:[#allocation2 + $0x191] sm:$0x1] %vm288, 0.0
      %324 = vst.msk [vmem:[#allocation2 + $0x1a9] sm:$0x1] %vm288, 0.0
      %v325 = vld [vmem:[%s273] sm:$0xff]
      %v326 = vld [vmem:[%s273 + $0x8] sm:$0xff]
      %v327 = vld [vmem:[%s273 + $0x10] sm:$0xff]
      %v328 = vld [vmem:[%s273 + $0x18] sm:$0xff]
      %v329 = vld [vmem:[%s273 + $0x20] sm:$0xff]
      %v330 = vld [vmem:[%s273 + $0x28] sm:$0xff]
      %v331 = vld [vmem:[%s273 + $0x30] sm:$0xff]
      %v332 = vld [vmem:[%s273 + $0x38] sm:$0xff]
      %v333 = vld [vmem:[%s273 + $0x40] sm:$0xff]
      %v334 = vld [vmem:[%s273 + $0x48] sm:$0xff]
      %v335 = vld [vmem:[%s273 + $0x50] sm:$0xff]
      %v336 = vld [vmem:[%s273 + $0x58] sm:$0xff]
      %v337 = vld [vmem:[%s273 + $0x60] sm:$0xff]
      %v338 = vld [vmem:[%s273 + $0x68] sm:$0xff]
      %v339 = vld [vmem:[%s273 + $0x70] sm:$0xff]
      %v340 = vld [vmem:[%s273 + $0x78] sm:$0xff]
      %v341 = vld [vmem:[%s273 + $0x80] sm:$0xff]
      %v342 = vld [vmem:[%s273 + $0x88] sm:$0xff]
      %v343 = vld [vmem:[%s273 + $0x90] sm:$0xff]
      %v344 = vld [vmem:[%s273 + $0x98] sm:$0xff]
      %v345 = vld [vmem:[%s273 + $0xa0] sm:$0xff]
      %v346 = vld [vmem:[%s273 + $0xa8] sm:$0xff]
      %v347 = vld [vmem:[%s273 + $0xb0] sm:$0xff]
      %v348 = vld [vmem:[%s273 + $0xb8] sm:$0xff]
      %v349 = vld [vmem:[%s273 + $0xc0] sm:$0xff]
      %v350 = vld [vmem:[%s273 + $0xc8] sm:$0xff]
      %v351 = vld [vmem:[%s273 + $0xd0] sm:$0xff]
      %v352 = vld [vmem:[%s273 + $0xd8] sm:$0xff]
      %v353 = vld [vmem:[%s273 + $0xe0] sm:$0xff]
      %v354 = vld [vmem:[%s273 + $0xe8] sm:$0xff]
      %v355 = vld [vmem:[%s273 + $0xf0] sm:$0xff]
      %v356 = vld [vmem:[%s273 + $0xf8] sm:$0xff]
      %s357 = scalar_lea.vmem [#allocation2], 24
      %358 = vst.msk [vmem:[%s357 + $0x1] sm:$0xff] %vm279, %v325
      %359 = vst.msk [vmem:[%s357 + $0x9] sm:$0xff] %vm279, %v326
      %360 = vst.msk [vmem:[%s357 + $0x19] sm:$0xff] %vm279, %v327
      %361 = vst.msk [vmem:[%s357 + $0x21] sm:$0xff] %vm279, %v328
      %362 = vst.msk [vmem:[%s357 + $0x31] sm:$0xff] %vm279, %v329
      %363 = vst.msk [vmem:[%s357 + $0x39] sm:$0xff] %vm279, %v330
      %364 = vst.msk [vmem:[%s357 + $0x49] sm:$0xff] %vm279, %v331
      %365 = vst.msk [vmem:[%s357 + $0x51] sm:$0xff] %vm279, %v332
      %366 = vst.msk [vmem:[%s357 + $0x61] sm:$0xff] %vm279, %v333
      %367 = vst.msk [vmem:[%s357 + $0x69] sm:$0xff] %vm279, %v334
      %368 = vst.msk [vmem:[%s357 + $0x79] sm:$0xff] %vm279, %v335
      %369 = vst.msk [vmem:[%s357 + $0x81] sm:$0xff] %vm279, %v336
      %370 = vst.msk [vmem:[%s357 + $0x91] sm:$0xff] %vm279, %v337
      %371 = vst.msk [vmem:[%s357 + $0x99] sm:$0xff] %vm279, %v338
      %372 = vst.msk [vmem:[%s357 + $0xa9] sm:$0xff] %vm279, %v339
      %373 = vst.msk [vmem:[%s357 + $0xb1] sm:$0xff] %vm279, %v340
      %374 = vst.msk [vmem:[%s357 + $0xc1] sm:$0xff] %vm279, %v341
      %375 = vst.msk [vmem:[%s357 + $0xc9] sm:$0xff] %vm279, %v342
      %376 = vst.msk [vmem:[%s357 + $0xd9] sm:$0xff] %vm279, %v343
      %377 = vst.msk [vmem:[%s357 + $0xe1] sm:$0xff] %vm279, %v344
      %378 = vst.msk [vmem:[%s357 + $0xf1] sm:$0xff] %vm279, %v345
      %379 = vst.msk [vmem:[%s357 + $0xf9] sm:$0xff] %vm279, %v346
      %380 = vst.msk [vmem:[%s357 + $0x109] sm:$0xff] %vm279, %v347
      %381 = vst.msk [vmem:[%s357 + $0x111] sm:$0xff] %vm279, %v348
      %382 = vst.msk [vmem:[%s357 + $0x121] sm:$0xff] %vm279, %v349
      %383 = vst.msk [vmem:[%s357 + $0x129] sm:$0xff] %vm279, %v350
      %384 = vst.msk [vmem:[%s357 + $0x139] sm:$0xff] %vm279, %v351
      %385 = vst.msk [vmem:[%s357 + $0x141] sm:$0xff] %vm279, %v352
      %386 = vst.msk [vmem:[%s357 + $0x151] sm:$0xff] %vm279, %v353
      %387 = vst.msk [vmem:[%s357 + $0x159] sm:$0xff] %vm279, %v354
      %388 = vst.msk [vmem:[%s357 + $0x169] sm:$0xff] %vm279, %v355
      %389 = vst.msk [vmem:[%s357 + $0x171] sm:$0xff] %vm279, %v356
      %v390 = vld [vmem:[#allocation2] sm:$0xff]
      %v391 = vld [vmem:[#allocation2 + $0x8] sm:$0xff]
      %v392 = vld [vmem:[#allocation2 + $0x10] sm:$0x3]
      %v393 = vld [vmem:[#allocation2 + $0x18] sm:$0xff]
      %v394 = vld [vmem:[#allocation2 + $0x20] sm:$0xff]
      %v395 = vld [vmem:[#allocation2 + $0x28] sm:$0x3]
      %v396 = vld [vmem:[#allocation2 + $0x30] sm:$0xff]
      %v397 = vld [vmem:[#allocation2 + $0x38] sm:$0xff]
      %v398 = vld [vmem:[#allocation2 + $0x40] sm:$0x3]
      %v399 = vld [vmem:[#allocation2 + $0x48] sm:$0xff]
      %v400 = vld [vmem:[#allocation2 + $0x50] sm:$0xff]
      %v401 = vld [vmem:[#allocation2 + $0x58] sm:$0x3]
      %v402 = vld [vmem:[#allocation2 + $0x60] sm:$0xff]
      %v403 = vld [vmem:[#allocation2 + $0x68] sm:$0xff]
      %v404 = vld [vmem:[#allocation2 + $0x70] sm:$0x3]
      %v405 = vld [vmem:[#allocation2 + $0x78] sm:$0xff]
      %v406 = vld [vmem:[#allocation2 + $0x80] sm:$0xff]
      %v407 = vld [vmem:[#allocation2 + $0x88] sm:$0x3]
      %v408 = vld [vmem:[#allocation2 + $0x90] sm:$0xff]
      %v409 = vld [vmem:[#allocation2 + $0x98] sm:$0xff]
      %v410 = vld [vmem:[#allocation2 + $0xa0] sm:$0x3]
      %v411 = vld [vmem:[#allocation2 + $0xa8] sm:$0xff]
      %v412 = vld [vmem:[#allocation2 + $0xb0] sm:$0xff]
      %v413 = vld [vmem:[#allocation2 + $0xb8] sm:$0x3]
      %v414 = vld [vmem:[#allocation2 + $0xc0] sm:$0xff]
      %v415 = vld [vmem:[#allocation2 + $0xc8] sm:$0xff]
      %v416 = vld [vmem:[#allocation2 + $0xd0] sm:$0x3]
      %v417 = vld [vmem:[#allocation2 + $0xd8] sm:$0xff]
      %v418 = vld [vmem:[#allocation2 + $0xe0] sm:$0xff]
      %v419 = vld [vmem:[#allocation2 + $0xe8] sm:$0x3]
      %v420 = vld [vmem:[#allocation2 + $0xf0] sm:$0xff]
      %v421 = vld [vmem:[#allocation2 + $0xf8] sm:$0xff]
      %v422 = vld [vmem:[#allocation2 + $0x100] sm:$0x3]
      %v423 = vld [vmem:[#allocation2 + $0x108] sm:$0xff]
      %v424 = vld [vmem:[#allocation2 + $0x110] sm:$0xff]
      %v425 = vld [vmem:[#allocation2 + $0x118] sm:$0x3]
      %v426 = vld [vmem:[#allocation2 + $0x120] sm:$0xff]
      %v427 = vld [vmem:[#allocation2 + $0x128] sm:$0xff]
      %v428 = vld [vmem:[#allocation2 + $0x130] sm:$0x3]
      %v429 = vld [vmem:[#allocation2 + $0x138] sm:$0xff]
      %v430 = vld [vmem:[#allocation2 + $0x140] sm:$0xff]
      %v431 = vld [vmem:[#allocation2 + $0x148] sm:$0x3]
      %v432 = vld [vmem:[#allocation2 + $0x150] sm:$0xff]
      %v433 = vld [vmem:[#allocation2 + $0x158] sm:$0xff]
      %v434 = vld [vmem:[#allocation2 + $0x160] sm:$0x3]
      %v435 = vld [vmem:[#allocation2 + $0x168] sm:$0xff]
      %v436 = vld [vmem:[#allocation2 + $0x170] sm:$0xff]
      %v437 = vld [vmem:[#allocation2 + $0x178] sm:$0x3]
      %v438 = vld [vmem:[#allocation2 + $0x180] sm:$0xff]
      %v439 = vld [vmem:[#allocation2 + $0x188] sm:$0xff]
      %v440 = vld [vmem:[#allocation2 + $0x190] sm:$0x3]
      %v441 = vld [vmem:[#allocation2 + $0x198] sm:$0xff]
      %v442 = vld [vmem:[#allocation2 + $0x1a0] sm:$0xff]
      %v443 = vld [vmem:[#allocation2 + $0x1a8] sm:$0x3]
      %v444 = vld [vmem:[%s1] sm:$0xf]
      %vm493 = vcmask 1046528
      %v494 = vrot.slane %v390, 1
      %v495 = vrot.slane %v391, 1
      %v496 = vsel %vm493, %v494, %v495
      %v497 = vrot.slane %v392, 1
      %v498 = vsel %vm493, %v495, %v497
      %v499 = vrot.slane %v393, 1
      %v500 = vrot.slane %v394, 1
      %v501 = vsel %vm493, %v499, %v500
      %v502 = vrot.slane %v395, 1
      %v503 = vsel %vm493, %v500, %v502
      %v504 = vrot.slane %v396, 1
      %v505 = vrot.slane %v397, 1
      %v506 = vsel %vm493, %v504, %v505
      %v507 = vrot.slane %v398, 1
      %v508 = vsel %vm493, %v505, %v507
      %v509 = vrot.slane %v399, 1
      %v510 = vrot.slane %v400, 1
      %v511 = vsel %vm493, %v509, %v510
      %v512 = vrot.slane %v401, 1
      %v513 = vsel %vm493, %v510, %v512
      %v514 = vrot.slane %v402, 1
      %v515 = vrot.slane %v403, 1
      %v516 = vsel %vm493, %v514, %v515
      %v517 = vrot.slane %v404, 1
      %v518 = vsel %vm493, %v515, %v517
      %v519 = vrot.slane %v405, 1
      %v520 = vrot.slane %v406, 1
      %v521 = vsel %vm493, %v519, %v520
      %v522 = vrot.slane %v407, 1
      %v523 = vsel %vm493, %v520, %v522
      %v524 = vrot.slane %v408, 1
      %v525 = vrot.slane %v409, 1
      %v526 = vsel %vm493, %v524, %v525
      %v527 = vrot.slane %v410, 1
      %v528 = vsel %vm493, %v525, %v527
      %v529 = vrot.slane %v411, 1
      %v530 = vrot.slane %v412, 1
      %v531 = vsel %vm493, %v529, %v530
      %v532 = vrot.slane %v413, 1
      %v533 = vsel %vm493, %v530, %v532
      %v534 = vrot.slane %v414, 1
      %v535 = vrot.slane %v415, 1
      %v536 = vsel %vm493, %v534, %v535
      %v537 = vrot.slane %v416, 1
      %v538 = vsel %vm493, %v535, %v537
      %v539 = vrot.slane %v417, 1
      %v540 = vrot.slane %v418, 1
      %v541 = vsel %vm493, %v539, %v540
      %v542 = vrot.slane %v419, 1
      %v543 = vsel %vm493, %v540, %v542
      %v544 = vrot.slane %v420, 1
      %v545 = vrot.slane %v421, 1
      %v546 = vsel %vm493, %v544, %v545
      %v547 = vrot.slane %v422, 1
      %v548 = vsel %vm493, %v545, %v547
      %v549 = vrot.slane %v423, 1
      %v550 = vrot.slane %v424, 1
      %v551 = vsel %vm493, %v549, %v550
      %v552 = vrot.slane %v425, 1
      %v553 = vsel %vm493, %v550, %v552
      %v554 = vrot.slane %v426, 1
      %v555 = vrot.slane %v427, 1
      %v556 = vsel %vm493, %v554, %v555
      %v557 = vrot.slane %v428, 1
      %v558 = vsel %vm493, %v555, %v557
      %v559 = vrot.slane %v429, 1
      %v560 = vrot.slane %v430, 1
      %v561 = vsel %vm493, %v559, %v560
      %v562 = vrot.slane %v431, 1
      %v563 = vsel %vm493, %v560, %v562
      %v564 = vrot.slane %v432, 1
      %v565 = vrot.slane %v433, 1
      %v566 = vsel %vm493, %v564, %v565
      %v567 = vrot.slane %v434, 1
      %v568 = vsel %vm493, %v565, %v567
      %v569 = vrot.slane %v435, 1
      %v570 = vrot.slane %v436, 1
      %v571 = vsel %vm493, %v569, %v570
      %v572 = vrot.slane %v437, 1
      %v573 = vsel %vm493, %v570, %v572
      %s574 = scalar_lea.vmem %s1, 4
      %v575 = vld [vmem:[%s574] sm:$0xf]
      %v576 = vsel %vm279, %v496, 0
      %v578 = vsel %vm279, %v498, 0
      %v580 = vsel %vm279, %v501, 0
      %v582 = vsel %vm279, %v503, 0
      %v584 = vsel %vm279, %v506, 0
      %v586 = vsel %vm279, %v508, 0
      %v588 = vsel %vm279, %v511, 0
      %v590 = vsel %vm279, %v513, 0
      %v592 = vsel %vm279, %v516, 0
      %v594 = vsel %vm279, %v518, 0
      %v596 = vsel %vm279, %v521, 0
      %v598 = vsel %vm279, %v523, 0
      %v600 = vsel %vm279, %v526, 0
      %v602 = vsel %vm279, %v528, 0
      %v604 = vsel %vm279, %v531, 0
      %v606 = vsel %vm279, %v533, 0
      %v608 = vsel %vm279, %v536, 0
      %v610 = vsel %vm279, %v538, 0
      %v612 = vsel %vm279, %v541, 0
      %v614 = vsel %vm279, %v543, 0
      %v616 = vsel %vm279, %v546, 0
      %v618 = vsel %vm279, %v548, 0
      %v620 = vsel %vm279, %v551, 0
      %v622 = vsel %vm279, %v553, 0
      %v624 = vsel %vm279, %v556, 0
      %v626 = vsel %vm279, %v558, 0
      %v628 = vsel %vm279, %v561, 0
      %v630 = vsel %vm279, %v563, 0
      %v632 = vsel %vm279, %v566, 0
      %v634 = vsel %vm279, %v568, 0
      %v636 = vsel %vm279, %v571, 0
      %v638 = vsel %vm279, %v573, 0
      %vm640 = vcmask 1043456
      %v642 = vsel %vm640, %v575, 0
      %644 = vmatprep.subr.mxu0 0.0
      %645 = vmatpush1.msra.mxu0 %v642
      %646 = vmatprep.subr.mxu0 0.0
      %647 = vmatpush1.msra.mxu0 0.0
      %648 = vmatprep.subr.mxu0 0.0
      %649 = vmatpush1.msra.mxu0 0.0
      %650 = vmatprep.subr.mxu0 0.0
      %651 = vmatpush1.msra.mxu0 0.0
      %652 = vmatprep.subr.mxu0 0.0
      %653 = vmatpush1.msra.mxu0 0.0
      %654 = vmatprep.subr.mxu0 0.0
      %655 = vmatpush1.msra.mxu0 0.0
      %656 = vmatprep.subr.mxu0 0.0
      %657 = vmatpush1.msra.mxu0 0.0
      %658 = vmatprep.subr.mxu0 0.0
      %659 = vmatpush1.msra.mxu0 0.0
      %660 = vmatprep.subr.mxu0 0.0
      %661 = vmatpush1.msra.mxu0 0.0
      %662 = vmatprep.subr.mxu0 0.0
      %663 = vmatpush1.msra.mxu0 0.0
      %664 = vmatprep.subr.mxu0 0.0
      %665 = vmatpush1.msra.mxu0 0.0
      %666 = vmatprep.subr.mxu0 0.0
      %667 = vmatpush1.msra.mxu0 0.0
      %668 = vmatprep.subr.mxu0 0.0
      %669 = vmatpush1.msra.mxu0 0.0
      %670 = vmatprep.subr.mxu0 0.0
      %671 = vmatpush1.msra.mxu0 0.0
      %672 = vmatprep.subr.mxu0 0.0
      %673 = vmatpush1.msra.mxu0 0.0
      %674 = vmatprep.subr.mxu0 0.0
      %675 = vmatpush1.msra.mxu0 0.0
      %676 = vmatprep.subr.mxu0 0.0
      %677 = vmatpush1.msra.mxu0 0.0
      %678 = vmatprep.subr.mxu0 0.0
      %679 = vmatpush1.msra.mxu0 0.0
      %680 = vmatprep.subr.mxu0 0.0
      %681 = vmatpush1.msra.mxu0 0.0
      %682 = vmatprep.subr.mxu0 0.0
      %683 = vmatpush1.msra.mxu0 0.0
      %684 = vmatprep.subr.mxu0 0.0
      %685 = vmatpush1.msra.mxu0 0.0
      %686 = vmatprep.subr.mxu0 0.0
      %687 = vmatpush1.msra.mxu0 0.0
      %688 = vmatprep.subr.mxu0 0.0
      %689 = vmatpush1.msra.mxu0 0.0
      %690 = vmatprep.subr.mxu0 0.0
      %691 = vmatpush1.msra.mxu0 0.0
      %692 = vmatprep.subr.mxu0 0.0
      %693 = vmatpush1.msra.mxu0 0.0
      %694 = vmatprep.subr.mxu0 0.0
      %695 = vmatpush1.msra.mxu0 0.0
      %696 = vmatprep.subr.mxu0 0.0
      %697 = vmatpush1.msra.mxu0 0.0
      %698 = vmatprep.subr.mxu0 0.0
      %699 = vmatpush1.msra.mxu0 0.0
      %700 = vmatprep.subr.mxu0 0.0
      %701 = vmatpush1.msra.mxu0 0.0
      %702 = vmatprep.subr.mxu0 0.0
      %703 = vmatpush1.msra.mxu0 0.0
      %704 = vmatprep.subr.mxu0 0.0
      %705 = vmatpush1.msra.mxu0 0.0
      %706 = vmatprep.subr.mxu0 0.0
      %707 = vmatpush1.msra.mxu0 0.0
      %708 = vmatprep.mubr.f32.mxu0 0.0
      %709 = vmatmul.mubr.f32.gmra.mrb[0].mxu0 %v576
      %v710 = vpop.f32.mrb[0].mxu0
      %v711 = vadd.f32 0.0, %v710
      %v712 = vpop.f32.mrb[0].mxu0
      %713 = vmatprep.mubr.f32.mxu0 0.0
      %714 = vmatmul.mubr.f32.gmra.mrb[0].mxu0 %v578
      %v715 = vpop.f32.mrb[0].mxu0
      %v716 = vadd.f32 0.0, %v715
      %v717 = vpop.f32.mrb[0].mxu0
      %718 = vmatprep.mubr.f32.mxu0 0.0
      %719 = vmatmul.mubr.f32.gmra.mrb[0].mxu0 %v580
      %v720 = vpop.f32.mrb[0].mxu0
      %v721 = vadd.f32 0.0, %v720
      %v722 = vpop.f32.mrb[0].mxu0
      %723 = vmatprep.mubr.f32.mxu0 0.0
      %724 = vmatmul.mubr.f32.gmra.mrb[0].mxu0 %v582
      %v725 = vpop.f32.mrb[0].mxu0
      %v726 = vadd.f32 0.0, %v725
      %v727 = vpop.f32.mrb[0].mxu0
      %728 = vmatprep.mubr.f32.mxu0 0.0
      %729 = vmatmul.mubr.f32.gmra.mrb[0].mxu0 %v584
      %v730 = vpop.f32.mrb[0].mxu0
      %v731 = vadd.f32 0.0, %v730
      %v732 = vpop.f32.mrb[0].mxu0
      %733 = vmatprep.mubr.f32.mxu0 0.0
      %734 = vmatmul.mubr.f32.gmra.mrb[0].mxu0 %v586
      %v735 = vpop.f32.mrb[0].mxu0
      %v736 = vadd.f32 0.0, %v735
      %v737 = vpop.f32.mrb[0].mxu0
      %738 = vmatprep.mubr.f32.mxu0 0.0
      %739 = vmatmul.mubr.f32.gmra.mrb[0].mxu0 %v588
      %v740 = vpop.f32.mrb[0].mxu0
      %v741 = vadd.f32 0.0, %v740
      %v742 = vpop.f32.mrb[0].mxu0
      %743 = vmatprep.mubr.f32.mxu0 0.0
      %744 = vmatmul.mubr.f32.gmra.mrb[0].mxu0 %v590
      %v745 = vpop.f32.mrb[0].mxu0
      %v746 = vadd.f32 0.0, %v745
      %v747 = vpop.f32.mrb[0].mxu0
      %748 = vmatprep.mubr.f32.mxu0 0.0
      %749 = vmatmul.mubr.f32.gmra.mrb[0].mxu0 %v592
      %v750 = vpop.f32.mrb[0].mxu0
      %v751 = vadd.f32 0.0, %v750
      %v752 = vpop.f32.mrb[0].mxu0
      %753 = vmatprep.mubr.f32.mxu0 0.0
      %754 = vmatmul.mubr.f32.gmra.mrb[0].mxu0 %v594
      %v755 = vpop.f32.mrb[0].mxu0
      %v756 = vadd.f32 0.0, %v755
      %v757 = vpop.f32.mrb[0].mxu0
      %758 = vmatprep.mubr.f32.mxu0 0.0
      %759 = vmatmul.mubr.f32.gmra.mrb[0].mxu0 %v596
      %v760 = vpop.f32.mrb[0].mxu0
      %v761 = vadd.f32 0.0, %v760
      %v762 = vpop.f32.mrb[0].mxu0
      %763 = vmatprep.mubr.f32.mxu0 0.0
      %764 = vmatmul.mubr.f32.gmra.mrb[0].mxu0 %v598
      %v765 = vpop.f32.mrb[0].mxu0
      %v766 = vadd.f32 0.0, %v765
      %v767 = vpop.f32.mrb[0].mxu0
      %768 = vmatprep.mubr.f32.mxu0 0.0
      %769 = vmatmul.mubr.f32.gmra.mrb[0].mxu0 %v600
      %v770 = vpop.f32.mrb[0].mxu0
      %v771 = vadd.f32 0.0, %v770
      %v772 = vpop.f32.mrb[0].mxu0
      %773 = vmatprep.mubr.f32.mxu0 0.0
      %774 = vmatmul.mubr.f32.gmra.mrb[0].mxu0 %v602
      %v775 = vpop.f32.mrb[0].mxu0
      %v776 = vadd.f32 0.0, %v775
      %v777 = vpop.f32.mrb[0].mxu0
      %778 = vmatprep.mubr.f32.mxu0 0.0
      %779 = vmatmul.mubr.f32.gmra.mrb[0].mxu0 %v604
      %v780 = vpop.f32.mrb[0].mxu0
      %v781 = vadd.f32 0.0, %v780
      %v782 = vpop.f32.mrb[0].mxu0
      %783 = vmatprep.mubr.f32.mxu0 0.0
      %784 = vmatmul.mubr.f32.gmra.mrb[0].mxu0 %v606
      %v785 = vpop.f32.mrb[0].mxu0
      %v786 = vadd.f32 0.0, %v785
      %v787 = vpop.f32.mrb[0].mxu0
      %788 = vmatprep.mubr.f32.mxu0 0.0
      %789 = vmatmul.mubr.f32.gmra.mrb[0].mxu0 %v608
      %v790 = vpop.f32.mrb[0].mxu0
      %v791 = vadd.f32 0.0, %v790
      %v792 = vpop.f32.mrb[0].mxu0
      %793 = vmatprep.mubr.f32.mxu0 0.0
      %794 = vmatmul.mubr.f32.gmra.mrb[0].mxu0 %v610
      %v795 = vpop.f32.mrb[0].mxu0
      %v796 = vadd.f32 0.0, %v795
      %v797 = vpop.f32.mrb[0].mxu0
      %798 = vmatprep.mubr.f32.mxu0 0.0
      %799 = vmatmul.mubr.f32.gmra.mrb[0].mxu0 %v612
      %v800 = vpop.f32.mrb[0].mxu0
      %v801 = vadd.f32 0.0, %v800
      %v802 = vpop.f32.mrb[0].mxu0
      %803 = vmatprep.mubr.f32.mxu0 0.0
      %804 = vmatmul.mubr.f32.gmra.mrb[0].mxu0 %v614
      %v805 = vpop.f32.mrb[0].mxu0
      %v806 = vadd.f32 0.0, %v805
      %v807 = vpop.f32.mrb[0].mxu0
      %808 = vmatprep.mubr.f32.mxu0 0.0
      %809 = vmatmul.mubr.f32.gmra.mrb[0].mxu0 %v616
      %v810 = vpop.f32.mrb[0].mxu0
      %v811 = vadd.f32 0.0, %v810
      %v812 = vpop.f32.mrb[0].mxu0
      %813 = vmatprep.mubr.f32.mxu0 0.0
      %814 = vmatmul.mubr.f32.gmra.mrb[0].mxu0 %v618
      %v815 = vpop.f32.mrb[0].mxu0
      %v816 = vadd.f32 0.0, %v815
      %v817 = vpop.f32.mrb[0].mxu0
      %818 = vmatprep.mubr.f32.mxu0 0.0
      %819 = vmatmul.mubr.f32.gmra.mrb[0].mxu0 %v620
      %v820 = vpop.f32.mrb[0].mxu0
      %v821 = vadd.f32 0.0, %v820
      %v822 = vpop.f32.mrb[0].mxu0
      %823 = vmatprep.mubr.f32.mxu0 0.0
      %824 = vmatmul.mubr.f32.gmra.mrb[0].mxu0 %v622
      %v825 = vpop.f32.mrb[0].mxu0
      %v826 = vadd.f32 0.0, %v825
      %v827 = vpop.f32.mrb[0].mxu0
      %828 = vmatprep.mubr.f32.mxu0 0.0
      %829 = vmatmul.mubr.f32.gmra.mrb[0].mxu0 %v624
      %v830 = vpop.f32.mrb[0].mxu0
      %v831 = vadd.f32 0.0, %v830
      %v832 = vpop.f32.mrb[0].mxu0
      %833 = vmatprep.mubr.f32.mxu0 0.0
      %834 = vmatmul.mubr.f32.gmra.mrb[0].mxu0 %v626
      %v835 = vpop.f32.mrb[0].mxu0
      %v836 = vadd.f32 0.0, %v835
      %v837 = vpop.f32.mrb[0].mxu0
      %838 = vmatprep.mubr.f32.mxu0 0.0
      %839 = vmatmul.mubr.f32.gmra.mrb[0].mxu0 %v628
      %v840 = vpop.f32.mrb[0].mxu0
      %v841 = vadd.f32 0.0, %v840
      %v842 = vpop.f32.mrb[0].mxu0
      %843 = vmatprep.mubr.f32.mxu0 0.0
      %844 = vmatmul.mubr.f32.gmra.mrb[0].mxu0 %v630
      %v845 = vpop.f32.mrb[0].mxu0
      %v846 = vadd.f32 0.0, %v845
      %v847 = vpop.f32.mrb[0].mxu0
      %848 = vmatprep.mubr.f32.mxu0 0.0
      %849 = vmatmul.mubr.f32.gmra.mrb[0].mxu0 %v632
      %v850 = vpop.f32.mrb[0].mxu0
      %v851 = vadd.f32 0.0, %v850
      %v852 = vpop.f32.mrb[0].mxu0
      %853 = vmatprep.mubr.f32.mxu0 0.0
      %854 = vmatmul.mubr.f32.gmra.mrb[0].mxu0 %v634
      %v855 = vpop.f32.mrb[0].mxu0
      %v856 = vadd.f32 0.0, %v855
      %v857 = vpop.f32.mrb[0].mxu0
      %858 = vmatprep.mubr.f32.mxu0 0.0
      %859 = vmatmul.mubr.f32.gmra.mrb[0].mxu0 %v636
      %v860 = vpop.f32.mrb[0].mxu0
      %v861 = vadd.f32 0.0, %v860
      %v862 = vpop.f32.mrb[0].mxu0
      %863 = vmatprep.mubr.f32.mxu0 0.0
      %864 = vmatmul.mubr.f32.gmra.mrb[0].mxu0 %v638
      %v865 = vpop.f32.mrb[0].mxu0
      %v866 = vadd.f32 0.0, %v865
      %v867 = vpop.f32.mrb[0].mxu0
      %868 = vdwg.mxu0
      %v869 = vsel %vm279, %v390, 0
      %v871 = vsel %vm279, %v391, 0
      %v873 = vsel %vm279, %v393, 0
      %v875 = vsel %vm279, %v394, 0
      %v877 = vsel %vm279, %v396, 0
      %v879 = vsel %vm279, %v397, 0
      %v881 = vsel %vm279, %v399, 0
      %v883 = vsel %vm279, %v400, 0
      %v885 = vsel %vm279, %v402, 0
      %v887 = vsel %vm279, %v403, 0
      %v889 = vsel %vm279, %v405, 0
      %v891 = vsel %vm279, %v406, 0
      %v893 = vsel %vm279, %v408, 0
      %v895 = vsel %vm279, %v409, 0
      %v897 = vsel %vm279, %v411, 0
      %v899 = vsel %vm279, %v412, 0
      %v901 = vsel %vm279, %v414, 0
      %v903 = vsel %vm279, %v415, 0
      %v905 = vsel %vm279, %v417, 0
      %v907 = vsel %vm279, %v418, 0
      %v909 = vsel %vm279, %v420, 0
      %v911 = vsel %vm279, %v421, 0
      %v913 = vsel %vm279, %v423, 0
      %v915 = vsel %vm279, %v424, 0
      %v917 = vsel %vm279, %v426, 0
      %v919 = vsel %vm279, %v427, 0
      %v921 = vsel %vm279, %v429, 0
      %v923 = vsel %vm279, %v430, 0
      %v925 = vsel %vm279, %v432, 0
      %v927 = vsel %vm279, %v433, 0
      %v929 = vsel %vm279, %v435, 0
      %v931 = vsel %vm279, %v436, 0
      %v934 = vsel %vm640, %v444, 0
      %936 = vmatprep.subr.mxu0 0.0
      %937 = vmatpush1.msra.mxu0 %v934
      %938 = vmatprep.subr.mxu0 0.0
      %939 = vmatpush1.msra.mxu0 0.0
      %940 = vmatprep.subr.mxu0 0.0
      %941 = vmatpush1.msra.mxu0 0.0
      %942 = vmatprep.subr.mxu0 0.0
      %943 = vmatpush1.msra.mxu0 0.0
      %944 = vmatprep.subr.mxu0 0.0
      %945 = vmatpush1.msra.mxu0 0.0
      %946 = vmatprep.subr.mxu0 0.0
      %947 = vmatpush1.msra.mxu0 0.0
      %948 = vmatprep.subr.mxu0 0.0
      %949 = vmatpush1.msra.mxu0 0.0
      %950 = vmatprep.subr.mxu0 0.0
      %951 = vmatpush1.msra.mxu0 0.0
      %952 = vmatprep.subr.mxu0 0.0
      %953 = vmatpush1.msra.mxu0 0.0
      %954 = vmatprep.subr.mxu0 0.0
      %955 = vmatpush1.msra.mxu0 0.0
      %956 = vmatprep.subr.mxu0 0.0
      %957 = vmatpush1.msra.mxu0 0.0
      %958 = vmatprep.subr.mxu0 0.0
      %959 = vmatpush1.msra.mxu0 0.0
      %960 = vmatprep.subr.mxu0 0.0
      %961 = vmatpush1.msra.mxu0 0.0
      %962 = vmatprep.subr.mxu0 0.0
      %963 = vmatpush1.msra.mxu0 0.0
      %964 = vmatprep.subr.mxu0 0.0
      %965 = vmatpush1.msra.mxu0 0.0
      %966 = vmatprep.subr.mxu0 0.0
      %967 = vmatpush1.msra.mxu0 0.0
      %968 = vmatprep.subr.mxu0 0.0
      %969 = vmatpush1.msra.mxu0 0.0
      %970 = vmatprep.subr.mxu0 0.0
      %971 = vmatpush1.msra.mxu0 0.0
      %972 = vmatprep.subr.mxu0 0.0
      %973 = vmatpush1.msra.mxu0 0.0
      %974 = vmatprep.subr.mxu0 0.0
      %975 = vmatpush1.msra.mxu0 0.0
      %976 = vmatprep.subr.mxu0 0.0
      %977 = vmatpush1.msra.mxu0 0.0
      %978 = vmatprep.subr.mxu0 0.0
      %979 = vmatpush1.msra.mxu0 0.0
      %980 = vmatprep.subr.mxu0 0.0
      %981 = vmatpush1.msra.mxu0 0.0
      %982 = vmatprep.subr.mxu0 0.0
      %983 = vmatpush1.msra.mxu0 0.0
      %984 = vmatprep.subr.mxu0 0.0
      %985 = vmatpush1.msra.mxu0 0.0
      %986 = vmatprep.subr.mxu0 0.0
      %987 = vmatpush1.msra.mxu0 0.0
      %988 = vmatprep.subr.mxu0 0.0
      %989 = vmatpush1.msra.mxu0 0.0
      %990 = vmatprep.subr.mxu0 0.0
      %991 = vmatpush1.msra.mxu0 0.0
      %992 = vmatprep.subr.mxu0 0.0
      %993 = vmatpush1.msra.mxu0 0.0
      %994 = vmatprep.subr.mxu0 0.0
      %995 = vmatpush1.msra.mxu0 0.0
      %996 = vmatprep.subr.mxu0 0.0
      %997 = vmatpush1.msra.mxu0 0.0
      %998 = vmatprep.subr.mxu0 0.0
      %999 = vmatpush1.msra.mxu0 0.0
      %1000 = vmatprep.mubr.f32.mxu0 0.0
      %1001 = vmatmul.mubr.f32.gmra.mrb[0].mxu0 %v869
      %v1002 = vpop.f32.mrb[0].mxu0
      %v1003 = vadd.f32 %v711, %v1002
      %v1004 = vpop.f32.mrb[0].mxu0
      %1005 = vmatprep.mubr.f32.mxu0 0.0
      %1006 = vmatmul.mubr.f32.gmra.mrb[0].mxu0 %v871
      %v1007 = vpop.f32.mrb[0].mxu0
      %v1008 = vadd.f32 %v716, %v1007
      %v1009 = vpop.f32.mrb[0].mxu0
      %1010 = vmatprep.mubr.f32.mxu0 0.0
      %1011 = vmatmul.mubr.f32.gmra.mrb[0].mxu0 %v873
      %v1012 = vpop.f32.mrb[0].mxu0
      %v1013 = vadd.f32 %v721, %v1012
      %v1014 = vpop.f32.mrb[0].mxu0
      %1015 = vmatprep.mubr.f32.mxu0 0.0
      %1016 = vmatmul.mubr.f32.gmra.mrb[0].mxu0 %v875
      %v1017 = vpop.f32.mrb[0].mxu0
      %v1018 = vadd.f32 %v726, %v1017
      %v1019 = vpop.f32.mrb[0].mxu0
      %1020 = vmatprep.mubr.f32.mxu0 0.0
      %1021 = vmatmul.mubr.f32.gmra.mrb[0].mxu0 %v877
      %v1022 = vpop.f32.mrb[0].mxu0
      %v1023 = vadd.f32 %v731, %v1022
      %v1024 = vpop.f32.mrb[0].mxu0
      %1025 = vmatprep.mubr.f32.mxu0 0.0
      %1026 = vmatmul.mubr.f32.gmra.mrb[0].mxu0 %v879
      %v1027 = vpop.f32.mrb[0].mxu0
      %v1028 = vadd.f32 %v736, %v1027
      %v1029 = vpop.f32.mrb[0].mxu0
      %1030 = vmatprep.mubr.f32.mxu0 0.0
      %1031 = vmatmul.mubr.f32.gmra.mrb[0].mxu0 %v881
      %v1032 = vpop.f32.mrb[0].mxu0
      %v1033 = vadd.f32 %v741, %v1032
      %v1034 = vpop.f32.mrb[0].mxu0
      %1035 = vmatprep.mubr.f32.mxu0 0.0
      %1036 = vmatmul.mubr.f32.gmra.mrb[0].mxu0 %v883
      %v1037 = vpop.f32.mrb[0].mxu0
      %v1038 = vadd.f32 %v746, %v1037
      %v1039 = vpop.f32.mrb[0].mxu0
      %1040 = vmatprep.mubr.f32.mxu0 0.0
      %1041 = vmatmul.mubr.f32.gmra.mrb[0].mxu0 %v885
      %v1042 = vpop.f32.mrb[0].mxu0
      %v1043 = vadd.f32 %v751, %v1042
      %v1044 = vpop.f32.mrb[0].mxu0
      %1045 = vmatprep.mubr.f32.mxu0 0.0
      %1046 = vmatmul.mubr.f32.gmra.mrb[0].mxu0 %v887
      %v1047 = vpop.f32.mrb[0].mxu0
      %v1048 = vadd.f32 %v756, %v1047
      %v1049 = vpop.f32.mrb[0].mxu0
      %1050 = vmatprep.mubr.f32.mxu0 0.0
      %1051 = vmatmul.mubr.f32.gmra.mrb[0].mxu0 %v889
      %v1052 = vpop.f32.mrb[0].mxu0
      %v1053 = vadd.f32 %v761, %v1052
      %v1054 = vpop.f32.mrb[0].mxu0
      %1055 = vmatprep.mubr.f32.mxu0 0.0
      %1056 = vmatmul.mubr.f32.gmra.mrb[0].mxu0 %v891
      %v1057 = vpop.f32.mrb[0].mxu0
      %v1058 = vadd.f32 %v766, %v1057
      %v1059 = vpop.f32.mrb[0].mxu0
      %1060 = vmatprep.mubr.f32.mxu0 0.0
      %1061 = vmatmul.mubr.f32.gmra.mrb[0].mxu0 %v893
      %v1062 = vpop.f32.mrb[0].mxu0
      %v1063 = vadd.f32 %v771, %v1062
      %v1064 = vpop.f32.mrb[0].mxu0
      %1065 = vmatprep.mubr.f32.mxu0 0.0
      %1066 = vmatmul.mubr.f32.gmra.mrb[0].mxu0 %v895
      %v1067 = vpop.f32.mrb[0].mxu0
      %v1068 = vadd.f32 %v776, %v1067
      %v1069 = vpop.f32.mrb[0].mxu0
      %1070 = vmatprep.mubr.f32.mxu0 0.0
      %1071 = vmatmul.mubr.f32.gmra.mrb[0].mxu0 %v897
      %v1072 = vpop.f32.mrb[0].mxu0
      %v1073 = vadd.f32 %v781, %v1072
      %v1074 = vpop.f32.mrb[0].mxu0
      %1075 = vmatprep.mubr.f32.mxu0 0.0
      %1076 = vmatmul.mubr.f32.gmra.mrb[0].mxu0 %v899
      %v1077 = vpop.f32.mrb[0].mxu0
      %v1078 = vadd.f32 %v786, %v1077
      %v1079 = vpop.f32.mrb[0].mxu0
      %1080 = vmatprep.mubr.f32.mxu0 0.0
      %1081 = vmatmul.mubr.f32.gmra.mrb[0].mxu0 %v901
      %v1082 = vpop.f32.mrb[0].mxu0
      %v1083 = vadd.f32 %v791, %v1082
      %v1084 = vpop.f32.mrb[0].mxu0
      %1085 = vmatprep.mubr.f32.mxu0 0.0
      %1086 = vmatmul.mubr.f32.gmra.mrb[0].mxu0 %v903
      %v1087 = vpop.f32.mrb[0].mxu0
      %v1088 = vadd.f32 %v796, %v1087
      %v1089 = vpop.f32.mrb[0].mxu0
      %1090 = vmatprep.mubr.f32.mxu0 0.0
      %1091 = vmatmul.mubr.f32.gmra.mrb[0].mxu0 %v905
      %v1092 = vpop.f32.mrb[0].mxu0
      %v1093 = vadd.f32 %v801, %v1092
      %v1094 = vpop.f32.mrb[0].mxu0
      %1095 = vmatprep.mubr.f32.mxu0 0.0
      %1096 = vmatmul.mubr.f32.gmra.mrb[0].mxu0 %v907
      %v1097 = vpop.f32.mrb[0].mxu0
      %v1098 = vadd.f32 %v806, %v1097
      %v1099 = vpop.f32.mrb[0].mxu0
      %1100 = vmatprep.mubr.f32.mxu0 0.0
      %1101 = vmatmul.mubr.f32.gmra.mrb[0].mxu0 %v909
      %v1102 = vpop.f32.mrb[0].mxu0
      %v1103 = vadd.f32 %v811, %v1102
      %v1104 = vpop.f32.mrb[0].mxu0
      %1105 = vmatprep.mubr.f32.mxu0 0.0
      %1106 = vmatmul.mubr.f32.gmra.mrb[0].mxu0 %v911
      %v1107 = vpop.f32.mrb[0].mxu0
      %v1108 = vadd.f32 %v816, %v1107
      %v1109 = vpop.f32.mrb[0].mxu0
      %1110 = vmatprep.mubr.f32.mxu0 0.0
      %1111 = vmatmul.mubr.f32.gmra.mrb[0].mxu0 %v913
      %v1112 = vpop.f32.mrb[0].mxu0
      %v1113 = vadd.f32 %v821, %v1112
      %v1114 = vpop.f32.mrb[0].mxu0
      %1115 = vmatprep.mubr.f32.mxu0 0.0
      %1116 = vmatmul.mubr.f32.gmra.mrb[0].mxu0 %v915
      %v1117 = vpop.f32.mrb[0].mxu0
      %v1118 = vadd.f32 %v826, %v1117
      %v1119 = vpop.f32.mrb[0].mxu0
      %1120 = vmatprep.mubr.f32.mxu0 0.0
      %1121 = vmatmul.mubr.f32.gmra.mrb[0].mxu0 %v917
      %v1122 = vpop.f32.mrb[0].mxu0
      %v1123 = vadd.f32 %v831, %v1122
      %v1124 = vpop.f32.mrb[0].mxu0
      %1125 = vmatprep.mubr.f32.mxu0 0.0
      %1126 = vmatmul.mubr.f32.gmra.mrb[0].mxu0 %v919
      %v1127 = vpop.f32.mrb[0].mxu0
      %v1128 = vadd.f32 %v836, %v1127
      %v1129 = vpop.f32.mrb[0].mxu0
      %1130 = vmatprep.mubr.f32.mxu0 0.0
      %1131 = vmatmul.mubr.f32.gmra.mrb[0].mxu0 %v921
      %v1132 = vpop.f32.mrb[0].mxu0
      %v1133 = vadd.f32 %v841, %v1132
      %v1134 = vpop.f32.mrb[0].mxu0
      %1135 = vmatprep.mubr.f32.mxu0 0.0
      %1136 = vmatmul.mubr.f32.gmra.mrb[0].mxu0 %v923
      %v1137 = vpop.f32.mrb[0].mxu0
      %v1138 = vadd.f32 %v846, %v1137
      %v1139 = vpop.f32.mrb[0].mxu0
      %1140 = vmatprep.mubr.f32.mxu0 0.0
      %1141 = vmatmul.mubr.f32.gmra.mrb[0].mxu0 %v925
      %v1142 = vpop.f32.mrb[0].mxu0
      %v1143 = vadd.f32 %v851, %v1142
      %v1144 = vpop.f32.mrb[0].mxu0
      %1145 = vmatprep.mubr.f32.mxu0 0.0
      %1146 = vmatmul.mubr.f32.gmra.mrb[0].mxu0 %v927
      %v1147 = vpop.f32.mrb[0].mxu0
      %v1148 = vadd.f32 %v856, %v1147
      %v1149 = vpop.f32.mrb[0].mxu0
      %1150 = vmatprep.mubr.f32.mxu0 0.0
      %1151 = vmatmul.mubr.f32.gmra.mrb[0].mxu0 %v929
      %v1152 = vpop.f32.mrb[0].mxu0
      %v1153 = vadd.f32 %v861, %v1152
      %v1154 = vpop.f32.mrb[0].mxu0
      %1155 = vmatprep.mubr.f32.mxu0 0.0
      %1156 = vmatmul.mubr.f32.gmra.mrb[0].mxu0 %v931
      %v1157 = vpop.f32.mrb[0].mxu0
      %v1158 = vadd.f32 %v866, %v1157
      %v1159 = vpop.f32.mrb[0].mxu0
      %1160 = vdwg.mxu0
      %vm1161 = vcmask 1045504
      %v1162 = vrot.slane %v390, 2
      %v1163 = vrot.slane %v391, 2
      %v1164 = vsel %vm1161, %v1162, %v1163
      %v1165 = vrot.slane %v392, 2
      %v1166 = vsel %vm1161, %v1163, %v1165
      %v1167 = vrot.slane %v393, 2
      %v1168 = vrot.slane %v394, 2
      %v1169 = vsel %vm1161, %v1167, %v1168
      %v1170 = vrot.slane %v395, 2
      %v1171 = vsel %vm1161, %v1168, %v1170
      %v1172 = vrot.slane %v396, 2
      %v1173 = vrot.slane %v397, 2
      %v1174 = vsel %vm1161, %v1172, %v1173
      %v1175 = vrot.slane %v398, 2
      %v1176 = vsel %vm1161, %v1173, %v1175
      %v1177 = vrot.slane %v399, 2
      %v1178 = vrot.slane %v400, 2
      %v1179 = vsel %vm1161, %v1177, %v1178
      %v1180 = vrot.slane %v401, 2
      %v1181 = vsel %vm1161, %v1178, %v1180
      %v1182 = vrot.slane %v402, 2
      %v1183 = vrot.slane %v403, 2
      %v1184 = vsel %vm1161, %v1182, %v1183
      %v1185 = vrot.slane %v404, 2
      %v1186 = vsel %vm1161, %v1183, %v1185
      %v1187 = vrot.slane %v405, 2
      %v1188 = vrot.slane %v406, 2
      %v1189 = vsel %vm1161, %v1187, %v1188
      %v1190 = vrot.slane %v407, 2
      %v1191 = vsel %vm1161, %v1188, %v1190
      %v1192 = vrot.slane %v408, 2
      %v1193 = vrot.slane %v409, 2
      %v1194 = vsel %vm1161, %v1192, %v1193
      %v1195 = vrot.slane %v410, 2
      %v1196 = vsel %vm1161, %v1193, %v1195
      %v1197 = vrot.slane %v411, 2
      %v1198 = vrot.slane %v412, 2
      %v1199 = vsel %vm1161, %v1197, %v1198
      %v1200 = vrot.slane %v413, 2
      %v1201 = vsel %vm1161, %v1198, %v1200
      %v1202 = vrot.slane %v414, 2
      %v1203 = vrot.slane %v415, 2
      %v1204 = vsel %vm1161, %v1202, %v1203
      %v1205 = vrot.slane %v416, 2
      %v1206 = vsel %vm1161, %v1203, %v1205
      %v1207 = vrot.slane %v417, 2
      %v1208 = vrot.slane %v418, 2
      %v1209 = vsel %vm1161, %v1207, %v1208
      %v1210 = vrot.slane %v419, 2
      %v1211 = vsel %vm1161, %v1208, %v1210
      %v1212 = vrot.slane %v420, 2
      %v1213 = vrot.slane %v421, 2
      %v1214 = vsel %vm1161, %v1212, %v1213
      %v1215 = vrot.slane %v422, 2
      %v1216 = vsel %vm1161, %v1213, %v1215
      %v1217 = vrot.slane %v423, 2
      %v1218 = vrot.slane %v424, 2
      %v1219 = vsel %vm1161, %v1217, %v1218
      %v1220 = vrot.slane %v425, 2
      %v1221 = vsel %vm1161, %v1218, %v1220
      %v1222 = vrot.slane %v426, 2
      %v1223 = vrot.slane %v427, 2
      %v1224 = vsel %vm1161, %v1222, %v1223
      %v1225 = vrot.slane %v428, 2
      %v1226 = vsel %vm1161, %v1223, %v1225
      %v1227 = vrot.slane %v429, 2
      %v1228 = vrot.slane %v430, 2
      %v1229 = vsel %vm1161, %v1227, %v1228
      %v1230 = vrot.slane %v431, 2
      %v1231 = vsel %vm1161, %v1228, %v1230
      %v1232 = vrot.slane %v432, 2
      %v1233 = vrot.slane %v433, 2
      %v1234 = vsel %vm1161, %v1232, %v1233
      %v1235 = vrot.slane %v434, 2
      %v1236 = vsel %vm1161, %v1233, %v1235
      %v1237 = vrot.slane %v435, 2
      %v1238 = vrot.slane %v436, 2
      %v1239 = vsel %vm1161, %v1237, %v1238
      %v1240 = vrot.slane %v437, 2
      %v1241 = vsel %vm1161, %v1238, %v1240
      %s1242 = scalar_lea.vmem %s1, 8
      %v1243 = vld [vmem:[%s1242] sm:$0xf]
      %v1244 = vsel %vm279, %v1164, 0
      %v1246 = vsel %vm279, %v1166, 0
      %v1248 = vsel %vm279, %v1169, 0
      %v1250 = vsel %vm279, %v1171, 0
      %v1252 = vsel %vm279, %v1174, 0
      %v1254 = vsel %vm279, %v1176, 0
      %v1256 = vsel %vm279, %v1179, 0
      %v1258 = vsel %vm279, %v1181, 0
      %v1260 = vsel %vm279, %v1184, 0
      %v1262 = vsel %vm279, %v1186, 0
      %v1264 = vsel %vm279, %v1189, 0
      %v1266 = vsel %vm279, %v1191, 0
      %v1268 = vsel %vm279, %v1194, 0
      %v1270 = vsel %vm279, %v1196, 0
      %v1272 = vsel %vm279, %v1199, 0
      %v1274 = vsel %vm279, %v1201, 0
      %v1276 = vsel %vm279, %v1204, 0
      %v1278 = vsel %vm279, %v1206, 0
      %v1280 = vsel %vm279, %v1209, 0
      %v1282 = vsel %vm279, %v1211, 0
      %v1284 = vsel %vm279, %v1214, 0
      %v1286 = vsel %vm279, %v1216, 0
      %v1288 = vsel %vm279, %v1219, 0
      %v1290 = vsel %vm279, %v1221, 0
      %v1292 = vsel %vm279, %v1224, 0
      %v1294 = vsel %vm279, %v1226, 0
      %v1296 = vsel %vm279, %v1229, 0
      %v1298 = vsel %vm279, %v1231, 0
      %v1300 = vsel %vm279, %v1234, 0
      %v1302 = vsel %vm279, %v1236, 0
      %v1304 = vsel %vm279, %v1239, 0
      %v1306 = vsel %vm279, %v1241, 0
      %v1309 = vsel %vm640, %v1243, 0
      %1311 = vmatprep.subr.mxu0 0.0
      %1312 = vmatpush1.msra.mxu0 %v1309
      %1313 = vmatprep.subr.mxu0 0.0
      %1314 = vmatpush1.msra.mxu0 0.0
      %1315 = vmatprep.subr.mxu0 0.0
      %1316 = vmatpush1.msra.mxu0 0.0
      %1317 = vmatprep.subr.mxu0 0.0
      %1318 = vmatpush1.msra.mxu0 0.0
      %1319 = vmatprep.subr.mxu0 0.0
      %1320 = vmatpush1.msra.mxu0 0.0
      %1321 = vmatprep.subr.mxu0 0.0
      %1322 = vmatpush1.msra.mxu0 0.0
      %1323 = vmatprep.subr.mxu0 0.0
      %1324 = vmatpush1.msra.mxu0 0.0
      %1325 = vmatprep.subr.mxu0 0.0
      %1326 = vmatpush1.msra.mxu0 0.0
      %1327 = vmatprep.subr.mxu0 0.0
      %1328 = vmatpush1.msra.mxu0 0.0
      %1329 = vmatprep.subr.mxu0 0.0
      %1330 = vmatpush1.msra.mxu0 0.0
      %1331 = vmatprep.subr.mxu0 0.0
      %1332 = vmatpush1.msra.mxu0 0.0
      %1333 = vmatprep.subr.mxu0 0.0
      %1334 = vmatpush1.msra.mxu0 0.0
      %1335 = vmatprep.subr.mxu0 0.0
      %1336 = vmatpush1.msra.mxu0 0.0
      %1337 = vmatprep.subr.mxu0 0.0
      %1338 = vmatpush1.msra.mxu0 0.0
      %1339 = vmatprep.subr.mxu0 0.0
      %1340 = vmatpush1.msra.mxu0 0.0
      %1341 = vmatprep.subr.mxu0 0.0
      %1342 = vmatpush1.msra.mxu0 0.0
      %1343 = vmatprep.subr.mxu0 0.0
      %1344 = vmatpush1.msra.mxu0 0.0
      %1345 = vmatprep.subr.mxu0 0.0
      %1346 = vmatpush1.msra.mxu0 0.0
      %1347 = vmatprep.subr.mxu0 0.0
      %1348 = vmatpush1.msra.mxu0 0.0
      %1349 = vmatprep.subr.mxu0 0.0
      %1350 = vmatpush1.msra.mxu0 0.0
      %1351 = vmatprep.subr.mxu0 0.0
      %1352 = vmatpush1.msra.mxu0 0.0
      %1353 = vmatprep.subr.mxu0 0.0
      %1354 = vmatpush1.msra.mxu0 0.0
      %1355 = vmatprep.subr.mxu0 0.0
      %1356 = vmatpush1.msra.mxu0 0.0
      %1357 = vmatprep.subr.mxu0 0.0
      %1358 = vmatpush1.msra.mxu0 0.0
      %1359 = vmatprep.subr.mxu0 0.0
      %1360 = vmatpush1.msra.mxu0 0.0
      %1361 = vmatprep.subr.mxu0 0.0
      %1362 = vmatpush1.msra.mxu0 0.0
      %1363 = vmatprep.subr.mxu0 0.0
      %1364 = vmatpush1.msra.mxu0 0.0
      %1365 = vmatprep.subr.mxu0 0.0
      %1366 = vmatpush1.msra.mxu0 0.0
      %1367 = vmatprep.subr.mxu0 0.0
      %1368 = vmatpush1.msra.mxu0 0.0
      %1369 = vmatprep.subr.mxu0 0.0
      %1370 = vmatpush1.msra.mxu0 0.0
      %1371 = vmatprep.subr.mxu0 0.0
      %1372 = vmatpush1.msra.mxu0 0.0
      %1373 = vmatprep.subr.mxu0 0.0
      %1374 = vmatpush1.msra.mxu0 0.0
      %1375 = vmatprep.mubr.f32.mxu0 0.0
      %1376 = vmatmul.mubr.f32.gmra.mrb[0].mxu0 %v1244
      %v1377 = vpop.f32.mrb[0].mxu0
      %v1378 = vadd.f32 0.0, %v1377
      %v1379 = vpop.f32.mrb[0].mxu0
      %1380 = vmatprep.mubr.f32.mxu0 0.0
      %1381 = vmatmul.mubr.f32.gmra.mrb[0].mxu0 %v1246
      %v1382 = vpop.f32.mrb[0].mxu0
      %v1383 = vadd.f32 0.0, %v1382
      %v1384 = vpop.f32.mrb[0].mxu0
      %1385 = vmatprep.mubr.f32.mxu0 0.0
      %1386 = vmatmul.mubr.f32.gmra.mrb[0].mxu0 %v1248
      %v1387 = vpop.f32.mrb[0].mxu0
      %v1388 = vadd.f32 0.0, %v1387
      %v1389 = vpop.f32.mrb[0].mxu0
      %1390 = vmatprep.mubr.f32.mxu0 0.0
      %1391 = vmatmul.mubr.f32.gmra.mrb[0].mxu0 %v1250
      %v1392 = vpop.f32.mrb[0].mxu0
      %v1393 = vadd.f32 0.0, %v1392
      %v1394 = vpop.f32.mrb[0].mxu0
      %1395 = vmatprep.mubr.f32.mxu0 0.0
      %1396 = vmatmul.mubr.f32.gmra.mrb[0].mxu0 %v1252
      %v1397 = vpop.f32.mrb[0].mxu0
      %v1398 = vadd.f32 0.0, %v1397
      %v1399 = vpop.f32.mrb[0].mxu0
      %1400 = vmatprep.mubr.f32.mxu0 0.0
      %1401 = vmatmul.mubr.f32.gmra.mrb[0].mxu0 %v1254
      %v1402 = vpop.f32.mrb[0].mxu0
      %v1403 = vadd.f32 0.0, %v1402
      %v1404 = vpop.f32.mrb[0].mxu0
      %1405 = vmatprep.mubr.f32.mxu0 0.0
      %1406 = vmatmul.mubr.f32.gmra.mrb[0].mxu0 %v1256
      %v1407 = vpop.f32.mrb[0].mxu0
      %v1408 = vadd.f32 0.0, %v1407
      %v1409 = vpop.f32.mrb[0].mxu0
      %1410 = vmatprep.mubr.f32.mxu0 0.0
      %1411 = vmatmul.mubr.f32.gmra.mrb[0].mxu0 %v1258
      %v1412 = vpop.f32.mrb[0].mxu0
      %v1413 = vadd.f32 0.0, %v1412
      %v1414 = vpop.f32.mrb[0].mxu0
      %1415 = vmatprep.mubr.f32.mxu0 0.0
      %1416 = vmatmul.mubr.f32.gmra.mrb[0].mxu0 %v1260
      %v1417 = vpop.f32.mrb[0].mxu0
      %v1418 = vadd.f32 0.0, %v1417
      %v1419 = vpop.f32.mrb[0].mxu0
      %1420 = vmatprep.mubr.f32.mxu0 0.0
      %1421 = vmatmul.mubr.f32.gmra.mrb[0].mxu0 %v1262
      %v1422 = vpop.f32.mrb[0].mxu0
      %v1423 = vadd.f32 0.0, %v1422
      %v1424 = vpop.f32.mrb[0].mxu0
      %1425 = vmatprep.mubr.f32.mxu0 0.0
      %1426 = vmatmul.mubr.f32.gmra.mrb[0].mxu0 %v1264
      %v1427 = vpop.f32.mrb[0].mxu0
      %v1428 = vadd.f32 0.0, %v1427
      %v1429 = vpop.f32.mrb[0].mxu0
      %1430 = vmatprep.mubr.f32.mxu0 0.0
      %1431 = vmatmul.mubr.f32.gmra.mrb[0].mxu0 %v1266
      %v1432 = vpop.f32.mrb[0].mxu0
      %v1433 = vadd.f32 0.0, %v1432
      %v1434 = vpop.f32.mrb[0].mxu0
      %1435 = vmatprep.mubr.f32.mxu0 0.0
      %1436 = vmatmul.mubr.f32.gmra.mrb[0].mxu0 %v1268
      %v1437 = vpop.f32.mrb[0].mxu0
      %v1438 = vadd.f32 0.0, %v1437
      %v1439 = vpop.f32.mrb[0].mxu0
      %1440 = vmatprep.mubr.f32.mxu0 0.0
      %1441 = vmatmul.mubr.f32.gmra.mrb[0].mxu0 %v1270
      %v1442 = vpop.f32.mrb[0].mxu0
      %v1443 = vadd.f32 0.0, %v1442
      %v1444 = vpop.f32.mrb[0].mxu0
      %1445 = vmatprep.mubr.f32.mxu0 0.0
      %1446 = vmatmul.mubr.f32.gmra.mrb[0].mxu0 %v1272
      %v1447 = vpop.f32.mrb[0].mxu0
      %v1448 = vadd.f32 0.0, %v1447
      %v1449 = vpop.f32.mrb[0].mxu0
      %1450 = vmatprep.mubr.f32.mxu0 0.0
      %1451 = vmatmul.mubr.f32.gmra.mrb[0].mxu0 %v1274
      %v1452 = vpop.f32.mrb[0].mxu0
      %v1453 = vadd.f32 0.0, %v1452
      %v1454 = vpop.f32.mrb[0].mxu0
      %1455 = vmatprep.mubr.f32.mxu0 0.0
      %1456 = vmatmul.mubr.f32.gmra.mrb[0].mxu0 %v1276
      %v1457 = vpop.f32.mrb[0].mxu0
      %v1458 = vadd.f32 0.0, %v1457
      %v1459 = vpop.f32.mrb[0].mxu0
      %1460 = vmatprep.mubr.f32.mxu0 0.0
      %1461 = vmatmul.mubr.f32.gmra.mrb[0].mxu0 %v1278
      %v1462 = vpop.f32.mrb[0].mxu0
      %v1463 = vadd.f32 0.0, %v1462
      %v1464 = vpop.f32.mrb[0].mxu0
      %1465 = vmatprep.mubr.f32.mxu0 0.0
      %1466 = vmatmul.mubr.f32.gmra.mrb[0].mxu0 %v1280
      %v1467 = vpop.f32.mrb[0].mxu0
      %v1468 = vadd.f32 0.0, %v1467
      %v1469 = vpop.f32.mrb[0].mxu0
      %1470 = vmatprep.mubr.f32.mxu0 0.0
      %1471 = vmatmul.mubr.f32.gmra.mrb[0].mxu0 %v1282
      %v1472 = vpop.f32.mrb[0].mxu0
      %v1473 = vadd.f32 0.0, %v1472
      %v1474 = vpop.f32.mrb[0].mxu0
      %1475 = vmatprep.mubr.f32.mxu0 0.0
      %1476 = vmatmul.mubr.f32.gmra.mrb[0].mxu0 %v1284
      %v1477 = vpop.f32.mrb[0].mxu0
      %v1478 = vadd.f32 0.0, %v1477
      %v1479 = vpop.f32.mrb[0].mxu0
      %1480 = vmatprep.mubr.f32.mxu0 0.0
      %1481 = vmatmul.mubr.f32.gmra.mrb[0].mxu0 %v1286
      %v1482 = vpop.f32.mrb[0].mxu0
      %v1483 = vadd.f32 0.0, %v1482
      %v1484 = vpop.f32.mrb[0].mxu0
      %1485 = vmatprep.mubr.f32.mxu0 0.0
      %1486 = vmatmul.mubr.f32.gmra.mrb[0].mxu0 %v1288
      %v1487 = vpop.f32.mrb[0].mxu0
      %v1488 = vadd.f32 0.0, %v1487
      %v1489 = vpop.f32.mrb[0].mxu0
      %1490 = vmatprep.mubr.f32.mxu0 0.0
      %1491 = vmatmul.mubr.f32.gmra.mrb[0].mxu0 %v1290
      %v1492 = vpop.f32.mrb[0].mxu0
      %v1493 = vadd.f32 0.0, %v1492
      %v1494 = vpop.f32.mrb[0].mxu0
      %1495 = vmatprep.mubr.f32.mxu0 0.0
      %1496 = vmatmul.mubr.f32.gmra.mrb[0].mxu0 %v1292
      %v1497 = vpop.f32.mrb[0].mxu0
      %v1498 = vadd.f32 0.0, %v1497
      %v1499 = vpop.f32.mrb[0].mxu0
      %1500 = vmatprep.mubr.f32.mxu0 0.0
      %1501 = vmatmul.mubr.f32.gmra.mrb[0].mxu0 %v1294
      %v1502 = vpop.f32.mrb[0].mxu0
      %v1503 = vadd.f32 0.0, %v1502
      %v1504 = vpop.f32.mrb[0].mxu0
      %1505 = vmatprep.mubr.f32.mxu0 0.0
      %1506 = vmatmul.mubr.f32.gmra.mrb[0].mxu0 %v1296
      %v1507 = vpop.f32.mrb[0].mxu0
      %v1508 = vadd.f32 0.0, %v1507
      %v1509 = vpop.f32.mrb[0].mxu0
      %1510 = vmatprep.mubr.f32.mxu0 0.0
      %1511 = vmatmul.mubr.f32.gmra.mrb[0].mxu0 %v1298
      %v1512 = vpop.f32.mrb[0].mxu0
      %v1513 = vadd.f32 0.0, %v1512
      %v1514 = vpop.f32.mrb[0].mxu0
      %1515 = vmatprep.mubr.f32.mxu0 0.0
      %1516 = vmatmul.mubr.f32.gmra.mrb[0].mxu0 %v1300
      %v1517 = vpop.f32.mrb[0].mxu0
      %v1518 = vadd.f32 0.0, %v1517
      %v1519 = vpop.f32.mrb[0].mxu0
      %1520 = vmatprep.mubr.f32.mxu0 0.0
      %1521 = vmatmul.mubr.f32.gmra.mrb[0].mxu0 %v1302
      %v1522 = vpop.f32.mrb[0].mxu0
      %v1523 = vadd.f32 0.0, %v1522
      %v1524 = vpop.f32.mrb[0].mxu0
      %1525 = vmatprep.mubr.f32.mxu0 0.0
      %1526 = vmatmul.mubr.f32.gmra.mrb[0].mxu0 %v1304
      %v1527 = vpop.f32.mrb[0].mxu0
      %v1528 = vadd.f32 0.0, %v1527
      %v1529 = vpop.f32.mrb[0].mxu0
      %1530 = vmatprep.mubr.f32.mxu0 0.0
      %1531 = vmatmul.mubr.f32.gmra.mrb[0].mxu0 %v1306
      %v1532 = vpop.f32.mrb[0].mxu0
      %v1533 = vadd.f32 0.0, %v1532
      %v1534 = vpop.f32.mrb[0].mxu0
      %1535 = vdwg.mxu0
      %v1536 = vadd.f32 %v1003, %v1378
      %v1537 = vadd.f32 %v1008, %v1383
      %v1538 = vadd.f32 %v1013, %v1388
      %v1539 = vadd.f32 %v1018, %v1393
      %v1540 = vadd.f32 %v1023, %v1398
      %v1541 = vadd.f32 %v1028, %v1403
      %v1542 = vadd.f32 %v1033, %v1408
      %v1543 = vadd.f32 %v1038, %v1413
      %v1544 = vadd.f32 %v1043, %v1418
      %v1545 = vadd.f32 %v1048, %v1423
      %v1546 = vadd.f32 %v1053, %v1428
      %v1547 = vadd.f32 %v1058, %v1433
      %v1548 = vadd.f32 %v1063, %v1438
      %v1549 = vadd.f32 %v1068, %v1443
      %v1550 = vadd.f32 %v1073, %v1448
      %v1551 = vadd.f32 %v1078, %v1453
      %v1552 = vadd.f32 %v1083, %v1458
      %v1553 = vadd.f32 %v1088, %v1463
      %v1554 = vadd.f32 %v1093, %v1468
      %v1555 = vadd.f32 %v1098, %v1473
      %v1556 = vadd.f32 %v1103, %v1478
      %v1557 = vadd.f32 %v1108, %v1483
      %v1558 = vadd.f32 %v1113, %v1488
      %v1559 = vadd.f32 %v1118, %v1493
      %v1560 = vadd.f32 %v1123, %v1498
      %v1561 = vadd.f32 %v1128, %v1503
      %v1562 = vadd.f32 %v1133, %v1508
      %v1563 = vadd.f32 %v1138, %v1513
      %v1564 = vadd.f32 %v1143, %v1518
      %v1565 = vadd.f32 %v1148, %v1523
      %v1566 = vadd.f32 %v1153, %v1528
      %v1567 = vadd.f32 %v1158, %v1533
      %s1568 = scalar_lea.vmem %s1, 12
      %v1569 = vld [vmem:[%s1568] sm:$0xf]
      %v1571 = vsel %vm279, %v438, 0
      %v1574 = vsel %vm279, %v439, 0
      %v1577 = vsel %vm640, %v1569, 0
      %1579 = vmatprep.subr.mxu0 0.0
      %1580 = vmatpush1.msra.mxu0 %v1577
      %1581 = vmatprep.subr.mxu0 0.0
      %1582 = vmatpush1.msra.mxu0 0.0
      %1583 = vmatprep.subr.mxu0 0.0
      %1584 = vmatpush1.msra.mxu0 0.0
      %1585 = vmatprep.subr.mxu0 0.0
      %1586 = vmatpush1.msra.mxu0 0.0
      %1587 = vmatprep.subr.mxu0 0.0
      %1588 = vmatpush1.msra.mxu0 0.0
      %1589 = vmatprep.subr.mxu0 0.0
      %1590 = vmatpush1.msra.mxu0 0.0
      %1591 = vmatprep.subr.mxu0 0.0
      %1592 = vmatpush1.msra.mxu0 0.0
      %1593 = vmatprep.subr.mxu0 0.0
      %1594 = vmatpush1.msra.mxu0 0.0
      %1595 = vmatprep.subr.mxu0 0.0
      %1596 = vmatpush1.msra.mxu0 0.0
      %1597 = vmatprep.subr.mxu0 0.0
      %1598 = vmatpush1.msra.mxu0 0.0
      %1599 = vmatprep.subr.mxu0 0.0
      %1600 = vmatpush1.msra.mxu0 0.0
      %1601 = vmatprep.subr.mxu0 0.0
      %1602 = vmatpush1.msra.mxu0 0.0
      %1603 = vmatprep.subr.mxu0 0.0
      %1604 = vmatpush1.msra.mxu0 0.0
      %1605 = vmatprep.subr.mxu0 0.0
      %1606 = vmatpush1.msra.mxu0 0.0
      %1607 = vmatprep.subr.mxu0 0.0
      %1608 = vmatpush1.msra.mxu0 0.0
      %1609 = vmatprep.subr.mxu0 0.0
      %1610 = vmatpush1.msra.mxu0 0.0
      %1611 = vmatprep.subr.mxu0 0.0
      %1612 = vmatpush1.msra.mxu0 0.0
      %1613 = vmatprep.subr.mxu0 0.0
      %1614 = vmatpush1.msra.mxu0 0.0
      %1615 = vmatprep.subr.mxu0 0.0
      %1616 = vmatpush1.msra.mxu0 0.0
      %1617 = vmatprep.subr.mxu0 0.0
      %1618 = vmatpush1.msra.mxu0 0.0
      %1619 = vmatprep.subr.mxu0 0.0
      %1620 = vmatpush1.msra.mxu0 0.0
      %1621 = vmatprep.subr.mxu0 0.0
      %1622 = vmatpush1.msra.mxu0 0.0
      %1623 = vmatprep.subr.mxu0 0.0
      %1624 = vmatpush1.msra.mxu0 0.0
      %1625 = vmatprep.subr.mxu0 0.0
      %1626 = vmatpush1.msra.mxu0 0.0
      %1627 = vmatprep.subr.mxu0 0.0
      %1628 = vmatpush1.msra.mxu0 0.0
      %1629 = vmatprep.subr.mxu0 0.0
      %1630 = vmatpush1.msra.mxu0 0.0
      %1631 = vmatprep.subr.mxu0 0.0
      %1632 = vmatpush1.msra.mxu0 0.0
      %1633 = vmatprep.subr.mxu0 0.0
      %1634 = vmatpush1.msra.mxu0 0.0
      %1635 = vmatprep.subr.mxu0 0.0
      %1636 = vmatpush1.msra.mxu0 0.0
      %1637 = vmatprep.subr.mxu0 0.0
      %1638 = vmatpush1.msra.mxu0 0.0
      %1639 = vmatprep.subr.mxu0 0.0
      %1640 = vmatpush1.msra.mxu0 0.0
      %1641 = vmatprep.subr.mxu0 0.0
      %1642 = vmatpush1.msra.mxu0 0.0
      %1643 = vmatprep.mubr.f32.mxu0 0.0
      %1644 = vmatmul.mubr.f32.gmra.mrb[0].mxu0 %v873
      %v1645 = vpop.f32.mrb[0].mxu0
      %v1646 = vadd.f32 0.0, %v1645
      %v1647 = vpop.f32.mrb[0].mxu0
      %1648 = vmatprep.mubr.f32.mxu0 0.0
      %1649 = vmatmul.mubr.f32.gmra.mrb[0].mxu0 %v875
      %v1650 = vpop.f32.mrb[0].mxu0
      %v1651 = vadd.f32 0.0, %v1650
      %v1652 = vpop.f32.mrb[0].mxu0
      %1653 = vmatprep.mubr.f32.mxu0 0.0
      %1654 = vmatmul.mubr.f32.gmra.mrb[0].mxu0 %v877
      %v1655 = vpop.f32.mrb[0].mxu0
      %v1656 = vadd.f32 0.0, %v1655
      %v1657 = vpop.f32.mrb[0].mxu0
      %1658 = vmatprep.mubr.f32.mxu0 0.0
      %1659 = vmatmul.mubr.f32.gmra.mrb[0].mxu0 %v879
      %v1660 = vpop.f32.mrb[0].mxu0
      %v1661 = vadd.f32 0.0, %v1660
      %v1662 = vpop.f32.mrb[0].mxu0
      %1663 = vmatprep.mubr.f32.mxu0 0.0
      %1664 = vmatmul.mubr.f32.gmra.mrb[0].mxu0 %v881
      %v1665 = vpop.f32.mrb[0].mxu0
      %v1666 = vadd.f32 0.0, %v1665
      %v1667 = vpop.f32.mrb[0].mxu0
      %1668 = vmatprep.mubr.f32.mxu0 0.0
      %1669 = vmatmul.mubr.f32.gmra.mrb[0].mxu0 %v883
      %v1670 = vpop.f32.mrb[0].mxu0
      %v1671 = vadd.f32 0.0, %v1670
      %v1672 = vpop.f32.mrb[0].mxu0
      %1673 = vmatprep.mubr.f32.mxu0 0.0
      %1674 = vmatmul.mubr.f32.gmra.mrb[0].mxu0 %v885
      %v1675 = vpop.f32.mrb[0].mxu0
      %v1676 = vadd.f32 0.0, %v1675
      %v1677 = vpop.f32.mrb[0].mxu0
      %1678 = vmatprep.mubr.f32.mxu0 0.0
      %1679 = vmatmul.mubr.f32.gmra.mrb[0].mxu0 %v887
      %v1680 = vpop.f32.mrb[0].mxu0
      %v1681 = vadd.f32 0.0, %v1680
      %v1682 = vpop.f32.mrb[0].mxu0
      %1683 = vmatprep.mubr.f32.mxu0 0.0
      %1684 = vmatmul.mubr.f32.gmra.mrb[0].mxu0 %v889
      %v1685 = vpop.f32.mrb[0].mxu0
      %v1686 = vadd.f32 0.0, %v1685
      %v1687 = vpop.f32.mrb[0].mxu0
      %1688 = vmatprep.mubr.f32.mxu0 0.0
      %1689 = vmatmul.mubr.f32.gmra.mrb[0].mxu0 %v891
      %v1690 = vpop.f32.mrb[0].mxu0
      %v1691 = vadd.f32 0.0, %v1690
      %v1692 = vpop.f32.mrb[0].mxu0
      %1693 = vmatprep.mubr.f32.mxu0 0.0
      %1694 = vmatmul.mubr.f32.gmra.mrb[0].mxu0 %v893
      %v1695 = vpop.f32.mrb[0].mxu0
      %v1696 = vadd.f32 0.0, %v1695
      %v1697 = vpop.f32.mrb[0].mxu0
      %1698 = vmatprep.mubr.f32.mxu0 0.0
      %1699 = vmatmul.mubr.f32.gmra.mrb[0].mxu0 %v895
      %v1700 = vpop.f32.mrb[0].mxu0
      %v1701 = vadd.f32 0.0, %v1700
      %v1702 = vpop.f32.mrb[0].mxu0
      %1703 = vmatprep.mubr.f32.mxu0 0.0
      %1704 = vmatmul.mubr.f32.gmra.mrb[0].mxu0 %v897
      %v1705 = vpop.f32.mrb[0].mxu0
      %v1706 = vadd.f32 0.0, %v1705
      %v1707 = vpop.f32.mrb[0].mxu0
      %1708 = vmatprep.mubr.f32.mxu0 0.0
      %1709 = vmatmul.mubr.f32.gmra.mrb[0].mxu0 %v899
      %v1710 = vpop.f32.mrb[0].mxu0
      %v1711 = vadd.f32 0.0, %v1710
      %v1712 = vpop.f32.mrb[0].mxu0
      %1713 = vmatprep.mubr.f32.mxu0 0.0
      %1714 = vmatmul.mubr.f32.gmra.mrb[0].mxu0 %v901
      %v1715 = vpop.f32.mrb[0].mxu0
      %v1716 = vadd.f32 0.0, %v1715
      %v1717 = vpop.f32.mrb[0].mxu0
      %1718 = vmatprep.mubr.f32.mxu0 0.0
      %1719 = vmatmul.mubr.f32.gmra.mrb[0].mxu0 %v903
      %v1720 = vpop.f32.mrb[0].mxu0
      %v1721 = vadd.f32 0.0, %v1720
      %v1722 = vpop.f32.mrb[0].mxu0
      %1723 = vmatprep.mubr.f32.mxu0 0.0
      %1724 = vmatmul.mubr.f32.gmra.mrb[0].mxu0 %v905
      %v1725 = vpop.f32.mrb[0].mxu0
      %v1726 = vadd.f32 0.0, %v1725
      %v1727 = vpop.f32.mrb[0].mxu0
      %1728 = vmatprep.mubr.f32.mxu0 0.0
      %1729 = vmatmul.mubr.f32.gmra.mrb[0].mxu0 %v907
      %v1730 = vpop.f32.mrb[0].mxu0
      %v1731 = vadd.f32 0.0, %v1730
      %v1732 = vpop.f32.mrb[0].mxu0
      %1733 = vmatprep.mubr.f32.mxu0 0.0
      %1734 = vmatmul.mubr.f32.gmra.mrb[0].mxu0 %v909
      %v1735 = vpop.f32.mrb[0].mxu0
      %v1736 = vadd.f32 0.0, %v1735
      %v1737 = vpop.f32.mrb[0].mxu0
      %1738 = vmatprep.mubr.f32.mxu0 0.0
      %1739 = vmatmul.mubr.f32.gmra.mrb[0].mxu0 %v911
      %v1740 = vpop.f32.mrb[0].mxu0
      %v1741 = vadd.f32 0.0, %v1740
      %v1742 = vpop.f32.mrb[0].mxu0
      %1743 = vmatprep.mubr.f32.mxu0 0.0
      %1744 = vmatmul.mubr.f32.gmra.mrb[0].mxu0 %v913
      %v1745 = vpop.f32.mrb[0].mxu0
      %v1746 = vadd.f32 0.0, %v1745
      %v1747 = vpop.f32.mrb[0].mxu0
      %1748 = vmatprep.mubr.f32.mxu0 0.0
      %1749 = vmatmul.mubr.f32.gmra.mrb[0].mxu0 %v915
      %v1750 = vpop.f32.mrb[0].mxu0
      %v1751 = vadd.f32 0.0, %v1750
      %v1752 = vpop.f32.mrb[0].mxu0
      %1753 = vmatprep.mubr.f32.mxu0 0.0
      %1754 = vmatmul.mubr.f32.gmra.mrb[0].mxu0 %v917
      %v1755 = vpop.f32.mrb[0].mxu0
      %v1756 = vadd.f32 0.0, %v1755
      %v1757 = vpop.f32.mrb[0].mxu0
      %1758 = vmatprep.mubr.f32.mxu0 0.0
      %1759 = vmatmul.mubr.f32.gmra.mrb[0].mxu0 %v919
      %v1760 = vpop.f32.mrb[0].mxu0
      %v1761 = vadd.f32 0.0, %v1760
      %v1762 = vpop.f32.mrb[0].mxu0
      %1763 = vmatprep.mubr.f32.mxu0 0.0
      %1764 = vmatmul.mubr.f32.gmra.mrb[0].mxu0 %v921
      %v1765 = vpop.f32.mrb[0].mxu0
      %v1766 = vadd.f32 0.0, %v1765
      %v1767 = vpop.f32.mrb[0].mxu0
      %1768 = vmatprep.mubr.f32.mxu0 0.0
      %1769 = vmatmul.mubr.f32.gmra.mrb[0].mxu0 %v923
      %v1770 = vpop.f32.mrb[0].mxu0
      %v1771 = vadd.f32 0.0, %v1770
      %v1772 = vpop.f32.mrb[0].mxu0
      %1773 = vmatprep.mubr.f32.mxu0 0.0
      %1774 = vmatmul.mubr.f32.gmra.mrb[0].mxu0 %v925
      %v1775 = vpop.f32.mrb[0].mxu0
      %v1776 = vadd.f32 0.0, %v1775
      %v1777 = vpop.f32.mrb[0].mxu0
      %1778 = vmatprep.mubr.f32.mxu0 0.0
      %1779 = vmatmul.mubr.f32.gmra.mrb[0].mxu0 %v927
      %v1780 = vpop.f32.mrb[0].mxu0
      %v1781 = vadd.f32 0.0, %v1780
      %v1782 = vpop.f32.mrb[0].mxu0
      %1783 = vmatprep.mubr.f32.mxu0 0.0
      %1784 = vmatmul.mubr.f32.gmra.mrb[0].mxu0 %v929
      %v1785 = vpop.f32.mrb[0].mxu0
      %v1786 = vadd.f32 0.0, %v1785
      %v1787 = vpop.f32.mrb[0].mxu0
      %1788 = vmatprep.mubr.f32.mxu0 0.0
      %1789 = vmatmul.mubr.f32.gmra.mrb[0].mxu0 %v931
      %v1790 = vpop.f32.mrb[0].mxu0
      %v1791 = vadd.f32 0.0, %v1790
      %v1792 = vpop.f32.mrb[0].mxu0
      %1793 = vmatprep.mubr.f32.mxu0 0.0
      %1794 = vmatmul.mubr.f32.gmra.mrb[0].mxu0 %v1571
      %v1795 = vpop.f32.mrb[0].mxu0
      %v1796 = vadd.f32 0.0, %v1795
      %v1797 = vpop.f32.mrb[0].mxu0
      %1798 = vmatprep.mubr.f32.mxu0 0.0
      %1799 = vmatmul.mubr.f32.gmra.mrb[0].mxu0 %v1574
      %v1800 = vpop.f32.mrb[0].mxu0
      %v1801 = vadd.f32 0.0, %v1800
      %v1802 = vpop.f32.mrb[0].mxu0
      %1803 = vdwg.mxu0
      %v1804 = vadd.f32 %v1536, %v1646
      %v1805 = vadd.f32 %v1537, %v1651
      %v1806 = vadd.f32 %v1538, %v1656
      %v1807 = vadd.f32 %v1539, %v1661
      %v1808 = vadd.f32 %v1540, %v1666
      %v1809 = vadd.f32 %v1541, %v1671
      %v1810 = vadd.f32 %v1542, %v1676
      %v1811 = vadd.f32 %v1543, %v1681
      %v1812 = vadd.f32 %v1544, %v1686
      %v1813 = vadd.f32 %v1545, %v1691
      %v1814 = vadd.f32 %v1546, %v1696
      %v1815 = vadd.f32 %v1547, %v1701
      %v1816 = vadd.f32 %v1548, %v1706
      %v1817 = vadd.f32 %v1549, %v1711
      %v1818 = vadd.f32 %v1550, %v1716
      %v1819 = vadd.f32 %v1551, %v1721
      %v1820 = vadd.f32 %v1552, %v1726
      %v1821 = vadd.f32 %v1553, %v1731
      %v1822 = vadd.f32 %v1554, %v1736
      %v1823 = vadd.f32 %v1555, %v1741
      %v1824 = vadd.f32 %v1556, %v1746
      %v1825 = vadd.f32 %v1557, %v1751
      %v1826 = vadd.f32 %v1558, %v1756
      %v1827 = vadd.f32 %v1559, %v1761
      %v1828 = vadd.f32 %v1560, %v1766
      %v1829 = vadd.f32 %v1561, %v1771
      %v1830 = vadd.f32 %v1562, %v1776
      %v1831 = vadd.f32 %v1563, %v1781
      %v1832 = vadd.f32 %v1564, %v1786
      %v1833 = vadd.f32 %v1565, %v1791
      %v1834 = vadd.f32 %v1566, %v1796
      %v1835 = vadd.f32 %v1567, %v1801
      %v1837 = vrot.slane %v438, 1
      %v1838 = vrot.slane %v439, 1
      %v1839 = vsel %vm493, %v1837, %v1838
      %v1840 = vrot.slane %v440, 1
      %v1841 = vsel %vm493, %v1838, %v1840
      %s1842 = scalar_lea.vmem %s1, 16
      %v1843 = vld [vmem:[%s1842] sm:$0xf]
      %v1844 = vsel %vm279, %v1839, 0
      %v1846 = vsel %vm279, %v1841, 0
      %v1849 = vsel %vm640, %v1843, 0
      %1851 = vmatprep.subr.mxu0 0.0
      %1852 = vmatpush1.msra.mxu0 %v1849
      %1853 = vmatprep.subr.mxu0 0.0
      %1854 = vmatpush1.msra.mxu0 0.0
      %1855 = vmatprep.subr.mxu0 0.0
      %1856 = vmatpush1.msra.mxu0 0.0
      %1857 = vmatprep.subr.mxu0 0.0
      %1858 = vmatpush1.msra.mxu0 0.0
      %1859 = vmatprep.subr.mxu0 0.0
      %1860 = vmatpush1.msra.mxu0 0.0
      %1861 = vmatprep.subr.mxu0 0.0
      %1862 = vmatpush1.msra.mxu0 0.0
      %1863 = vmatprep.subr.mxu0 0.0
      %1864 = vmatpush1.msra.mxu0 0.0
      %1865 = vmatprep.subr.mxu0 0.0
      %1866 = vmatpush1.msra.mxu0 0.0
      %1867 = vmatprep.subr.mxu0 0.0
      %1868 = vmatpush1.msra.mxu0 0.0
      %1869 = vmatprep.subr.mxu0 0.0
      %1870 = vmatpush1.msra.mxu0 0.0
      %1871 = vmatprep.subr.mxu0 0.0
      %1872 = vmatpush1.msra.mxu0 0.0
      %1873 = vmatprep.subr.mxu0 0.0
      %1874 = vmatpush1.msra.mxu0 0.0
      %1875 = vmatprep.subr.mxu0 0.0
      %1876 = vmatpush1.msra.mxu0 0.0
      %1877 = vmatprep.subr.mxu0 0.0
      %1878 = vmatpush1.msra.mxu0 0.0
      %1879 = vmatprep.subr.mxu0 0.0
      %1880 = vmatpush1.msra.mxu0 0.0
      %1881 = vmatprep.subr.mxu0 0.0
      %1882 = vmatpush1.msra.mxu0 0.0
      %1883 = vmatprep.subr.mxu0 0.0
      %1884 = vmatpush1.msra.mxu0 0.0
      %1885 = vmatprep.subr.mxu0 0.0
      %1886 = vmatpush1.msra.mxu0 0.0
      %1887 = vmatprep.subr.mxu0 0.0
      %1888 = vmatpush1.msra.mxu0 0.0
      %1889 = vmatprep.subr.mxu0 0.0
      %1890 = vmatpush1.msra.mxu0 0.0
      %1891 = vmatprep.subr.mxu0 0.0
      %1892 = vmatpush1.msra.mxu0 0.0
      %1893 = vmatprep.subr.mxu0 0.0
      %1894 = vmatpush1.msra.mxu0 0.0
      %1895 = vmatprep.subr.mxu0 0.0
      %1896 = vmatpush1.msra.mxu0 0.0
      %1897 = vmatprep.subr.mxu0 0.0
      %1898 = vmatpush1.msra.mxu0 0.0
      %1899 = vmatprep.subr.mxu0 0.0
      %1900 = vmatpush1.msra.mxu0 0.0
      %1901 = vmatprep.subr.mxu0 0.0
      %1902 = vmatpush1.msra.mxu0 0.0
      %1903 = vmatprep.subr.mxu0 0.0
      %1904 = vmatpush1.msra.mxu0 0.0
      %1905 = vmatprep.subr.mxu0 0.0
      %1906 = vmatpush1.msra.mxu0 0.0
      %1907 = vmatprep.subr.mxu0 0.0
      %1908 = vmatpush1.msra.mxu0 0.0
      %1909 = vmatprep.subr.mxu0 0.0
      %1910 = vmatpush1.msra.mxu0 0.0
      %1911 = vmatprep.subr.mxu0 0.0
      %1912 = vmatpush1.msra.mxu0 0.0
      %1913 = vmatprep.subr.mxu0 0.0
      %1914 = vmatpush1.msra.mxu0 0.0
      %1915 = vmatprep.mubr.f32.mxu0 0.0
      %1916 = vmatmul.mubr.f32.gmra.mrb[0].mxu0 %v580
      %v1917 = vpop.f32.mrb[0].mxu0
      %v1918 = vadd.f32 0.0, %v1917
      %v1919 = vpop.f32.mrb[0].mxu0
      %1920 = vmatprep.mubr.f32.mxu0 0.0
      %1921 = vmatmul.mubr.f32.gmra.mrb[0].mxu0 %v582
      %v1922 = vpop.f32.mrb[0].mxu0
      %v1923 = vadd.f32 0.0, %v1922
      %v1924 = vpop.f32.mrb[0].mxu0
      %1925 = vmatprep.mubr.f32.mxu0 0.0
      %1926 = vmatmul.mubr.f32.gmra.mrb[0].mxu0 %v584
      %v1927 = vpop.f32.mrb[0].mxu0
      %v1928 = vadd.f32 0.0, %v1927
      %v1929 = vpop.f32.mrb[0].mxu0
      %1930 = vmatprep.mubr.f32.mxu0 0.0
      %1931 = vmatmul.mubr.f32.gmra.mrb[0].mxu0 %v586
      %v1932 = vpop.f32.mrb[0].mxu0
      %v1933 = vadd.f32 0.0, %v1932
      %v1934 = vpop.f32.mrb[0].mxu0
      %1935 = vmatprep.mubr.f32.mxu0 0.0
      %1936 = vmatmul.mubr.f32.gmra.mrb[0].mxu0 %v588
      %v1937 = vpop.f32.mrb[0].mxu0
      %v1938 = vadd.f32 0.0, %v1937
      %v1939 = vpop.f32.mrb[0].mxu0
      %1940 = vmatprep.mubr.f32.mxu0 0.0
      %1941 = vmatmul.mubr.f32.gmra.mrb[0].mxu0 %v590
      %v1942 = vpop.f32.mrb[0].mxu0
      %v1943 = vadd.f32 0.0, %v1942
      %v1944 = vpop.f32.mrb[0].mxu0
      %1945 = vmatprep.mubr.f32.mxu0 0.0
      %1946 = vmatmul.mubr.f32.gmra.mrb[0].mxu0 %v592
      %v1947 = vpop.f32.mrb[0].mxu0
      %v1948 = vadd.f32 0.0, %v1947
      %v1949 = vpop.f32.mrb[0].mxu0
      %1950 = vmatprep.mubr.f32.mxu0 0.0
      %1951 = vmatmul.mubr.f32.gmra.mrb[0].mxu0 %v594
      %v1952 = vpop.f32.mrb[0].mxu0
      %v1953 = vadd.f32 0.0, %v1952
      %v1954 = vpop.f32.mrb[0].mxu0
      %1955 = vmatprep.mubr.f32.mxu0 0.0
      %1956 = vmatmul.mubr.f32.gmra.mrb[0].mxu0 %v596
      %v1957 = vpop.f32.mrb[0].mxu0
      %v1958 = vadd.f32 0.0, %v1957
      %v1959 = vpop.f32.mrb[0].mxu0
      %1960 = vmatprep.mubr.f32.mxu0 0.0
      %1961 = vmatmul.mubr.f32.gmra.mrb[0].mxu0 %v598
      %v1962 = vpop.f32.mrb[0].mxu0
      %v1963 = vadd.f32 0.0, %v1962
      %v1964 = vpop.f32.mrb[0].mxu0
      %1965 = vmatprep.mubr.f32.mxu0 0.0
      %1966 = vmatmul.mubr.f32.gmra.mrb[0].mxu0 %v600
      %v1967 = vpop.f32.mrb[0].mxu0
      %v1968 = vadd.f32 0.0, %v1967
      %v1969 = vpop.f32.mrb[0].mxu0
      %1970 = vmatprep.mubr.f32.mxu0 0.0
      %1971 = vmatmul.mubr.f32.gmra.mrb[0].mxu0 %v602
      %v1972 = vpop.f32.mrb[0].mxu0
      %v1973 = vadd.f32 0.0, %v1972
      %v1974 = vpop.f32.mrb[0].mxu0
      %1975 = vmatprep.mubr.f32.mxu0 0.0
      %1976 = vmatmul.mubr.f32.gmra.mrb[0].mxu0 %v604
      %v1977 = vpop.f32.mrb[0].mxu0
      %v1978 = vadd.f32 0.0, %v1977
      %v1979 = vpop.f32.mrb[0].mxu0
      %1980 = vmatprep.mubr.f32.mxu0 0.0
      %1981 = vmatmul.mubr.f32.gmra.mrb[0].mxu0 %v606
      %v1982 = vpop.f32.mrb[0].mxu0
      %v1983 = vadd.f32 0.0, %v1982
      %v1984 = vpop.f32.mrb[0].mxu0
      %1985 = vmatprep.mubr.f32.mxu0 0.0
      %1986 = vmatmul.mubr.f32.gmra.mrb[0].mxu0 %v608
      %v1987 = vpop.f32.mrb[0].mxu0
      %v1988 = vadd.f32 0.0, %v1987
      %v1989 = vpop.f32.mrb[0].mxu0
      %1990 = vmatprep.mubr.f32.mxu0 0.0
      %1991 = vmatmul.mubr.f32.gmra.mrb[0].mxu0 %v610
      %v1992 = vpop.f32.mrb[0].mxu0
      %v1993 = vadd.f32 0.0, %v1992
      %v1994 = vpop.f32.mrb[0].mxu0
      %1995 = vmatprep.mubr.f32.mxu0 0.0
      %1996 = vmatmul.mubr.f32.gmra.mrb[0].mxu0 %v612
      %v1997 = vpop.f32.mrb[0].mxu0
      %v1998 = vadd.f32 0.0, %v1997
      %v1999 = vpop.f32.mrb[0].mxu0
      %2000 = vmatprep.mubr.f32.mxu0 0.0
      %2001 = vmatmul.mubr.f32.gmra.mrb[0].mxu0 %v614
      %v2002 = vpop.f32.mrb[0].mxu0
      %v2003 = vadd.f32 0.0, %v2002
      %v2004 = vpop.f32.mrb[0].mxu0
      %2005 = vmatprep.mubr.f32.mxu0 0.0
      %2006 = vmatmul.mubr.f32.gmra.mrb[0].mxu0 %v616
      %v2007 = vpop.f32.mrb[0].mxu0
      %v2008 = vadd.f32 0.0, %v2007
      %v2009 = vpop.f32.mrb[0].mxu0
      %2010 = vmatprep.mubr.f32.mxu0 0.0
      %2011 = vmatmul.mubr.f32.gmra.mrb[0].mxu0 %v618
      %v2012 = vpop.f32.mrb[0].mxu0
      %v2013 = vadd.f32 0.0, %v2012
      %v2014 = vpop.f32.mrb[0].mxu0
      %2015 = vmatprep.mubr.f32.mxu0 0.0
      %2016 = vmatmul.mubr.f32.gmra.mrb[0].mxu0 %v620
      %v2017 = vpop.f32.mrb[0].mxu0
      %v2018 = vadd.f32 0.0, %v2017
      %v2019 = vpop.f32.mrb[0].mxu0
      %2020 = vmatprep.mubr.f32.mxu0 0.0
      %2021 = vmatmul.mubr.f32.gmra.mrb[0].mxu0 %v622
      %v2022 = vpop.f32.mrb[0].mxu0
      %v2023 = vadd.f32 0.0, %v2022
      %v2024 = vpop.f32.mrb[0].mxu0
      %2025 = vmatprep.mubr.f32.mxu0 0.0
      %2026 = vmatmul.mubr.f32.gmra.mrb[0].mxu0 %v624
      %v2027 = vpop.f32.mrb[0].mxu0
      %v2028 = vadd.f32 0.0, %v2027
      %v2029 = vpop.f32.mrb[0].mxu0
      %2030 = vmatprep.mubr.f32.mxu0 0.0
      %2031 = vmatmul.mubr.f32.gmra.mrb[0].mxu0 %v626
      %v2032 = vpop.f32.mrb[0].mxu0
      %v2033 = vadd.f32 0.0, %v2032
      %v2034 = vpop.f32.mrb[0].mxu0
      %2035 = vmatprep.mubr.f32.mxu0 0.0
      %2036 = vmatmul.mubr.f32.gmra.mrb[0].mxu0 %v628
      %v2037 = vpop.f32.mrb[0].mxu0
      %v2038 = vadd.f32 0.0, %v2037
      %v2039 = vpop.f32.mrb[0].mxu0
      %2040 = vmatprep.mubr.f32.mxu0 0.0
      %2041 = vmatmul.mubr.f32.gmra.mrb[0].mxu0 %v630
      %v2042 = vpop.f32.mrb[0].mxu0
      %v2043 = vadd.f32 0.0, %v2042
      %v2044 = vpop.f32.mrb[0].mxu0
      %2045 = vmatprep.mubr.f32.mxu0 0.0
      %2046 = vmatmul.mubr.f32.gmra.mrb[0].mxu0 %v632
      %v2047 = vpop.f32.mrb[0].mxu0
      %v2048 = vadd.f32 0.0, %v2047
      %v2049 = vpop.f32.mrb[0].mxu0
      %2050 = vmatprep.mubr.f32.mxu0 0.0
      %2051 = vmatmul.mubr.f32.gmra.mrb[0].mxu0 %v634
      %v2052 = vpop.f32.mrb[0].mxu0
      %v2053 = vadd.f32 0.0, %v2052
      %v2054 = vpop.f32.mrb[0].mxu0
      %2055 = vmatprep.mubr.f32.mxu0 0.0
      %2056 = vmatmul.mubr.f32.gmra.mrb[0].mxu0 %v636
      %v2057 = vpop.f32.mrb[0].mxu0
      %v2058 = vadd.f32 0.0, %v2057
      %v2059 = vpop.f32.mrb[0].mxu0
      %2060 = vmatprep.mubr.f32.mxu0 0.0
      %2061 = vmatmul.mubr.f32.gmra.mrb[0].mxu0 %v638
      %v2062 = vpop.f32.mrb[0].mxu0
      %v2063 = vadd.f32 0.0, %v2062
      %v2064 = vpop.f32.mrb[0].mxu0
      %2065 = vmatprep.mubr.f32.mxu0 0.0
      %2066 = vmatmul.mubr.f32.gmra.mrb[0].mxu0 %v1844
      %v2067 = vpop.f32.mrb[0].mxu0
      %v2068 = vadd.f32 0.0, %v2067
      %v2069 = vpop.f32.mrb[0].mxu0
      %2070 = vmatprep.mubr.f32.mxu0 0.0
      %2071 = vmatmul.mubr.f32.gmra.mrb[0].mxu0 %v1846
      %v2072 = vpop.f32.mrb[0].mxu0
      %v2073 = vadd.f32 0.0, %v2072
      %v2074 = vpop.f32.mrb[0].mxu0
      %2075 = vdwg.mxu0
      %v2076 = vadd.f32 %v1804, %v1918
      %v2077 = vadd.f32 %v1805, %v1923
      %v2078 = vadd.f32 %v1806, %v1928
      %v2079 = vadd.f32 %v1807, %v1933
      %v2080 = vadd.f32 %v1808, %v1938
      %v2081 = vadd.f32 %v1809, %v1943
      %v2082 = vadd.f32 %v1810, %v1948
      %v2083 = vadd.f32 %v1811, %v1953
      %v2084 = vadd.f32 %v1812, %v1958
      %v2085 = vadd.f32 %v1813, %v1963
      %v2086 = vadd.f32 %v1814, %v1968
      %v2087 = vadd.f32 %v1815, %v1973
      %v2088 = vadd.f32 %v1816, %v1978
      %v2089 = vadd.f32 %v1817, %v1983
      %v2090 = vadd.f32 %v1818, %v1988
      %v2091 = vadd.f32 %v1819, %v1993
      %v2092 = vadd.f32 %v1820, %v1998
      %v2093 = vadd.f32 %v1821, %v2003
      %v2094 = vadd.f32 %v1822, %v2008
      %v2095 = vadd.f32 %v1823, %v2013
      %v2096 = vadd.f32 %v1824, %v2018
      %v2097 = vadd.f32 %v1825, %v2023
      %v2098 = vadd.f32 %v1826, %v2028
      %v2099 = vadd.f32 %v1827, %v2033
      %v2100 = vadd.f32 %v1828, %v2038
      %v2101 = vadd.f32 %v1829, %v2043
      %v2102 = vadd.f32 %v1830, %v2048
      %v2103 = vadd.f32 %v1831, %v2053
      %v2104 = vadd.f32 %v1832, %v2058
      %v2105 = vadd.f32 %v1833, %v2063
      %v2106 = vadd.f32 %v1834, %v2068
      %v2107 = vadd.f32 %v1835, %v2073
      %v2108 = vrot.slane %v438, 2
      %v2109 = vrot.slane %v439, 2
      %v2110 = vsel %vm1161, %v2108, %v2109
      %v2111 = vrot.slane %v440, 2
      %v2112 = vsel %vm1161, %v2109, %v2111
      %s2113 = scalar_lea.vmem %s1, 20
      %v2114 = vld [vmem:[%s2113] sm:$0xf]
      %v2115 = vsel %vm279, %v2110, 0
      %v2117 = vsel %vm279, %v2112, 0
      %v2120 = vsel %vm640, %v2114, 0
      %2122 = vmatprep.subr.mxu0 0.0
      %2123 = vmatpush1.msra.mxu0 %v2120
      %2124 = vmatprep.subr.mxu0 0.0
      %2125 = vmatpush1.msra.mxu0 0.0
      %2126 = vmatprep.subr.mxu0 0.0
      %2127 = vmatpush1.msra.mxu0 0.0
      %2128 = vmatprep.subr.mxu0 0.0
      %2129 = vmatpush1.msra.mxu0 0.0
      %2130 = vmatprep.subr.mxu0 0.0
      %2131 = vmatpush1.msra.mxu0 0.0
      %2132 = vmatprep.subr.mxu0 0.0
      %2133 = vmatpush1.msra.mxu0 0.0
      %2134 = vmatprep.subr.mxu0 0.0
      %2135 = vmatpush1.msra.mxu0 0.0
      %2136 = vmatprep.subr.mxu0 0.0
      %2137 = vmatpush1.msra.mxu0 0.0
      %2138 = vmatprep.subr.mxu0 0.0
      %2139 = vmatpush1.msra.mxu0 0.0
      %2140 = vmatprep.subr.mxu0 0.0
      %2141 = vmatpush1.msra.mxu0 0.0
      %2142 = vmatprep.subr.mxu0 0.0
      %2143 = vmatpush1.msra.mxu0 0.0
      %2144 = vmatprep.subr.mxu0 0.0
      %2145 = vmatpush1.msra.mxu0 0.0
      %2146 = vmatprep.subr.mxu0 0.0
      %2147 = vmatpush1.msra.mxu0 0.0
      %2148 = vmatprep.subr.mxu0 0.0
      %2149 = vmatpush1.msra.mxu0 0.0
      %2150 = vmatprep.subr.mxu0 0.0
      %2151 = vmatpush1.msra.mxu0 0.0
      %2152 = vmatprep.subr.mxu0 0.0
      %2153 = vmatpush1.msra.mxu0 0.0
      %2154 = vmatprep.subr.mxu0 0.0
      %2155 = vmatpush1.msra.mxu0 0.0
      %2156 = vmatprep.subr.mxu0 0.0
      %2157 = vmatpush1.msra.mxu0 0.0
      %2158 = vmatprep.subr.mxu0 0.0
      %2159 = vmatpush1.msra.mxu0 0.0
      %2160 = vmatprep.subr.mxu0 0.0
      %2161 = vmatpush1.msra.mxu0 0.0
      %2162 = vmatprep.subr.mxu0 0.0
      %2163 = vmatpush1.msra.mxu0 0.0
      %2164 = vmatprep.subr.mxu0 0.0
      %2165 = vmatpush1.msra.mxu0 0.0
      %2166 = vmatprep.subr.mxu0 0.0
      %2167 = vmatpush1.msra.mxu0 0.0
      %2168 = vmatprep.subr.mxu0 0.0
      %2169 = vmatpush1.msra.mxu0 0.0
      %2170 = vmatprep.subr.mxu0 0.0
      %2171 = vmatpush1.msra.mxu0 0.0
      %2172 = vmatprep.subr.mxu0 0.0
      %2173 = vmatpush1.msra.mxu0 0.0
      %2174 = vmatprep.subr.mxu0 0.0
      %2175 = vmatpush1.msra.mxu0 0.0
      %2176 = vmatprep.subr.mxu0 0.0
      %2177 = vmatpush1.msra.mxu0 0.0
      %2178 = vmatprep.subr.mxu0 0.0
      %2179 = vmatpush1.msra.mxu0 0.0
      %2180 = vmatprep.subr.mxu0 0.0
      %2181 = vmatpush1.msra.mxu0 0.0
      %2182 = vmatprep.subr.mxu0 0.0
      %2183 = vmatpush1.msra.mxu0 0.0
      %2184 = vmatprep.subr.mxu0 0.0
      %2185 = vmatpush1.msra.mxu0 0.0
      %2186 = vmatprep.mubr.f32.mxu0 0.0
      %2187 = vmatmul.mubr.f32.gmra.mrb[0].mxu0 %v1248
      %v2188 = vpop.f32.mrb[0].mxu0
      %v2189 = vadd.f32 0.0, %v2188
      %v2190 = vpop.f32.mrb[0].mxu0
      %2191 = vmatprep.mubr.f32.mxu0 0.0
      %2192 = vmatmul.mubr.f32.gmra.mrb[0].mxu0 %v1250
      %v2193 = vpop.f32.mrb[0].mxu0
      %v2194 = vadd.f32 0.0, %v2193
      %v2195 = vpop.f32.mrb[0].mxu0
      %2196 = vmatprep.mubr.f32.mxu0 0.0
      %2197 = vmatmul.mubr.f32.gmra.mrb[0].mxu0 %v1252
      %v2198 = vpop.f32.mrb[0].mxu0
      %v2199 = vadd.f32 0.0, %v2198
      %v2200 = vpop.f32.mrb[0].mxu0
      %2201 = vmatprep.mubr.f32.mxu0 0.0
      %2202 = vmatmul.mubr.f32.gmra.mrb[0].mxu0 %v1254
      %v2203 = vpop.f32.mrb[0].mxu0
      %v2204 = vadd.f32 0.0, %v2203
      %v2205 = vpop.f32.mrb[0].mxu0
      %2206 = vmatprep.mubr.f32.mxu0 0.0
      %2207 = vmatmul.mubr.f32.gmra.mrb[0].mxu0 %v1256
      %v2208 = vpop.f32.mrb[0].mxu0
      %v2209 = vadd.f32 0.0, %v2208
      %v2210 = vpop.f32.mrb[0].mxu0
      %2211 = vmatprep.mubr.f32.mxu0 0.0
      %2212 = vmatmul.mubr.f32.gmra.mrb[0].mxu0 %v1258
      %v2213 = vpop.f32.mrb[0].mxu0
      %v2214 = vadd.f32 0.0, %v2213
      %v2215 = vpop.f32.mrb[0].mxu0
      %2216 = vmatprep.mubr.f32.mxu0 0.0
      %2217 = vmatmul.mubr.f32.gmra.mrb[0].mxu0 %v1260
      %v2218 = vpop.f32.mrb[0].mxu0
      %v2219 = vadd.f32 0.0, %v2218
      %v2220 = vpop.f32.mrb[0].mxu0
      %2221 = vmatprep.mubr.f32.mxu0 0.0
      %2222 = vmatmul.mubr.f32.gmra.mrb[0].mxu0 %v1262
      %v2223 = vpop.f32.mrb[0].mxu0
      %v2224 = vadd.f32 0.0, %v2223
      %v2225 = vpop.f32.mrb[0].mxu0
      %2226 = vmatprep.mubr.f32.mxu0 0.0
      %2227 = vmatmul.mubr.f32.gmra.mrb[0].mxu0 %v1264
      %v2228 = vpop.f32.mrb[0].mxu0
      %v2229 = vadd.f32 0.0, %v2228
      %v2230 = vpop.f32.mrb[0].mxu0
      %2231 = vmatprep.mubr.f32.mxu0 0.0
      %2232 = vmatmul.mubr.f32.gmra.mrb[0].mxu0 %v1266
      %v2233 = vpop.f32.mrb[0].mxu0
      %v2234 = vadd.f32 0.0, %v2233
      %v2235 = vpop.f32.mrb[0].mxu0
      %2236 = vmatprep.mubr.f32.mxu0 0.0
      %2237 = vmatmul.mubr.f32.gmra.mrb[0].mxu0 %v1268
      %v2238 = vpop.f32.mrb[0].mxu0
      %v2239 = vadd.f32 0.0, %v2238
      %v2240 = vpop.f32.mrb[0].mxu0
      %2241 = vmatprep.mubr.f32.mxu0 0.0
      %2242 = vmatmul.mubr.f32.gmra.mrb[0].mxu0 %v1270
      %v2243 = vpop.f32.mrb[0].mxu0
      %v2244 = vadd.f32 0.0, %v2243
      %v2245 = vpop.f32.mrb[0].mxu0
      %2246 = vmatprep.mubr.f32.mxu0 0.0
      %2247 = vmatmul.mubr.f32.gmra.mrb[0].mxu0 %v1272
      %v2248 = vpop.f32.mrb[0].mxu0
      %v2249 = vadd.f32 0.0, %v2248
      %v2250 = vpop.f32.mrb[0].mxu0
      %2251 = vmatprep.mubr.f32.mxu0 0.0
      %2252 = vmatmul.mubr.f32.gmra.mrb[0].mxu0 %v1274
      %v2253 = vpop.f32.mrb[0].mxu0
      %v2254 = vadd.f32 0.0, %v2253
      %v2255 = vpop.f32.mrb[0].mxu0
      %2256 = vmatprep.mubr.f32.mxu0 0.0
      %2257 = vmatmul.mubr.f32.gmra.mrb[0].mxu0 %v1276
      %v2258 = vpop.f32.mrb[0].mxu0
      %v2259 = vadd.f32 0.0, %v2258
      %v2260 = vpop.f32.mrb[0].mxu0
      %2261 = vmatprep.mubr.f32.mxu0 0.0
      %2262 = vmatmul.mubr.f32.gmra.mrb[0].mxu0 %v1278
      %v2263 = vpop.f32.mrb[0].mxu0
      %v2264 = vadd.f32 0.0, %v2263
      %v2265 = vpop.f32.mrb[0].mxu0
      %2266 = vmatprep.mubr.f32.mxu0 0.0
      %2267 = vmatmul.mubr.f32.gmra.mrb[0].mxu0 %v1280
      %v2268 = vpop.f32.mrb[0].mxu0
      %v2269 = vadd.f32 0.0, %v2268
      %v2270 = vpop.f32.mrb[0].mxu0
      %2271 = vmatprep.mubr.f32.mxu0 0.0
      %2272 = vmatmul.mubr.f32.gmra.mrb[0].mxu0 %v1282
      %v2273 = vpop.f32.mrb[0].mxu0
      %v2274 = vadd.f32 0.0, %v2273
      %v2275 = vpop.f32.mrb[0].mxu0
      %2276 = vmatprep.mubr.f32.mxu0 0.0
      %2277 = vmatmul.mubr.f32.gmra.mrb[0].mxu0 %v1284
      %v2278 = vpop.f32.mrb[0].mxu0
      %v2279 = vadd.f32 0.0, %v2278
      %v2280 = vpop.f32.mrb[0].mxu0
      %2281 = vmatprep.mubr.f32.mxu0 0.0
      %2282 = vmatmul.mubr.f32.gmra.mrb[0].mxu0 %v1286
      %v2283 = vpop.f32.mrb[0].mxu0
      %v2284 = vadd.f32 0.0, %v2283
      %v2285 = vpop.f32.mrb[0].mxu0
      %2286 = vmatprep.mubr.f32.mxu0 0.0
      %2287 = vmatmul.mubr.f32.gmra.mrb[0].mxu0 %v1288
      %v2288 = vpop.f32.mrb[0].mxu0
      %v2289 = vadd.f32 0.0, %v2288
      %v2290 = vpop.f32.mrb[0].mxu0
      %2291 = vmatprep.mubr.f32.mxu0 0.0
      %2292 = vmatmul.mubr.f32.gmra.mrb[0].mxu0 %v1290
      %v2293 = vpop.f32.mrb[0].mxu0
      %v2294 = vadd.f32 0.0, %v2293
      %v2295 = vpop.f32.mrb[0].mxu0
      %2296 = vmatprep.mubr.f32.mxu0 0.0
      %2297 = vmatmul.mubr.f32.gmra.mrb[0].mxu0 %v1292
      %v2298 = vpop.f32.mrb[0].mxu0
      %v2299 = vadd.f32 0.0, %v2298
      %v2300 = vpop.f32.mrb[0].mxu0
      %2301 = vmatprep.mubr.f32.mxu0 0.0
      %2302 = vmatmul.mubr.f32.gmra.mrb[0].mxu0 %v1294
      %v2303 = vpop.f32.mrb[0].mxu0
      %v2304 = vadd.f32 0.0, %v2303
      %v2305 = vpop.f32.mrb[0].mxu0
      %2306 = vmatprep.mubr.f32.mxu0 0.0
      %2307 = vmatmul.mubr.f32.gmra.mrb[0].mxu0 %v1296
      %v2308 = vpop.f32.mrb[0].mxu0
      %v2309 = vadd.f32 0.0, %v2308
      %v2310 = vpop.f32.mrb[0].mxu0
      %2311 = vmatprep.mubr.f32.mxu0 0.0
      %2312 = vmatmul.mubr.f32.gmra.mrb[0].mxu0 %v1298
      %v2313 = vpop.f32.mrb[0].mxu0
      %v2314 = vadd.f32 0.0, %v2313
      %v2315 = vpop.f32.mrb[0].mxu0
      %2316 = vmatprep.mubr.f32.mxu0 0.0
      %2317 = vmatmul.mubr.f32.gmra.mrb[0].mxu0 %v1300
      %v2318 = vpop.f32.mrb[0].mxu0
      %v2319 = vadd.f32 0.0, %v2318
      %v2320 = vpop.f32.mrb[0].mxu0
      %2321 = vmatprep.mubr.f32.mxu0 0.0
      %2322 = vmatmul.mubr.f32.gmra.mrb[0].mxu0 %v1302
      %v2323 = vpop.f32.mrb[0].mxu0
      %v2324 = vadd.f32 0.0, %v2323
      %v2325 = vpop.f32.mrb[0].mxu0
      %2326 = vmatprep.mubr.f32.mxu0 0.0
      %2327 = vmatmul.mubr.f32.gmra.mrb[0].mxu0 %v1304
      %v2328 = vpop.f32.mrb[0].mxu0
      %v2329 = vadd.f32 0.0, %v2328
      %v2330 = vpop.f32.mrb[0].mxu0
      %2331 = vmatprep.mubr.f32.mxu0 0.0
      %2332 = vmatmul.mubr.f32.gmra.mrb[0].mxu0 %v1306
      %v2333 = vpop.f32.mrb[0].mxu0
      %v2334 = vadd.f32 0.0, %v2333
      %v2335 = vpop.f32.mrb[0].mxu0
      %2336 = vmatprep.mubr.f32.mxu0 0.0
      %2337 = vmatmul.mubr.f32.gmra.mrb[0].mxu0 %v2115
      %v2338 = vpop.f32.mrb[0].mxu0
      %v2339 = vadd.f32 0.0, %v2338
      %v2340 = vpop.f32.mrb[0].mxu0
      %2341 = vmatprep.mubr.f32.mxu0 0.0
      %2342 = vmatmul.mubr.f32.gmra.mrb[0].mxu0 %v2117
      %v2343 = vpop.f32.mrb[0].mxu0
      %v2344 = vadd.f32 0.0, %v2343
      %v2345 = vpop.f32.mrb[0].mxu0
      %2346 = vdwg.mxu0
      %v2347 = vadd.f32 %v2076, %v2189
      %v2348 = vadd.f32 %v2077, %v2194
      %v2349 = vadd.f32 %v2078, %v2199
      %v2350 = vadd.f32 %v2079, %v2204
      %v2351 = vadd.f32 %v2080, %v2209
      %v2352 = vadd.f32 %v2081, %v2214
      %v2353 = vadd.f32 %v2082, %v2219
      %v2354 = vadd.f32 %v2083, %v2224
      %v2355 = vadd.f32 %v2084, %v2229
      %v2356 = vadd.f32 %v2085, %v2234
      %v2357 = vadd.f32 %v2086, %v2239
      %v2358 = vadd.f32 %v2087, %v2244
      %v2359 = vadd.f32 %v2088, %v2249
      %v2360 = vadd.f32 %v2089, %v2254
      %v2361 = vadd.f32 %v2090, %v2259
      %v2362 = vadd.f32 %v2091, %v2264
      %v2363 = vadd.f32 %v2092, %v2269
      %v2364 = vadd.f32 %v2093, %v2274
      %v2365 = vadd.f32 %v2094, %v2279
      %v2366 = vadd.f32 %v2095, %v2284
      %v2367 = vadd.f32 %v2096, %v2289
      %v2368 = vadd.f32 %v2097, %v2294
      %v2369 = vadd.f32 %v2098, %v2299
      %v2370 = vadd.f32 %v2099, %v2304
      %v2371 = vadd.f32 %v2100, %v2309
      %v2372 = vadd.f32 %v2101, %v2314
      %v2373 = vadd.f32 %v2102, %v2319
      %v2374 = vadd.f32 %v2103, %v2324
      %v2375 = vadd.f32 %v2104, %v2329
      %v2376 = vadd.f32 %v2105, %v2334
      %v2377 = vadd.f32 %v2106, %v2339
      %v2378 = vadd.f32 %v2107, %v2344
      %s2379 = scalar_lea.vmem %s1, 24
      %v2380 = vld [vmem:[%s2379] sm:$0xf]
      %v2382 = vsel %vm279, %v441, 0
      %v2385 = vsel %vm279, %v442, 0
      %v2388 = vsel %vm640, %v2380, 0
      %2390 = vmatprep.subr.mxu0 0.0
      %2391 = vmatpush1.msra.mxu0 %v2388
      %2392 = vmatprep.subr.mxu0 0.0
      %2393 = vmatpush1.msra.mxu0 0.0
      %2394 = vmatprep.subr.mxu0 0.0
      %2395 = vmatpush1.msra.mxu0 0.0
      %2396 = vmatprep.subr.mxu0 0.0
      %2397 = vmatpush1.msra.mxu0 0.0
      %2398 = vmatprep.subr.mxu0 0.0
      %2399 = vmatpush1.msra.mxu0 0.0
      %2400 = vmatprep.subr.mxu0 0.0
      %2401 = vmatpush1.msra.mxu0 0.0
      %2402 = vmatprep.subr.mxu0 0.0
      %2403 = vmatpush1.msra.mxu0 0.0
      %2404 = vmatprep.subr.mxu0 0.0
      %2405 = vmatpush1.msra.mxu0 0.0
      %2406 = vmatprep.subr.mxu0 0.0
      %2407 = vmatpush1.msra.mxu0 0.0
      %2408 = vmatprep.subr.mxu0 0.0
      %2409 = vmatpush1.msra.mxu0 0.0
      %2410 = vmatprep.subr.mxu0 0.0
      %2411 = vmatpush1.msra.mxu0 0.0
      %2412 = vmatprep.subr.mxu0 0.0
      %2413 = vmatpush1.msra.mxu0 0.0
      %2414 = vmatprep.subr.mxu0 0.0
      %2415 = vmatpush1.msra.mxu0 0.0
      %2416 = vmatprep.subr.mxu0 0.0
      %2417 = vmatpush1.msra.mxu0 0.0
      %2418 = vmatprep.subr.mxu0 0.0
      %2419 = vmatpush1.msra.mxu0 0.0
      %2420 = vmatprep.subr.mxu0 0.0
      %2421 = vmatpush1.msra.mxu0 0.0
      %2422 = vmatprep.subr.mxu0 0.0
      %2423 = vmatpush1.msra.mxu0 0.0
      %2424 = vmatprep.subr.mxu0 0.0
      %2425 = vmatpush1.msra.mxu0 0.0
      %2426 = vmatprep.subr.mxu0 0.0
      %2427 = vmatpush1.msra.mxu0 0.0
      %2428 = vmatprep.subr.mxu0 0.0
      %2429 = vmatpush1.msra.mxu0 0.0
      %2430 = vmatprep.subr.mxu0 0.0
      %2431 = vmatpush1.msra.mxu0 0.0
      %2432 = vmatprep.subr.mxu0 0.0
      %2433 = vmatpush1.msra.mxu0 0.0
      %2434 = vmatprep.subr.mxu0 0.0
      %2435 = vmatpush1.msra.mxu0 0.0
      %2436 = vmatprep.subr.mxu0 0.0
      %2437 = vmatpush1.msra.mxu0 0.0
      %2438 = vmatprep.subr.mxu0 0.0
      %2439 = vmatpush1.msra.mxu0 0.0
      %2440 = vmatprep.subr.mxu0 0.0
      %2441 = vmatpush1.msra.mxu0 0.0
      %2442 = vmatprep.subr.mxu0 0.0
      %2443 = vmatpush1.msra.mxu0 0.0
      %2444 = vmatprep.subr.mxu0 0.0
      %2445 = vmatpush1.msra.mxu0 0.0
      %2446 = vmatprep.subr.mxu0 0.0
      %2447 = vmatpush1.msra.mxu0 0.0
      %2448 = vmatprep.subr.mxu0 0.0
      %2449 = vmatpush1.msra.mxu0 0.0
      %2450 = vmatprep.subr.mxu0 0.0
      %2451 = vmatpush1.msra.mxu0 0.0
      %2452 = vmatprep.subr.mxu0 0.0
      %2453 = vmatpush1.msra.mxu0 0.0
      %2454 = vmatprep.mubr.f32.mxu0 0.0
      %2455 = vmatmul.mubr.f32.gmra.mrb[0].mxu0 %v877
      %v2456 = vpop.f32.mrb[0].mxu0
      %v2457 = vadd.f32 0.0, %v2456
      %v2458 = vpop.f32.mrb[0].mxu0
      %2459 = vmatprep.mubr.f32.mxu0 0.0
      %2460 = vmatmul.mubr.f32.gmra.mrb[0].mxu0 %v879
      %v2461 = vpop.f32.mrb[0].mxu0
      %v2462 = vadd.f32 0.0, %v2461
      %v2463 = vpop.f32.mrb[0].mxu0
      %2464 = vmatprep.mubr.f32.mxu0 0.0
      %2465 = vmatmul.mubr.f32.gmra.mrb[0].mxu0 %v881
      %v2466 = vpop.f32.mrb[0].mxu0
      %v2467 = vadd.f32 0.0, %v2466
      %v2468 = vpop.f32.mrb[0].mxu0
      %2469 = vmatprep.mubr.f32.mxu0 0.0
      %2470 = vmatmul.mubr.f32.gmra.mrb[0].mxu0 %v883
      %v2471 = vpop.f32.mrb[0].mxu0
      %v2472 = vadd.f32 0.0, %v2471
      %v2473 = vpop.f32.mrb[0].mxu0
      %2474 = vmatprep.mubr.f32.mxu0 0.0
      %2475 = vmatmul.mubr.f32.gmra.mrb[0].mxu0 %v885
      %v2476 = vpop.f32.mrb[0].mxu0
      %v2477 = vadd.f32 0.0, %v2476
      %v2478 = vpop.f32.mrb[0].mxu0
      %2479 = vmatprep.mubr.f32.mxu0 0.0
      %2480 = vmatmul.mubr.f32.gmra.mrb[0].mxu0 %v887
      %v2481 = vpop.f32.mrb[0].mxu0
      %v2482 = vadd.f32 0.0, %v2481
      %v2483 = vpop.f32.mrb[0].mxu0
      %2484 = vmatprep.mubr.f32.mxu0 0.0
      %2485 = vmatmul.mubr.f32.gmra.mrb[0].mxu0 %v889
      %v2486 = vpop.f32.mrb[0].mxu0
      %v2487 = vadd.f32 0.0, %v2486
      %v2488 = vpop.f32.mrb[0].mxu0
      %2489 = vmatprep.mubr.f32.mxu0 0.0
      %2490 = vmatmul.mubr.f32.gmra.mrb[0].mxu0 %v891
      %v2491 = vpop.f32.mrb[0].mxu0
      %v2492 = vadd.f32 0.0, %v2491
      %v2493 = vpop.f32.mrb[0].mxu0
      %2494 = vmatprep.mubr.f32.mxu0 0.0
      %2495 = vmatmul.mubr.f32.gmra.mrb[0].mxu0 %v893
      %v2496 = vpop.f32.mrb[0].mxu0
      %v2497 = vadd.f32 0.0, %v2496
      %v2498 = vpop.f32.mrb[0].mxu0
      %2499 = vmatprep.mubr.f32.mxu0 0.0
      %2500 = vmatmul.mubr.f32.gmra.mrb[0].mxu0 %v895
      %v2501 = vpop.f32.mrb[0].mxu0
      %v2502 = vadd.f32 0.0, %v2501
      %v2503 = vpop.f32.mrb[0].mxu0
      %2504 = vmatprep.mubr.f32.mxu0 0.0
      %2505 = vmatmul.mubr.f32.gmra.mrb[0].mxu0 %v897
      %v2506 = vpop.f32.mrb[0].mxu0
      %v2507 = vadd.f32 0.0, %v2506
      %v2508 = vpop.f32.mrb[0].mxu0
      %2509 = vmatprep.mubr.f32.mxu0 0.0
      %2510 = vmatmul.mubr.f32.gmra.mrb[0].mxu0 %v899
      %v2511 = vpop.f32.mrb[0].mxu0
      %v2512 = vadd.f32 0.0, %v2511
      %v2513 = vpop.f32.mrb[0].mxu0
      %2514 = vmatprep.mubr.f32.mxu0 0.0
      %2515 = vmatmul.mubr.f32.gmra.mrb[0].mxu0 %v901
      %v2516 = vpop.f32.mrb[0].mxu0
      %v2517 = vadd.f32 0.0, %v2516
      %v2518 = vpop.f32.mrb[0].mxu0
      %2519 = vmatprep.mubr.f32.mxu0 0.0
      %2520 = vmatmul.mubr.f32.gmra.mrb[0].mxu0 %v903
      %v2521 = vpop.f32.mrb[0].mxu0
      %v2522 = vadd.f32 0.0, %v2521
      %v2523 = vpop.f32.mrb[0].mxu0
      %2524 = vmatprep.mubr.f32.mxu0 0.0
      %2525 = vmatmul.mubr.f32.gmra.mrb[0].mxu0 %v905
      %v2526 = vpop.f32.mrb[0].mxu0
      %v2527 = vadd.f32 0.0, %v2526
      %v2528 = vpop.f32.mrb[0].mxu0
      %2529 = vmatprep.mubr.f32.mxu0 0.0
      %2530 = vmatmul.mubr.f32.gmra.mrb[0].mxu0 %v907
      %v2531 = vpop.f32.mrb[0].mxu0
      %v2532 = vadd.f32 0.0, %v2531
      %v2533 = vpop.f32.mrb[0].mxu0
      %2534 = vmatprep.mubr.f32.mxu0 0.0
      %2535 = vmatmul.mubr.f32.gmra.mrb[0].mxu0 %v909
      %v2536 = vpop.f32.mrb[0].mxu0
      %v2537 = vadd.f32 0.0, %v2536
      %v2538 = vpop.f32.mrb[0].mxu0
      %2539 = vmatprep.mubr.f32.mxu0 0.0
      %2540 = vmatmul.mubr.f32.gmra.mrb[0].mxu0 %v911
      %v2541 = vpop.f32.mrb[0].mxu0
      %v2542 = vadd.f32 0.0, %v2541
      %v2543 = vpop.f32.mrb[0].mxu0
      %2544 = vmatprep.mubr.f32.mxu0 0.0
      %2545 = vmatmul.mubr.f32.gmra.mrb[0].mxu0 %v913
      %v2546 = vpop.f32.mrb[0].mxu0
      %v2547 = vadd.f32 0.0, %v2546
      %v2548 = vpop.f32.mrb[0].mxu0
      %2549 = vmatprep.mubr.f32.mxu0 0.0
      %2550 = vmatmul.mubr.f32.gmra.mrb[0].mxu0 %v915
      %v2551 = vpop.f32.mrb[0].mxu0
      %v2552 = vadd.f32 0.0, %v2551
      %v2553 = vpop.f32.mrb[0].mxu0
      %2554 = vmatprep.mubr.f32.mxu0 0.0
      %2555 = vmatmul.mubr.f32.gmra.mrb[0].mxu0 %v917
      %v2556 = vpop.f32.mrb[0].mxu0
      %v2557 = vadd.f32 0.0, %v2556
      %v2558 = vpop.f32.mrb[0].mxu0
      %2559 = vmatprep.mubr.f32.mxu0 0.0
      %2560 = vmatmul.mubr.f32.gmra.mrb[0].mxu0 %v919
      %v2561 = vpop.f32.mrb[0].mxu0
      %v2562 = vadd.f32 0.0, %v2561
      %v2563 = vpop.f32.mrb[0].mxu0
      %2564 = vmatprep.mubr.f32.mxu0 0.0
      %2565 = vmatmul.mubr.f32.gmra.mrb[0].mxu0 %v921
      %v2566 = vpop.f32.mrb[0].mxu0
      %v2567 = vadd.f32 0.0, %v2566
      %v2568 = vpop.f32.mrb[0].mxu0
      %2569 = vmatprep.mubr.f32.mxu0 0.0
      %2570 = vmatmul.mubr.f32.gmra.mrb[0].mxu0 %v923
      %v2571 = vpop.f32.mrb[0].mxu0
      %v2572 = vadd.f32 0.0, %v2571
      %v2573 = vpop.f32.mrb[0].mxu0
      %2574 = vmatprep.mubr.f32.mxu0 0.0
      %2575 = vmatmul.mubr.f32.gmra.mrb[0].mxu0 %v925
      %v2576 = vpop.f32.mrb[0].mxu0
      %v2577 = vadd.f32 0.0, %v2576
      %v2578 = vpop.f32.mrb[0].mxu0
      %2579 = vmatprep.mubr.f32.mxu0 0.0
      %2580 = vmatmul.mubr.f32.gmra.mrb[0].mxu0 %v927
      %v2581 = vpop.f32.mrb[0].mxu0
      %v2582 = vadd.f32 0.0, %v2581
      %v2583 = vpop.f32.mrb[0].mxu0
      %2584 = vmatprep.mubr.f32.mxu0 0.0
      %2585 = vmatmul.mubr.f32.gmra.mrb[0].mxu0 %v929
      %v2586 = vpop.f32.mrb[0].mxu0
      %v2587 = vadd.f32 0.0, %v2586
      %v2588 = vpop.f32.mrb[0].mxu0
      %2589 = vmatprep.mubr.f32.mxu0 0.0
      %2590 = vmatmul.mubr.f32.gmra.mrb[0].mxu0 %v931
      %v2591 = vpop.f32.mrb[0].mxu0
      %v2592 = vadd.f32 0.0, %v2591
      %v2593 = vpop.f32.mrb[0].mxu0
      %2594 = vmatprep.mubr.f32.mxu0 0.0
      %2595 = vmatmul.mubr.f32.gmra.mrb[0].mxu0 %v1571
      %v2596 = vpop.f32.mrb[0].mxu0
      %v2597 = vadd.f32 0.0, %v2596
      %v2598 = vpop.f32.mrb[0].mxu0
      %2599 = vmatprep.mubr.f32.mxu0 0.0
      %2600 = vmatmul.mubr.f32.gmra.mrb[0].mxu0 %v1574
      %v2601 = vpop.f32.mrb[0].mxu0
      %v2602 = vadd.f32 0.0, %v2601
      %v2603 = vpop.f32.mrb[0].mxu0
      %2604 = vmatprep.mubr.f32.mxu0 0.0
      %2605 = vmatmul.mubr.f32.gmra.mrb[0].mxu0 %v2382
      %v2606 = vpop.f32.mrb[0].mxu0
      %v2607 = vadd.f32 0.0, %v2606
      %v2608 = vpop.f32.mrb[0].mxu0
      %2609 = vmatprep.mubr.f32.mxu0 0.0
      %2610 = vmatmul.mubr.f32.gmra.mrb[0].mxu0 %v2385
      %v2611 = vpop.f32.mrb[0].mxu0
      %v2612 = vadd.f32 0.0, %v2611
      %v2613 = vpop.f32.mrb[0].mxu0
      %2614 = vdwg.mxu0
      %v2615 = vadd.f32 %v2347, %v2457
      %v2616 = vadd.f32 %v2348, %v2462
      %v2617 = vadd.f32 %v2349, %v2467
      %v2618 = vadd.f32 %v2350, %v2472
      %v2619 = vadd.f32 %v2351, %v2477
      %v2620 = vadd.f32 %v2352, %v2482
      %v2621 = vadd.f32 %v2353, %v2487
      %v2622 = vadd.f32 %v2354, %v2492
      %v2623 = vadd.f32 %v2355, %v2497
      %v2624 = vadd.f32 %v2356, %v2502
      %v2625 = vadd.f32 %v2357, %v2507
      %v2626 = vadd.f32 %v2358, %v2512
      %v2627 = vadd.f32 %v2359, %v2517
      %v2628 = vadd.f32 %v2360, %v2522
      %v2629 = vadd.f32 %v2361, %v2527
      %v2630 = vadd.f32 %v2362, %v2532
      %v2631 = vadd.f32 %v2363, %v2537
      %v2632 = vadd.f32 %v2364, %v2542
      %v2633 = vadd.f32 %v2365, %v2547
      %v2634 = vadd.f32 %v2366, %v2552
      %v2635 = vadd.f32 %v2367, %v2557
      %v2636 = vadd.f32 %v2368, %v2562
      %v2637 = vadd.f32 %v2369, %v2567
      %v2638 = vadd.f32 %v2370, %v2572
      %v2639 = vadd.f32 %v2371, %v2577
      %v2640 = vadd.f32 %v2372, %v2582
      %v2641 = vadd.f32 %v2373, %v2587
      %v2642 = vadd.f32 %v2374, %v2592
      %v2643 = vadd.f32 %v2375, %v2597
      %v2644 = vadd.f32 %v2376, %v2602
      %v2645 = vadd.f32 %v2377, %v2607
      %v2646 = vadd.f32 %v2378, %v2612
      %v2648 = vrot.slane %v441, 1
      %v2649 = vrot.slane %v442, 1
      %v2650 = vsel %vm493, %v2648, %v2649
      %v2651 = vrot.slane %v443, 1
      %v2652 = vsel %vm493, %v2649, %v2651
      %s2653 = scalar_lea.vmem %s1, 28
      %v2654 = vld [vmem:[%s2653] sm:$0xf]
      %v2655 = vsel %vm279, %v2650, 0
      %v2657 = vsel %vm279, %v2652, 0
      %v2660 = vsel %vm640, %v2654, 0
      %2662 = vmatprep.subr.mxu0 0.0
      %2663 = vmatpush1.msra.mxu0 %v2660
      %2664 = vmatprep.subr.mxu0 0.0
      %2665 = vmatpush1.msra.mxu0 0.0
      %2666 = vmatprep.subr.mxu0 0.0
      %2667 = vmatpush1.msra.mxu0 0.0
      %2668 = vmatprep.subr.mxu0 0.0
      %2669 = vmatpush1.msra.mxu0 0.0
      %2670 = vmatprep.subr.mxu0 0.0
      %2671 = vmatpush1.msra.mxu0 0.0
      %2672 = vmatprep.subr.mxu0 0.0
      %2673 = vmatpush1.msra.mxu0 0.0
      %2674 = vmatprep.subr.mxu0 0.0
      %2675 = vmatpush1.msra.mxu0 0.0
      %2676 = vmatprep.subr.mxu0 0.0
      %2677 = vmatpush1.msra.mxu0 0.0
      %2678 = vmatprep.subr.mxu0 0.0
      %2679 = vmatpush1.msra.mxu0 0.0
      %2680 = vmatprep.subr.mxu0 0.0
      %2681 = vmatpush1.msra.mxu0 0.0
      %2682 = vmatprep.subr.mxu0 0.0
      %2683 = vmatpush1.msra.mxu0 0.0
      %2684 = vmatprep.subr.mxu0 0.0
      %2685 = vmatpush1.msra.mxu0 0.0
      %2686 = vmatprep.subr.mxu0 0.0
      %2687 = vmatpush1.msra.mxu0 0.0
      %2688 = vmatprep.subr.mxu0 0.0
      %2689 = vmatpush1.msra.mxu0 0.0
      %2690 = vmatprep.subr.mxu0 0.0
      %2691 = vmatpush1.msra.mxu0 0.0
      %2692 = vmatprep.subr.mxu0 0.0
      %2693 = vmatpush1.msra.mxu0 0.0
      %2694 = vmatprep.subr.mxu0 0.0
      %2695 = vmatpush1.msra.mxu0 0.0
      %2696 = vmatprep.subr.mxu0 0.0
      %2697 = vmatpush1.msra.mxu0 0.0
      %2698 = vmatprep.subr.mxu0 0.0
      %2699 = vmatpush1.msra.mxu0 0.0
      %2700 = vmatprep.subr.mxu0 0.0
      %2701 = vmatpush1.msra.mxu0 0.0
      %2702 = vmatprep.subr.mxu0 0.0
      %2703 = vmatpush1.msra.mxu0 0.0
      %2704 = vmatprep.subr.mxu0 0.0
      %2705 = vmatpush1.msra.mxu0 0.0
      %2706 = vmatprep.subr.mxu0 0.0
      %2707 = vmatpush1.msra.mxu0 0.0
      %2708 = vmatprep.subr.mxu0 0.0
      %2709 = vmatpush1.msra.mxu0 0.0
      %2710 = vmatprep.subr.mxu0 0.0
      %2711 = vmatpush1.msra.mxu0 0.0
      %2712 = vmatprep.subr.mxu0 0.0
      %2713 = vmatpush1.msra.mxu0 0.0
      %2714 = vmatprep.subr.mxu0 0.0
      %2715 = vmatpush1.msra.mxu0 0.0
      %2716 = vmatprep.subr.mxu0 0.0
      %2717 = vmatpush1.msra.mxu0 0.0
      %2718 = vmatprep.subr.mxu0 0.0
      %2719 = vmatpush1.msra.mxu0 0.0
      %2720 = vmatprep.subr.mxu0 0.0
      %2721 = vmatpush1.msra.mxu0 0.0
      %2722 = vmatprep.subr.mxu0 0.0
      %2723 = vmatpush1.msra.mxu0 0.0
      %2724 = vmatprep.subr.mxu0 0.0
      %2725 = vmatpush1.msra.mxu0 0.0
      %2726 = vmatprep.mubr.f32.mxu0 0.0
      %2727 = vmatmul.mubr.f32.gmra.mrb[0].mxu0 %v584
      %v2728 = vpop.f32.mrb[0].mxu0
      %v2729 = vadd.f32 0.0, %v2728
      %v2730 = vpop.f32.mrb[0].mxu0
      %2731 = vmatprep.mubr.f32.mxu0 0.0
      %2732 = vmatmul.mubr.f32.gmra.mrb[0].mxu0 %v586
      %v2733 = vpop.f32.mrb[0].mxu0
      %v2734 = vadd.f32 0.0, %v2733
      %v2735 = vpop.f32.mrb[0].mxu0
      %2736 = vmatprep.mubr.f32.mxu0 0.0
      %2737 = vmatmul.mubr.f32.gmra.mrb[0].mxu0 %v588
      %v2738 = vpop.f32.mrb[0].mxu0
      %v2739 = vadd.f32 0.0, %v2738
      %v2740 = vpop.f32.mrb[0].mxu0
      %2741 = vmatprep.mubr.f32.mxu0 0.0
      %2742 = vmatmul.mubr.f32.gmra.mrb[0].mxu0 %v590
      %v2743 = vpop.f32.mrb[0].mxu0
      %v2744 = vadd.f32 0.0, %v2743
      %v2745 = vpop.f32.mrb[0].mxu0
      %2746 = vmatprep.mubr.f32.mxu0 0.0
      %2747 = vmatmul.mubr.f32.gmra.mrb[0].mxu0 %v592
      %v2748 = vpop.f32.mrb[0].mxu0
      %v2749 = vadd.f32 0.0, %v2748
      %v2750 = vpop.f32.mrb[0].mxu0
      %2751 = vmatprep.mubr.f32.mxu0 0.0
      %2752 = vmatmul.mubr.f32.gmra.mrb[0].mxu0 %v594
      %v2753 = vpop.f32.mrb[0].mxu0
      %v2754 = vadd.f32 0.0, %v2753
      %v2755 = vpop.f32.mrb[0].mxu0
      %2756 = vmatprep.mubr.f32.mxu0 0.0
      %2757 = vmatmul.mubr.f32.gmra.mrb[0].mxu0 %v596
      %v2758 = vpop.f32.mrb[0].mxu0
      %v2759 = vadd.f32 0.0, %v2758
      %v2760 = vpop.f32.mrb[0].mxu0
      %2761 = vmatprep.mubr.f32.mxu0 0.0
      %2762 = vmatmul.mubr.f32.gmra.mrb[0].mxu0 %v598
      %v2763 = vpop.f32.mrb[0].mxu0
      %v2764 = vadd.f32 0.0, %v2763
      %v2765 = vpop.f32.mrb[0].mxu0
      %2766 = vmatprep.mubr.f32.mxu0 0.0
      %2767 = vmatmul.mubr.f32.gmra.mrb[0].mxu0 %v600
      %v2768 = vpop.f32.mrb[0].mxu0
      %v2769 = vadd.f32 0.0, %v2768
      %v2770 = vpop.f32.mrb[0].mxu0
      %2771 = vmatprep.mubr.f32.mxu0 0.0
      %2772 = vmatmul.mubr.f32.gmra.mrb[0].mxu0 %v602
      %v2773 = vpop.f32.mrb[0].mxu0
      %v2774 = vadd.f32 0.0, %v2773
      %v2775 = vpop.f32.mrb[0].mxu0
      %2776 = vmatprep.mubr.f32.mxu0 0.0
      %2777 = vmatmul.mubr.f32.gmra.mrb[0].mxu0 %v604
      %v2778 = vpop.f32.mrb[0].mxu0
      %v2779 = vadd.f32 0.0, %v2778
      %v2780 = vpop.f32.mrb[0].mxu0
      %2781 = vmatprep.mubr.f32.mxu0 0.0
      %2782 = vmatmul.mubr.f32.gmra.mrb[0].mxu0 %v606
      %v2783 = vpop.f32.mrb[0].mxu0
      %v2784 = vadd.f32 0.0, %v2783
      %v2785 = vpop.f32.mrb[0].mxu0
      %2786 = vmatprep.mubr.f32.mxu0 0.0
      %2787 = vmatmul.mubr.f32.gmra.mrb[0].mxu0 %v608
      %v2788 = vpop.f32.mrb[0].mxu0
      %v2789 = vadd.f32 0.0, %v2788
      %v2790 = vpop.f32.mrb[0].mxu0
      %2791 = vmatprep.mubr.f32.mxu0 0.0
      %2792 = vmatmul.mubr.f32.gmra.mrb[0].mxu0 %v610
      %v2793 = vpop.f32.mrb[0].mxu0
      %v2794 = vadd.f32 0.0, %v2793
      %v2795 = vpop.f32.mrb[0].mxu0
      %2796 = vmatprep.mubr.f32.mxu0 0.0
      %2797 = vmatmul.mubr.f32.gmra.mrb[0].mxu0 %v612
      %v2798 = vpop.f32.mrb[0].mxu0
      %v2799 = vadd.f32 0.0, %v2798
      %v2800 = vpop.f32.mrb[0].mxu0
      %2801 = vmatprep.mubr.f32.mxu0 0.0
      %2802 = vmatmul.mubr.f32.gmra.mrb[0].mxu0 %v614
      %v2803 = vpop.f32.mrb[0].mxu0
      %v2804 = vadd.f32 0.0, %v2803
      %v2805 = vpop.f32.mrb[0].mxu0
      %2806 = vmatprep.mubr.f32.mxu0 0.0
      %2807 = vmatmul.mubr.f32.gmra.mrb[0].mxu0 %v616
      %v2808 = vpop.f32.mrb[0].mxu0
      %v2809 = vadd.f32 0.0, %v2808
      %v2810 = vpop.f32.mrb[0].mxu0
      %2811 = vmatprep.mubr.f32.mxu0 0.0
      %2812 = vmatmul.mubr.f32.gmra.mrb[0].mxu0 %v618
      %v2813 = vpop.f32.mrb[0].mxu0
      %v2814 = vadd.f32 0.0, %v2813
      %v2815 = vpop.f32.mrb[0].mxu0
      %2816 = vmatprep.mubr.f32.mxu0 0.0
      %2817 = vmatmul.mubr.f32.gmra.mrb[0].mxu0 %v620
      %v2818 = vpop.f32.mrb[0].mxu0
      %v2819 = vadd.f32 0.0, %v2818
      %v2820 = vpop.f32.mrb[0].mxu0
      %2821 = vmatprep.mubr.f32.mxu0 0.0
      %2822 = vmatmul.mubr.f32.gmra.mrb[0].mxu0 %v622
      %v2823 = vpop.f32.mrb[0].mxu0
      %v2824 = vadd.f32 0.0, %v2823
      %v2825 = vpop.f32.mrb[0].mxu0
      %2826 = vmatprep.mubr.f32.mxu0 0.0
      %2827 = vmatmul.mubr.f32.gmra.mrb[0].mxu0 %v624
      %v2828 = vpop.f32.mrb[0].mxu0
      %v2829 = vadd.f32 0.0, %v2828
      %v2830 = vpop.f32.mrb[0].mxu0
      %2831 = vmatprep.mubr.f32.mxu0 0.0
      %2832 = vmatmul.mubr.f32.gmra.mrb[0].mxu0 %v626
      %v2833 = vpop.f32.mrb[0].mxu0
      %v2834 = vadd.f32 0.0, %v2833
      %v2835 = vpop.f32.mrb[0].mxu0
      %2836 = vmatprep.mubr.f32.mxu0 0.0
      %2837 = vmatmul.mubr.f32.gmra.mrb[0].mxu0 %v628
      %v2838 = vpop.f32.mrb[0].mxu0
      %v2839 = vadd.f32 0.0, %v2838
      %v2840 = vpop.f32.mrb[0].mxu0
      %2841 = vmatprep.mubr.f32.mxu0 0.0
      %2842 = vmatmul.mubr.f32.gmra.mrb[0].mxu0 %v630
      %v2843 = vpop.f32.mrb[0].mxu0
      %v2844 = vadd.f32 0.0, %v2843
      %v2845 = vpop.f32.mrb[0].mxu0
      %2846 = vmatprep.mubr.f32.mxu0 0.0
      %2847 = vmatmul.mubr.f32.gmra.mrb[0].mxu0 %v632
      %v2848 = vpop.f32.mrb[0].mxu0
      %v2849 = vadd.f32 0.0, %v2848
      %v2850 = vpop.f32.mrb[0].mxu0
      %2851 = vmatprep.mubr.f32.mxu0 0.0
      %2852 = vmatmul.mubr.f32.gmra.mrb[0].mxu0 %v634
      %v2853 = vpop.f32.mrb[0].mxu0
      %v2854 = vadd.f32 0.0, %v2853
      %v2855 = vpop.f32.mrb[0].mxu0
      %2856 = vmatprep.mubr.f32.mxu0 0.0
      %2857 = vmatmul.mubr.f32.gmra.mrb[0].mxu0 %v636
      %v2858 = vpop.f32.mrb[0].mxu0
      %v2859 = vadd.f32 0.0, %v2858
      %v2860 = vpop.f32.mrb[0].mxu0
      %2861 = vmatprep.mubr.f32.mxu0 0.0
      %2862 = vmatmul.mubr.f32.gmra.mrb[0].mxu0 %v638
      %v2863 = vpop.f32.mrb[0].mxu0
      %v2864 = vadd.f32 0.0, %v2863
      %v2865 = vpop.f32.mrb[0].mxu0
      %2866 = vmatprep.mubr.f32.mxu0 0.0
      %2867 = vmatmul.mubr.f32.gmra.mrb[0].mxu0 %v1844
      %v2868 = vpop.f32.mrb[0].mxu0
      %v2869 = vadd.f32 0.0, %v2868
      %v2870 = vpop.f32.mrb[0].mxu0
      %2871 = vmatprep.mubr.f32.mxu0 0.0
      %2872 = vmatmul.mubr.f32.gmra.mrb[0].mxu0 %v1846
      %v2873 = vpop.f32.mrb[0].mxu0
      %v2874 = vadd.f32 0.0, %v2873
      %v2875 = vpop.f32.mrb[0].mxu0
      %2876 = vmatprep.mubr.f32.mxu0 0.0
      %2877 = vmatmul.mubr.f32.gmra.mrb[0].mxu0 %v2655
      %v2878 = vpop.f32.mrb[0].mxu0
      %v2879 = vadd.f32 0.0, %v2878
      %v2880 = vpop.f32.mrb[0].mxu0
      %2881 = vmatprep.mubr.f32.mxu0 0.0
      %2882 = vmatmul.mubr.f32.gmra.mrb[0].mxu0 %v2657
      %v2883 = vpop.f32.mrb[0].mxu0
      %v2884 = vadd.f32 0.0, %v2883
      %v2885 = vpop.f32.mrb[0].mxu0
      %2886 = vdwg.mxu0
      %v2887 = vadd.f32 %v2615, %v2729
      %v2888 = vadd.f32 %v2616, %v2734
      %v2889 = vadd.f32 %v2617, %v2739
      %v2890 = vadd.f32 %v2618, %v2744
      %v2891 = vadd.f32 %v2619, %v2749
      %v2892 = vadd.f32 %v2620, %v2754
      %v2893 = vadd.f32 %v2621, %v2759
      %v2894 = vadd.f32 %v2622, %v2764
      %v2895 = vadd.f32 %v2623, %v2769
      %v2896 = vadd.f32 %v2624, %v2774
      %v2897 = vadd.f32 %v2625, %v2779
      %v2898 = vadd.f32 %v2626, %v2784
      %v2899 = vadd.f32 %v2627, %v2789
      %v2900 = vadd.f32 %v2628, %v2794
      %v2901 = vadd.f32 %v2629, %v2799
      %v2902 = vadd.f32 %v2630, %v2804
      %v2903 = vadd.f32 %v2631, %v2809
      %v2904 = vadd.f32 %v2632, %v2814
      %v2905 = vadd.f32 %v2633, %v2819
      %v2906 = vadd.f32 %v2634, %v2824
      %v2907 = vadd.f32 %v2635, %v2829
      %v2908 = vadd.f32 %v2636, %v2834
      %v2909 = vadd.f32 %v2637, %v2839
      %v2910 = vadd.f32 %v2638, %v2844
      %v2911 = vadd.f32 %v2639, %v2849
      %v2912 = vadd.f32 %v2640, %v2854
      %v2913 = vadd.f32 %v2641, %v2859
      %v2914 = vadd.f32 %v2642, %v2864
      %v2915 = vadd.f32 %v2643, %v2869
      %v2916 = vadd.f32 %v2644, %v2874
      %v2917 = vadd.f32 %v2645, %v2879
      %v2918 = vadd.f32 %v2646, %v2884
      %v2919 = vrot.slane %v441, 2
      %v2920 = vrot.slane %v442, 2
      %v2921 = vsel %vm1161, %v2919, %v2920
      %v2922 = vrot.slane %v443, 2
      %v2923 = vsel %vm1161, %v2920, %v2922
      %s2924 = scalar_lea.vmem %s1, 32
      %v2925 = vld [vmem:[%s2924] sm:$0xf]
      %v2926 = vsel %vm279, %v2921, 0
      %v2928 = vsel %vm279, %v2923, 0
      %v2931 = vsel %vm640, %v2925, 0
      %2933 = vmatprep.subr.mxu0 0.0
      %2934 = vmatpush1.msra.mxu0 %v2931
      %2935 = vmatprep.subr.mxu0 0.0
      %2936 = vmatpush1.msra.mxu0 0.0
      %2937 = vmatprep.subr.mxu0 0.0
      %2938 = vmatpush1.msra.mxu0 0.0
      %2939 = vmatprep.subr.mxu0 0.0
      %2940 = vmatpush1.msra.mxu0 0.0
      %2941 = vmatprep.subr.mxu0 0.0
      %2942 = vmatpush1.msra.mxu0 0.0
      %2943 = vmatprep.subr.mxu0 0.0
      %2944 = vmatpush1.msra.mxu0 0.0
      %2945 = vmatprep.subr.mxu0 0.0
      %2946 = vmatpush1.msra.mxu0 0.0
      %2947 = vmatprep.subr.mxu0 0.0
      %2948 = vmatpush1.msra.mxu0 0.0
      %2949 = vmatprep.subr.mxu0 0.0
      %2950 = vmatpush1.msra.mxu0 0.0
      %2951 = vmatprep.subr.mxu0 0.0
      %2952 = vmatpush1.msra.mxu0 0.0
      %2953 = vmatprep.subr.mxu0 0.0
      %2954 = vmatpush1.msra.mxu0 0.0
      %2955 = vmatprep.subr.mxu0 0.0
      %2956 = vmatpush1.msra.mxu0 0.0
      %2957 = vmatprep.subr.mxu0 0.0
      %2958 = vmatpush1.msra.mxu0 0.0
      %2959 = vmatprep.subr.mxu0 0.0
      %2960 = vmatpush1.msra.mxu0 0.0
      %2961 = vmatprep.subr.mxu0 0.0
      %2962 = vmatpush1.msra.mxu0 0.0
      %2963 = vmatprep.subr.mxu0 0.0
      %2964 = vmatpush1.msra.mxu0 0.0
      %2965 = vmatprep.subr.mxu0 0.0
      %2966 = vmatpush1.msra.mxu0 0.0
      %2967 = vmatprep.subr.mxu0 0.0
      %2968 = vmatpush1.msra.mxu0 0.0
      %2969 = vmatprep.subr.mxu0 0.0
      %2970 = vmatpush1.msra.mxu0 0.0
      %2971 = vmatprep.subr.mxu0 0.0
      %2972 = vmatpush1.msra.mxu0 0.0
      %2973 = vmatprep.subr.mxu0 0.0
      %2974 = vmatpush1.msra.mxu0 0.0
      %2975 = vmatprep.subr.mxu0 0.0
      %2976 = vmatpush1.msra.mxu0 0.0
      %2977 = vmatprep.subr.mxu0 0.0
      %2978 = vmatpush1.msra.mxu0 0.0
      %2979 = vmatprep.subr.mxu0 0.0
      %2980 = vmatpush1.msra.mxu0 0.0
      %2981 = vmatprep.subr.mxu0 0.0
      %2982 = vmatpush1.msra.mxu0 0.0
      %2983 = vmatprep.subr.mxu0 0.0
      %2984 = vmatpush1.msra.mxu0 0.0
      %2985 = vmatprep.subr.mxu0 0.0
      %2986 = vmatpush1.msra.mxu0 0.0
      %2987 = vmatprep.subr.mxu0 0.0
      %2988 = vmatpush1.msra.mxu0 0.0
      %2989 = vmatprep.subr.mxu0 0.0
      %2990 = vmatpush1.msra.mxu0 0.0
      %2991 = vmatprep.subr.mxu0 0.0
      %2992 = vmatpush1.msra.mxu0 0.0
      %2993 = vmatprep.subr.mxu0 0.0
      %2994 = vmatpush1.msra.mxu0 0.0
      %2995 = vmatprep.subr.mxu0 0.0
      %2996 = vmatpush1.msra.mxu0 0.0
      %2997 = vmatprep.mubr.f32.mxu0 0.0
      %2998 = vmatmul.mubr.f32.gmra.mrb[0].mxu0 %v1252
      %v2999 = vpop.f32.mrb[0].mxu0
      %v3000 = vadd.f32 0.0, %v2999
      %v3001 = vpop.f32.mrb[0].mxu0
      %3002 = vmatprep.mubr.f32.mxu0 0.0
      %3003 = vmatmul.mubr.f32.gmra.mrb[0].mxu0 %v1254
      %v3004 = vpop.f32.mrb[0].mxu0
      %v3005 = vadd.f32 0.0, %v3004
      %v3006 = vpop.f32.mrb[0].mxu0
      %3007 = vmatprep.mubr.f32.mxu0 0.0
      %3008 = vmatmul.mubr.f32.gmra.mrb[0].mxu0 %v1256
      %v3009 = vpop.f32.mrb[0].mxu0
      %v3010 = vadd.f32 0.0, %v3009
      %v3011 = vpop.f32.mrb[0].mxu0
      %3012 = vmatprep.mubr.f32.mxu0 0.0
      %3013 = vmatmul.mubr.f32.gmra.mrb[0].mxu0 %v1258
      %v3014 = vpop.f32.mrb[0].mxu0
      %v3015 = vadd.f32 0.0, %v3014
      %v3016 = vpop.f32.mrb[0].mxu0
      %3017 = vmatprep.mubr.f32.mxu0 0.0
      %3018 = vmatmul.mubr.f32.gmra.mrb[0].mxu0 %v1260
      %v3019 = vpop.f32.mrb[0].mxu0
      %v3020 = vadd.f32 0.0, %v3019
      %v3021 = vpop.f32.mrb[0].mxu0
      %3022 = vmatprep.mubr.f32.mxu0 0.0
      %3023 = vmatmul.mubr.f32.gmra.mrb[0].mxu0 %v1262
      %v3024 = vpop.f32.mrb[0].mxu0
      %v3025 = vadd.f32 0.0, %v3024
      %v3026 = vpop.f32.mrb[0].mxu0
      %3027 = vmatprep.mubr.f32.mxu0 0.0
      %3028 = vmatmul.mubr.f32.gmra.mrb[0].mxu0 %v1264
      %v3029 = vpop.f32.mrb[0].mxu0
      %v3030 = vadd.f32 0.0, %v3029
      %v3031 = vpop.f32.mrb[0].mxu0
      %3032 = vmatprep.mubr.f32.mxu0 0.0
      %3033 = vmatmul.mubr.f32.gmra.mrb[0].mxu0 %v1266
      %v3034 = vpop.f32.mrb[0].mxu0
      %v3035 = vadd.f32 0.0, %v3034
      %v3036 = vpop.f32.mrb[0].mxu0
      %3037 = vmatprep.mubr.f32.mxu0 0.0
      %3038 = vmatmul.mubr.f32.gmra.mrb[0].mxu0 %v1268
      %v3039 = vpop.f32.mrb[0].mxu0
      %v3040 = vadd.f32 0.0, %v3039
      %v3041 = vpop.f32.mrb[0].mxu0
      %3042 = vmatprep.mubr.f32.mxu0 0.0
      %3043 = vmatmul.mubr.f32.gmra.mrb[0].mxu0 %v1270
      %v3044 = vpop.f32.mrb[0].mxu0
      %v3045 = vadd.f32 0.0, %v3044
      %v3046 = vpop.f32.mrb[0].mxu0
      %3047 = vmatprep.mubr.f32.mxu0 0.0
      %3048 = vmatmul.mubr.f32.gmra.mrb[0].mxu0 %v1272
      %v3049 = vpop.f32.mrb[0].mxu0
      %v3050 = vadd.f32 0.0, %v3049
      %v3051 = vpop.f32.mrb[0].mxu0
      %3052 = vmatprep.mubr.f32.mxu0 0.0
      %3053 = vmatmul.mubr.f32.gmra.mrb[0].mxu0 %v1274
      %v3054 = vpop.f32.mrb[0].mxu0
      %v3055 = vadd.f32 0.0, %v3054
      %v3056 = vpop.f32.mrb[0].mxu0
      %3057 = vmatprep.mubr.f32.mxu0 0.0
      %3058 = vmatmul.mubr.f32.gmra.mrb[0].mxu0 %v1276
      %v3059 = vpop.f32.mrb[0].mxu0
      %v3060 = vadd.f32 0.0, %v3059
      %v3061 = vpop.f32.mrb[0].mxu0
      %3062 = vmatprep.mubr.f32.mxu0 0.0
      %3063 = vmatmul.mubr.f32.gmra.mrb[0].mxu0 %v1278
      %v3064 = vpop.f32.mrb[0].mxu0
      %v3065 = vadd.f32 0.0, %v3064
      %v3066 = vpop.f32.mrb[0].mxu0
      %3067 = vmatprep.mubr.f32.mxu0 0.0
      %3068 = vmatmul.mubr.f32.gmra.mrb[0].mxu0 %v1280
      %v3069 = vpop.f32.mrb[0].mxu0
      %v3070 = vadd.f32 0.0, %v3069
      %v3071 = vpop.f32.mrb[0].mxu0
      %3072 = vmatprep.mubr.f32.mxu0 0.0
      %3073 = vmatmul.mubr.f32.gmra.mrb[0].mxu0 %v1282
      %v3074 = vpop.f32.mrb[0].mxu0
      %v3075 = vadd.f32 0.0, %v3074
      %v3076 = vpop.f32.mrb[0].mxu0
      %3077 = vmatprep.mubr.f32.mxu0 0.0
      %3078 = vmatmul.mubr.f32.gmra.mrb[0].mxu0 %v1284
      %v3079 = vpop.f32.mrb[0].mxu0
      %v3080 = vadd.f32 0.0, %v3079
      %v3081 = vpop.f32.mrb[0].mxu0
      %3082 = vmatprep.mubr.f32.mxu0 0.0
      %3083 = vmatmul.mubr.f32.gmra.mrb[0].mxu0 %v1286
      %v3084 = vpop.f32.mrb[0].mxu0
      %v3085 = vadd.f32 0.0, %v3084
      %v3086 = vpop.f32.mrb[0].mxu0
      %3087 = vmatprep.mubr.f32.mxu0 0.0
      %3088 = vmatmul.mubr.f32.gmra.mrb[0].mxu0 %v1288
      %v3089 = vpop.f32.mrb[0].mxu0
      %v3090 = vadd.f32 0.0, %v3089
      %v3091 = vpop.f32.mrb[0].mxu0
      %3092 = vmatprep.mubr.f32.mxu0 0.0
      %3093 = vmatmul.mubr.f32.gmra.mrb[0].mxu0 %v1290
      %v3094 = vpop.f32.mrb[0].mxu0
      %v3095 = vadd.f32 0.0, %v3094
      %v3096 = vpop.f32.mrb[0].mxu0
      %3097 = vmatprep.mubr.f32.mxu0 0.0
      %3098 = vmatmul.mubr.f32.gmra.mrb[0].mxu0 %v1292
      %v3099 = vpop.f32.mrb[0].mxu0
      %v3100 = vadd.f32 0.0, %v3099
      %v3101 = vpop.f32.mrb[0].mxu0
      %3102 = vmatprep.mubr.f32.mxu0 0.0
      %3103 = vmatmul.mubr.f32.gmra.mrb[0].mxu0 %v1294
      %v3104 = vpop.f32.mrb[0].mxu0
      %v3105 = vadd.f32 0.0, %v3104
      %v3106 = vpop.f32.mrb[0].mxu0
      %3107 = vmatprep.mubr.f32.mxu0 0.0
      %3108 = vmatmul.mubr.f32.gmra.mrb[0].mxu0 %v1296
      %v3109 = vpop.f32.mrb[0].mxu0
      %v3110 = vadd.f32 0.0, %v3109
      %v3111 = vpop.f32.mrb[0].mxu0
      %3112 = vmatprep.mubr.f32.mxu0 0.0
      %3113 = vmatmul.mubr.f32.gmra.mrb[0].mxu0 %v1298
      %v3114 = vpop.f32.mrb[0].mxu0
      %v3115 = vadd.f32 0.0, %v3114
      %v3116 = vpop.f32.mrb[0].mxu0
      %3117 = vmatprep.mubr.f32.mxu0 0.0
      %3118 = vmatmul.mubr.f32.gmra.mrb[0].mxu0 %v1300
      %v3119 = vpop.f32.mrb[0].mxu0
      %v3120 = vadd.f32 0.0, %v3119
      %v3121 = vpop.f32.mrb[0].mxu0
      %3122 = vmatprep.mubr.f32.mxu0 0.0
      %3123 = vmatmul.mubr.f32.gmra.mrb[0].mxu0 %v1302
      %v3124 = vpop.f32.mrb[0].mxu0
      %v3125 = vadd.f32 0.0, %v3124
      %v3126 = vpop.f32.mrb[0].mxu0
      %3127 = vmatprep.mubr.f32.mxu0 0.0
      %3128 = vmatmul.mubr.f32.gmra.mrb[0].mxu0 %v1304
      %v3129 = vpop.f32.mrb[0].mxu0
      %v3130 = vadd.f32 0.0, %v3129
      %v3131 = vpop.f32.mrb[0].mxu0
      %3132 = vmatprep.mubr.f32.mxu0 0.0
      %3133 = vmatmul.mubr.f32.gmra.mrb[0].mxu0 %v1306
      %v3134 = vpop.f32.mrb[0].mxu0
      %v3135 = vadd.f32 0.0, %v3134
      %v3136 = vpop.f32.mrb[0].mxu0
      %3137 = vmatprep.mubr.f32.mxu0 0.0
      %3138 = vmatmul.mubr.f32.gmra.mrb[0].mxu0 %v2115
      %v3139 = vpop.f32.mrb[0].mxu0
      %v3140 = vadd.f32 0.0, %v3139
      %v3141 = vpop.f32.mrb[0].mxu0
      %3142 = vmatprep.mubr.f32.mxu0 0.0
      %3143 = vmatmul.mubr.f32.gmra.mrb[0].mxu0 %v2117
      %v3144 = vpop.f32.mrb[0].mxu0
      %v3145 = vadd.f32 0.0, %v3144
      %v3146 = vpop.f32.mrb[0].mxu0
      %3147 = vmatprep.mubr.f32.mxu0 0.0
      %3148 = vmatmul.mubr.f32.gmra.mrb[0].mxu0 %v2926
      %v3149 = vpop.f32.mrb[0].mxu0
      %v3150 = vadd.f32 0.0, %v3149
      %v3151 = vpop.f32.mrb[0].mxu0
      %3152 = vmatprep.mubr.f32.mxu0 0.0
      %3153 = vmatmul.mubr.f32.gmra.mrb[0].mxu0 %v2928
      %v3154 = vpop.f32.mrb[0].mxu0
      %v3155 = vadd.f32 0.0, %v3154
      %v3156 = vpop.f32.mrb[0].mxu0
      %3157 = vdwg.mxu0
      %v3158 = vadd.f32 %v2887, %v3000
      %v3159 = vadd.f32 %v2888, %v3005
      %v3160 = vadd.f32 %v2889, %v3010
      %v3161 = vadd.f32 %v2890, %v3015
      %v3162 = vadd.f32 %v2891, %v3020
      %v3163 = vadd.f32 %v2892, %v3025
      %v3164 = vadd.f32 %v2893, %v3030
      %v3165 = vadd.f32 %v2894, %v3035
      %v3166 = vadd.f32 %v2895, %v3040
      %v3167 = vadd.f32 %v2896, %v3045
      %v3168 = vadd.f32 %v2897, %v3050
      %v3169 = vadd.f32 %v2898, %v3055
      %v3170 = vadd.f32 %v2899, %v3060
      %v3171 = vadd.f32 %v2900, %v3065
      %v3172 = vadd.f32 %v2901, %v3070
      %v3173 = vadd.f32 %v2902, %v3075
      %v3174 = vadd.f32 %v2903, %v3080
      %v3175 = vadd.f32 %v2904, %v3085
      %v3176 = vadd.f32 %v2905, %v3090
      %v3177 = vadd.f32 %v2906, %v3095
      %v3178 = vadd.f32 %v2907, %v3100
      %v3179 = vadd.f32 %v2908, %v3105
      %v3180 = vadd.f32 %v2909, %v3110
      %v3181 = vadd.f32 %v2910, %v3115
      %v3182 = vadd.f32 %v2911, %v3120
      %v3183 = vadd.f32 %v2912, %v3125
      %v3184 = vadd.f32 %v2913, %v3130
      %v3185 = vadd.f32 %v2914, %v3135
      %v3186 = vadd.f32 %v2915, %v3140
      %v3187 = vadd.f32 %v2916, %v3145
      %v3188 = vadd.f32 %v2917, %v3150
      %v3189 = vadd.f32 %v2918, %v3155
      %v3190 = vsel %vm279, %v3158, 0.0
      %v3191 = vsel %vm279, %v3159, 0.0
      %v3192 = vadd.f32 %v3190, %v3191
      %v3193 = vsel %vm279, %v3160, 0.0
      %v3194 = vadd.f32 %v3192, %v3193
      %v3195 = vsel %vm279, %v3161, 0.0
      %v3196 = vadd.f32 %v3194, %v3195
      %v3197 = vsel %vm279, %v3162, 0.0
      %v3198 = vadd.f32 %v3196, %v3197
      %v3199 = vsel %vm279, %v3163, 0.0
      %v3200 = vadd.f32 %v3198, %v3199
      %v3201 = vsel %vm279, %v3164, 0.0
      %v3202 = vadd.f32 %v3200, %v3201
      %v3203 = vsel %vm279, %v3165, 0.0
      %v3204 = vadd.f32 %v3202, %v3203
      %v3205 = vsel %vm279, %v3166, 0.0
      %v3206 = vadd.f32 %v3204, %v3205
      %v3207 = vsel %vm279, %v3167, 0.0
      %v3208 = vadd.f32 %v3206, %v3207
      %v3209 = vsel %vm279, %v3168, 0.0
      %v3210 = vadd.f32 %v3208, %v3209
      %v3211 = vsel %vm279, %v3169, 0.0
      %v3212 = vadd.f32 %v3210, %v3211
      %v3213 = vsel %vm279, %v3170, 0.0
      %v3214 = vadd.f32 %v3212, %v3213
      %v3215 = vsel %vm279, %v3171, 0.0
      %v3216 = vadd.f32 %v3214, %v3215
      %v3217 = vsel %vm279, %v3172, 0.0
      %v3218 = vadd.f32 %v3216, %v3217
      %v3219 = vsel %vm279, %v3173, 0.0
      %v3220 = vadd.f32 %v3218, %v3219
      %v3221 = vsel %vm279, %v3174, 0.0
      %v3222 = vadd.f32 %v3220, %v3221
      %v3223 = vsel %vm279, %v3175, 0.0
      %v3224 = vadd.f32 %v3222, %v3223
      %v3225 = vsel %vm279, %v3176, 0.0
      %v3226 = vadd.f32 %v3224, %v3225
      %v3227 = vsel %vm279, %v3177, 0.0
      %v3228 = vadd.f32 %v3226, %v3227
      %v3229 = vsel %vm279, %v3178, 0.0
      %v3230 = vadd.f32 %v3228, %v3229
      %v3231 = vsel %vm279, %v3179, 0.0
      %v3232 = vadd.f32 %v3230, %v3231
      %v3233 = vsel %vm279, %v3180, 0.0
      %v3234 = vadd.f32 %v3232, %v3233
      %v3235 = vsel %vm279, %v3181, 0.0
      %v3236 = vadd.f32 %v3234, %v3235
      %v3237 = vsel %vm279, %v3182, 0.0
      %v3238 = vadd.f32 %v3236, %v3237
      %v3239 = vsel %vm279, %v3183, 0.0
      %v3240 = vadd.f32 %v3238, %v3239
      %v3241 = vsel %vm279, %v3184, 0.0
      %v3242 = vadd.f32 %v3240, %v3241
      %v3243 = vsel %vm279, %v3185, 0.0
      %v3244 = vadd.f32 %v3242, %v3243
      %v3245 = vsel %vm279, %v3186, 0.0
      %v3246 = vadd.f32 %v3244, %v3245
      %v3247 = vsel %vm279, %v3187, 0.0
      %v3248 = vadd.f32 %v3246, %v3247
      %v3249 = vsel %vm279, %v3188, 0.0
      %v3250 = vadd.f32 %v3248, %v3249
      %v3251 = vsel %vm279, %v3189, 0.0
      %v3252 = vadd.f32 %v3250, %v3251
      %v3253 = vrot.slane %v3252, 4
      %v3254 = vadd.f32 %v3252, %v3253
      %v3255 = vrot.slane %v3254, 2
      %v3256 = vadd.f32 %v3254, %v3255
      %v3257 = vrot.slane %v3256, 1
      %v3258 = vadd.f32 %v3256, %v3257
      %v3259 = vmul.f32 %v3258, 0.00390625
      %v3260 = vmul.f32 %v3158, %v3158
      %v3261 = vmul.f32 %v3159, %v3159
      %v3262 = vmul.f32 %v3160, %v3160
      %v3263 = vmul.f32 %v3161, %v3161
      %v3264 = vmul.f32 %v3162, %v3162
      %v3265 = vmul.f32 %v3163, %v3163
      %v3266 = vmul.f32 %v3164, %v3164
      %v3267 = vmul.f32 %v3165, %v3165
      %v3268 = vmul.f32 %v3166, %v3166
      %v3269 = vmul.f32 %v3167, %v3167
      %v3270 = vmul.f32 %v3168, %v3168
      %v3271 = vmul.f32 %v3169, %v3169
      %v3272 = vmul.f32 %v3170, %v3170
      %v3273 = vmul.f32 %v3171, %v3171
      %v3274 = vmul.f32 %v3172, %v3172
      %v3275 = vmul.f32 %v3173, %v3173
      %v3276 = vmul.f32 %v3174, %v3174
      %v3277 = vmul.f32 %v3175, %v3175
      %v3278 = vmul.f32 %v3176, %v3176
      %v3279 = vmul.f32 %v3177, %v3177
      %v3280 = vmul.f32 %v3178, %v3178
      %v3281 = vmul.f32 %v3179, %v3179
      %v3282 = vmul.f32 %v3180, %v3180
      %v3283 = vmul.f32 %v3181, %v3181
      %v3284 = vmul.f32 %v3182, %v3182
      %v3285 = vmul.f32 %v3183, %v3183
      %v3286 = vmul.f32 %v3184, %v3184
      %v3287 = vmul.f32 %v3185, %v3185
      %v3288 = vmul.f32 %v3186, %v3186
      %v3289 = vmul.f32 %v3187, %v3187
      %v3290 = vmul.f32 %v3188, %v3188
      %v3291 = vmul.f32 %v3189, %v3189
      %v3292 = vsel %vm279, %v3260, 0.0
      %v3293 = vsel %vm279, %v3261, 0.0
      %v3294 = vadd.f32 %v3292, %v3293
      %v3295 = vsel %vm279, %v3262, 0.0
      %v3296 = vadd.f32 %v3294, %v3295
      %v3297 = vsel %vm279, %v3263, 0.0
      %v3298 = vadd.f32 %v3296, %v3297
      %v3299 = vsel %vm279, %v3264, 0.0
      %v3300 = vadd.f32 %v3298, %v3299
      %v3301 = vsel %vm279, %v3265, 0.0
      %v3302 = vadd.f32 %v3300, %v3301
      %v3303 = vsel %vm279, %v3266, 0.0
      %v3304 = vadd.f32 %v3302, %v3303
      %v3305 = vsel %vm279, %v3267, 0.0
      %v3306 = vadd.f32 %v3304, %v3305
      %v3307 = vsel %vm279, %v3268, 0.0
      %v3308 = vadd.f32 %v3306, %v3307
      %v3309 = vsel %vm279, %v3269, 0.0
      %v3310 = vadd.f32 %v3308, %v3309
      %v3311 = vsel %vm279, %v3270, 0.0
      %v3312 = vadd.f32 %v3310, %v3311
      %v3313 = vsel %vm279, %v3271, 0.0
      %v3314 = vadd.f32 %v3312, %v3313
      %v3315 = vsel %vm279, %v3272, 0.0
      %v3316 = vadd.f32 %v3314, %v3315
      %v3317 = vsel %vm279, %v3273, 0.0
      %v3318 = vadd.f32 %v3316, %v3317
      %v3319 = vsel %vm279, %v3274, 0.0
      %v3320 = vadd.f32 %v3318, %v3319
      %v3321 = vsel %vm279, %v3275, 0.0
      %v3322 = vadd.f32 %v3320, %v3321
      %v3323 = vsel %vm279, %v3276, 0.0
      %v3324 = vadd.f32 %v3322, %v3323
      %v3325 = vsel %vm279, %v3277, 0.0
      %v3326 = vadd.f32 %v3324, %v3325
      %v3327 = vsel %vm279, %v3278, 0.0
      %v3328 = vadd.f32 %v3326, %v3327
      %v3329 = vsel %vm279, %v3279, 0.0
      %v3330 = vadd.f32 %v3328, %v3329
      %v3331 = vsel %vm279, %v3280, 0.0
      %v3332 = vadd.f32 %v3330, %v3331
      %v3333 = vsel %vm279, %v3281, 0.0
      %v3334 = vadd.f32 %v3332, %v3333
      %v3335 = vsel %vm279, %v3282, 0.0
      %v3336 = vadd.f32 %v3334, %v3335
      %v3337 = vsel %vm279, %v3283, 0.0
      %v3338 = vadd.f32 %v3336, %v3337
      %v3339 = vsel %vm279, %v3284, 0.0
      %v3340 = vadd.f32 %v3338, %v3339
      %v3341 = vsel %vm279, %v3285, 0.0
      %v3342 = vadd.f32 %v3340, %v3341
      %v3343 = vsel %vm279, %v3286, 0.0
      %v3344 = vadd.f32 %v3342, %v3343
      %v3345 = vsel %vm279, %v3287, 0.0
      %v3346 = vadd.f32 %v3344, %v3345
      %v3347 = vsel %vm279, %v3288, 0.0
      %v3348 = vadd.f32 %v3346, %v3347
      %v3349 = vsel %vm279, %v3289, 0.0
      %v3350 = vadd.f32 %v3348, %v3349
      %v3351 = vsel %vm279, %v3290, 0.0
      %v3352 = vadd.f32 %v3350, %v3351
      %v3353 = vsel %vm279, %v3291, 0.0
      %v3354 = vadd.f32 %v3352, %v3353
      %v3355 = vrot.slane %v3354, 4
      %v3356 = vadd.f32 %v3354, %v3355
      %v3357 = vrot.slane %v3356, 2
      %v3358 = vadd.f32 %v3356, %v3357
      %v3359 = vrot.slane %v3358, 1
      %v3360 = vadd.f32 %v3358, %v3359
      %v3361 = vmul.f32 %v3360, 0.00390625
      %v3362 = vmul.f32 %v3259, %v3259
      %v3363 = vsub.f32 %v3361, %v3362
      %v3364 = vmax.f32 %v3363, 0.0
      %v3365 = vld [vmem:[%s3] sm:$0x1]
      %v3366 = vadd.f32 %v3364, 1e-05
      %v3367 = vrsqrt.pop %v3366
      %v3368 = vmul.f32 %v3365, %v3367
      %v3369 = vld [vmem:[%s4] sm:$0x1]
      %v3370 = vmul.f32 %v3259, %v3368
      %v3371 = vsub.f32 %v3369, %v3370
      %v3373 = vlaneseq
      %v3374 = vshrl.u32 %v3373, 7
      %v3375 = vsub.s32 0, %v3374
      %v3376 = vrot.slane %v3368, %v3375
      %v3378 = vmul.f32 %v3158, %v3376
      %v3379 = vmul.f32 %v3159, %v3376
      %v3380 = vmul.f32 %v3160, %v3376
      %v3381 = vmul.f32 %v3161, %v3376
      %v3382 = vmul.f32 %v3162, %v3376
      %v3383 = vmul.f32 %v3163, %v3376
      %v3384 = vmul.f32 %v3164, %v3376
      %v3385 = vmul.f32 %v3165, %v3376
      %v3386 = vmul.f32 %v3166, %v3376
      %v3387 = vmul.f32 %v3167, %v3376
      %v3388 = vmul.f32 %v3168, %v3376
      %v3389 = vmul.f32 %v3169, %v3376
      %v3390 = vmul.f32 %v3170, %v3376
      %v3391 = vmul.f32 %v3171, %v3376
      %v3392 = vmul.f32 %v3172, %v3376
      %v3393 = vmul.f32 %v3173, %v3376
      %v3394 = vmul.f32 %v3174, %v3376
      %v3395 = vmul.f32 %v3175, %v3376
      %v3396 = vmul.f32 %v3176, %v3376
      %v3397 = vmul.f32 %v3177, %v3376
      %v3398 = vmul.f32 %v3178, %v3376
      %v3399 = vmul.f32 %v3179, %v3376
      %v3400 = vmul.f32 %v3180, %v3376
      %v3401 = vmul.f32 %v3181, %v3376
      %v3402 = vmul.f32 %v3182, %v3376
      %v3403 = vmul.f32 %v3183, %v3376
      %v3404 = vmul.f32 %v3184, %v3376
      %v3405 = vmul.f32 %v3185, %v3376
      %v3406 = vmul.f32 %v3186, %v3376
      %v3407 = vmul.f32 %v3187, %v3376
      %v3408 = vmul.f32 %v3188, %v3376
      %v3409 = vmul.f32 %v3189, %v3376
      %v3411 = vlaneseq
      %v3412 = vshrl.u32 %v3411, 7
      %v3413 = vsub.s32 0, %v3412
      %v3414 = vrot.slane %v3371, %v3413
      %v3416 = vadd.f32 %v3378, %v3414
      %v3417 = vadd.f32 %v3379, %v3414
      %v3418 = vadd.f32 %v3380, %v3414
      %v3419 = vadd.f32 %v3381, %v3414
      %v3420 = vadd.f32 %v3382, %v3414
      %v3421 = vadd.f32 %v3383, %v3414
      %v3422 = vadd.f32 %v3384, %v3414
      %v3423 = vadd.f32 %v3385, %v3414
      %v3424 = vadd.f32 %v3386, %v3414
      %v3425 = vadd.f32 %v3387, %v3414
      %v3426 = vadd.f32 %v3388, %v3414
      %v3427 = vadd.f32 %v3389, %v3414
      %v3428 = vadd.f32 %v3390, %v3414
      %v3429 = vadd.f32 %v3391, %v3414
      %v3430 = vadd.f32 %v3392, %v3414
      %v3431 = vadd.f32 %v3393, %v3414
      %v3432 = vadd.f32 %v3394, %v3414
      %v3433 = vadd.f32 %v3395, %v3414
      %v3434 = vadd.f32 %v3396, %v3414
      %v3435 = vadd.f32 %v3397, %v3414
      %v3436 = vadd.f32 %v3398, %v3414
      %v3437 = vadd.f32 %v3399, %v3414
      %v3438 = vadd.f32 %v3400, %v3414
      %v3439 = vadd.f32 %v3401, %v3414
      %v3440 = vadd.f32 %v3402, %v3414
      %v3441 = vadd.f32 %v3403, %v3414
      %v3442 = vadd.f32 %v3404, %v3414
      %v3443 = vadd.f32 %v3405, %v3414
      %v3444 = vadd.f32 %v3406, %v3414
      %v3445 = vadd.f32 %v3407, %v3414
      %v3446 = vadd.f32 %v3408, %v3414
      %v3447 = vadd.f32 %v3409, %v3414
      %v3448 = vmax.f32 %v3416, 0.0
      %v3449 = vmax.f32 %v3417, 0.0
      %v3450 = vmax.f32 %v3418, 0.0
      %v3451 = vmax.f32 %v3419, 0.0
      %v3452 = vmax.f32 %v3420, 0.0
      %v3453 = vmax.f32 %v3421, 0.0
      %v3454 = vmax.f32 %v3422, 0.0
      %v3455 = vmax.f32 %v3423, 0.0
      %v3456 = vmax.f32 %v3424, 0.0
      %v3457 = vmax.f32 %v3425, 0.0
      %v3458 = vmax.f32 %v3426, 0.0
      %v3459 = vmax.f32 %v3427, 0.0
      %v3460 = vmax.f32 %v3428, 0.0
      %v3461 = vmax.f32 %v3429, 0.0
      %v3462 = vmax.f32 %v3430, 0.0
      %v3463 = vmax.f32 %v3431, 0.0
      %v3464 = vmax.f32 %v3432, 0.0
      %v3465 = vmax.f32 %v3433, 0.0
      %v3466 = vmax.f32 %v3434, 0.0
      %v3467 = vmax.f32 %v3435, 0.0
      %v3468 = vmax.f32 %v3436, 0.0
      %v3469 = vmax.f32 %v3437, 0.0
      %v3470 = vmax.f32 %v3438, 0.0
      %v3471 = vmax.f32 %v3439, 0.0
      %v3472 = vmax.f32 %v3440, 0.0
      %v3473 = vmax.f32 %v3441, 0.0
      %v3474 = vmax.f32 %v3442, 0.0
      %v3475 = vmax.f32 %v3443, 0.0
      %v3476 = vmax.f32 %v3444, 0.0
      %v3477 = vmax.f32 %v3445, 0.0
      %v3478 = vmax.f32 %v3446, 0.0
      %v3479 = vmax.f32 %v3447, 0.0
      %3480 = vst.msk [vmem:[%s357 + $0x1] sm:$0xff] %vm279, %v3448
      %3481 = vst.msk [vmem:[%s357 + $0x9] sm:$0xff] %vm279, %v3449
      %3482 = vst.msk [vmem:[%s357 + $0x19] sm:$0xff] %vm279, %v3450
      %3483 = vst.msk [vmem:[%s357 + $0x21] sm:$0xff] %vm279, %v3451
      %3484 = vst.msk [vmem:[%s357 + $0x31] sm:$0xff] %vm279, %v3452
      %3485 = vst.msk [vmem:[%s357 + $0x39] sm:$0xff] %vm279, %v3453
      %3486 = vst.msk [vmem:[%s357 + $0x49] sm:$0xff] %vm279, %v3454
      %3487 = vst.msk [vmem:[%s357 + $0x51] sm:$0xff] %vm279, %v3455
      %3488 = vst.msk [vmem:[%s357 + $0x61] sm:$0xff] %vm279, %v3456
      %3489 = vst.msk [vmem:[%s357 + $0x69] sm:$0xff] %vm279, %v3457
      %3490 = vst.msk [vmem:[%s357 + $0x79] sm:$0xff] %vm279, %v3458
      %3491 = vst.msk [vmem:[%s357 + $0x81] sm:$0xff] %vm279, %v3459
      %3492 = vst.msk [vmem:[%s357 + $0x91] sm:$0xff] %vm279, %v3460
      %3493 = vst.msk [vmem:[%s357 + $0x99] sm:$0xff] %vm279, %v3461
      %3494 = vst.msk [vmem:[%s357 + $0xa9] sm:$0xff] %vm279, %v3462
      %3495 = vst.msk [vmem:[%s357 + $0xb1] sm:$0xff] %vm279, %v3463
      %3496 = vst.msk [vmem:[%s357 + $0xc1] sm:$0xff] %vm279, %v3464
      %3497 = vst.msk [vmem:[%s357 + $0xc9] sm:$0xff] %vm279, %v3465
      %3498 = vst.msk [vmem:[%s357 + $0xd9] sm:$0xff] %vm279, %v3466
      %3499 = vst.msk [vmem:[%s357 + $0xe1] sm:$0xff] %vm279, %v3467
      %3500 = vst.msk [vmem:[%s357 + $0xf1] sm:$0xff] %vm279, %v3468
      %3501 = vst.msk [vmem:[%s357 + $0xf9] sm:$0xff] %vm279, %v3469
      %3502 = vst.msk [vmem:[%s357 + $0x109] sm:$0xff] %vm279, %v3470
      %3503 = vst.msk [vmem:[%s357 + $0x111] sm:$0xff] %vm279, %v3471
      %3504 = vst.msk [vmem:[%s357 + $0x121] sm:$0xff] %vm279, %v3472
      %3505 = vst.msk [vmem:[%s357 + $0x129] sm:$0xff] %vm279, %v3473
      %3506 = vst.msk [vmem:[%s357 + $0x139] sm:$0xff] %vm279, %v3474
      %3507 = vst.msk [vmem:[%s357 + $0x141] sm:$0xff] %vm279, %v3475
      %3508 = vst.msk [vmem:[%s357 + $0x151] sm:$0xff] %vm279, %v3476
      %3509 = vst.msk [vmem:[%s357 + $0x159] sm:$0xff] %vm279, %v3477
      %3510 = vst.msk [vmem:[%s357 + $0x169] sm:$0xff] %vm279, %v3478
      %3511 = vst.msk [vmem:[%s357 + $0x171] sm:$0xff] %vm279, %v3479
      %v3512 = vld [vmem:[#allocation2] sm:$0xff]
      %v3513 = vld [vmem:[#allocation2 + $0x8] sm:$0xff]
      %v3514 = vld [vmem:[#allocation2 + $0x10] sm:$0x3]
      %v3515 = vld [vmem:[#allocation2 + $0x18] sm:$0xff]
      %v3516 = vld [vmem:[#allocation2 + $0x20] sm:$0xff]
      %v3517 = vld [vmem:[#allocation2 + $0x28] sm:$0x3]
      %v3518 = vld [vmem:[#allocation2 + $0x30] sm:$0xff]
      %v3519 = vld [vmem:[#allocation2 + $0x38] sm:$0xff]
      %v3520 = vld [vmem:[#allocation2 + $0x40] sm:$0x3]
      %v3521 = vld [vmem:[#allocation2 + $0x48] sm:$0xff]
      %v3522 = vld [vmem:[#allocation2 + $0x50] sm:$0xff]
      %v3523 = vld [vmem:[#allocation2 + $0x58] sm:$0x3]
      %v3524 = vld [vmem:[#allocation2 + $0x60] sm:$0xff]
      %v3525 = vld [vmem:[#allocation2 + $0x68] sm:$0xff]
      %v3526 = vld [vmem:[#allocation2 + $0x70] sm:$0x3]
      %v3527 = vld [vmem:[#allocation2 + $0x78] sm:$0xff]
      %v3528 = vld [vmem:[#allocation2 + $0x80] sm:$0xff]
      %v3529 = vld [vmem:[#allocation2 + $0x88] sm:$0x3]
      %v3530 = vld [vmem:[#allocation2 + $0x90] sm:$0xff]
      %v3531 = vld [vmem:[#allocation2 + $0x98] sm:$0xff]
      %v3532 = vld [vmem:[#allocation2 + $0xa0] sm:$0x3]
      %v3533 = vld [vmem:[#allocation2 + $0xa8] sm:$0xff]
      %v3534 = vld [vmem:[#allocation2 + $0xb0] sm:$0xff]
      %v3535 = vld [vmem:[#allocation2 + $0xb8] sm:$0x3]
      %v3536 = vld [vmem:[#allocation2 + $0xc0] sm:$0xff]
      %v3537 = vld [vmem:[#allocation2 + $0xc8] sm:$0xff]
      %v3538 = vld [vmem:[#allocation2 + $0xd0] sm:$0x3]
      %v3539 = vld [vmem:[#allocation2 + $0xd8] sm:$0xff]
      %v3540 = vld [vmem:[#allocation2 + $0xe0] sm:$0xff]
      %v3541 = vld [vmem:[#allocation2 + $0xe8] sm:$0x3]
      %v3542 = vld [vmem:[#allocation2 + $0xf0] sm:$0xff]
      %v3543 = vld [vmem:[#allocation2 + $0xf8] sm:$0xff]
      %v3544 = vld [vmem:[#allocation2 + $0x100] sm:$0x3]
      %v3545 = vld [vmem:[#allocation2 + $0x108] sm:$0xff]
      %v3546 = vld [vmem:[#allocation2 + $0x110] sm:$0xff]
      %v3547 = vld [vmem:[#allocation2 + $0x118] sm:$0x3]
      %v3548 = vld [vmem:[#allocation2 + $0x120] sm:$0xff]
      %v3549 = vld [vmem:[#allocation2 + $0x128] sm:$0xff]
      %v3550 = vld [vmem:[#allocation2 + $0x130] sm:$0x3]
      %v3551 = vld [vmem:[#allocation2 + $0x138] sm:$0xff]
      %v3552 = vld [vmem:[#allocation2 + $0x140] sm:$0xff]
      %v3553 = vld [vmem:[#allocation2 + $0x148] sm:$0x3]
      %v3554 = vld [vmem:[#allocation2 + $0x150] sm:$0xff]
      %v3555 = vld [vmem:[#allocation2 + $0x158] sm:$0xff]
      %v3556 = vld [vmem:[#allocation2 + $0x160] sm:$0x3]
      %v3557 = vld [vmem:[#allocation2 + $0x168] sm:$0xff]
      %v3558 = vld [vmem:[#allocation2 + $0x170] sm:$0xff]
      %v3559 = vld [vmem:[#allocation2 + $0x178] sm:$0x3]
      %v3560 = vld [vmem:[#allocation2 + $0x180] sm:$0xff]
      %v3561 = vld [vmem:[#allocation2 + $0x188] sm:$0xff]
      %v3562 = vld [vmem:[#allocation2 + $0x190] sm:$0x3]
      %v3563 = vld [vmem:[#allocation2 + $0x198] sm:$0xff]
      %v3564 = vld [vmem:[#allocation2 + $0x1a0] sm:$0xff]
      %v3565 = vld [vmem:[#allocation2 + $0x1a8] sm:$0x3]
      %v3566 = vld [vmem:[%s2] sm:$0xf]
      %v3615 = vrot.slane %v3512, 1
      %v3616 = vrot.slane %v3513, 1
      %v3617 = vsel %vm493, %v3615, %v3616
      %v3618 = vrot.slane %v3514, 1
      %v3619 = vsel %vm493, %v3616, %v3618
      %v3620 = vrot.slane %v3515, 1
      %v3621 = vrot.slane %v3516, 1
      %v3622 = vsel %vm493, %v3620, %v3621
      %v3623 = vrot.slane %v3517, 1
      %v3624 = vsel %vm493, %v3621, %v3623
      %v3625 = vrot.slane %v3518, 1
      %v3626 = vrot.slane %v3519, 1
      %v3627 = vsel %vm493, %v3625, %v3626
      %v3628 = vrot.slane %v3520, 1
      %v3629 = vsel %vm493, %v3626, %v3628
      %v3630 = vrot.slane %v3521, 1
      %v3631 = vrot.slane %v3522, 1
      %v3632 = vsel %vm493, %v3630, %v3631
      %v3633 = vrot.slane %v3523, 1
      %v3634 = vsel %vm493, %v3631, %v3633
      %v3635 = vrot.slane %v3524, 1
      %v3636 = vrot.slane %v3525, 1
      %v3637 = vsel %vm493, %v3635, %v3636
      %v3638 = vrot.slane %v3526, 1
      %v3639 = vsel %vm493, %v3636, %v3638
      %v3640 = vrot.slane %v3527, 1
      %v3641 = vrot.slane %v3528, 1
      %v3642 = vsel %vm493, %v3640, %v3641
      %v3643 = vrot.slane %v3529, 1
      %v3644 = vsel %vm493, %v3641, %v3643
      %v3645 = vrot.slane %v3530, 1
      %v3646 = vrot.slane %v3531, 1
      %v3647 = vsel %vm493, %v3645, %v3646
      %v3648 = vrot.slane %v3532, 1
      %v3649 = vsel %vm493, %v3646, %v3648
      %v3650 = vrot.slane %v3533, 1
      %v3651 = vrot.slane %v3534, 1
      %v3652 = vsel %vm493, %v3650, %v3651
      %v3653 = vrot.slane %v3535, 1
      %v3654 = vsel %vm493, %v3651, %v3653
      %v3655 = vrot.slane %v3536, 1
      %v3656 = vrot.slane %v3537, 1
      %v3657 = vsel %vm493, %v3655, %v3656
      %v3658 = vrot.slane %v3538, 1
      %v3659 = vsel %vm493, %v3656, %v3658
      %v3660 = vrot.slane %v3539, 1
      %v3661 = vrot.slane %v3540, 1
      %v3662 = vsel %vm493, %v3660, %v3661
      %v3663 = vrot.slane %v3541, 1
      %v3664 = vsel %vm493, %v3661, %v3663
      %v3665 = vrot.slane %v3542, 1
      %v3666 = vrot.slane %v3543, 1
      %v3667 = vsel %vm493, %v3665, %v3666
      %v3668 = vrot.slane %v3544, 1
      %v3669 = vsel %vm493, %v3666, %v3668
      %v3670 = vrot.slane %v3545, 1
      %v3671 = vrot.slane %v3546, 1
      %v3672 = vsel %vm493, %v3670, %v3671
      %v3673 = vrot.slane %v3547, 1
      %v3674 = vsel %vm493, %v3671, %v3673
      %v3675 = vrot.slane %v3548, 1
      %v3676 = vrot.slane %v3549, 1
      %v3677 = vsel %vm493, %v3675, %v3676
      %v3678 = vrot.slane %v3550, 1
      %v3679 = vsel %vm493, %v3676, %v3678
      %v3680 = vrot.slane %v3551, 1
      %v3681 = vrot.slane %v3552, 1
      %v3682 = vsel %vm493, %v3680, %v3681
      %v3683 = vrot.slane %v3553, 1
      %v3684 = vsel %vm493, %v3681, %v3683
      %v3685 = vrot.slane %v3554, 1
      %v3686 = vrot.slane %v3555, 1
      %v3687 = vsel %vm493, %v3685, %v3686
      %v3688 = vrot.slane %v3556, 1
      %v3689 = vsel %vm493, %v3686, %v3688
      %v3690 = vrot.slane %v3557, 1
      %v3691 = vrot.slane %v3558, 1
      %v3692 = vsel %vm493, %v3690, %v3691
      %v3693 = vrot.slane %v3559, 1
      %v3694 = vsel %vm493, %v3691, %v3693
      %s3695 = scalar_lea.vmem %s2, 4
      %v3696 = vld [vmem:[%s3695] sm:$0xf]
      %v3697 = vsel %vm279, %v3617, 0
      %v3699 = vsel %vm279, %v3619, 0
      %v3701 = vsel %vm279, %v3622, 0
      %v3703 = vsel %vm279, %v3624, 0
      %v3705 = vsel %vm279, %v3627, 0
      %v3707 = vsel %vm279, %v3629, 0
      %v3709 = vsel %vm279, %v3632, 0
      %v3711 = vsel %vm279, %v3634, 0
      %v3713 = vsel %vm279, %v3637, 0
      %v3715 = vsel %vm279, %v3639, 0
      %v3717 = vsel %vm279, %v3642, 0
      %v3719 = vsel %vm279, %v3644, 0
      %v3721 = vsel %vm279, %v3647, 0
      %v3723 = vsel %vm279, %v3649, 0
      %v3725 = vsel %vm279, %v3652, 0
      %v3727 = vsel %vm279, %v3654, 0
      %v3729 = vsel %vm279, %v3657, 0
      %v3731 = vsel %vm279, %v3659, 0
      %v3733 = vsel %vm279, %v3662, 0
      %v3735 = vsel %vm279, %v3664, 0
      %v3737 = vsel %vm279, %v3667, 0
      %v3739 = vsel %vm279, %v3669, 0
      %v3741 = vsel %vm279, %v3672, 0
      %v3743 = vsel %vm279, %v3674, 0
      %v3745 = vsel %vm279, %v3677, 0
      %v3747 = vsel %vm279, %v3679, 0
      %v3749 = vsel %vm279, %v3682, 0
      %v3751 = vsel %vm279, %v3684, 0
      %v3753 = vsel %vm279, %v3687, 0
      %v3755 = vsel %vm279, %v3689, 0
      %v3757 = vsel %vm279, %v3692, 0
      %v3759 = vsel %vm279, %v3694, 0
      %v3762 = vsel %vm640, %v3696, 0
      %3764 = vmatprep.subr.mxu0 0.0
      %3765 = vmatpush1.msra.mxu0 %v3762
      %3766 = vmatprep.subr.mxu0 0.0
      %3767 = vmatpush1.msra.mxu0 0.0
      %3768 = vmatprep.subr.mxu0 0.0
      %3769 = vmatpush1.msra.mxu0 0.0
      %3770 = vmatprep.subr.mxu0 0.0
      %3771 = vmatpush1.msra.mxu0 0.0
      %3772 = vmatprep.subr.mxu0 0.0
      %3773 = vmatpush1.msra.mxu0 0.0
      %3774 = vmatprep.subr.mxu0 0.0
      %3775 = vmatpush1.msra.mxu0 0.0
      %3776 = vmatprep.subr.mxu0 0.0
      %3777 = vmatpush1.msra.mxu0 0.0
      %3778 = vmatprep.subr.mxu0 0.0
      %3779 = vmatpush1.msra.mxu0 0.0
      %3780 = vmatprep.subr.mxu0 0.0
      %3781 = vmatpush1.msra.mxu0 0.0
      %3782 = vmatprep.subr.mxu0 0.0
      %3783 = vmatpush1.msra.mxu0 0.0
      %3784 = vmatprep.subr.mxu0 0.0
      %3785 = vmatpush1.msra.mxu0 0.0
      %3786 = vmatprep.subr.mxu0 0.0
      %3787 = vmatpush1.msra.mxu0 0.0
      %3788 = vmatprep.subr.mxu0 0.0
      %3789 = vmatpush1.msra.mxu0 0.0
      %3790 = vmatprep.subr.mxu0 0.0
      %3791 = vmatpush1.msra.mxu0 0.0
      %3792 = vmatprep.subr.mxu0 0.0
      %3793 = vmatpush1.msra.mxu0 0.0
      %3794 = vmatprep.subr.mxu0 0.0
      %3795 = vmatpush1.msra.mxu0 0.0
      %3796 = vmatprep.subr.mxu0 0.0
      %3797 = vmatpush1.msra.mxu0 0.0
      %3798 = vmatprep.subr.mxu0 0.0
      %3799 = vmatpush1.msra.mxu0 0.0
      %3800 = vmatprep.subr.mxu0 0.0
      %3801 = vmatpush1.msra.mxu0 0.0
      %3802 = vmatprep.subr.mxu0 0.0
      %3803 = vmatpush1.msra.mxu0 0.0
      %3804 = vmatprep.subr.mxu0 0.0
      %3805 = vmatpush1.msra.mxu0 0.0
      %3806 = vmatprep.subr.mxu0 0.0
      %3807 = vmatpush1.msra.mxu0 0.0
      %3808 = vmatprep.subr.mxu0 0.0
      %3809 = vmatpush1.msra.mxu0 0.0
      %3810 = vmatprep.subr.mxu0 0.0
      %3811 = vmatpush1.msra.mxu0 0.0
      %3812 = vmatprep.subr.mxu0 0.0
      %3813 = vmatpush1.msra.mxu0 0.0
      %3814 = vmatprep.subr.mxu0 0.0
      %3815 = vmatpush1.msra.mxu0 0.0
      %3816 = vmatprep.subr.mxu0 0.0
      %3817 = vmatpush1.msra.mxu0 0.0
      %3818 = vmatprep.subr.mxu0 0.0
      %3819 = vmatpush1.msra.mxu0 0.0
      %3820 = vmatprep.subr.mxu0 0.0
      %3821 = vmatpush1.msra.mxu0 0.0
      %3822 = vmatprep.subr.mxu0 0.0
      %3823 = vmatpush1.msra.mxu0 0.0
      %3824 = vmatprep.subr.mxu0 0.0
      %3825 = vmatpush1.msra.mxu0 0.0
      %3826 = vmatprep.subr.mxu0 0.0
      %3827 = vmatpush1.msra.mxu0 0.0
      %3828 = vmatprep.mubr.f32.mxu0 0.0
      %3829 = vmatmul.mubr.f32.gmra.mrb[0].mxu0 %v3697
      %v3830 = vpop.f32.mrb[0].mxu0
      %v3831 = vadd.f32 0.0, %v3830
      %v3832 = vpop.f32.mrb[0].mxu0
      %3833 = vmatprep.mubr.f32.mxu0 0.0
      %3834 = vmatmul.mubr.f32.gmra.mrb[0].mxu0 %v3699
      %v3835 = vpop.f32.mrb[0].mxu0
      %v3836 = vadd.f32 0.0, %v3835
      %v3837 = vpop.f32.mrb[0].mxu0
      %3838 = vmatprep.mubr.f32.mxu0 0.0
      %3839 = vmatmul.mubr.f32.gmra.mrb[0].mxu0 %v3701
      %v3840 = vpop.f32.mrb[0].mxu0
      %v3841 = vadd.f32 0.0, %v3840
      %v3842 = vpop.f32.mrb[0].mxu0
      %3843 = vmatprep.mubr.f32.mxu0 0.0
      %3844 = vmatmul.mubr.f32.gmra.mrb[0].mxu0 %v3703
      %v3845 = vpop.f32.mrb[0].mxu0
      %v3846 = vadd.f32 0.0, %v3845
      %v3847 = vpop.f32.mrb[0].mxu0
      %3848 = vmatprep.mubr.f32.mxu0 0.0
      %3849 = vmatmul.mubr.f32.gmra.mrb[0].mxu0 %v3705
      %v3850 = vpop.f32.mrb[0].mxu0
      %v3851 = vadd.f32 0.0, %v3850
      %v3852 = vpop.f32.mrb[0].mxu0
      %3853 = vmatprep.mubr.f32.mxu0 0.0
      %3854 = vmatmul.mubr.f32.gmra.mrb[0].mxu0 %v3707
      %v3855 = vpop.f32.mrb[0].mxu0
      %v3856 = vadd.f32 0.0, %v3855
      %v3857 = vpop.f32.mrb[0].mxu0
      %3858 = vmatprep.mubr.f32.mxu0 0.0
      %3859 = vmatmul.mubr.f32.gmra.mrb[0].mxu0 %v3709
      %v3860 = vpop.f32.mrb[0].mxu0
      %v3861 = vadd.f32 0.0, %v3860
      %v3862 = vpop.f32.mrb[0].mxu0
      %3863 = vmatprep.mubr.f32.mxu0 0.0
      %3864 = vmatmul.mubr.f32.gmra.mrb[0].mxu0 %v3711
      %v3865 = vpop.f32.mrb[0].mxu0
      %v3866 = vadd.f32 0.0, %v3865
      %v3867 = vpop.f32.mrb[0].mxu0
      %3868 = vmatprep.mubr.f32.mxu0 0.0
      %3869 = vmatmul.mubr.f32.gmra.mrb[0].mxu0 %v3713
      %v3870 = vpop.f32.mrb[0].mxu0
      %v3871 = vadd.f32 0.0, %v3870
      %v3872 = vpop.f32.mrb[0].mxu0
      %3873 = vmatprep.mubr.f32.mxu0 0.0
      %3874 = vmatmul.mubr.f32.gmra.mrb[0].mxu0 %v3715
      %v3875 = vpop.f32.mrb[0].mxu0
      %v3876 = vadd.f32 0.0, %v3875
      %v3877 = vpop.f32.mrb[0].mxu0
      %3878 = vmatprep.mubr.f32.mxu0 0.0
      %3879 = vmatmul.mubr.f32.gmra.mrb[0].mxu0 %v3717
      %v3880 = vpop.f32.mrb[0].mxu0
      %v3881 = vadd.f32 0.0, %v3880
      %v3882 = vpop.f32.mrb[0].mxu0
      %3883 = vmatprep.mubr.f32.mxu0 0.0
      %3884 = vmatmul.mubr.f32.gmra.mrb[0].mxu0 %v3719
      %v3885 = vpop.f32.mrb[0].mxu0
      %v3886 = vadd.f32 0.0, %v3885
      %v3887 = vpop.f32.mrb[0].mxu0
      %3888 = vmatprep.mubr.f32.mxu0 0.0
      %3889 = vmatmul.mubr.f32.gmra.mrb[0].mxu0 %v3721
      %v3890 = vpop.f32.mrb[0].mxu0
      %v3891 = vadd.f32 0.0, %v3890
      %v3892 = vpop.f32.mrb[0].mxu0
      %3893 = vmatprep.mubr.f32.mxu0 0.0
      %3894 = vmatmul.mubr.f32.gmra.mrb[0].mxu0 %v3723
      %v3895 = vpop.f32.mrb[0].mxu0
      %v3896 = vadd.f32 0.0, %v3895
      %v3897 = vpop.f32.mrb[0].mxu0
      %3898 = vmatprep.mubr.f32.mxu0 0.0
      %3899 = vmatmul.mubr.f32.gmra.mrb[0].mxu0 %v3725
      %v3900 = vpop.f32.mrb[0].mxu0
      %v3901 = vadd.f32 0.0, %v3900
      %v3902 = vpop.f32.mrb[0].mxu0
      %3903 = vmatprep.mubr.f32.mxu0 0.0
      %3904 = vmatmul.mubr.f32.gmra.mrb[0].mxu0 %v3727
      %v3905 = vpop.f32.mrb[0].mxu0
      %v3906 = vadd.f32 0.0, %v3905
      %v3907 = vpop.f32.mrb[0].mxu0
      %3908 = vmatprep.mubr.f32.mxu0 0.0
      %3909 = vmatmul.mubr.f32.gmra.mrb[0].mxu0 %v3729
      %v3910 = vpop.f32.mrb[0].mxu0
      %v3911 = vadd.f32 0.0, %v3910
      %v3912 = vpop.f32.mrb[0].mxu0
      %3913 = vmatprep.mubr.f32.mxu0 0.0
      %3914 = vmatmul.mubr.f32.gmra.mrb[0].mxu0 %v3731
      %v3915 = vpop.f32.mrb[0].mxu0
      %v3916 = vadd.f32 0.0, %v3915
      %v3917 = vpop.f32.mrb[0].mxu0
      %3918 = vmatprep.mubr.f32.mxu0 0.0
      %3919 = vmatmul.mubr.f32.gmra.mrb[0].mxu0 %v3733
      %v3920 = vpop.f32.mrb[0].mxu0
      %v3921 = vadd.f32 0.0, %v3920
      %v3922 = vpop.f32.mrb[0].mxu0
      %3923 = vmatprep.mubr.f32.mxu0 0.0
      %3924 = vmatmul.mubr.f32.gmra.mrb[0].mxu0 %v3735
      %v3925 = vpop.f32.mrb[0].mxu0
      %v3926 = vadd.f32 0.0, %v3925
      %v3927 = vpop.f32.mrb[0].mxu0
      %3928 = vmatprep.mubr.f32.mxu0 0.0
      %3929 = vmatmul.mubr.f32.gmra.mrb[0].mxu0 %v3737
      %v3930 = vpop.f32.mrb[0].mxu0
      %v3931 = vadd.f32 0.0, %v3930
      %v3932 = vpop.f32.mrb[0].mxu0
      %3933 = vmatprep.mubr.f32.mxu0 0.0
      %3934 = vmatmul.mubr.f32.gmra.mrb[0].mxu0 %v3739
      %v3935 = vpop.f32.mrb[0].mxu0
      %v3936 = vadd.f32 0.0, %v3935
      %v3937 = vpop.f32.mrb[0].mxu0
      %3938 = vmatprep.mubr.f32.mxu0 0.0
      %3939 = vmatmul.mubr.f32.gmra.mrb[0].mxu0 %v3741
      %v3940 = vpop.f32.mrb[0].mxu0
      %v3941 = vadd.f32 0.0, %v3940
      %v3942 = vpop.f32.mrb[0].mxu0
      %3943 = vmatprep.mubr.f32.mxu0 0.0
      %3944 = vmatmul.mubr.f32.gmra.mrb[0].mxu0 %v3743
      %v3945 = vpop.f32.mrb[0].mxu0
      %v3946 = vadd.f32 0.0, %v3945
      %v3947 = vpop.f32.mrb[0].mxu0
      %3948 = vmatprep.mubr.f32.mxu0 0.0
      %3949 = vmatmul.mubr.f32.gmra.mrb[0].mxu0 %v3745
      %v3950 = vpop.f32.mrb[0].mxu0
      %v3951 = vadd.f32 0.0, %v3950
      %v3952 = vpop.f32.mrb[0].mxu0
      %3953 = vmatprep.mubr.f32.mxu0 0.0
      %3954 = vmatmul.mubr.f32.gmra.mrb[0].mxu0 %v3747
      %v3955 = vpop.f32.mrb[0].mxu0
      %v3956 = vadd.f32 0.0, %v3955
      %v3957 = vpop.f32.mrb[0].mxu0
      %3958 = vmatprep.mubr.f32.mxu0 0.0
      %3959 = vmatmul.mubr.f32.gmra.mrb[0].mxu0 %v3749
      %v3960 = vpop.f32.mrb[0].mxu0
      %v3961 = vadd.f32 0.0, %v3960
      %v3962 = vpop.f32.mrb[0].mxu0
      %3963 = vmatprep.mubr.f32.mxu0 0.0
      %3964 = vmatmul.mubr.f32.gmra.mrb[0].mxu0 %v3751
      %v3965 = vpop.f32.mrb[0].mxu0
      %v3966 = vadd.f32 0.0, %v3965
      %v3967 = vpop.f32.mrb[0].mxu0
      %3968 = vmatprep.mubr.f32.mxu0 0.0
      %3969 = vmatmul.mubr.f32.gmra.mrb[0].mxu0 %v3753
      %v3970 = vpop.f32.mrb[0].mxu0
      %v3971 = vadd.f32 0.0, %v3970
      %v3972 = vpop.f32.mrb[0].mxu0
      %3973 = vmatprep.mubr.f32.mxu0 0.0
      %3974 = vmatmul.mubr.f32.gmra.mrb[0].mxu0 %v3755
      %v3975 = vpop.f32.mrb[0].mxu0
      %v3976 = vadd.f32 0.0, %v3975
      %v3977 = vpop.f32.mrb[0].mxu0
      %3978 = vmatprep.mubr.f32.mxu0 0.0
      %3979 = vmatmul.mubr.f32.gmra.mrb[0].mxu0 %v3757
      %v3980 = vpop.f32.mrb[0].mxu0
      %v3981 = vadd.f32 0.0, %v3980
      %v3982 = vpop.f32.mrb[0].mxu0
      %3983 = vmatprep.mubr.f32.mxu0 0.0
      %3984 = vmatmul.mubr.f32.gmra.mrb[0].mxu0 %v3759
      %v3985 = vpop.f32.mrb[0].mxu0
      %v3986 = vadd.f32 0.0, %v3985
      %v3987 = vpop.f32.mrb[0].mxu0
      %3988 = vdwg.mxu0
      %v3989 = vsel %vm279, %v3512, 0
      %v3991 = vsel %vm279, %v3513, 0
      %v3993 = vsel %vm279, %v3515, 0
      %v3995 = vsel %vm279, %v3516, 0
      %v3997 = vsel %vm279, %v3518, 0
      %v3999 = vsel %vm279, %v3519, 0
      %v4001 = vsel %vm279, %v3521, 0
      %v4003 = vsel %vm279, %v3522, 0
      %v4005 = vsel %vm279, %v3524, 0
      %v4007 = vsel %vm279, %v3525, 0
      %v4009 = vsel %vm279, %v3527, 0
      %v4011 = vsel %vm279, %v3528, 0
      %v4013 = vsel %vm279, %v3530, 0
      %v4015 = vsel %vm279, %v3531, 0
      %v4017 = vsel %vm279, %v3533, 0
      %v4019 = vsel %vm279, %v3534, 0
      %v4021 = vsel %vm279, %v3536, 0
      %v4023 = vsel %vm279, %v3537, 0
      %v4025 = vsel %vm279, %v3539, 0
      %v4027 = vsel %vm279, %v3540, 0
      %v4029 = vsel %vm279, %v3542, 0
      %v4031 = vsel %vm279, %v3543, 0
      %v4033 = vsel %vm279, %v3545, 0
      %v4035 = vsel %vm279, %v3546, 0
      %v4037 = vsel %vm279, %v3548, 0
      %v4039 = vsel %vm279, %v3549, 0
      %v4041 = vsel %vm279, %v3551, 0
      %v4043 = vsel %vm279, %v3552, 0
      %v4045 = vsel %vm279, %v3554, 0
      %v4047 = vsel %vm279, %v3555, 0
      %v4049 = vsel %vm279, %v3557, 0
      %v4051 = vsel %vm279, %v3558, 0
      %v4054 = vsel %vm640, %v3566, 0
      %4056 = vmatprep.subr.mxu0 0.0
      %4057 = vmatpush1.msra.mxu0 %v4054
      %4058 = vmatprep.subr.mxu0 0.0
      %4059 = vmatpush1.msra.mxu0 0.0
      %4060 = vmatprep.subr.mxu0 0.0
      %4061 = vmatpush1.msra.mxu0 0.0
      %4062 = vmatprep.subr.mxu0 0.0
      %4063 = vmatpush1.msra.mxu0 0.0
      %4064 = vmatprep.subr.mxu0 0.0
      %4065 = vmatpush1.msra.mxu0 0.0
      %4066 = vmatprep.subr.mxu0 0.0
      %4067 = vmatpush1.msra.mxu0 0.0
      %4068 = vmatprep.subr.mxu0 0.0
      %4069 = vmatpush1.msra.mxu0 0.0
      %4070 = vmatprep.subr.mxu0 0.0
      %4071 = vmatpush1.msra.mxu0 0.0
      %4072 = vmatprep.subr.mxu0 0.0
      %4073 = vmatpush1.msra.mxu0 0.0
      %4074 = vmatprep.subr.mxu0 0.0
      %4075 = vmatpush1.msra.mxu0 0.0
      %4076 = vmatprep.subr.mxu0 0.0
      %4077 = vmatpush1.msra.mxu0 0.0
      %4078 = vmatprep.subr.mxu0 0.0
      %4079 = vmatpush1.msra.mxu0 0.0
      %4080 = vmatprep.subr.mxu0 0.0
      %4081 = vmatpush1.msra.mxu0 0.0
      %4082 = vmatprep.subr.mxu0 0.0
      %4083 = vmatpush1.msra.mxu0 0.0
      %4084 = vmatprep.subr.mxu0 0.0
      %4085 = vmatpush1.msra.mxu0 0.0
      %4086 = vmatprep.subr.mxu0 0.0
      %4087 = vmatpush1.msra.mxu0 0.0
      %4088 = vmatprep.subr.mxu0 0.0
      %4089 = vmatpush1.msra.mxu0 0.0
      %4090 = vmatprep.subr.mxu0 0.0
      %4091 = vmatpush1.msra.mxu0 0.0
      %4092 = vmatprep.subr.mxu0 0.0
      %4093 = vmatpush1.msra.mxu0 0.0
      %4094 = vmatprep.subr.mxu0 0.0
      %4095 = vmatpush1.msra.mxu0 0.0
      %4096 = vmatprep.subr.mxu0 0.0
      %4097 = vmatpush1.msra.mxu0 0.0
      %4098 = vmatprep.subr.mxu0 0.0
      %4099 = vmatpush1.msra.mxu0 0.0
      %4100 = vmatprep.subr.mxu0 0.0
      %4101 = vmatpush1.msra.mxu0 0.0
      %4102 = vmatprep.subr.mxu0 0.0
      %4103 = vmatpush1.msra.mxu0 0.0
      %4104 = vmatprep.subr.mxu0 0.0
      %4105 = vmatpush1.msra.mxu0 0.0
      %4106 = vmatprep.subr.mxu0 0.0
      %4107 = vmatpush1.msra.mxu0 0.0
      %4108 = vmatprep.subr.mxu0 0.0
      %4109 = vmatpush1.msra.mxu0 0.0
      %4110 = vmatprep.subr.mxu0 0.0
      %4111 = vmatpush1.msra.mxu0 0.0
      %4112 = vmatprep.subr.mxu0 0.0
      %4113 = vmatpush1.msra.mxu0 0.0
      %4114 = vmatprep.subr.mxu0 0.0
      %4115 = vmatpush1.msra.mxu0 0.0
      %4116 = vmatprep.subr.mxu0 0.0
      %4117 = vmatpush1.msra.mxu0 0.0
      %4118 = vmatprep.subr.mxu0 0.0
      %4119 = vmatpush1.msra.mxu0 0.0
      %4120 = vmatprep.mubr.f32.mxu0 0.0
      %4121 = vmatmul.mubr.f32.gmra.mrb[0].mxu0 %v3989
      %v4122 = vpop.f32.mrb[0].mxu0
      %v4123 = vadd.f32 %v3831, %v4122
      %v4124 = vpop.f32.mrb[0].mxu0
      %4125 = vmatprep.mubr.f32.mxu0 0.0
      %4126 = vmatmul.mubr.f32.gmra.mrb[0].mxu0 %v3991
      %v4127 = vpop.f32.mrb[0].mxu0
      %v4128 = vadd.f32 %v3836, %v4127
      %v4129 = vpop.f32.mrb[0].mxu0
      %4130 = vmatprep.mubr.f32.mxu0 0.0
      %4131 = vmatmul.mubr.f32.gmra.mrb[0].mxu0 %v3993
      %v4132 = vpop.f32.mrb[0].mxu0
      %v4133 = vadd.f32 %v3841, %v4132
      %v4134 = vpop.f32.mrb[0].mxu0
      %4135 = vmatprep.mubr.f32.mxu0 0.0
      %4136 = vmatmul.mubr.f32.gmra.mrb[0].mxu0 %v3995
      %v4137 = vpop.f32.mrb[0].mxu0
      %v4138 = vadd.f32 %v3846, %v4137
      %v4139 = vpop.f32.mrb[0].mxu0
      %4140 = vmatprep.mubr.f32.mxu0 0.0
      %4141 = vmatmul.mubr.f32.gmra.mrb[0].mxu0 %v3997
      %v4142 = vpop.f32.mrb[0].mxu0
      %v4143 = vadd.f32 %v3851, %v4142
      %v4144 = vpop.f32.mrb[0].mxu0
      %4145 = vmatprep.mubr.f32.mxu0 0.0
      %4146 = vmatmul.mubr.f32.gmra.mrb[0].mxu0 %v3999
      %v4147 = vpop.f32.mrb[0].mxu0
      %v4148 = vadd.f32 %v3856, %v4147
      %v4149 = vpop.f32.mrb[0].mxu0
      %4150 = vmatprep.mubr.f32.mxu0 0.0
      %4151 = vmatmul.mubr.f32.gmra.mrb[0].mxu0 %v4001
      %v4152 = vpop.f32.mrb[0].mxu0
      %v4153 = vadd.f32 %v3861, %v4152
      %v4154 = vpop.f32.mrb[0].mxu0
      %4155 = vmatprep.mubr.f32.mxu0 0.0
      %4156 = vmatmul.mubr.f32.gmra.mrb[0].mxu0 %v4003
      %v4157 = vpop.f32.mrb[0].mxu0
      %v4158 = vadd.f32 %v3866, %v4157
      %v4159 = vpop.f32.mrb[0].mxu0
      %4160 = vmatprep.mubr.f32.mxu0 0.0
      %4161 = vmatmul.mubr.f32.gmra.mrb[0].mxu0 %v4005
      %v4162 = vpop.f32.mrb[0].mxu0
      %v4163 = vadd.f32 %v3871, %v4162
      %v4164 = vpop.f32.mrb[0].mxu0
      %4165 = vmatprep.mubr.f32.mxu0 0.0
      %4166 = vmatmul.mubr.f32.gmra.mrb[0].mxu0 %v4007
      %v4167 = vpop.f32.mrb[0].mxu0
      %v4168 = vadd.f32 %v3876, %v4167
      %v4169 = vpop.f32.mrb[0].mxu0
      %4170 = vmatprep.mubr.f32.mxu0 0.0
      %4171 = vmatmul.mubr.f32.gmra.mrb[0].mxu0 %v4009
      %v4172 = vpop.f32.mrb[0].mxu0
      %v4173 = vadd.f32 %v3881, %v4172
      %v4174 = vpop.f32.mrb[0].mxu0
      %4175 = vmatprep.mubr.f32.mxu0 0.0
      %4176 = vmatmul.mubr.f32.gmra.mrb[0].mxu0 %v4011
      %v4177 = vpop.f32.mrb[0].mxu0
      %v4178 = vadd.f32 %v3886, %v4177
      %v4179 = vpop.f32.mrb[0].mxu0
      %4180 = vmatprep.mubr.f32.mxu0 0.0
      %4181 = vmatmul.mubr.f32.gmra.mrb[0].mxu0 %v4013
      %v4182 = vpop.f32.mrb[0].mxu0
      %v4183 = vadd.f32 %v3891, %v4182
      %v4184 = vpop.f32.mrb[0].mxu0
      %4185 = vmatprep.mubr.f32.mxu0 0.0
      %4186 = vmatmul.mubr.f32.gmra.mrb[0].mxu0 %v4015
      %v4187 = vpop.f32.mrb[0].mxu0
      %v4188 = vadd.f32 %v3896, %v4187
      %v4189 = vpop.f32.mrb[0].mxu0
      %4190 = vmatprep.mubr.f32.mxu0 0.0
      %4191 = vmatmul.mubr.f32.gmra.mrb[0].mxu0 %v4017
      %v4192 = vpop.f32.mrb[0].mxu0
      %v4193 = vadd.f32 %v3901, %v4192
      %v4194 = vpop.f32.mrb[0].mxu0
      %4195 = vmatprep.mubr.f32.mxu0 0.0
      %4196 = vmatmul.mubr.f32.gmra.mrb[0].mxu0 %v4019
      %v4197 = vpop.f32.mrb[0].mxu0
      %v4198 = vadd.f32 %v3906, %v4197
      %v4199 = vpop.f32.mrb[0].mxu0
      %4200 = vmatprep.mubr.f32.mxu0 0.0
      %4201 = vmatmul.mubr.f32.gmra.mrb[0].mxu0 %v4021
      %v4202 = vpop.f32.mrb[0].mxu0
      %v4203 = vadd.f32 %v3911, %v4202
      %v4204 = vpop.f32.mrb[0].mxu0
      %4205 = vmatprep.mubr.f32.mxu0 0.0
      %4206 = vmatmul.mubr.f32.gmra.mrb[0].mxu0 %v4023
      %v4207 = vpop.f32.mrb[0].mxu0
      %v4208 = vadd.f32 %v3916, %v4207
      %v4209 = vpop.f32.mrb[0].mxu0
      %4210 = vmatprep.mubr.f32.mxu0 0.0
      %4211 = vmatmul.mubr.f32.gmra.mrb[0].mxu0 %v4025
      %v4212 = vpop.f32.mrb[0].mxu0
      %v4213 = vadd.f32 %v3921, %v4212
      %v4214 = vpop.f32.mrb[0].mxu0
      %4215 = vmatprep.mubr.f32.mxu0 0.0
      %4216 = vmatmul.mubr.f32.gmra.mrb[0].mxu0 %v4027
      %v4217 = vpop.f32.mrb[0].mxu0
      %v4218 = vadd.f32 %v3926, %v4217
      %v4219 = vpop.f32.mrb[0].mxu0
      %4220 = vmatprep.mubr.f32.mxu0 0.0
      %4221 = vmatmul.mubr.f32.gmra.mrb[0].mxu0 %v4029
      %v4222 = vpop.f32.mrb[0].mxu0
      %v4223 = vadd.f32 %v3931, %v4222
      %v4224 = vpop.f32.mrb[0].mxu0
      %4225 = vmatprep.mubr.f32.mxu0 0.0
      %4226 = vmatmul.mubr.f32.gmra.mrb[0].mxu0 %v4031
      %v4227 = vpop.f32.mrb[0].mxu0
      %v4228 = vadd.f32 %v3936, %v4227
      %v4229 = vpop.f32.mrb[0].mxu0
      %4230 = vmatprep.mubr.f32.mxu0 0.0
      %4231 = vmatmul.mubr.f32.gmra.mrb[0].mxu0 %v4033
      %v4232 = vpop.f32.mrb[0].mxu0
      %v4233 = vadd.f32 %v3941, %v4232
      %v4234 = vpop.f32.mrb[0].mxu0
      %4235 = vmatprep.mubr.f32.mxu0 0.0
      %4236 = vmatmul.mubr.f32.gmra.mrb[0].mxu0 %v4035
      %v4237 = vpop.f32.mrb[0].mxu0
      %v4238 = vadd.f32 %v3946, %v4237
      %v4239 = vpop.f32.mrb[0].mxu0
      %4240 = vmatprep.mubr.f32.mxu0 0.0
      %4241 = vmatmul.mubr.f32.gmra.mrb[0].mxu0 %v4037
      %v4242 = vpop.f32.mrb[0].mxu0
      %v4243 = vadd.f32 %v3951, %v4242
      %v4244 = vpop.f32.mrb[0].mxu0
      %4245 = vmatprep.mubr.f32.mxu0 0.0
      %4246 = vmatmul.mubr.f32.gmra.mrb[0].mxu0 %v4039
      %v4247 = vpop.f32.mrb[0].mxu0
      %v4248 = vadd.f32 %v3956, %v4247
      %v4249 = vpop.f32.mrb[0].mxu0
      %4250 = vmatprep.mubr.f32.mxu0 0.0
      %4251 = vmatmul.mubr.f32.gmra.mrb[0].mxu0 %v4041
      %v4252 = vpop.f32.mrb[0].mxu0
      %v4253 = vadd.f32 %v3961, %v4252
      %v4254 = vpop.f32.mrb[0].mxu0
      %4255 = vmatprep.mubr.f32.mxu0 0.0
      %4256 = vmatmul.mubr.f32.gmra.mrb[0].mxu0 %v4043
      %v4257 = vpop.f32.mrb[0].mxu0
      %v4258 = vadd.f32 %v3966, %v4257
      %v4259 = vpop.f32.mrb[0].mxu0
      %4260 = vmatprep.mubr.f32.mxu0 0.0
      %4261 = vmatmul.mubr.f32.gmra.mrb[0].mxu0 %v4045
      %v4262 = vpop.f32.mrb[0].mxu0
      %v4263 = vadd.f32 %v3971, %v4262
      %v4264 = vpop.f32.mrb[0].mxu0
      %4265 = vmatprep.mubr.f32.mxu0 0.0
      %4266 = vmatmul.mubr.f32.gmra.mrb[0].mxu0 %v4047
      %v4267 = vpop.f32.mrb[0].mxu0
      %v4268 = vadd.f32 %v3976, %v4267
      %v4269 = vpop.f32.mrb[0].mxu0
      %4270 = vmatprep.mubr.f32.mxu0 0.0
      %4271 = vmatmul.mubr.f32.gmra.mrb[0].mxu0 %v4049
      %v4272 = vpop.f32.mrb[0].mxu0
      %v4273 = vadd.f32 %v3981, %v4272
      %v4274 = vpop.f32.mrb[0].mxu0
      %4275 = vmatprep.mubr.f32.mxu0 0.0
      %4276 = vmatmul.mubr.f32.gmra.mrb[0].mxu0 %v4051
      %v4277 = vpop.f32.mrb[0].mxu0
      %v4278 = vadd.f32 %v3986, %v4277
      %v4279 = vpop.f32.mrb[0].mxu0
      %4280 = vdwg.mxu0
      %v4281 = vrot.slane %v3512, 2
      %v4282 = vrot.slane %v3513, 2
      %v4283 = vsel %vm1161, %v4281, %v4282
      %v4284 = vrot.slane %v3514, 2
      %v4285 = vsel %vm1161, %v4282, %v4284
      %v4286 = vrot.slane %v3515, 2
      %v4287 = vrot.slane %v3516, 2
      %v4288 = vsel %vm1161, %v4286, %v4287
      %v4289 = vrot.slane %v3517, 2
      %v4290 = vsel %vm1161, %v4287, %v4289
      %v4291 = vrot.slane %v3518, 2
      %v4292 = vrot.slane %v3519, 2
      %v4293 = vsel %vm1161, %v4291, %v4292
      %v4294 = vrot.slane %v3520, 2
      %v4295 = vsel %vm1161, %v4292, %v4294
      %v4296 = vrot.slane %v3521, 2
      %v4297 = vrot.slane %v3522, 2
      %v4298 = vsel %vm1161, %v4296, %v4297
      %v4299 = vrot.slane %v3523, 2
      %v4300 = vsel %vm1161, %v4297, %v4299
      %v4301 = vrot.slane %v3524, 2
      %v4302 = vrot.slane %v3525, 2
      %v4303 = vsel %vm1161, %v4301, %v4302
      %v4304 = vrot.slane %v3526, 2
      %v4305 = vsel %vm1161, %v4302, %v4304
      %v4306 = vrot.slane %v3527, 2
      %v4307 = vrot.slane %v3528, 2
      %v4308 = vsel %vm1161, %v4306, %v4307
      %v4309 = vrot.slane %v3529, 2
      %v4310 = vsel %vm1161, %v4307, %v4309
      %v4311 = vrot.slane %v3530, 2
      %v4312 = vrot.slane %v3531, 2
      %v4313 = vsel %vm1161, %v4311, %v4312
      %v4314 = vrot.slane %v3532, 2
      %v4315 = vsel %vm1161, %v4312, %v4314
      %v4316 = vrot.slane %v3533, 2
      %v4317 = vrot.slane %v3534, 2
      %v4318 = vsel %vm1161, %v4316, %v4317
      %v4319 = vrot.slane %v3535, 2
      %v4320 = vsel %vm1161, %v4317, %v4319
      %v4321 = vrot.slane %v3536, 2
      %v4322 = vrot.slane %v3537, 2
      %v4323 = vsel %vm1161, %v4321, %v4322
      %v4324 = vrot.slane %v3538, 2
      %v4325 = vsel %vm1161, %v4322, %v4324
      %v4326 = vrot.slane %v3539, 2
      %v4327 = vrot.slane %v3540, 2
      %v4328 = vsel %vm1161, %v4326, %v4327
      %v4329 = vrot.slane %v3541, 2
      %v4330 = vsel %vm1161, %v4327, %v4329
      %v4331 = vrot.slane %v3542, 2
      %v4332 = vrot.slane %v3543, 2
      %v4333 = vsel %vm1161, %v4331, %v4332
      %v4334 = vrot.slane %v3544, 2
      %v4335 = vsel %vm1161, %v4332, %v4334
      %v4336 = vrot.slane %v3545, 2
      %v4337 = vrot.slane %v3546, 2
      %v4338 = vsel %vm1161, %v4336, %v4337
      %v4339 = vrot.slane %v3547, 2
      %v4340 = vsel %vm1161, %v4337, %v4339
      %v4341 = vrot.slane %v3548, 2
      %v4342 = vrot.slane %v3549, 2
      %v4343 = vsel %vm1161, %v4341, %v4342
      %v4344 = vrot.slane %v3550, 2
      %v4345 = vsel %vm1161, %v4342, %v4344
      %v4346 = vrot.slane %v3551, 2
      %v4347 = vrot.slane %v3552, 2
      %v4348 = vsel %vm1161, %v4346, %v4347
      %v4349 = vrot.slane %v3553, 2
      %v4350 = vsel %vm1161, %v4347, %v4349
      %v4351 = vrot.slane %v3554, 2
      %v4352 = vrot.slane %v3555, 2
      %v4353 = vsel %vm1161, %v4351, %v4352
      %v4354 = vrot.slane %v3556, 2
      %v4355 = vsel %vm1161, %v4352, %v4354
      %v4356 = vrot.slane %v3557, 2
      %v4357 = vrot.slane %v3558, 2
      %v4358 = vsel %vm1161, %v4356, %v4357
      %v4359 = vrot.slane %v3559, 2
      %v4360 = vsel %vm1161, %v4357, %v4359
      %s4361 = scalar_lea.vmem %s2, 8
      %v4362 = vld [vmem:[%s4361] sm:$0xf]
      %v4363 = vsel %vm279, %v4283, 0
      %v4365 = vsel %vm279, %v4285, 0
      %v4367 = vsel %vm279, %v4288, 0
      %v4369 = vsel %vm279, %v4290, 0
      %v4371 = vsel %vm279, %v4293, 0
      %v4373 = vsel %vm279, %v4295, 0
      %v4375 = vsel %vm279, %v4298, 0
      %v4377 = vsel %vm279, %v4300, 0
      %v4379 = vsel %vm279, %v4303, 0
      %v4381 = vsel %vm279, %v4305, 0
      %v4383 = vsel %vm279, %v4308, 0
      %v4385 = vsel %vm279, %v4310, 0
      %v4387 = vsel %vm279, %v4313, 0
      %v4389 = vsel %vm279, %v4315, 0
      %v4391 = vsel %vm279, %v4318, 0
      %v4393 = vsel %vm279, %v4320, 0
      %v4395 = vsel %vm279, %v4323, 0
      %v4397 = vsel %vm279, %v4325, 0
      %v4399 = vsel %vm279, %v4328, 0
      %v4401 = vsel %vm279, %v4330, 0
      %v4403 = vsel %vm279, %v4333, 0
      %v4405 = vsel %vm279, %v4335, 0
      %v4407 = vsel %vm279, %v4338, 0
      %v4409 = vsel %vm279, %v4340, 0
      %v4411 = vsel %vm279, %v4343, 0
      %v4413 = vsel %vm279, %v4345, 0
      %v4415 = vsel %vm279, %v4348, 0
      %v4417 = vsel %vm279, %v4350, 0
      %v4419 = vsel %vm279, %v4353, 0
      %v4421 = vsel %vm279, %v4355, 0
      %v4423 = vsel %vm279, %v4358, 0
      %v4425 = vsel %vm279, %v4360, 0
      %v4428 = vsel %vm640, %v4362, 0
      %4430 = vmatprep.subr.mxu0 0.0
      %4431 = vmatpush1.msra.mxu0 %v4428
      %4432 = vmatprep.subr.mxu0 0.0
      %4433 = vmatpush1.msra.mxu0 0.0
      %4434 = vmatprep.subr.mxu0 0.0
      %4435 = vmatpush1.msra.mxu0 0.0
      %4436 = vmatprep.subr.mxu0 0.0
      %4437 = vmatpush1.msra.mxu0 0.0
      %4438 = vmatprep.subr.mxu0 0.0
      %4439 = vmatpush1.msra.mxu0 0.0
      %4440 = vmatprep.subr.mxu0 0.0
      %4441 = vmatpush1.msra.mxu0 0.0
      %4442 = vmatprep.subr.mxu0 0.0
      %4443 = vmatpush1.msra.mxu0 0.0
      %4444 = vmatprep.subr.mxu0 0.0
      %4445 = vmatpush1.msra.mxu0 0.0
      %4446 = vmatprep.subr.mxu0 0.0
      %4447 = vmatpush1.msra.mxu0 0.0
      %4448 = vmatprep.subr.mxu0 0.0
      %4449 = vmatpush1.msra.mxu0 0.0
      %4450 = vmatprep.subr.mxu0 0.0
      %4451 = vmatpush1.msra.mxu0 0.0
      %4452 = vmatprep.subr.mxu0 0.0
      %4453 = vmatpush1.msra.mxu0 0.0
      %4454 = vmatprep.subr.mxu0 0.0
      %4455 = vmatpush1.msra.mxu0 0.0
      %4456 = vmatprep.subr.mxu0 0.0
      %4457 = vmatpush1.msra.mxu0 0.0
      %4458 = vmatprep.subr.mxu0 0.0
      %4459 = vmatpush1.msra.mxu0 0.0
      %4460 = vmatprep.subr.mxu0 0.0
      %4461 = vmatpush1.msra.mxu0 0.0
      %4462 = vmatprep.subr.mxu0 0.0
      %4463 = vmatpush1.msra.mxu0 0.0
      %4464 = vmatprep.subr.mxu0 0.0
      %4465 = vmatpush1.msra.mxu0 0.0
      %4466 = vmatprep.subr.mxu0 0.0
      %4467 = vmatpush1.msra.mxu0 0.0
      %4468 = vmatprep.subr.mxu0 0.0
      %4469 = vmatpush1.msra.mxu0 0.0
      %4470 = vmatprep.subr.mxu0 0.0
      %4471 = vmatpush1.msra.mxu0 0.0
      %4472 = vmatprep.subr.mxu0 0.0
      %4473 = vmatpush1.msra.mxu0 0.0
      %4474 = vmatprep.subr.mxu0 0.0
      %4475 = vmatpush1.msra.mxu0 0.0
      %4476 = vmatprep.subr.mxu0 0.0
      %4477 = vmatpush1.msra.mxu0 0.0
      %4478 = vmatprep.subr.mxu0 0.0
      %4479 = vmatpush1.msra.mxu0 0.0
      %4480 = vmatprep.subr.mxu0 0.0
      %4481 = vmatpush1.msra.mxu0 0.0
      %4482 = vmatprep.subr.mxu0 0.0
      %4483 = vmatpush1.msra.mxu0 0.0
      %4484 = vmatprep.subr.mxu0 0.0
      %4485 = vmatpush1.msra.mxu0 0.0
      %4486 = vmatprep.subr.mxu0 0.0
      %4487 = vmatpush1.msra.mxu0 0.0
      %4488 = vmatprep.subr.mxu0 0.0
      %4489 = vmatpush1.msra.mxu0 0.0
      %4490 = vmatprep.subr.mxu0 0.0
      %4491 = vmatpush1.msra.mxu0 0.0
      %4492 = vmatprep.subr.mxu0 0.0
      %4493 = vmatpush1.msra.mxu0 0.0
      %4494 = vmatprep.mubr.f32.mxu0 0.0
      %4495 = vmatmul.mubr.f32.gmra.mrb[0].mxu0 %v4363
      %v4496 = vpop.f32.mrb[0].mxu0
      %v4497 = vadd.f32 0.0, %v4496
      %v4498 = vpop.f32.mrb[0].mxu0
      %4499 = vmatprep.mubr.f32.mxu0 0.0
      %4500 = vmatmul.mubr.f32.gmra.mrb[0].mxu0 %v4365
      %v4501 = vpop.f32.mrb[0].mxu0
      %v4502 = vadd.f32 0.0, %v4501
      %v4503 = vpop.f32.mrb[0].mxu0
      %4504 = vmatprep.mubr.f32.mxu0 0.0
      %4505 = vmatmul.mubr.f32.gmra.mrb[0].mxu0 %v4367
      %v4506 = vpop.f32.mrb[0].mxu0
      %v4507 = vadd.f32 0.0, %v4506
      %v4508 = vpop.f32.mrb[0].mxu0
      %4509 = vmatprep.mubr.f32.mxu0 0.0
      %4510 = vmatmul.mubr.f32.gmra.mrb[0].mxu0 %v4369
      %v4511 = vpop.f32.mrb[0].mxu0
      %v4512 = vadd.f32 0.0, %v4511
      %v4513 = vpop.f32.mrb[0].mxu0
      %4514 = vmatprep.mubr.f32.mxu0 0.0
      %4515 = vmatmul.mubr.f32.gmra.mrb[0].mxu0 %v4371
      %v4516 = vpop.f32.mrb[0].mxu0
      %v4517 = vadd.f32 0.0, %v4516
      %v4518 = vpop.f32.mrb[0].mxu0
      %4519 = vmatprep.mubr.f32.mxu0 0.0
      %4520 = vmatmul.mubr.f32.gmra.mrb[0].mxu0 %v4373
      %v4521 = vpop.f32.mrb[0].mxu0
      %v4522 = vadd.f32 0.0, %v4521
      %v4523 = vpop.f32.mrb[0].mxu0
      %4524 = vmatprep.mubr.f32.mxu0 0.0
      %4525 = vmatmul.mubr.f32.gmra.mrb[0].mxu0 %v4375
      %v4526 = vpop.f32.mrb[0].mxu0
      %v4527 = vadd.f32 0.0, %v4526
      %v4528 = vpop.f32.mrb[0].mxu0
      %4529 = vmatprep.mubr.f32.mxu0 0.0
      %4530 = vmatmul.mubr.f32.gmra.mrb[0].mxu0 %v4377
      %v4531 = vpop.f32.mrb[0].mxu0
      %v4532 = vadd.f32 0.0, %v4531
      %v4533 = vpop.f32.mrb[0].mxu0
      %4534 = vmatprep.mubr.f32.mxu0 0.0
      %4535 = vmatmul.mubr.f32.gmra.mrb[0].mxu0 %v4379
      %v4536 = vpop.f32.mrb[0].mxu0
      %v4537 = vadd.f32 0.0, %v4536
      %v4538 = vpop.f32.mrb[0].mxu0
      %4539 = vmatprep.mubr.f32.mxu0 0.0
      %4540 = vmatmul.mubr.f32.gmra.mrb[0].mxu0 %v4381
      %v4541 = vpop.f32.mrb[0].mxu0
      %v4542 = vadd.f32 0.0, %v4541
      %v4543 = vpop.f32.mrb[0].mxu0
      %4544 = vmatprep.mubr.f32.mxu0 0.0
      %4545 = vmatmul.mubr.f32.gmra.mrb[0].mxu0 %v4383
      %v4546 = vpop.f32.mrb[0].mxu0
      %v4547 = vadd.f32 0.0, %v4546
      %v4548 = vpop.f32.mrb[0].mxu0
      %4549 = vmatprep.mubr.f32.mxu0 0.0
      %4550 = vmatmul.mubr.f32.gmra.mrb[0].mxu0 %v4385
      %v4551 = vpop.f32.mrb[0].mxu0
      %v4552 = vadd.f32 0.0, %v4551
      %v4553 = vpop.f32.mrb[0].mxu0
      %4554 = vmatprep.mubr.f32.mxu0 0.0
      %4555 = vmatmul.mubr.f32.gmra.mrb[0].mxu0 %v4387
      %v4556 = vpop.f32.mrb[0].mxu0
      %v4557 = vadd.f32 0.0, %v4556
      %v4558 = vpop.f32.mrb[0].mxu0
      %4559 = vmatprep.mubr.f32.mxu0 0.0
      %4560 = vmatmul.mubr.f32.gmra.mrb[0].mxu0 %v4389
      %v4561 = vpop.f32.mrb[0].mxu0
      %v4562 = vadd.f32 0.0, %v4561
      %v4563 = vpop.f32.mrb[0].mxu0
      %4564 = vmatprep.mubr.f32.mxu0 0.0
      %4565 = vmatmul.mubr.f32.gmra.mrb[0].mxu0 %v4391
      %v4566 = vpop.f32.mrb[0].mxu0
      %v4567 = vadd.f32 0.0, %v4566
      %v4568 = vpop.f32.mrb[0].mxu0
      %4569 = vmatprep.mubr.f32.mxu0 0.0
      %4570 = vmatmul.mubr.f32.gmra.mrb[0].mxu0 %v4393
      %v4571 = vpop.f32.mrb[0].mxu0
      %v4572 = vadd.f32 0.0, %v4571
      %v4573 = vpop.f32.mrb[0].mxu0
      %4574 = vmatprep.mubr.f32.mxu0 0.0
      %4575 = vmatmul.mubr.f32.gmra.mrb[0].mxu0 %v4395
      %v4576 = vpop.f32.mrb[0].mxu0
      %v4577 = vadd.f32 0.0, %v4576
      %v4578 = vpop.f32.mrb[0].mxu0
      %4579 = vmatprep.mubr.f32.mxu0 0.0
      %4580 = vmatmul.mubr.f32.gmra.mrb[0].mxu0 %v4397
      %v4581 = vpop.f32.mrb[0].mxu0
      %v4582 = vadd.f32 0.0, %v4581
      %v4583 = vpop.f32.mrb[0].mxu0
      %4584 = vmatprep.mubr.f32.mxu0 0.0
      %4585 = vmatmul.mubr.f32.gmra.mrb[0].mxu0 %v4399
      %v4586 = vpop.f32.mrb[0].mxu0
      %v4587 = vadd.f32 0.0, %v4586
      %v4588 = vpop.f32.mrb[0].mxu0
      %4589 = vmatprep.mubr.f32.mxu0 0.0
      %4590 = vmatmul.mubr.f32.gmra.mrb[0].mxu0 %v4401
      %v4591 = vpop.f32.mrb[0].mxu0
      %v4592 = vadd.f32 0.0, %v4591
      %v4593 = vpop.f32.mrb[0].mxu0
      %4594 = vmatprep.mubr.f32.mxu0 0.0
      %4595 = vmatmul.mubr.f32.gmra.mrb[0].mxu0 %v4403
      %v4596 = vpop.f32.mrb[0].mxu0
      %v4597 = vadd.f32 0.0, %v4596
      %v4598 = vpop.f32.mrb[0].mxu0
      %4599 = vmatprep.mubr.f32.mxu0 0.0
      %4600 = vmatmul.mubr.f32.gmra.mrb[0].mxu0 %v4405
      %v4601 = vpop.f32.mrb[0].mxu0
      %v4602 = vadd.f32 0.0, %v4601
      %v4603 = vpop.f32.mrb[0].mxu0
      %4604 = vmatprep.mubr.f32.mxu0 0.0
      %4605 = vmatmul.mubr.f32.gmra.mrb[0].mxu0 %v4407
      %v4606 = vpop.f32.mrb[0].mxu0
      %v4607 = vadd.f32 0.0, %v4606
      %v4608 = vpop.f32.mrb[0].mxu0
      %4609 = vmatprep.mubr.f32.mxu0 0.0
      %4610 = vmatmul.mubr.f32.gmra.mrb[0].mxu0 %v4409
      %v4611 = vpop.f32.mrb[0].mxu0
      %v4612 = vadd.f32 0.0, %v4611
      %v4613 = vpop.f32.mrb[0].mxu0
      %4614 = vmatprep.mubr.f32.mxu0 0.0
      %4615 = vmatmul.mubr.f32.gmra.mrb[0].mxu0 %v4411
      %v4616 = vpop.f32.mrb[0].mxu0
      %v4617 = vadd.f32 0.0, %v4616
      %v4618 = vpop.f32.mrb[0].mxu0
      %4619 = vmatprep.mubr.f32.mxu0 0.0
      %4620 = vmatmul.mubr.f32.gmra.mrb[0].mxu0 %v4413
      %v4621 = vpop.f32.mrb[0].mxu0
      %v4622 = vadd.f32 0.0, %v4621
      %v4623 = vpop.f32.mrb[0].mxu0
      %4624 = vmatprep.mubr.f32.mxu0 0.0
      %4625 = vmatmul.mubr.f32.gmra.mrb[0].mxu0 %v4415
      %v4626 = vpop.f32.mrb[0].mxu0
      %v4627 = vadd.f32 0.0, %v4626
      %v4628 = vpop.f32.mrb[0].mxu0
      %4629 = vmatprep.mubr.f32.mxu0 0.0
      %4630 = vmatmul.mubr.f32.gmra.mrb[0].mxu0 %v4417
      %v4631 = vpop.f32.mrb[0].mxu0
      %v4632 = vadd.f32 0.0, %v4631
      %v4633 = vpop.f32.mrb[0].mxu0
      %4634 = vmatprep.mubr.f32.mxu0 0.0
      %4635 = vmatmul.mubr.f32.gmra.mrb[0].mxu0 %v4419
      %v4636 = vpop.f32.mrb[0].mxu0
      %v4637 = vadd.f32 0.0, %v4636
      %v4638 = vpop.f32.mrb[0].mxu0
      %4639 = vmatprep.mubr.f32.mxu0 0.0
      %4640 = vmatmul.mubr.f32.gmra.mrb[0].mxu0 %v4421
      %v4641 = vpop.f32.mrb[0].mxu0
      %v4642 = vadd.f32 0.0, %v4641
      %v4643 = vpop.f32.mrb[0].mxu0
      %4644 = vmatprep.mubr.f32.mxu0 0.0
      %4645 = vmatmul.mubr.f32.gmra.mrb[0].mxu0 %v4423
      %v4646 = vpop.f32.mrb[0].mxu0
      %v4647 = vadd.f32 0.0, %v4646
      %v4648 = vpop.f32.mrb[0].mxu0
      %4649 = vmatprep.mubr.f32.mxu0 0.0
      %4650 = vmatmul.mubr.f32.gmra.mrb[0].mxu0 %v4425
      %v4651 = vpop.f32.mrb[0].mxu0
      %v4652 = vadd.f32 0.0, %v4651
      %v4653 = vpop.f32.mrb[0].mxu0
      %4654 = vdwg.mxu0
      %v4655 = vadd.f32 %v4123, %v4497
      %v4656 = vadd.f32 %v4128, %v4502
      %v4657 = vadd.f32 %v4133, %v4507
      %v4658 = vadd.f32 %v4138, %v4512
      %v4659 = vadd.f32 %v4143, %v4517
      %v4660 = vadd.f32 %v4148, %v4522
      %v4661 = vadd.f32 %v4153, %v4527
      %v4662 = vadd.f32 %v4158, %v4532
      %v4663 = vadd.f32 %v4163, %v4537
      %v4664 = vadd.f32 %v4168, %v4542
      %v4665 = vadd.f32 %v4173, %v4547
      %v4666 = vadd.f32 %v4178, %v4552
      %v4667 = vadd.f32 %v4183, %v4557
      %v4668 = vadd.f32 %v4188, %v4562
      %v4669 = vadd.f32 %v4193, %v4567
      %v4670 = vadd.f32 %v4198, %v4572
      %v4671 = vadd.f32 %v4203, %v4577
      %v4672 = vadd.f32 %v4208, %v4582
      %v4673 = vadd.f32 %v4213, %v4587
      %v4674 = vadd.f32 %v4218, %v4592
      %v4675 = vadd.f32 %v4223, %v4597
      %v4676 = vadd.f32 %v4228, %v4602
      %v4677 = vadd.f32 %v4233, %v4607
      %v4678 = vadd.f32 %v4238, %v4612
      %v4679 = vadd.f32 %v4243, %v4617
      %v4680 = vadd.f32 %v4248, %v4622
      %v4681 = vadd.f32 %v4253, %v4627
      %v4682 = vadd.f32 %v4258, %v4632
      %v4683 = vadd.f32 %v4263, %v4637
      %v4684 = vadd.f32 %v4268, %v4642
      %v4685 = vadd.f32 %v4273, %v4647
      %v4686 = vadd.f32 %v4278, %v4652
      %s4687 = scalar_lea.vmem %s2, 12
      %v4688 = vld [vmem:[%s4687] sm:$0xf]
      %v4690 = vsel %vm279, %v3560, 0
      %v4693 = vsel %vm279, %v3561, 0
      %v4696 = vsel %vm640, %v4688, 0
      %4698 = vmatprep.subr.mxu0 0.0
      %4699 = vmatpush1.msra.mxu0 %v4696
      %4700 = vmatprep.subr.mxu0 0.0
      %4701 = vmatpush1.msra.mxu0 0.0
      %4702 = vmatprep.subr.mxu0 0.0
      %4703 = vmatpush1.msra.mxu0 0.0
      %4704 = vmatprep.subr.mxu0 0.0
      %4705 = vmatpush1.msra.mxu0 0.0
      %4706 = vmatprep.subr.mxu0 0.0
      %4707 = vmatpush1.msra.mxu0 0.0
      %4708 = vmatprep.subr.mxu0 0.0
      %4709 = vmatpush1.msra.mxu0 0.0
      %4710 = vmatprep.subr.mxu0 0.0
      %4711 = vmatpush1.msra.mxu0 0.0
      %4712 = vmatprep.subr.mxu0 0.0
      %4713 = vmatpush1.msra.mxu0 0.0
      %4714 = vmatprep.subr.mxu0 0.0
      %4715 = vmatpush1.msra.mxu0 0.0
      %4716 = vmatprep.subr.mxu0 0.0
      %4717 = vmatpush1.msra.mxu0 0.0
      %4718 = vmatprep.subr.mxu0 0.0
      %4719 = vmatpush1.msra.mxu0 0.0
      %4720 = vmatprep.subr.mxu0 0.0
      %4721 = vmatpush1.msra.mxu0 0.0
      %4722 = vmatprep.subr.mxu0 0.0
      %4723 = vmatpush1.msra.mxu0 0.0
      %4724 = vmatprep.subr.mxu0 0.0
      %4725 = vmatpush1.msra.mxu0 0.0
      %4726 = vmatprep.subr.mxu0 0.0
      %4727 = vmatpush1.msra.mxu0 0.0
      %4728 = vmatprep.subr.mxu0 0.0
      %4729 = vmatpush1.msra.mxu0 0.0
      %4730 = vmatprep.subr.mxu0 0.0
      %4731 = vmatpush1.msra.mxu0 0.0
      %4732 = vmatprep.subr.mxu0 0.0
      %4733 = vmatpush1.msra.mxu0 0.0
      %4734 = vmatprep.subr.mxu0 0.0
      %4735 = vmatpush1.msra.mxu0 0.0
      %4736 = vmatprep.subr.mxu0 0.0
      %4737 = vmatpush1.msra.mxu0 0.0
      %4738 = vmatprep.subr.mxu0 0.0
      %4739 = vmatpush1.msra.mxu0 0.0
      %4740 = vmatprep.subr.mxu0 0.0
      %4741 = vmatpush1.msra.mxu0 0.0
      %4742 = vmatprep.subr.mxu0 0.0
      %4743 = vmatpush1.msra.mxu0 0.0
      %4744 = vmatprep.subr.mxu0 0.0
      %4745 = vmatpush1.msra.mxu0 0.0
      %4746 = vmatprep.subr.mxu0 0.0
      %4747 = vmatpush1.msra.mxu0 0.0
      %4748 = vmatprep.subr.mxu0 0.0
      %4749 = vmatpush1.msra.mxu0 0.0
      %4750 = vmatprep.subr.mxu0 0.0
      %4751 = vmatpush1.msra.mxu0 0.0
      %4752 = vmatprep.subr.mxu0 0.0
      %4753 = vmatpush1.msra.mxu0 0.0
      %4754 = vmatprep.subr.mxu0 0.0
      %4755 = vmatpush1.msra.mxu0 0.0
      %4756 = vmatprep.subr.mxu0 0.0
      %4757 = vmatpush1.msra.mxu0 0.0
      %4758 = vmatprep.subr.mxu0 0.0
      %4759 = vmatpush1.msra.mxu0 0.0
      %4760 = vmatprep.subr.mxu0 0.0
      %4761 = vmatpush1.msra.mxu0 0.0
      %4762 = vmatprep.mubr.f32.mxu0 0.0
      %4763 = vmatmul.mubr.f32.gmra.mrb[0].mxu0 %v3993
      %v4764 = vpop.f32.mrb[0].mxu0
      %v4765 = vadd.f32 0.0, %v4764
      %v4766 = vpop.f32.mrb[0].mxu0
      %4767 = vmatprep.mubr.f32.mxu0 0.0
      %4768 = vmatmul.mubr.f32.gmra.mrb[0].mxu0 %v3995
      %v4769 = vpop.f32.mrb[0].mxu0
      %v4770 = vadd.f32 0.0, %v4769
      %v4771 = vpop.f32.mrb[0].mxu0
      %4772 = vmatprep.mubr.f32.mxu0 0.0
      %4773 = vmatmul.mubr.f32.gmra.mrb[0].mxu0 %v3997
      %v4774 = vpop.f32.mrb[0].mxu0
      %v4775 = vadd.f32 0.0, %v4774
      %v4776 = vpop.f32.mrb[0].mxu0
      %4777 = vmatprep.mubr.f32.mxu0 0.0
      %4778 = vmatmul.mubr.f32.gmra.mrb[0].mxu0 %v3999
      %v4779 = vpop.f32.mrb[0].mxu0
      %v4780 = vadd.f32 0.0, %v4779
      %v4781 = vpop.f32.mrb[0].mxu0
      %4782 = vmatprep.mubr.f32.mxu0 0.0
      %4783 = vmatmul.mubr.f32.gmra.mrb[0].mxu0 %v4001
      %v4784 = vpop.f32.mrb[0].mxu0
      %v4785 = vadd.f32 0.0, %v4784
      %v4786 = vpop.f32.mrb[0].mxu0
      %4787 = vmatprep.mubr.f32.mxu0 0.0
      %4788 = vmatmul.mubr.f32.gmra.mrb[0].mxu0 %v4003
      %v4789 = vpop.f32.mrb[0].mxu0
      %v4790 = vadd.f32 0.0, %v4789
      %v4791 = vpop.f32.mrb[0].mxu0
      %4792 = vmatprep.mubr.f32.mxu0 0.0
      %4793 = vmatmul.mubr.f32.gmra.mrb[0].mxu0 %v4005
      %v4794 = vpop.f32.mrb[0].mxu0
      %v4795 = vadd.f32 0.0, %v4794
      %v4796 = vpop.f32.mrb[0].mxu0
      %4797 = vmatprep.mubr.f32.mxu0 0.0
      %4798 = vmatmul.mubr.f32.gmra.mrb[0].mxu0 %v4007
      %v4799 = vpop.f32.mrb[0].mxu0
      %v4800 = vadd.f32 0.0, %v4799
      %v4801 = vpop.f32.mrb[0].mxu0
      %4802 = vmatprep.mubr.f32.mxu0 0.0
      %4803 = vmatmul.mubr.f32.gmra.mrb[0].mxu0 %v4009
      %v4804 = vpop.f32.mrb[0].mxu0
      %v4805 = vadd.f32 0.0, %v4804
      %v4806 = vpop.f32.mrb[0].mxu0
      %4807 = vmatprep.mubr.f32.mxu0 0.0
      %4808 = vmatmul.mubr.f32.gmra.mrb[0].mxu0 %v4011
      %v4809 = vpop.f32.mrb[0].mxu0
      %v4810 = vadd.f32 0.0, %v4809
      %v4811 = vpop.f32.mrb[0].mxu0
      %4812 = vmatprep.mubr.f32.mxu0 0.0
      %4813 = vmatmul.mubr.f32.gmra.mrb[0].mxu0 %v4013
      %v4814 = vpop.f32.mrb[0].mxu0
      %v4815 = vadd.f32 0.0, %v4814
      %v4816 = vpop.f32.mrb[0].mxu0
      %4817 = vmatprep.mubr.f32.mxu0 0.0
      %4818 = vmatmul.mubr.f32.gmra.mrb[0].mxu0 %v4015
      %v4819 = vpop.f32.mrb[0].mxu0
      %v4820 = vadd.f32 0.0, %v4819
      %v4821 = vpop.f32.mrb[0].mxu0
      %4822 = vmatprep.mubr.f32.mxu0 0.0
      %4823 = vmatmul.mubr.f32.gmra.mrb[0].mxu0 %v4017
      %v4824 = vpop.f32.mrb[0].mxu0
      %v4825 = vadd.f32 0.0, %v4824
      %v4826 = vpop.f32.mrb[0].mxu0
      %4827 = vmatprep.mubr.f32.mxu0 0.0
      %4828 = vmatmul.mubr.f32.gmra.mrb[0].mxu0 %v4019
      %v4829 = vpop.f32.mrb[0].mxu0
      %v4830 = vadd.f32 0.0, %v4829
      %v4831 = vpop.f32.mrb[0].mxu0
      %4832 = vmatprep.mubr.f32.mxu0 0.0
      %4833 = vmatmul.mubr.f32.gmra.mrb[0].mxu0 %v4021
      %v4834 = vpop.f32.mrb[0].mxu0
      %v4835 = vadd.f32 0.0, %v4834
      %v4836 = vpop.f32.mrb[0].mxu0
      %4837 = vmatprep.mubr.f32.mxu0 0.0
      %4838 = vmatmul.mubr.f32.gmra.mrb[0].mxu0 %v4023
      %v4839 = vpop.f32.mrb[0].mxu0
      %v4840 = vadd.f32 0.0, %v4839
      %v4841 = vpop.f32.mrb[0].mxu0
      %4842 = vmatprep.mubr.f32.mxu0 0.0
      %4843 = vmatmul.mubr.f32.gmra.mrb[0].mxu0 %v4025
      %v4844 = vpop.f32.mrb[0].mxu0
      %v4845 = vadd.f32 0.0, %v4844
      %v4846 = vpop.f32.mrb[0].mxu0
      %4847 = vmatprep.mubr.f32.mxu0 0.0
      %4848 = vmatmul.mubr.f32.gmra.mrb[0].mxu0 %v4027
      %v4849 = vpop.f32.mrb[0].mxu0
      %v4850 = vadd.f32 0.0, %v4849
      %v4851 = vpop.f32.mrb[0].mxu0
      %4852 = vmatprep.mubr.f32.mxu0 0.0
      %4853 = vmatmul.mubr.f32.gmra.mrb[0].mxu0 %v4029
      %v4854 = vpop.f32.mrb[0].mxu0
      %v4855 = vadd.f32 0.0, %v4854
      %v4856 = vpop.f32.mrb[0].mxu0
      %4857 = vmatprep.mubr.f32.mxu0 0.0
      %4858 = vmatmul.mubr.f32.gmra.mrb[0].mxu0 %v4031
      %v4859 = vpop.f32.mrb[0].mxu0
      %v4860 = vadd.f32 0.0, %v4859
      %v4861 = vpop.f32.mrb[0].mxu0
      %4862 = vmatprep.mubr.f32.mxu0 0.0
      %4863 = vmatmul.mubr.f32.gmra.mrb[0].mxu0 %v4033
      %v4864 = vpop.f32.mrb[0].mxu0
      %v4865 = vadd.f32 0.0, %v4864
      %v4866 = vpop.f32.mrb[0].mxu0
      %4867 = vmatprep.mubr.f32.mxu0 0.0
      %4868 = vmatmul.mubr.f32.gmra.mrb[0].mxu0 %v4035
      %v4869 = vpop.f32.mrb[0].mxu0
      %v4870 = vadd.f32 0.0, %v4869
      %v4871 = vpop.f32.mrb[0].mxu0
      %4872 = vmatprep.mubr.f32.mxu0 0.0
      %4873 = vmatmul.mubr.f32.gmra.mrb[0].mxu0 %v4037
      %v4874 = vpop.f32.mrb[0].mxu0
      %v4875 = vadd.f32 0.0, %v4874
      %v4876 = vpop.f32.mrb[0].mxu0
      %4877 = vmatprep.mubr.f32.mxu0 0.0
      %4878 = vmatmul.mubr.f32.gmra.mrb[0].mxu0 %v4039
      %v4879 = vpop.f32.mrb[0].mxu0
      %v4880 = vadd.f32 0.0, %v4879
      %v4881 = vpop.f32.mrb[0].mxu0
      %4882 = vmatprep.mubr.f32.mxu0 0.0
      %4883 = vmatmul.mubr.f32.gmra.mrb[0].mxu0 %v4041
      %v4884 = vpop.f32.mrb[0].mxu0
      %v4885 = vadd.f32 0.0, %v4884
      %v4886 = vpop.f32.mrb[0].mxu0
      %4887 = vmatprep.mubr.f32.mxu0 0.0
      %4888 = vmatmul.mubr.f32.gmra.mrb[0].mxu0 %v4043
      %v4889 = vpop.f32.mrb[0].mxu0
      %v4890 = vadd.f32 0.0, %v4889
      %v4891 = vpop.f32.mrb[0].mxu0
      %4892 = vmatprep.mubr.f32.mxu0 0.0
      %4893 = vmatmul.mubr.f32.gmra.mrb[0].mxu0 %v4045
      %v4894 = vpop.f32.mrb[0].mxu0
      %v4895 = vadd.f32 0.0, %v4894
      %v4896 = vpop.f32.mrb[0].mxu0
      %4897 = vmatprep.mubr.f32.mxu0 0.0
      %4898 = vmatmul.mubr.f32.gmra.mrb[0].mxu0 %v4047
      %v4899 = vpop.f32.mrb[0].mxu0
      %v4900 = vadd.f32 0.0, %v4899
      %v4901 = vpop.f32.mrb[0].mxu0
      %4902 = vmatprep.mubr.f32.mxu0 0.0
      %4903 = vmatmul.mubr.f32.gmra.mrb[0].mxu0 %v4049
      %v4904 = vpop.f32.mrb[0].mxu0
      %v4905 = vadd.f32 0.0, %v4904
      %v4906 = vpop.f32.mrb[0].mxu0
      %4907 = vmatprep.mubr.f32.mxu0 0.0
      %4908 = vmatmul.mubr.f32.gmra.mrb[0].mxu0 %v4051
      %v4909 = vpop.f32.mrb[0].mxu0
      %v4910 = vadd.f32 0.0, %v4909
      %v4911 = vpop.f32.mrb[0].mxu0
      %4912 = vmatprep.mubr.f32.mxu0 0.0
      %4913 = vmatmul.mubr.f32.gmra.mrb[0].mxu0 %v4690
      %v4914 = vpop.f32.mrb[0].mxu0
      %v4915 = vadd.f32 0.0, %v4914
      %v4916 = vpop.f32.mrb[0].mxu0
      %4917 = vmatprep.mubr.f32.mxu0 0.0
      %4918 = vmatmul.mubr.f32.gmra.mrb[0].mxu0 %v4693
      %v4919 = vpop.f32.mrb[0].mxu0
      %v4920 = vadd.f32 0.0, %v4919
      %v4921 = vpop.f32.mrb[0].mxu0
      %4922 = vdwg.mxu0
      %v4923 = vadd.f32 %v4655, %v4765
      %v4924 = vadd.f32 %v4656, %v4770
      %v4925 = vadd.f32 %v4657, %v4775
      %v4926 = vadd.f32 %v4658, %v4780
      %v4927 = vadd.f32 %v4659, %v4785
      %v4928 = vadd.f32 %v4660, %v4790
      %v4929 = vadd.f32 %v4661, %v4795
      %v4930 = vadd.f32 %v4662, %v4800
      %v4931 = vadd.f32 %v4663, %v4805
      %v4932 = vadd.f32 %v4664, %v4810
      %v4933 = vadd.f32 %v4665, %v4815
      %v4934 = vadd.f32 %v4666, %v4820
      %v4935 = vadd.f32 %v4667, %v4825
      %v4936 = vadd.f32 %v4668, %v4830
      %v4937 = vadd.f32 %v4669, %v4835
      %v4938 = vadd.f32 %v4670, %v4840
      %v4939 = vadd.f32 %v4671, %v4845
      %v4940 = vadd.f32 %v4672, %v4850
      %v4941 = vadd.f32 %v4673, %v4855
      %v4942 = vadd.f32 %v4674, %v4860
      %v4943 = vadd.f32 %v4675, %v4865
      %v4944 = vadd.f32 %v4676, %v4870
      %v4945 = vadd.f32 %v4677, %v4875
      %v4946 = vadd.f32 %v4678, %v4880
      %v4947 = vadd.f32 %v4679, %v4885
      %v4948 = vadd.f32 %v4680, %v4890
      %v4949 = vadd.f32 %v4681, %v4895
      %v4950 = vadd.f32 %v4682, %v4900
      %v4951 = vadd.f32 %v4683, %v4905
      %v4952 = vadd.f32 %v4684, %v4910
      %v4953 = vadd.f32 %v4685, %v4915
      %v4954 = vadd.f32 %v4686, %v4920
      %v4956 = vrot.slane %v3560, 1
      %v4957 = vrot.slane %v3561, 1
      %v4958 = vsel %vm493, %v4956, %v4957
      %v4959 = vrot.slane %v3562, 1
      %v4960 = vsel %vm493, %v4957, %v4959
      %s4961 = scalar_lea.vmem %s2, 16
      %v4962 = vld [vmem:[%s4961] sm:$0xf]
      %v4963 = vsel %vm279, %v4958, 0
      %v4965 = vsel %vm279, %v4960, 0
      %v4968 = vsel %vm640, %v4962, 0
      %4970 = vmatprep.subr.mxu0 0.0
      %4971 = vmatpush1.msra.mxu0 %v4968
      %4972 = vmatprep.subr.mxu0 0.0
      %4973 = vmatpush1.msra.mxu0 0.0
      %4974 = vmatprep.subr.mxu0 0.0
      %4975 = vmatpush1.msra.mxu0 0.0
      %4976 = vmatprep.subr.mxu0 0.0
      %4977 = vmatpush1.msra.mxu0 0.0
      %4978 = vmatprep.subr.mxu0 0.0
      %4979 = vmatpush1.msra.mxu0 0.0
      %4980 = vmatprep.subr.mxu0 0.0
      %4981 = vmatpush1.msra.mxu0 0.0
      %4982 = vmatprep.subr.mxu0 0.0
      %4983 = vmatpush1.msra.mxu0 0.0
      %4984 = vmatprep.subr.mxu0 0.0
      %4985 = vmatpush1.msra.mxu0 0.0
      %4986 = vmatprep.subr.mxu0 0.0
      %4987 = vmatpush1.msra.mxu0 0.0
      %4988 = vmatprep.subr.mxu0 0.0
      %4989 = vmatpush1.msra.mxu0 0.0
      %4990 = vmatprep.subr.mxu0 0.0
      %4991 = vmatpush1.msra.mxu0 0.0
      %4992 = vmatprep.subr.mxu0 0.0
      %4993 = vmatpush1.msra.mxu0 0.0
      %4994 = vmatprep.subr.mxu0 0.0
      %4995 = vmatpush1.msra.mxu0 0.0
      %4996 = vmatprep.subr.mxu0 0.0
      %4997 = vmatpush1.msra.mxu0 0.0
      %4998 = vmatprep.subr.mxu0 0.0
      %4999 = vmatpush1.msra.mxu0 0.0
      %5000 = vmatprep.subr.mxu0 0.0
      %5001 = vmatpush1.msra.mxu0 0.0
      %5002 = vmatprep.subr.mxu0 0.0
      %5003 = vmatpush1.msra.mxu0 0.0
      %5004 = vmatprep.subr.mxu0 0.0
      %5005 = vmatpush1.msra.mxu0 0.0
      %5006 = vmatprep.subr.mxu0 0.0
      %5007 = vmatpush1.msra.mxu0 0.0
      %5008 = vmatprep.subr.mxu0 0.0
      %5009 = vmatpush1.msra.mxu0 0.0
      %5010 = vmatprep.subr.mxu0 0.0
      %5011 = vmatpush1.msra.mxu0 0.0
      %5012 = vmatprep.subr.mxu0 0.0
      %5013 = vmatpush1.msra.mxu0 0.0
      %5014 = vmatprep.subr.mxu0 0.0
      %5015 = vmatpush1.msra.mxu0 0.0
      %5016 = vmatprep.subr.mxu0 0.0
      %5017 = vmatpush1.msra.mxu0 0.0
      %5018 = vmatprep.subr.mxu0 0.0
      %5019 = vmatpush1.msra.mxu0 0.0
      %5020 = vmatprep.subr.mxu0 0.0
      %5021 = vmatpush1.msra.mxu0 0.0
      %5022 = vmatprep.subr.mxu0 0.0
      %5023 = vmatpush1.msra.mxu0 0.0
      %5024 = vmatprep.subr.mxu0 0.0
      %5025 = vmatpush1.msra.mxu0 0.0
      %5026 = vmatprep.subr.mxu0 0.0
      %5027 = vmatpush1.msra.mxu0 0.0
      %5028 = vmatprep.subr.mxu0 0.0
      %5029 = vmatpush1.msra.mxu0 0.0
      %5030 = vmatprep.subr.mxu0 0.0
      %5031 = vmatpush1.msra.mxu0 0.0
      %5032 = vmatprep.subr.mxu0 0.0
      %5033 = vmatpush1.msra.mxu0 0.0
      %5034 = vmatprep.mubr.f32.mxu0 0.0
      %5035 = vmatmul.mubr.f32.gmra.mrb[0].mxu0 %v3701
      %v5036 = vpop.f32.mrb[0].mxu0
      %v5037 = vadd.f32 0.0, %v5036
      %v5038 = vpop.f32.mrb[0].mxu0
      %5039 = vmatprep.mubr.f32.mxu0 0.0
      %5040 = vmatmul.mubr.f32.gmra.mrb[0].mxu0 %v3703
      %v5041 = vpop.f32.mrb[0].mxu0
      %v5042 = vadd.f32 0.0, %v5041
      %v5043 = vpop.f32.mrb[0].mxu0
      %5044 = vmatprep.mubr.f32.mxu0 0.0
      %5045 = vmatmul.mubr.f32.gmra.mrb[0].mxu0 %v3705
      %v5046 = vpop.f32.mrb[0].mxu0
      %v5047 = vadd.f32 0.0, %v5046
      %v5048 = vpop.f32.mrb[0].mxu0
      %5049 = vmatprep.mubr.f32.mxu0 0.0
      %5050 = vmatmul.mubr.f32.gmra.mrb[0].mxu0 %v3707
      %v5051 = vpop.f32.mrb[0].mxu0
      %v5052 = vadd.f32 0.0, %v5051
      %v5053 = vpop.f32.mrb[0].mxu0
      %5054 = vmatprep.mubr.f32.mxu0 0.0
      %5055 = vmatmul.mubr.f32.gmra.mrb[0].mxu0 %v3709
      %v5056 = vpop.f32.mrb[0].mxu0
      %v5057 = vadd.f32 0.0, %v5056
      %v5058 = vpop.f32.mrb[0].mxu0
      %5059 = vmatprep.mubr.f32.mxu0 0.0
      %5060 = vmatmul.mubr.f32.gmra.mrb[0].mxu0 %v3711
      %v5061 = vpop.f32.mrb[0].mxu0
      %v5062 = vadd.f32 0.0, %v5061
      %v5063 = vpop.f32.mrb[0].mxu0
      %5064 = vmatprep.mubr.f32.mxu0 0.0
      %5065 = vmatmul.mubr.f32.gmra.mrb[0].mxu0 %v3713
      %v5066 = vpop.f32.mrb[0].mxu0
      %v5067 = vadd.f32 0.0, %v5066
      %v5068 = vpop.f32.mrb[0].mxu0
      %5069 = vmatprep.mubr.f32.mxu0 0.0
      %5070 = vmatmul.mubr.f32.gmra.mrb[0].mxu0 %v3715
      %v5071 = vpop.f32.mrb[0].mxu0
      %v5072 = vadd.f32 0.0, %v5071
      %v5073 = vpop.f32.mrb[0].mxu0
      %5074 = vmatprep.mubr.f32.mxu0 0.0
      %5075 = vmatmul.mubr.f32.gmra.mrb[0].mxu0 %v3717
      %v5076 = vpop.f32.mrb[0].mxu0
      %v5077 = vadd.f32 0.0, %v5076
      %v5078 = vpop.f32.mrb[0].mxu0
      %5079 = vmatprep.mubr.f32.mxu0 0.0
      %5080 = vmatmul.mubr.f32.gmra.mrb[0].mxu0 %v3719
      %v5081 = vpop.f32.mrb[0].mxu0
      %v5082 = vadd.f32 0.0, %v5081
      %v5083 = vpop.f32.mrb[0].mxu0
      %5084 = vmatprep.mubr.f32.mxu0 0.0
      %5085 = vmatmul.mubr.f32.gmra.mrb[0].mxu0 %v3721
      %v5086 = vpop.f32.mrb[0].mxu0
      %v5087 = vadd.f32 0.0, %v5086
      %v5088 = vpop.f32.mrb[0].mxu0
      %5089 = vmatprep.mubr.f32.mxu0 0.0
      %5090 = vmatmul.mubr.f32.gmra.mrb[0].mxu0 %v3723
      %v5091 = vpop.f32.mrb[0].mxu0
      %v5092 = vadd.f32 0.0, %v5091
      %v5093 = vpop.f32.mrb[0].mxu0
      %5094 = vmatprep.mubr.f32.mxu0 0.0
      %5095 = vmatmul.mubr.f32.gmra.mrb[0].mxu0 %v3725
      %v5096 = vpop.f32.mrb[0].mxu0
      %v5097 = vadd.f32 0.0, %v5096
      %v5098 = vpop.f32.mrb[0].mxu0
      %5099 = vmatprep.mubr.f32.mxu0 0.0
      %5100 = vmatmul.mubr.f32.gmra.mrb[0].mxu0 %v3727
      %v5101 = vpop.f32.mrb[0].mxu0
      %v5102 = vadd.f32 0.0, %v5101
      %v5103 = vpop.f32.mrb[0].mxu0
      %5104 = vmatprep.mubr.f32.mxu0 0.0
      %5105 = vmatmul.mubr.f32.gmra.mrb[0].mxu0 %v3729
      %v5106 = vpop.f32.mrb[0].mxu0
      %v5107 = vadd.f32 0.0, %v5106
      %v5108 = vpop.f32.mrb[0].mxu0
      %5109 = vmatprep.mubr.f32.mxu0 0.0
      %5110 = vmatmul.mubr.f32.gmra.mrb[0].mxu0 %v3731
      %v5111 = vpop.f32.mrb[0].mxu0
      %v5112 = vadd.f32 0.0, %v5111
      %v5113 = vpop.f32.mrb[0].mxu0
      %5114 = vmatprep.mubr.f32.mxu0 0.0
      %5115 = vmatmul.mubr.f32.gmra.mrb[0].mxu0 %v3733
      %v5116 = vpop.f32.mrb[0].mxu0
      %v5117 = vadd.f32 0.0, %v5116
      %v5118 = vpop.f32.mrb[0].mxu0
      %5119 = vmatprep.mubr.f32.mxu0 0.0
      %5120 = vmatmul.mubr.f32.gmra.mrb[0].mxu0 %v3735
      %v5121 = vpop.f32.mrb[0].mxu0
      %v5122 = vadd.f32 0.0, %v5121
      %v5123 = vpop.f32.mrb[0].mxu0
      %5124 = vmatprep.mubr.f32.mxu0 0.0
      %5125 = vmatmul.mubr.f32.gmra.mrb[0].mxu0 %v3737
      %v5126 = vpop.f32.mrb[0].mxu0
      %v5127 = vadd.f32 0.0, %v5126
      %v5128 = vpop.f32.mrb[0].mxu0
      %5129 = vmatprep.mubr.f32.mxu0 0.0
      %5130 = vmatmul.mubr.f32.gmra.mrb[0].mxu0 %v3739
      %v5131 = vpop.f32.mrb[0].mxu0
      %v5132 = vadd.f32 0.0, %v5131
      %v5133 = vpop.f32.mrb[0].mxu0
      %5134 = vmatprep.mubr.f32.mxu0 0.0
      %5135 = vmatmul.mubr.f32.gmra.mrb[0].mxu0 %v3741
      %v5136 = vpop.f32.mrb[0].mxu0
      %v5137 = vadd.f32 0.0, %v5136
      %v5138 = vpop.f32.mrb[0].mxu0
      %5139 = vmatprep.mubr.f32.mxu0 0.0
      %5140 = vmatmul.mubr.f32.gmra.mrb[0].mxu0 %v3743
      %v5141 = vpop.f32.mrb[0].mxu0
      %v5142 = vadd.f32 0.0, %v5141
      %v5143 = vpop.f32.mrb[0].mxu0
      %5144 = vmatprep.mubr.f32.mxu0 0.0
      %5145 = vmatmul.mubr.f32.gmra.mrb[0].mxu0 %v3745
      %v5146 = vpop.f32.mrb[0].mxu0
      %v5147 = vadd.f32 0.0, %v5146
      %v5148 = vpop.f32.mrb[0].mxu0
      %5149 = vmatprep.mubr.f32.mxu0 0.0
      %5150 = vmatmul.mubr.f32.gmra.mrb[0].mxu0 %v3747
      %v5151 = vpop.f32.mrb[0].mxu0
      %v5152 = vadd.f32 0.0, %v5151
      %v5153 = vpop.f32.mrb[0].mxu0
      %5154 = vmatprep.mubr.f32.mxu0 0.0
      %5155 = vmatmul.mubr.f32.gmra.mrb[0].mxu0 %v3749
      %v5156 = vpop.f32.mrb[0].mxu0
      %v5157 = vadd.f32 0.0, %v5156
      %v5158 = vpop.f32.mrb[0].mxu0
      %5159 = vmatprep.mubr.f32.mxu0 0.0
      %5160 = vmatmul.mubr.f32.gmra.mrb[0].mxu0 %v3751
      %v5161 = vpop.f32.mrb[0].mxu0
      %v5162 = vadd.f32 0.0, %v5161
      %v5163 = vpop.f32.mrb[0].mxu0
      %5164 = vmatprep.mubr.f32.mxu0 0.0
      %5165 = vmatmul.mubr.f32.gmra.mrb[0].mxu0 %v3753
      %v5166 = vpop.f32.mrb[0].mxu0
      %v5167 = vadd.f32 0.0, %v5166
      %v5168 = vpop.f32.mrb[0].mxu0
      %5169 = vmatprep.mubr.f32.mxu0 0.0
      %5170 = vmatmul.mubr.f32.gmra.mrb[0].mxu0 %v3755
      %v5171 = vpop.f32.mrb[0].mxu0
      %v5172 = vadd.f32 0.0, %v5171
      %v5173 = vpop.f32.mrb[0].mxu0
      %5174 = vmatprep.mubr.f32.mxu0 0.0
      %5175 = vmatmul.mubr.f32.gmra.mrb[0].mxu0 %v3757
      %v5176 = vpop.f32.mrb[0].mxu0
      %v5177 = vadd.f32 0.0, %v5176
      %v5178 = vpop.f32.mrb[0].mxu0
      %5179 = vmatprep.mubr.f32.mxu0 0.0
      %5180 = vmatmul.mubr.f32.gmra.mrb[0].mxu0 %v3759
      %v5181 = vpop.f32.mrb[0].mxu0
      %v5182 = vadd.f32 0.0, %v5181
      %v5183 = vpop.f32.mrb[0].mxu0
      %5184 = vmatprep.mubr.f32.mxu0 0.0
      %5185 = vmatmul.mubr.f32.gmra.mrb[0].mxu0 %v4963
      %v5186 = vpop.f32.mrb[0].mxu0
      %v5187 = vadd.f32 0.0, %v5186
      %v5188 = vpop.f32.mrb[0].mxu0
      %5189 = vmatprep.mubr.f32.mxu0 0.0
      %5190 = vmatmul.mubr.f32.gmra.mrb[0].mxu0 %v4965
      %v5191 = vpop.f32.mrb[0].mxu0
      %v5192 = vadd.f32 0.0, %v5191
      %v5193 = vpop.f32.mrb[0].mxu0
      %5194 = vdwg.mxu0
      %v5195 = vadd.f32 %v4923, %v5037
      %v5196 = vadd.f32 %v4924, %v5042
      %v5197 = vadd.f32 %v4925, %v5047
      %v5198 = vadd.f32 %v4926, %v5052
      %v5199 = vadd.f32 %v4927, %v5057
      %v5200 = vadd.f32 %v4928, %v5062
      %v5201 = vadd.f32 %v4929, %v5067
      %v5202 = vadd.f32 %v4930, %v5072
      %v5203 = vadd.f32 %v4931, %v5077
      %v5204 = vadd.f32 %v4932, %v5082
      %v5205 = vadd.f32 %v4933, %v5087
      %v5206 = vadd.f32 %v4934, %v5092
      %v5207 = vadd.f32 %v4935, %v5097
      %v5208 = vadd.f32 %v4936, %v5102
      %v5209 = vadd.f32 %v4937, %v5107
      %v5210 = vadd.f32 %v4938, %v5112
      %v5211 = vadd.f32 %v4939, %v5117
      %v5212 = vadd.f32 %v4940, %v5122
      %v5213 = vadd.f32 %v4941, %v5127
      %v5214 = vadd.f32 %v4942, %v5132
      %v5215 = vadd.f32 %v4943, %v5137
      %v5216 = vadd.f32 %v4944, %v5142
      %v5217 = vadd.f32 %v4945, %v5147
      %v5218 = vadd.f32 %v4946, %v5152
      %v5219 = vadd.f32 %v4947, %v5157
      %v5220 = vadd.f32 %v4948, %v5162
      %v5221 = vadd.f32 %v4949, %v5167
      %v5222 = vadd.f32 %v4950, %v5172
      %v5223 = vadd.f32 %v4951, %v5177
      %v5224 = vadd.f32 %v4952, %v5182
      %v5225 = vadd.f32 %v4953, %v5187
      %v5226 = vadd.f32 %v4954, %v5192
      %v5227 = vrot.slane %v3560, 2
      %v5228 = vrot.slane %v3561, 2
      %v5229 = vsel %vm1161, %v5227, %v5228
      %v5230 = vrot.slane %v3562, 2
      %v5231 = vsel %vm1161, %v5228, %v5230
      %s5232 = scalar_lea.vmem %s2, 20
      %v5233 = vld [vmem:[%s5232] sm:$0xf]
      %v5234 = vsel %vm279, %v5229, 0
      %v5236 = vsel %vm279, %v5231, 0
      %v5239 = vsel %vm640, %v5233, 0
      %5241 = vmatprep.subr.mxu0 0.0
      %5242 = vmatpush1.msra.mxu0 %v5239
      %5243 = vmatprep.subr.mxu0 0.0
      %5244 = vmatpush1.msra.mxu0 0.0
      %5245 = vmatprep.subr.mxu0 0.0
      %5246 = vmatpush1.msra.mxu0 0.0
      %5247 = vmatprep.subr.mxu0 0.0
      %5248 = vmatpush1.msra.mxu0 0.0
      %5249 = vmatprep.subr.mxu0 0.0
      %5250 = vmatpush1.msra.mxu0 0.0
      %5251 = vmatprep.subr.mxu0 0.0
      %5252 = vmatpush1.msra.mxu0 0.0
      %5253 = vmatprep.subr.mxu0 0.0
      %5254 = vmatpush1.msra.mxu0 0.0
      %5255 = vmatprep.subr.mxu0 0.0
      %5256 = vmatpush1.msra.mxu0 0.0
      %5257 = vmatprep.subr.mxu0 0.0
      %5258 = vmatpush1.msra.mxu0 0.0
      %5259 = vmatprep.subr.mxu0 0.0
      %5260 = vmatpush1.msra.mxu0 0.0
      %5261 = vmatprep.subr.mxu0 0.0
      %5262 = vmatpush1.msra.mxu0 0.0
      %5263 = vmatprep.subr.mxu0 0.0
      %5264 = vmatpush1.msra.mxu0 0.0
      %5265 = vmatprep.subr.mxu0 0.0
      %5266 = vmatpush1.msra.mxu0 0.0
      %5267 = vmatprep.subr.mxu0 0.0
      %5268 = vmatpush1.msra.mxu0 0.0
      %5269 = vmatprep.subr.mxu0 0.0
      %5270 = vmatpush1.msra.mxu0 0.0
      %5271 = vmatprep.subr.mxu0 0.0
      %5272 = vmatpush1.msra.mxu0 0.0
      %5273 = vmatprep.subr.mxu0 0.0
      %5274 = vmatpush1.msra.mxu0 0.0
      %5275 = vmatprep.subr.mxu0 0.0
      %5276 = vmatpush1.msra.mxu0 0.0
      %5277 = vmatprep.subr.mxu0 0.0
      %5278 = vmatpush1.msra.mxu0 0.0
      %5279 = vmatprep.subr.mxu0 0.0
      %5280 = vmatpush1.msra.mxu0 0.0
      %5281 = vmatprep.subr.mxu0 0.0
      %5282 = vmatpush1.msra.mxu0 0.0
      %5283 = vmatprep.subr.mxu0 0.0
      %5284 = vmatpush1.msra.mxu0 0.0
      %5285 = vmatprep.subr.mxu0 0.0
      %5286 = vmatpush1.msra.mxu0 0.0
      %5287 = vmatprep.subr.mxu0 0.0
      %5288 = vmatpush1.msra.mxu0 0.0
      %5289 = vmatprep.subr.mxu0 0.0
      %5290 = vmatpush1.msra.mxu0 0.0
      %5291 = vmatprep.subr.mxu0 0.0
      %5292 = vmatpush1.msra.mxu0 0.0
      %5293 = vmatprep.subr.mxu0 0.0
      %5294 = vmatpush1.msra.mxu0 0.0
      %5295 = vmatprep.subr.mxu0 0.0
      %5296 = vmatpush1.msra.mxu0 0.0
      %5297 = vmatprep.subr.mxu0 0.0
      %5298 = vmatpush1.msra.mxu0 0.0
      %5299 = vmatprep.subr.mxu0 0.0
      %5300 = vmatpush1.msra.mxu0 0.0
      %5301 = vmatprep.subr.mxu0 0.0
      %5302 = vmatpush1.msra.mxu0 0.0
      %5303 = vmatprep.subr.mxu0 0.0
      %5304 = vmatpush1.msra.mxu0 0.0
      %5305 = vmatprep.mubr.f32.mxu0 0.0
      %5306 = vmatmul.mubr.f32.gmra.mrb[0].mxu0 %v4367
      %v5307 = vpop.f32.mrb[0].mxu0
      %v5308 = vadd.f32 0.0, %v5307
      %v5309 = vpop.f32.mrb[0].mxu0
      %5310 = vmatprep.mubr.f32.mxu0 0.0
      %5311 = vmatmul.mubr.f32.gmra.mrb[0].mxu0 %v4369
      %v5312 = vpop.f32.mrb[0].mxu0
      %v5313 = vadd.f32 0.0, %v5312
      %v5314 = vpop.f32.mrb[0].mxu0
      %5315 = vmatprep.mubr.f32.mxu0 0.0
      %5316 = vmatmul.mubr.f32.gmra.mrb[0].mxu0 %v4371
      %v5317 = vpop.f32.mrb[0].mxu0
      %v5318 = vadd.f32 0.0, %v5317
      %v5319 = vpop.f32.mrb[0].mxu0
      %5320 = vmatprep.mubr.f32.mxu0 0.0
      %5321 = vmatmul.mubr.f32.gmra.mrb[0].mxu0 %v4373
      %v5322 = vpop.f32.mrb[0].mxu0
      %v5323 = vadd.f32 0.0, %v5322
      %v5324 = vpop.f32.mrb[0].mxu0
      %5325 = vmatprep.mubr.f32.mxu0 0.0
      %5326 = vmatmul.mubr.f32.gmra.mrb[0].mxu0 %v4375
      %v5327 = vpop.f32.mrb[0].mxu0
      %v5328 = vadd.f32 0.0, %v5327
      %v5329 = vpop.f32.mrb[0].mxu0
      %5330 = vmatprep.mubr.f32.mxu0 0.0
      %5331 = vmatmul.mubr.f32.gmra.mrb[0].mxu0 %v4377
      %v5332 = vpop.f32.mrb[0].mxu0
      %v5333 = vadd.f32 0.0, %v5332
      %v5334 = vpop.f32.mrb[0].mxu0
      %5335 = vmatprep.mubr.f32.mxu0 0.0
      %5336 = vmatmul.mubr.f32.gmra.mrb[0].mxu0 %v4379
      %v5337 = vpop.f32.mrb[0].mxu0
      %v5338 = vadd.f32 0.0, %v5337
      %v5339 = vpop.f32.mrb[0].mxu0
      %5340 = vmatprep.mubr.f32.mxu0 0.0
      %5341 = vmatmul.mubr.f32.gmra.mrb[0].mxu0 %v4381
      %v5342 = vpop.f32.mrb[0].mxu0
      %v5343 = vadd.f32 0.0, %v5342
      %v5344 = vpop.f32.mrb[0].mxu0
      %5345 = vmatprep.mubr.f32.mxu0 0.0
      %5346 = vmatmul.mubr.f32.gmra.mrb[0].mxu0 %v4383
      %v5347 = vpop.f32.mrb[0].mxu0
      %v5348 = vadd.f32 0.0, %v5347
      %v5349 = vpop.f32.mrb[0].mxu0
      %5350 = vmatprep.mubr.f32.mxu0 0.0
      %5351 = vmatmul.mubr.f32.gmra.mrb[0].mxu0 %v4385
      %v5352 = vpop.f32.mrb[0].mxu0
      %v5353 = vadd.f32 0.0, %v5352
      %v5354 = vpop.f32.mrb[0].mxu0
      %5355 = vmatprep.mubr.f32.mxu0 0.0
      %5356 = vmatmul.mubr.f32.gmra.mrb[0].mxu0 %v4387
      %v5357 = vpop.f32.mrb[0].mxu0
      %v5358 = vadd.f32 0.0, %v5357
      %v5359 = vpop.f32.mrb[0].mxu0
      %5360 = vmatprep.mubr.f32.mxu0 0.0
      %5361 = vmatmul.mubr.f32.gmra.mrb[0].mxu0 %v4389
      %v5362 = vpop.f32.mrb[0].mxu0
      %v5363 = vadd.f32 0.0, %v5362
      %v5364 = vpop.f32.mrb[0].mxu0
      %5365 = vmatprep.mubr.f32.mxu0 0.0
      %5366 = vmatmul.mubr.f32.gmra.mrb[0].mxu0 %v4391
      %v5367 = vpop.f32.mrb[0].mxu0
      %v5368 = vadd.f32 0.0, %v5367
      %v5369 = vpop.f32.mrb[0].mxu0
      %5370 = vmatprep.mubr.f32.mxu0 0.0
      %5371 = vmatmul.mubr.f32.gmra.mrb[0].mxu0 %v4393
      %v5372 = vpop.f32.mrb[0].mxu0
      %v5373 = vadd.f32 0.0, %v5372
      %v5374 = vpop.f32.mrb[0].mxu0
      %5375 = vmatprep.mubr.f32.mxu0 0.0
      %5376 = vmatmul.mubr.f32.gmra.mrb[0].mxu0 %v4395
      %v5377 = vpop.f32.mrb[0].mxu0
      %v5378 = vadd.f32 0.0, %v5377
      %v5379 = vpop.f32.mrb[0].mxu0
      %5380 = vmatprep.mubr.f32.mxu0 0.0
      %5381 = vmatmul.mubr.f32.gmra.mrb[0].mxu0 %v4397
      %v5382 = vpop.f32.mrb[0].mxu0
      %v5383 = vadd.f32 0.0, %v5382
      %v5384 = vpop.f32.mrb[0].mxu0
      %5385 = vmatprep.mubr.f32.mxu0 0.0
      %5386 = vmatmul.mubr.f32.gmra.mrb[0].mxu0 %v4399
      %v5387 = vpop.f32.mrb[0].mxu0
      %v5388 = vadd.f32 0.0, %v5387
      %v5389 = vpop.f32.mrb[0].mxu0
      %5390 = vmatprep.mubr.f32.mxu0 0.0
      %5391 = vmatmul.mubr.f32.gmra.mrb[0].mxu0 %v4401
      %v5392 = vpop.f32.mrb[0].mxu0
      %v5393 = vadd.f32 0.0, %v5392
      %v5394 = vpop.f32.mrb[0].mxu0
      %5395 = vmatprep.mubr.f32.mxu0 0.0
      %5396 = vmatmul.mubr.f32.gmra.mrb[0].mxu0 %v4403
      %v5397 = vpop.f32.mrb[0].mxu0
      %v5398 = vadd.f32 0.0, %v5397
      %v5399 = vpop.f32.mrb[0].mxu0
      %5400 = vmatprep.mubr.f32.mxu0 0.0
      %5401 = vmatmul.mubr.f32.gmra.mrb[0].mxu0 %v4405
      %v5402 = vpop.f32.mrb[0].mxu0
      %v5403 = vadd.f32 0.0, %v5402
      %v5404 = vpop.f32.mrb[0].mxu0
      %5405 = vmatprep.mubr.f32.mxu0 0.0
      %5406 = vmatmul.mubr.f32.gmra.mrb[0].mxu0 %v4407
      %v5407 = vpop.f32.mrb[0].mxu0
      %v5408 = vadd.f32 0.0, %v5407
      %v5409 = vpop.f32.mrb[0].mxu0
      %5410 = vmatprep.mubr.f32.mxu0 0.0
      %5411 = vmatmul.mubr.f32.gmra.mrb[0].mxu0 %v4409
      %v5412 = vpop.f32.mrb[0].mxu0
      %v5413 = vadd.f32 0.0, %v5412
      %v5414 = vpop.f32.mrb[0].mxu0
      %5415 = vmatprep.mubr.f32.mxu0 0.0
      %5416 = vmatmul.mubr.f32.gmra.mrb[0].mxu0 %v4411
      %v5417 = vpop.f32.mrb[0].mxu0
      %v5418 = vadd.f32 0.0, %v5417
      %v5419 = vpop.f32.mrb[0].mxu0
      %5420 = vmatprep.mubr.f32.mxu0 0.0
      %5421 = vmatmul.mubr.f32.gmra.mrb[0].mxu0 %v4413
      %v5422 = vpop.f32.mrb[0].mxu0
      %v5423 = vadd.f32 0.0, %v5422
      %v5424 = vpop.f32.mrb[0].mxu0
      %5425 = vmatprep.mubr.f32.mxu0 0.0
      %5426 = vmatmul.mubr.f32.gmra.mrb[0].mxu0 %v4415
      %v5427 = vpop.f32.mrb[0].mxu0
      %v5428 = vadd.f32 0.0, %v5427
      %v5429 = vpop.f32.mrb[0].mxu0
      %5430 = vmatprep.mubr.f32.mxu0 0.0
      %5431 = vmatmul.mubr.f32.gmra.mrb[0].mxu0 %v4417
      %v5432 = vpop.f32.mrb[0].mxu0
      %v5433 = vadd.f32 0.0, %v5432
      %v5434 = vpop.f32.mrb[0].mxu0
      %5435 = vmatprep.mubr.f32.mxu0 0.0
      %5436 = vmatmul.mubr.f32.gmra.mrb[0].mxu0 %v4419
      %v5437 = vpop.f32.mrb[0].mxu0
      %v5438 = vadd.f32 0.0, %v5437
      %v5439 = vpop.f32.mrb[0].mxu0
      %5440 = vmatprep.mubr.f32.mxu0 0.0
      %5441 = vmatmul.mubr.f32.gmra.mrb[0].mxu0 %v4421
      %v5442 = vpop.f32.mrb[0].mxu0
      %v5443 = vadd.f32 0.0, %v5442
      %v5444 = vpop.f32.mrb[0].mxu0
      %5445 = vmatprep.mubr.f32.mxu0 0.0
      %5446 = vmatmul.mubr.f32.gmra.mrb[0].mxu0 %v4423
      %v5447 = vpop.f32.mrb[0].mxu0
      %v5448 = vadd.f32 0.0, %v5447
      %v5449 = vpop.f32.mrb[0].mxu0
      %5450 = vmatprep.mubr.f32.mxu0 0.0
      %5451 = vmatmul.mubr.f32.gmra.mrb[0].mxu0 %v4425
      %v5452 = vpop.f32.mrb[0].mxu0
      %v5453 = vadd.f32 0.0, %v5452
      %v5454 = vpop.f32.mrb[0].mxu0
      %5455 = vmatprep.mubr.f32.mxu0 0.0
      %5456 = vmatmul.mubr.f32.gmra.mrb[0].mxu0 %v5234
      %v5457 = vpop.f32.mrb[0].mxu0
      %v5458 = vadd.f32 0.0, %v5457
      %v5459 = vpop.f32.mrb[0].mxu0
      %5460 = vmatprep.mubr.f32.mxu0 0.0
      %5461 = vmatmul.mubr.f32.gmra.mrb[0].mxu0 %v5236
      %v5462 = vpop.f32.mrb[0].mxu0
      %v5463 = vadd.f32 0.0, %v5462
      %v5464 = vpop.f32.mrb[0].mxu0
      %5465 = vdwg.mxu0
      %v5466 = vadd.f32 %v5195, %v5308
      %v5467 = vadd.f32 %v5196, %v5313
      %v5468 = vadd.f32 %v5197, %v5318
      %v5469 = vadd.f32 %v5198, %v5323
      %v5470 = vadd.f32 %v5199, %v5328
      %v5471 = vadd.f32 %v5200, %v5333
      %v5472 = vadd.f32 %v5201, %v5338
      %v5473 = vadd.f32 %v5202, %v5343
      %v5474 = vadd.f32 %v5203, %v5348
      %v5475 = vadd.f32 %v5204, %v5353
      %v5476 = vadd.f32 %v5205, %v5358
      %v5477 = vadd.f32 %v5206, %v5363
      %v5478 = vadd.f32 %v5207, %v5368
      %v5479 = vadd.f32 %v5208, %v5373
      %v5480 = vadd.f32 %v5209, %v5378
      %v5481 = vadd.f32 %v5210, %v5383
      %v5482 = vadd.f32 %v5211, %v5388
      %v5483 = vadd.f32 %v5212, %v5393
      %v5484 = vadd.f32 %v5213, %v5398
      %v5485 = vadd.f32 %v5214, %v5403
      %v5486 = vadd.f32 %v5215, %v5408
      %v5487 = vadd.f32 %v5216, %v5413
      %v5488 = vadd.f32 %v5217, %v5418
      %v5489 = vadd.f32 %v5218, %v5423
      %v5490 = vadd.f32 %v5219, %v5428
      %v5491 = vadd.f32 %v5220, %v5433
      %v5492 = vadd.f32 %v5221, %v5438
      %v5493 = vadd.f32 %v5222, %v5443
      %v5494 = vadd.f32 %v5223, %v5448
      %v5495 = vadd.f32 %v5224, %v5453
      %v5496 = vadd.f32 %v5225, %v5458
      %v5497 = vadd.f32 %v5226, %v5463
      %s5498 = scalar_lea.vmem %s2, 24
      %v5499 = vld [vmem:[%s5498] sm:$0xf]
      %v5501 = vsel %vm279, %v3563, 0
      %v5504 = vsel %vm279, %v3564, 0
      %v5507 = vsel %vm640, %v5499, 0
      %5509 = vmatprep.subr.mxu0 0.0
      %5510 = vmatpush1.msra.mxu0 %v5507
      %5511 = vmatprep.subr.mxu0 0.0
      %5512 = vmatpush1.msra.mxu0 0.0
      %5513 = vmatprep.subr.mxu0 0.0
      %5514 = vmatpush1.msra.mxu0 0.0
      %5515 = vmatprep.subr.mxu0 0.0
      %5516 = vmatpush1.msra.mxu0 0.0
      %5517 = vmatprep.subr.mxu0 0.0
      %5518 = vmatpush1.msra.mxu0 0.0
      %5519 = vmatprep.subr.mxu0 0.0
      %5520 = vmatpush1.msra.mxu0 0.0
      %5521 = vmatprep.subr.mxu0 0.0
      %5522 = vmatpush1.msra.mxu0 0.0
      %5523 = vmatprep.subr.mxu0 0.0
      %5524 = vmatpush1.msra.mxu0 0.0
      %5525 = vmatprep.subr.mxu0 0.0
      %5526 = vmatpush1.msra.mxu0 0.0
      %5527 = vmatprep.subr.mxu0 0.0
      %5528 = vmatpush1.msra.mxu0 0.0
      %5529 = vmatprep.subr.mxu0 0.0
      %5530 = vmatpush1.msra.mxu0 0.0
      %5531 = vmatprep.subr.mxu0 0.0
      %5532 = vmatpush1.msra.mxu0 0.0
      %5533 = vmatprep.subr.mxu0 0.0
      %5534 = vmatpush1.msra.mxu0 0.0
      %5535 = vmatprep.subr.mxu0 0.0
      %5536 = vmatpush1.msra.mxu0 0.0
      %5537 = vmatprep.subr.mxu0 0.0
      %5538 = vmatpush1.msra.mxu0 0.0
      %5539 = vmatprep.subr.mxu0 0.0
      %5540 = vmatpush1.msra.mxu0 0.0
      %5541 = vmatprep.subr.mxu0 0.0
      %5542 = vmatpush1.msra.mxu0 0.0
      %5543 = vmatprep.subr.mxu0 0.0
      %5544 = vmatpush1.msra.mxu0 0.0
      %5545 = vmatprep.subr.mxu0 0.0
      %5546 = vmatpush1.msra.mxu0 0.0
      %5547 = vmatprep.subr.mxu0 0.0
      %5548 = vmatpush1.msra.mxu0 0.0
      %5549 = vmatprep.subr.mxu0 0.0
      %5550 = vmatpush1.msra.mxu0 0.0
      %5551 = vmatprep.subr.mxu0 0.0
      %5552 = vmatpush1.msra.mxu0 0.0
      %5553 = vmatprep.subr.mxu0 0.0
      %5554 = vmatpush1.msra.mxu0 0.0
      %5555 = vmatprep.subr.mxu0 0.0
      %5556 = vmatpush1.msra.mxu0 0.0
      %5557 = vmatprep.subr.mxu0 0.0
      %5558 = vmatpush1.msra.mxu0 0.0
      %5559 = vmatprep.subr.mxu0 0.0
      %5560 = vmatpush1.msra.mxu0 0.0
      %5561 = vmatprep.subr.mxu0 0.0
      %5562 = vmatpush1.msra.mxu0 0.0
      %5563 = vmatprep.subr.mxu0 0.0
      %5564 = vmatpush1.msra.mxu0 0.0
      %5565 = vmatprep.subr.mxu0 0.0
      %5566 = vmatpush1.msra.mxu0 0.0
      %5567 = vmatprep.subr.mxu0 0.0
      %5568 = vmatpush1.msra.mxu0 0.0
      %5569 = vmatprep.subr.mxu0 0.0
      %5570 = vmatpush1.msra.mxu0 0.0
      %5571 = vmatprep.subr.mxu0 0.0
      %5572 = vmatpush1.msra.mxu0 0.0
      %5573 = vmatprep.mubr.f32.mxu0 0.0
      %5574 = vmatmul.mubr.f32.gmra.mrb[0].mxu0 %v3997
      %v5575 = vpop.f32.mrb[0].mxu0
      %v5576 = vadd.f32 0.0, %v5575
      %v5577 = vpop.f32.mrb[0].mxu0
      %5578 = vmatprep.mubr.f32.mxu0 0.0
      %5579 = vmatmul.mubr.f32.gmra.mrb[0].mxu0 %v3999
      %v5580 = vpop.f32.mrb[0].mxu0
      %v5581 = vadd.f32 0.0, %v5580
      %v5582 = vpop.f32.mrb[0].mxu0
      %5583 = vmatprep.mubr.f32.mxu0 0.0
      %5584 = vmatmul.mubr.f32.gmra.mrb[0].mxu0 %v4001
      %v5585 = vpop.f32.mrb[0].mxu0
      %v5586 = vadd.f32 0.0, %v5585
      %v5587 = vpop.f32.mrb[0].mxu0
      %5588 = vmatprep.mubr.f32.mxu0 0.0
      %5589 = vmatmul.mubr.f32.gmra.mrb[0].mxu0 %v4003
      %v5590 = vpop.f32.mrb[0].mxu0
      %v5591 = vadd.f32 0.0, %v5590
      %v5592 = vpop.f32.mrb[0].mxu0
      %5593 = vmatprep.mubr.f32.mxu0 0.0
      %5594 = vmatmul.mubr.f32.gmra.mrb[0].mxu0 %v4005
      %v5595 = vpop.f32.mrb[0].mxu0
      %v5596 = vadd.f32 0.0, %v5595
      %v5597 = vpop.f32.mrb[0].mxu0
      %5598 = vmatprep.mubr.f32.mxu0 0.0
      %5599 = vmatmul.mubr.f32.gmra.mrb[0].mxu0 %v4007
      %v5600 = vpop.f32.mrb[0].mxu0
      %v5601 = vadd.f32 0.0, %v5600
      %v5602 = vpop.f32.mrb[0].mxu0
      %5603 = vmatprep.mubr.f32.mxu0 0.0
      %5604 = vmatmul.mubr.f32.gmra.mrb[0].mxu0 %v4009
      %v5605 = vpop.f32.mrb[0].mxu0
      %v5606 = vadd.f32 0.0, %v5605
      %v5607 = vpop.f32.mrb[0].mxu0
      %5608 = vmatprep.mubr.f32.mxu0 0.0
      %5609 = vmatmul.mubr.f32.gmra.mrb[0].mxu0 %v4011
      %v5610 = vpop.f32.mrb[0].mxu0
      %v5611 = vadd.f32 0.0, %v5610
      %v5612 = vpop.f32.mrb[0].mxu0
      %5613 = vmatprep.mubr.f32.mxu0 0.0
      %5614 = vmatmul.mubr.f32.gmra.mrb[0].mxu0 %v4013
      %v5615 = vpop.f32.mrb[0].mxu0
      %v5616 = vadd.f32 0.0, %v5615
      %v5617 = vpop.f32.mrb[0].mxu0
      %5618 = vmatprep.mubr.f32.mxu0 0.0
      %5619 = vmatmul.mubr.f32.gmra.mrb[0].mxu0 %v4015
      %v5620 = vpop.f32.mrb[0].mxu0
      %v5621 = vadd.f32 0.0, %v5620
      %v5622 = vpop.f32.mrb[0].mxu0
      %5623 = vmatprep.mubr.f32.mxu0 0.0
      %5624 = vmatmul.mubr.f32.gmra.mrb[0].mxu0 %v4017
      %v5625 = vpop.f32.mrb[0].mxu0
      %v5626 = vadd.f32 0.0, %v5625
      %v5627 = vpop.f32.mrb[0].mxu0
      %5628 = vmatprep.mubr.f32.mxu0 0.0
      %5629 = vmatmul.mubr.f32.gmra.mrb[0].mxu0 %v4019
      %v5630 = vpop.f32.mrb[0].mxu0
      %v5631 = vadd.f32 0.0, %v5630
      %v5632 = vpop.f32.mrb[0].mxu0
      %5633 = vmatprep.mubr.f32.mxu0 0.0
      %5634 = vmatmul.mubr.f32.gmra.mrb[0].mxu0 %v4021
      %v5635 = vpop.f32.mrb[0].mxu0
      %v5636 = vadd.f32 0.0, %v5635
      %v5637 = vpop.f32.mrb[0].mxu0
      %5638 = vmatprep.mubr.f32.mxu0 0.0
      %5639 = vmatmul.mubr.f32.gmra.mrb[0].mxu0 %v4023
      %v5640 = vpop.f32.mrb[0].mxu0
      %v5641 = vadd.f32 0.0, %v5640
      %v5642 = vpop.f32.mrb[0].mxu0
      %5643 = vmatprep.mubr.f32.mxu0 0.0
      %5644 = vmatmul.mubr.f32.gmra.mrb[0].mxu0 %v4025
      %v5645 = vpop.f32.mrb[0].mxu0
      %v5646 = vadd.f32 0.0, %v5645
      %v5647 = vpop.f32.mrb[0].mxu0
      %5648 = vmatprep.mubr.f32.mxu0 0.0
      %5649 = vmatmul.mubr.f32.gmra.mrb[0].mxu0 %v4027
      %v5650 = vpop.f32.mrb[0].mxu0
      %v5651 = vadd.f32 0.0, %v5650
      %v5652 = vpop.f32.mrb[0].mxu0
      %5653 = vmatprep.mubr.f32.mxu0 0.0
      %5654 = vmatmul.mubr.f32.gmra.mrb[0].mxu0 %v4029
      %v5655 = vpop.f32.mrb[0].mxu0
      %v5656 = vadd.f32 0.0, %v5655
      %v5657 = vpop.f32.mrb[0].mxu0
      %5658 = vmatprep.mubr.f32.mxu0 0.0
      %5659 = vmatmul.mubr.f32.gmra.mrb[0].mxu0 %v4031
      %v5660 = vpop.f32.mrb[0].mxu0
      %v5661 = vadd.f32 0.0, %v5660
      %v5662 = vpop.f32.mrb[0].mxu0
      %5663 = vmatprep.mubr.f32.mxu0 0.0
      %5664 = vmatmul.mubr.f32.gmra.mrb[0].mxu0 %v4033
      %v5665 = vpop.f32.mrb[0].mxu0
      %v5666 = vadd.f32 0.0, %v5665
      %v5667 = vpop.f32.mrb[0].mxu0
      %5668 = vmatprep.mubr.f32.mxu0 0.0
      %5669 = vmatmul.mubr.f32.gmra.mrb[0].mxu0 %v4035
      %v5670 = vpop.f32.mrb[0].mxu0
      %v5671 = vadd.f32 0.0, %v5670
      %v5672 = vpop.f32.mrb[0].mxu0
      %5673 = vmatprep.mubr.f32.mxu0 0.0
      %5674 = vmatmul.mubr.f32.gmra.mrb[0].mxu0 %v4037
      %v5675 = vpop.f32.mrb[0].mxu0
      %v5676 = vadd.f32 0.0, %v5675
      %v5677 = vpop.f32.mrb[0].mxu0
      %5678 = vmatprep.mubr.f32.mxu0 0.0
      %5679 = vmatmul.mubr.f32.gmra.mrb[0].mxu0 %v4039
      %v5680 = vpop.f32.mrb[0].mxu0
      %v5681 = vadd.f32 0.0, %v5680
      %v5682 = vpop.f32.mrb[0].mxu0
      %5683 = vmatprep.mubr.f32.mxu0 0.0
      %5684 = vmatmul.mubr.f32.gmra.mrb[0].mxu0 %v4041
      %v5685 = vpop.f32.mrb[0].mxu0
      %v5686 = vadd.f32 0.0, %v5685
      %v5687 = vpop.f32.mrb[0].mxu0
      %5688 = vmatprep.mubr.f32.mxu0 0.0
      %5689 = vmatmul.mubr.f32.gmra.mrb[0].mxu0 %v4043
      %v5690 = vpop.f32.mrb[0].mxu0
      %v5691 = vadd.f32 0.0, %v5690
      %v5692 = vpop.f32.mrb[0].mxu0
      %5693 = vmatprep.mubr.f32.mxu0 0.0
      %5694 = vmatmul.mubr.f32.gmra.mrb[0].mxu0 %v4045
      %v5695 = vpop.f32.mrb[0].mxu0
      %v5696 = vadd.f32 0.0, %v5695
      %v5697 = vpop.f32.mrb[0].mxu0
      %5698 = vmatprep.mubr.f32.mxu0 0.0
      %5699 = vmatmul.mubr.f32.gmra.mrb[0].mxu0 %v4047
      %v5700 = vpop.f32.mrb[0].mxu0
      %v5701 = vadd.f32 0.0, %v5700
      %v5702 = vpop.f32.mrb[0].mxu0
      %5703 = vmatprep.mubr.f32.mxu0 0.0
      %5704 = vmatmul.mubr.f32.gmra.mrb[0].mxu0 %v4049
      %v5705 = vpop.f32.mrb[0].mxu0
      %v5706 = vadd.f32 0.0, %v5705
      %v5707 = vpop.f32.mrb[0].mxu0
      %5708 = vmatprep.mubr.f32.mxu0 0.0
      %5709 = vmatmul.mubr.f32.gmra.mrb[0].mxu0 %v4051
      %v5710 = vpop.f32.mrb[0].mxu0
      %v5711 = vadd.f32 0.0, %v5710
      %v5712 = vpop.f32.mrb[0].mxu0
      %5713 = vmatprep.mubr.f32.mxu0 0.0
      %5714 = vmatmul.mubr.f32.gmra.mrb[0].mxu0 %v4690
      %v5715 = vpop.f32.mrb[0].mxu0
      %v5716 = vadd.f32 0.0, %v5715
      %v5717 = vpop.f32.mrb[0].mxu0
      %5718 = vmatprep.mubr.f32.mxu0 0.0
      %5719 = vmatmul.mubr.f32.gmra.mrb[0].mxu0 %v4693
      %v5720 = vpop.f32.mrb[0].mxu0
      %v5721 = vadd.f32 0.0, %v5720
      %v5722 = vpop.f32.mrb[0].mxu0
      %5723 = vmatprep.mubr.f32.mxu0 0.0
      %5724 = vmatmul.mubr.f32.gmra.mrb[0].mxu0 %v5501
      %v5725 = vpop.f32.mrb[0].mxu0
      %v5726 = vadd.f32 0.0, %v5725
      %v5727 = vpop.f32.mrb[0].mxu0
      %5728 = vmatprep.mubr.f32.mxu0 0.0
      %5729 = vmatmul.mubr.f32.gmra.mrb[0].mxu0 %v5504
      %v5730 = vpop.f32.mrb[0].mxu0
      %v5731 = vadd.f32 0.0, %v5730
      %v5732 = vpop.f32.mrb[0].mxu0
      %5733 = vdwg.mxu0
      %v5734 = vadd.f32 %v5466, %v5576
      %v5735 = vadd.f32 %v5467, %v5581
      %v5736 = vadd.f32 %v5468, %v5586
      %v5737 = vadd.f32 %v5469, %v5591
      %v5738 = vadd.f32 %v5470, %v5596
      %v5739 = vadd.f32 %v5471, %v5601
      %v5740 = vadd.f32 %v5472, %v5606
      %v5741 = vadd.f32 %v5473, %v5611
      %v5742 = vadd.f32 %v5474, %v5616
      %v5743 = vadd.f32 %v5475, %v5621
      %v5744 = vadd.f32 %v5476, %v5626
      %v5745 = vadd.f32 %v5477, %v5631
      %v5746 = vadd.f32 %v5478, %v5636
      %v5747 = vadd.f32 %v5479, %v5641
      %v5748 = vadd.f32 %v5480, %v5646
      %v5749 = vadd.f32 %v5481, %v5651
      %v5750 = vadd.f32 %v5482, %v5656
      %v5751 = vadd.f32 %v5483, %v5661
      %v5752 = vadd.f32 %v5484, %v5666
      %v5753 = vadd.f32 %v5485, %v5671
      %v5754 = vadd.f32 %v5486, %v5676
      %v5755 = vadd.f32 %v5487, %v5681
      %v5756 = vadd.f32 %v5488, %v5686
      %v5757 = vadd.f32 %v5489, %v5691
      %v5758 = vadd.f32 %v5490, %v5696
      %v5759 = vadd.f32 %v5491, %v5701
      %v5760 = vadd.f32 %v5492, %v5706
      %v5761 = vadd.f32 %v5493, %v5711
      %v5762 = vadd.f32 %v5494, %v5716
      %v5763 = vadd.f32 %v5495, %v5721
      %v5764 = vadd.f32 %v5496, %v5726
      %v5765 = vadd.f32 %v5497, %v5731
      %v5767 = vrot.slane %v3563, 1
      %v5768 = vrot.slane %v3564, 1
      %v5769 = vsel %vm493, %v5767, %v5768
      %v5770 = vrot.slane %v3565, 1
      %v5771 = vsel %vm493, %v5768, %v5770
      %s5772 = scalar_lea.vmem %s2, 28
      %v5773 = vld [vmem:[%s5772] sm:$0xf]
      %v5774 = vsel %vm279, %v5769, 0
      %v5776 = vsel %vm279, %v5771, 0
      %v5779 = vsel %vm640, %v5773, 0
      %5781 = vmatprep.subr.mxu0 0.0
      %5782 = vmatpush1.msra.mxu0 %v5779
      %5783 = vmatprep.subr.mxu0 0.0
      %5784 = vmatpush1.msra.mxu0 0.0
      %5785 = vmatprep.subr.mxu0 0.0
      %5786 = vmatpush1.msra.mxu0 0.0
      %5787 = vmatprep.subr.mxu0 0.0
      %5788 = vmatpush1.msra.mxu0 0.0
      %5789 = vmatprep.subr.mxu0 0.0
      %5790 = vmatpush1.msra.mxu0 0.0
      %5791 = vmatprep.subr.mxu0 0.0
      %5792 = vmatpush1.msra.mxu0 0.0
      %5793 = vmatprep.subr.mxu0 0.0
      %5794 = vmatpush1.msra.mxu0 0.0
      %5795 = vmatprep.subr.mxu0 0.0
      %5796 = vmatpush1.msra.mxu0 0.0
      %5797 = vmatprep.subr.mxu0 0.0
      %5798 = vmatpush1.msra.mxu0 0.0
      %5799 = vmatprep.subr.mxu0 0.0
      %5800 = vmatpush1.msra.mxu0 0.0
      %5801 = vmatprep.subr.mxu0 0.0
      %5802 = vmatpush1.msra.mxu0 0.0
      %5803 = vmatprep.subr.mxu0 0.0
      %5804 = vmatpush1.msra.mxu0 0.0
      %5805 = vmatprep.subr.mxu0 0.0
      %5806 = vmatpush1.msra.mxu0 0.0
      %5807 = vmatprep.subr.mxu0 0.0
      %5808 = vmatpush1.msra.mxu0 0.0
      %5809 = vmatprep.subr.mxu0 0.0
      %5810 = vmatpush1.msra.mxu0 0.0
      %5811 = vmatprep.subr.mxu0 0.0
      %5812 = vmatpush1.msra.mxu0 0.0
      %5813 = vmatprep.subr.mxu0 0.0
      %5814 = vmatpush1.msra.mxu0 0.0
      %5815 = vmatprep.subr.mxu0 0.0
      %5816 = vmatpush1.msra.mxu0 0.0
      %5817 = vmatprep.subr.mxu0 0.0
      %5818 = vmatpush1.msra.mxu0 0.0
      %5819 = vmatprep.subr.mxu0 0.0
      %5820 = vmatpush1.msra.mxu0 0.0
      %5821 = vmatprep.subr.mxu0 0.0
      %5822 = vmatpush1.msra.mxu0 0.0
      %5823 = vmatprep.subr.mxu0 0.0
      %5824 = vmatpush1.msra.mxu0 0.0
      %5825 = vmatprep.subr.mxu0 0.0
      %5826 = vmatpush1.msra.mxu0 0.0
      %5827 = vmatprep.subr.mxu0 0.0
      %5828 = vmatpush1.msra.mxu0 0.0
      %5829 = vmatprep.subr.mxu0 0.0
      %5830 = vmatpush1.msra.mxu0 0.0
      %5831 = vmatprep.subr.mxu0 0.0
      %5832 = vmatpush1.msra.mxu0 0.0
      %5833 = vmatprep.subr.mxu0 0.0
      %5834 = vmatpush1.msra.mxu0 0.0
      %5835 = vmatprep.subr.mxu0 0.0
      %5836 = vmatpush1.msra.mxu0 0.0
      %5837 = vmatprep.subr.mxu0 0.0
      %5838 = vmatpush1.msra.mxu0 0.0
      %5839 = vmatprep.subr.mxu0 0.0
      %5840 = vmatpush1.msra.mxu0 0.0
      %5841 = vmatprep.subr.mxu0 0.0
      %5842 = vmatpush1.msra.mxu0 0.0
      %5843 = vmatprep.subr.mxu0 0.0
      %5844 = vmatpush1.msra.mxu0 0.0
      %5845 = vmatprep.mubr.f32.mxu0 0.0
      %5846 = vmatmul.mubr.f32.gmra.mrb[0].mxu0 %v3705
      %v5847 = vpop.f32.mrb[0].mxu0
      %v5848 = vadd.f32 0.0, %v5847
      %v5849 = vpop.f32.mrb[0].mxu0
      %5850 = vmatprep.mubr.f32.mxu0 0.0
      %5851 = vmatmul.mubr.f32.gmra.mrb[0].mxu0 %v3707
      %v5852 = vpop.f32.mrb[0].mxu0
      %v5853 = vadd.f32 0.0, %v5852
      %v5854 = vpop.f32.mrb[0].mxu0
      %5855 = vmatprep.mubr.f32.mxu0 0.0
      %5856 = vmatmul.mubr.f32.gmra.mrb[0].mxu0 %v3709
      %v5857 = vpop.f32.mrb[0].mxu0
      %v5858 = vadd.f32 0.0, %v5857
      %v5859 = vpop.f32.mrb[0].mxu0
      %5860 = vmatprep.mubr.f32.mxu0 0.0
      %5861 = vmatmul.mubr.f32.gmra.mrb[0].mxu0 %v3711
      %v5862 = vpop.f32.mrb[0].mxu0
      %v5863 = vadd.f32 0.0, %v5862
      %v5864 = vpop.f32.mrb[0].mxu0
      %5865 = vmatprep.mubr.f32.mxu0 0.0
      %5866 = vmatmul.mubr.f32.gmra.mrb[0].mxu0 %v3713
      %v5867 = vpop.f32.mrb[0].mxu0
      %v5868 = vadd.f32 0.0, %v5867
      %v5869 = vpop.f32.mrb[0].mxu0
      %5870 = vmatprep.mubr.f32.mxu0 0.0
      %5871 = vmatmul.mubr.f32.gmra.mrb[0].mxu0 %v3715
      %v5872 = vpop.f32.mrb[0].mxu0
      %v5873 = vadd.f32 0.0, %v5872
      %v5874 = vpop.f32.mrb[0].mxu0
      %5875 = vmatprep.mubr.f32.mxu0 0.0
      %5876 = vmatmul.mubr.f32.gmra.mrb[0].mxu0 %v3717
      %v5877 = vpop.f32.mrb[0].mxu0
      %v5878 = vadd.f32 0.0, %v5877
      %v5879 = vpop.f32.mrb[0].mxu0
      %5880 = vmatprep.mubr.f32.mxu0 0.0
      %5881 = vmatmul.mubr.f32.gmra.mrb[0].mxu0 %v3719
      %v5882 = vpop.f32.mrb[0].mxu0
      %v5883 = vadd.f32 0.0, %v5882
      %v5884 = vpop.f32.mrb[0].mxu0
      %5885 = vmatprep.mubr.f32.mxu0 0.0
      %5886 = vmatmul.mubr.f32.gmra.mrb[0].mxu0 %v3721
      %v5887 = vpop.f32.mrb[0].mxu0
      %v5888 = vadd.f32 0.0, %v5887
      %v5889 = vpop.f32.mrb[0].mxu0
      %5890 = vmatprep.mubr.f32.mxu0 0.0
      %5891 = vmatmul.mubr.f32.gmra.mrb[0].mxu0 %v3723
      %v5892 = vpop.f32.mrb[0].mxu0
      %v5893 = vadd.f32 0.0, %v5892
      %v5894 = vpop.f32.mrb[0].mxu0
      %5895 = vmatprep.mubr.f32.mxu0 0.0
      %5896 = vmatmul.mubr.f32.gmra.mrb[0].mxu0 %v3725
      %v5897 = vpop.f32.mrb[0].mxu0
      %v5898 = vadd.f32 0.0, %v5897
      %v5899 = vpop.f32.mrb[0].mxu0
      %5900 = vmatprep.mubr.f32.mxu0 0.0
      %5901 = vmatmul.mubr.f32.gmra.mrb[0].mxu0 %v3727
      %v5902 = vpop.f32.mrb[0].mxu0
      %v5903 = vadd.f32 0.0, %v5902
      %v5904 = vpop.f32.mrb[0].mxu0
      %5905 = vmatprep.mubr.f32.mxu0 0.0
      %5906 = vmatmul.mubr.f32.gmra.mrb[0].mxu0 %v3729
      %v5907 = vpop.f32.mrb[0].mxu0
      %v5908 = vadd.f32 0.0, %v5907
      %v5909 = vpop.f32.mrb[0].mxu0
      %5910 = vmatprep.mubr.f32.mxu0 0.0
      %5911 = vmatmul.mubr.f32.gmra.mrb[0].mxu0 %v3731
      %v5912 = vpop.f32.mrb[0].mxu0
      %v5913 = vadd.f32 0.0, %v5912
      %v5914 = vpop.f32.mrb[0].mxu0
      %5915 = vmatprep.mubr.f32.mxu0 0.0
      %5916 = vmatmul.mubr.f32.gmra.mrb[0].mxu0 %v3733
      %v5917 = vpop.f32.mrb[0].mxu0
      %v5918 = vadd.f32 0.0, %v5917
      %v5919 = vpop.f32.mrb[0].mxu0
      %5920 = vmatprep.mubr.f32.mxu0 0.0
      %5921 = vmatmul.mubr.f32.gmra.mrb[0].mxu0 %v3735
      %v5922 = vpop.f32.mrb[0].mxu0
      %v5923 = vadd.f32 0.0, %v5922
      %v5924 = vpop.f32.mrb[0].mxu0
      %5925 = vmatprep.mubr.f32.mxu0 0.0
      %5926 = vmatmul.mubr.f32.gmra.mrb[0].mxu0 %v3737
      %v5927 = vpop.f32.mrb[0].mxu0
      %v5928 = vadd.f32 0.0, %v5927
      %v5929 = vpop.f32.mrb[0].mxu0
      %5930 = vmatprep.mubr.f32.mxu0 0.0
      %5931 = vmatmul.mubr.f32.gmra.mrb[0].mxu0 %v3739
      %v5932 = vpop.f32.mrb[0].mxu0
      %v5933 = vadd.f32 0.0, %v5932
      %v5934 = vpop.f32.mrb[0].mxu0
      %5935 = vmatprep.mubr.f32.mxu0 0.0
      %5936 = vmatmul.mubr.f32.gmra.mrb[0].mxu0 %v3741
      %v5937 = vpop.f32.mrb[0].mxu0
      %v5938 = vadd.f32 0.0, %v5937
      %v5939 = vpop.f32.mrb[0].mxu0
      %5940 = vmatprep.mubr.f32.mxu0 0.0
      %5941 = vmatmul.mubr.f32.gmra.mrb[0].mxu0 %v3743
      %v5942 = vpop.f32.mrb[0].mxu0
      %v5943 = vadd.f32 0.0, %v5942
      %v5944 = vpop.f32.mrb[0].mxu0
      %5945 = vmatprep.mubr.f32.mxu0 0.0
      %5946 = vmatmul.mubr.f32.gmra.mrb[0].mxu0 %v3745
      %v5947 = vpop.f32.mrb[0].mxu0
      %v5948 = vadd.f32 0.0, %v5947
      %v5949 = vpop.f32.mrb[0].mxu0
      %5950 = vmatprep.mubr.f32.mxu0 0.0
      %5951 = vmatmul.mubr.f32.gmra.mrb[0].mxu0 %v3747
      %v5952 = vpop.f32.mrb[0].mxu0
      %v5953 = vadd.f32 0.0, %v5952
      %v5954 = vpop.f32.mrb[0].mxu0
      %5955 = vmatprep.mubr.f32.mxu0 0.0
      %5956 = vmatmul.mubr.f32.gmra.mrb[0].mxu0 %v3749
      %v5957 = vpop.f32.mrb[0].mxu0
      %v5958 = vadd.f32 0.0, %v5957
      %v5959 = vpop.f32.mrb[0].mxu0
      %5960 = vmatprep.mubr.f32.mxu0 0.0
      %5961 = vmatmul.mubr.f32.gmra.mrb[0].mxu0 %v3751
      %v5962 = vpop.f32.mrb[0].mxu0
      %v5963 = vadd.f32 0.0, %v5962
      %v5964 = vpop.f32.mrb[0].mxu0
      %5965 = vmatprep.mubr.f32.mxu0 0.0
      %5966 = vmatmul.mubr.f32.gmra.mrb[0].mxu0 %v3753
      %v5967 = vpop.f32.mrb[0].mxu0
      %v5968 = vadd.f32 0.0, %v5967
      %v5969 = vpop.f32.mrb[0].mxu0
      %5970 = vmatprep.mubr.f32.mxu0 0.0
      %5971 = vmatmul.mubr.f32.gmra.mrb[0].mxu0 %v3755
      %v5972 = vpop.f32.mrb[0].mxu0
      %v5973 = vadd.f32 0.0, %v5972
      %v5974 = vpop.f32.mrb[0].mxu0
      %5975 = vmatprep.mubr.f32.mxu0 0.0
      %5976 = vmatmul.mubr.f32.gmra.mrb[0].mxu0 %v3757
      %v5977 = vpop.f32.mrb[0].mxu0
      %v5978 = vadd.f32 0.0, %v5977
      %v5979 = vpop.f32.mrb[0].mxu0
      %5980 = vmatprep.mubr.f32.mxu0 0.0
      %5981 = vmatmul.mubr.f32.gmra.mrb[0].mxu0 %v3759
      %v5982 = vpop.f32.mrb[0].mxu0
      %v5983 = vadd.f32 0.0, %v5982
      %v5984 = vpop.f32.mrb[0].mxu0
      %5985 = vmatprep.mubr.f32.mxu0 0.0
      %5986 = vmatmul.mubr.f32.gmra.mrb[0].mxu0 %v4963
      %v5987 = vpop.f32.mrb[0].mxu0
      %v5988 = vadd.f32 0.0, %v5987
      %v5989 = vpop.f32.mrb[0].mxu0
      %5990 = vmatprep.mubr.f32.mxu0 0.0
      %5991 = vmatmul.mubr.f32.gmra.mrb[0].mxu0 %v4965
      %v5992 = vpop.f32.mrb[0].mxu0
      %v5993 = vadd.f32 0.0, %v5992
      %v5994 = vpop.f32.mrb[0].mxu0
      %5995 = vmatprep.mubr.f32.mxu0 0.0
      %5996 = vmatmul.mubr.f32.gmra.mrb[0].mxu0 %v5774
      %v5997 = vpop.f32.mrb[0].mxu0
      %v5998 = vadd.f32 0.0, %v5997
      %v5999 = vpop.f32.mrb[0].mxu0
      %6000 = vmatprep.mubr.f32.mxu0 0.0
      %6001 = vmatmul.mubr.f32.gmra.mrb[0].mxu0 %v5776
      %v6002 = vpop.f32.mrb[0].mxu0
      %v6003 = vadd.f32 0.0, %v6002
      %v6004 = vpop.f32.mrb[0].mxu0
      %6005 = vdwg.mxu0
      %v6006 = vadd.f32 %v5734, %v5848
      %v6007 = vadd.f32 %v5735, %v5853
      %v6008 = vadd.f32 %v5736, %v5858
      %v6009 = vadd.f32 %v5737, %v5863
      %v6010 = vadd.f32 %v5738, %v5868
      %v6011 = vadd.f32 %v5739, %v5873
      %v6012 = vadd.f32 %v5740, %v5878
      %v6013 = vadd.f32 %v5741, %v5883
      %v6014 = vadd.f32 %v5742, %v5888
      %v6015 = vadd.f32 %v5743, %v5893
      %v6016 = vadd.f32 %v5744, %v5898
      %v6017 = vadd.f32 %v5745, %v5903
      %v6018 = vadd.f32 %v5746, %v5908
      %v6019 = vadd.f32 %v5747, %v5913
      %v6020 = vadd.f32 %v5748, %v5918
      %v6021 = vadd.f32 %v5749, %v5923
      %v6022 = vadd.f32 %v5750, %v5928
      %v6023 = vadd.f32 %v5751, %v5933
      %v6024 = vadd.f32 %v5752, %v5938
      %v6025 = vadd.f32 %v5753, %v5943
      %v6026 = vadd.f32 %v5754, %v5948
      %v6027 = vadd.f32 %v5755, %v5953
      %v6028 = vadd.f32 %v5756, %v5958
      %v6029 = vadd.f32 %v5757, %v5963
      %v6030 = vadd.f32 %v5758, %v5968
      %v6031 = vadd.f32 %v5759, %v5973
      %v6032 = vadd.f32 %v5760, %v5978
      %v6033 = vadd.f32 %v5761, %v5983
      %v6034 = vadd.f32 %v5762, %v5988
      %v6035 = vadd.f32 %v5763, %v5993
      %v6036 = vadd.f32 %v5764, %v5998
      %v6037 = vadd.f32 %v5765, %v6003
      %v6038 = vrot.slane %v3563, 2
      %v6039 = vrot.slane %v3564, 2
      %v6040 = vsel %vm1161, %v6038, %v6039
      %v6041 = vrot.slane %v3565, 2
      %v6042 = vsel %vm1161, %v6039, %v6041
      %s6043 = scalar_lea.vmem %s2, 32
      %v6044 = vld [vmem:[%s6043] sm:$0xf]
      %v6045 = vsel %vm279, %v6040, 0
      %v6047 = vsel %vm279, %v6042, 0
      %v6050 = vsel %vm640, %v6044, 0
      %6052 = vmatprep.subr.mxu0 0.0
      %6053 = vmatpush1.msra.mxu0 %v6050
      %6054 = vmatprep.subr.mxu0 0.0
      %6055 = vmatpush1.msra.mxu0 0.0
      %6056 = vmatprep.subr.mxu0 0.0
      %6057 = vmatpush1.msra.mxu0 0.0
      %6058 = vmatprep.subr.mxu0 0.0
      %6059 = vmatpush1.msra.mxu0 0.0
      %6060 = vmatprep.subr.mxu0 0.0
      %6061 = vmatpush1.msra.mxu0 0.0
      %6062 = vmatprep.subr.mxu0 0.0
      %6063 = vmatpush1.msra.mxu0 0.0
      %6064 = vmatprep.subr.mxu0 0.0
      %6065 = vmatpush1.msra.mxu0 0.0
      %6066 = vmatprep.subr.mxu0 0.0
      %6067 = vmatpush1.msra.mxu0 0.0
      %6068 = vmatprep.subr.mxu0 0.0
      %6069 = vmatpush1.msra.mxu0 0.0
      %6070 = vmatprep.subr.mxu0 0.0
      %6071 = vmatpush1.msra.mxu0 0.0
      %6072 = vmatprep.subr.mxu0 0.0
      %6073 = vmatpush1.msra.mxu0 0.0
      %6074 = vmatprep.subr.mxu0 0.0
      %6075 = vmatpush1.msra.mxu0 0.0
      %6076 = vmatprep.subr.mxu0 0.0
      %6077 = vmatpush1.msra.mxu0 0.0
      %6078 = vmatprep.subr.mxu0 0.0
      %6079 = vmatpush1.msra.mxu0 0.0
      %6080 = vmatprep.subr.mxu0 0.0
      %6081 = vmatpush1.msra.mxu0 0.0
      %6082 = vmatprep.subr.mxu0 0.0
      %6083 = vmatpush1.msra.mxu0 0.0
      %6084 = vmatprep.subr.mxu0 0.0
      %6085 = vmatpush1.msra.mxu0 0.0
      %6086 = vmatprep.subr.mxu0 0.0
      %6087 = vmatpush1.msra.mxu0 0.0
      %6088 = vmatprep.subr.mxu0 0.0
      %6089 = vmatpush1.msra.mxu0 0.0
      %6090 = vmatprep.subr.mxu0 0.0
      %6091 = vmatpush1.msra.mxu0 0.0
      %6092 = vmatprep.subr.mxu0 0.0
      %6093 = vmatpush1.msra.mxu0 0.0
      %6094 = vmatprep.subr.mxu0 0.0
      %6095 = vmatpush1.msra.mxu0 0.0
      %6096 = vmatprep.subr.mxu0 0.0
      %6097 = vmatpush1.msra.mxu0 0.0
      %6098 = vmatprep.subr.mxu0 0.0
      %6099 = vmatpush1.msra.mxu0 0.0
      %6100 = vmatprep.subr.mxu0 0.0
      %6101 = vmatpush1.msra.mxu0 0.0
      %6102 = vmatprep.subr.mxu0 0.0
      %6103 = vmatpush1.msra.mxu0 0.0
      %6104 = vmatprep.subr.mxu0 0.0
      %6105 = vmatpush1.msra.mxu0 0.0
      %6106 = vmatprep.subr.mxu0 0.0
      %6107 = vmatpush1.msra.mxu0 0.0
      %6108 = vmatprep.subr.mxu0 0.0
      %6109 = vmatpush1.msra.mxu0 0.0
      %6110 = vmatprep.subr.mxu0 0.0
      %6111 = vmatpush1.msra.mxu0 0.0
      %6112 = vmatprep.subr.mxu0 0.0
      %6113 = vmatpush1.msra.mxu0 0.0
      %6114 = vmatprep.subr.mxu0 0.0
      %6115 = vmatpush1.msra.mxu0 0.0
      %6116 = vmatprep.mubr.f32.mxu0 0.0
      %6117 = vmatmul.mubr.f32.gmra.mrb[0].mxu0 %v4371
      %v6118 = vpop.f32.mrb[0].mxu0
      %v6119 = vadd.f32 0.0, %v6118
      %v6120 = vpop.f32.mrb[0].mxu0
      %6121 = vmatprep.mubr.f32.mxu0 0.0
      %6122 = vmatmul.mubr.f32.gmra.mrb[0].mxu0 %v4373
      %v6123 = vpop.f32.mrb[0].mxu0
      %v6124 = vadd.f32 0.0, %v6123
      %v6125 = vpop.f32.mrb[0].mxu0
      %6126 = vmatprep.mubr.f32.mxu0 0.0
      %6127 = vmatmul.mubr.f32.gmra.mrb[0].mxu0 %v4375
      %v6128 = vpop.f32.mrb[0].mxu0
      %v6129 = vadd.f32 0.0, %v6128
      %v6130 = vpop.f32.mrb[0].mxu0
      %6131 = vmatprep.mubr.f32.mxu0 0.0
      %6132 = vmatmul.mubr.f32.gmra.mrb[0].mxu0 %v4377
      %v6133 = vpop.f32.mrb[0].mxu0
      %v6134 = vadd.f32 0.0, %v6133
      %v6135 = vpop.f32.mrb[0].mxu0
      %6136 = vmatprep.mubr.f32.mxu0 0.0
      %6137 = vmatmul.mubr.f32.gmra.mrb[0].mxu0 %v4379
      %v6138 = vpop.f32.mrb[0].mxu0
      %v6139 = vadd.f32 0.0, %v6138
      %v6140 = vpop.f32.mrb[0].mxu0
      %6141 = vmatprep.mubr.f32.mxu0 0.0
      %6142 = vmatmul.mubr.f32.gmra.mrb[0].mxu0 %v4381
      %v6143 = vpop.f32.mrb[0].mxu0
      %v6144 = vadd.f32 0.0, %v6143
      %v6145 = vpop.f32.mrb[0].mxu0
      %6146 = vmatprep.mubr.f32.mxu0 0.0
      %6147 = vmatmul.mubr.f32.gmra.mrb[0].mxu0 %v4383
      %v6148 = vpop.f32.mrb[0].mxu0
      %v6149 = vadd.f32 0.0, %v6148
      %v6150 = vpop.f32.mrb[0].mxu0
      %6151 = vmatprep.mubr.f32.mxu0 0.0
      %6152 = vmatmul.mubr.f32.gmra.mrb[0].mxu0 %v4385
      %v6153 = vpop.f32.mrb[0].mxu0
      %v6154 = vadd.f32 0.0, %v6153
      %v6155 = vpop.f32.mrb[0].mxu0
      %6156 = vmatprep.mubr.f32.mxu0 0.0
      %6157 = vmatmul.mubr.f32.gmra.mrb[0].mxu0 %v4387
      %v6158 = vpop.f32.mrb[0].mxu0
      %v6159 = vadd.f32 0.0, %v6158
      %v6160 = vpop.f32.mrb[0].mxu0
      %6161 = vmatprep.mubr.f32.mxu0 0.0
      %6162 = vmatmul.mubr.f32.gmra.mrb[0].mxu0 %v4389
      %v6163 = vpop.f32.mrb[0].mxu0
      %v6164 = vadd.f32 0.0, %v6163
      %v6165 = vpop.f32.mrb[0].mxu0
      %6166 = vmatprep.mubr.f32.mxu0 0.0
      %6167 = vmatmul.mubr.f32.gmra.mrb[0].mxu0 %v4391
      %v6168 = vpop.f32.mrb[0].mxu0
      %v6169 = vadd.f32 0.0, %v6168
      %v6170 = vpop.f32.mrb[0].mxu0
      %6171 = vmatprep.mubr.f32.mxu0 0.0
      %6172 = vmatmul.mubr.f32.gmra.mrb[0].mxu0 %v4393
      %v6173 = vpop.f32.mrb[0].mxu0
      %v6174 = vadd.f32 0.0, %v6173
      %v6175 = vpop.f32.mrb[0].mxu0
      %6176 = vmatprep.mubr.f32.mxu0 0.0
      %6177 = vmatmul.mubr.f32.gmra.mrb[0].mxu0 %v4395
      %v6178 = vpop.f32.mrb[0].mxu0
      %v6179 = vadd.f32 0.0, %v6178
      %v6180 = vpop.f32.mrb[0].mxu0
      %6181 = vmatprep.mubr.f32.mxu0 0.0
      %6182 = vmatmul.mubr.f32.gmra.mrb[0].mxu0 %v4397
      %v6183 = vpop.f32.mrb[0].mxu0
      %v6184 = vadd.f32 0.0, %v6183
      %v6185 = vpop.f32.mrb[0].mxu0
      %6186 = vmatprep.mubr.f32.mxu0 0.0
      %6187 = vmatmul.mubr.f32.gmra.mrb[0].mxu0 %v4399
      %v6188 = vpop.f32.mrb[0].mxu0
      %v6189 = vadd.f32 0.0, %v6188
      %v6190 = vpop.f32.mrb[0].mxu0
      %6191 = vmatprep.mubr.f32.mxu0 0.0
      %6192 = vmatmul.mubr.f32.gmra.mrb[0].mxu0 %v4401
      %v6193 = vpop.f32.mrb[0].mxu0
      %v6194 = vadd.f32 0.0, %v6193
      %v6195 = vpop.f32.mrb[0].mxu0
      %6196 = vmatprep.mubr.f32.mxu0 0.0
      %6197 = vmatmul.mubr.f32.gmra.mrb[0].mxu0 %v4403
      %v6198 = vpop.f32.mrb[0].mxu0
      %v6199 = vadd.f32 0.0, %v6198
      %v6200 = vpop.f32.mrb[0].mxu0
      %6201 = vmatprep.mubr.f32.mxu0 0.0
      %6202 = vmatmul.mubr.f32.gmra.mrb[0].mxu0 %v4405
      %v6203 = vpop.f32.mrb[0].mxu0
      %v6204 = vadd.f32 0.0, %v6203
      %v6205 = vpop.f32.mrb[0].mxu0
      %6206 = vmatprep.mubr.f32.mxu0 0.0
      %6207 = vmatmul.mubr.f32.gmra.mrb[0].mxu0 %v4407
      %v6208 = vpop.f32.mrb[0].mxu0
      %v6209 = vadd.f32 0.0, %v6208
      %v6210 = vpop.f32.mrb[0].mxu0
      %6211 = vmatprep.mubr.f32.mxu0 0.0
      %6212 = vmatmul.mubr.f32.gmra.mrb[0].mxu0 %v4409
      %v6213 = vpop.f32.mrb[0].mxu0
      %v6214 = vadd.f32 0.0, %v6213
      %v6215 = vpop.f32.mrb[0].mxu0
      %6216 = vmatprep.mubr.f32.mxu0 0.0
      %6217 = vmatmul.mubr.f32.gmra.mrb[0].mxu0 %v4411
      %v6218 = vpop.f32.mrb[0].mxu0
      %v6219 = vadd.f32 0.0, %v6218
      %v6220 = vpop.f32.mrb[0].mxu0
      %6221 = vmatprep.mubr.f32.mxu0 0.0
      %6222 = vmatmul.mubr.f32.gmra.mrb[0].mxu0 %v4413
      %v6223 = vpop.f32.mrb[0].mxu0
      %v6224 = vadd.f32 0.0, %v6223
      %v6225 = vpop.f32.mrb[0].mxu0
      %6226 = vmatprep.mubr.f32.mxu0 0.0
      %6227 = vmatmul.mubr.f32.gmra.mrb[0].mxu0 %v4415
      %v6228 = vpop.f32.mrb[0].mxu0
      %v6229 = vadd.f32 0.0, %v6228
      %v6230 = vpop.f32.mrb[0].mxu0
      %6231 = vmatprep.mubr.f32.mxu0 0.0
      %6232 = vmatmul.mubr.f32.gmra.mrb[0].mxu0 %v4417
      %v6233 = vpop.f32.mrb[0].mxu0
      %v6234 = vadd.f32 0.0, %v6233
      %v6235 = vpop.f32.mrb[0].mxu0
      %6236 = vmatprep.mubr.f32.mxu0 0.0
      %6237 = vmatmul.mubr.f32.gmra.mrb[0].mxu0 %v4419
      %v6238 = vpop.f32.mrb[0].mxu0
      %v6239 = vadd.f32 0.0, %v6238
      %v6240 = vpop.f32.mrb[0].mxu0
      %6241 = vmatprep.mubr.f32.mxu0 0.0
      %6242 = vmatmul.mubr.f32.gmra.mrb[0].mxu0 %v4421
      %v6243 = vpop.f32.mrb[0].mxu0
      %v6244 = vadd.f32 0.0, %v6243
      %v6245 = vpop.f32.mrb[0].mxu0
      %6246 = vmatprep.mubr.f32.mxu0 0.0
      %6247 = vmatmul.mubr.f32.gmra.mrb[0].mxu0 %v4423
      %v6248 = vpop.f32.mrb[0].mxu0
      %v6249 = vadd.f32 0.0, %v6248
      %v6250 = vpop.f32.mrb[0].mxu0
      %6251 = vmatprep.mubr.f32.mxu0 0.0
      %6252 = vmatmul.mubr.f32.gmra.mrb[0].mxu0 %v4425
      %v6253 = vpop.f32.mrb[0].mxu0
      %v6254 = vadd.f32 0.0, %v6253
      %v6255 = vpop.f32.mrb[0].mxu0
      %6256 = vmatprep.mubr.f32.mxu0 0.0
      %6257 = vmatmul.mubr.f32.gmra.mrb[0].mxu0 %v5234
      %v6258 = vpop.f32.mrb[0].mxu0
      %v6259 = vadd.f32 0.0, %v6258
      %v6260 = vpop.f32.mrb[0].mxu0
      %6261 = vmatprep.mubr.f32.mxu0 0.0
      %6262 = vmatmul.mubr.f32.gmra.mrb[0].mxu0 %v5236
      %v6263 = vpop.f32.mrb[0].mxu0
      %v6264 = vadd.f32 0.0, %v6263
      %v6265 = vpop.f32.mrb[0].mxu0
      %6266 = vmatprep.mubr.f32.mxu0 0.0
      %6267 = vmatmul.mubr.f32.gmra.mrb[0].mxu0 %v6045
      %v6268 = vpop.f32.mrb[0].mxu0
      %v6269 = vadd.f32 0.0, %v6268
      %v6270 = vpop.f32.mrb[0].mxu0
      %6271 = vmatprep.mubr.f32.mxu0 0.0
      %6272 = vmatmul.mubr.f32.gmra.mrb[0].mxu0 %v6047
      %v6273 = vpop.f32.mrb[0].mxu0
      %v6274 = vadd.f32 0.0, %v6273
      %v6275 = vpop.f32.mrb[0].mxu0
      %6276 = vdwg.mxu0
      %v6277 = vadd.f32 %v6006, %v6119
      %v6278 = vadd.f32 %v6007, %v6124
      %v6279 = vadd.f32 %v6008, %v6129
      %v6280 = vadd.f32 %v6009, %v6134
      %v6281 = vadd.f32 %v6010, %v6139
      %v6282 = vadd.f32 %v6011, %v6144
      %v6283 = vadd.f32 %v6012, %v6149
      %v6284 = vadd.f32 %v6013, %v6154
      %v6285 = vadd.f32 %v6014, %v6159
      %v6286 = vadd.f32 %v6015, %v6164
      %v6287 = vadd.f32 %v6016, %v6169
      %v6288 = vadd.f32 %v6017, %v6174
      %v6289 = vadd.f32 %v6018, %v6179
      %v6290 = vadd.f32 %v6019, %v6184
      %v6291 = vadd.f32 %v6020, %v6189
      %v6292 = vadd.f32 %v6021, %v6194
      %v6293 = vadd.f32 %v6022, %v6199
      %v6294 = vadd.f32 %v6023, %v6204
      %v6295 = vadd.f32 %v6024, %v6209
      %v6296 = vadd.f32 %v6025, %v6214
      %v6297 = vadd.f32 %v6026, %v6219
      %v6298 = vadd.f32 %v6027, %v6224
      %v6299 = vadd.f32 %v6028, %v6229
      %v6300 = vadd.f32 %v6029, %v6234
      %v6301 = vadd.f32 %v6030, %v6239
      %v6302 = vadd.f32 %v6031, %v6244
      %v6303 = vadd.f32 %v6032, %v6249
      %v6304 = vadd.f32 %v6033, %v6254
      %v6305 = vadd.f32 %v6034, %v6259
      %v6306 = vadd.f32 %v6035, %v6264
      %v6307 = vadd.f32 %v6036, %v6269
      %v6308 = vadd.f32 %v6037, %v6274
      %v6309 = vsel %vm279, %v6277, 0.0
      %v6310 = vsel %vm279, %v6278, 0.0
      %v6311 = vadd.f32 %v6309, %v6310
      %v6312 = vsel %vm279, %v6279, 0.0
      %v6313 = vadd.f32 %v6311, %v6312
      %v6314 = vsel %vm279, %v6280, 0.0
      %v6315 = vadd.f32 %v6313, %v6314
      %v6316 = vsel %vm279, %v6281, 0.0
      %v6317 = vadd.f32 %v6315, %v6316
      %v6318 = vsel %vm279, %v6282, 0.0
      %v6319 = vadd.f32 %v6317, %v6318
      %v6320 = vsel %vm279, %v6283, 0.0
      %v6321 = vadd.f32 %v6319, %v6320
      %v6322 = vsel %vm279, %v6284, 0.0
      %v6323 = vadd.f32 %v6321, %v6322
      %v6324 = vsel %vm279, %v6285, 0.0
      %v6325 = vadd.f32 %v6323, %v6324
      %v6326 = vsel %vm279, %v6286, 0.0
      %v6327 = vadd.f32 %v6325, %v6326
      %v6328 = vsel %vm279, %v6287, 0.0
      %v6329 = vadd.f32 %v6327, %v6328
      %v6330 = vsel %vm279, %v6288, 0.0
      %v6331 = vadd.f32 %v6329, %v6330
      %v6332 = vsel %vm279, %v6289, 0.0
      %v6333 = vadd.f32 %v6331, %v6332
      %v6334 = vsel %vm279, %v6290, 0.0
      %v6335 = vadd.f32 %v6333, %v6334
      %v6336 = vsel %vm279, %v6291, 0.0
      %v6337 = vadd.f32 %v6335, %v6336
      %v6338 = vsel %vm279, %v6292, 0.0
      %v6339 = vadd.f32 %v6337, %v6338
      %v6340 = vsel %vm279, %v6293, 0.0
      %v6341 = vadd.f32 %v6339, %v6340
      %v6342 = vsel %vm279, %v6294, 0.0
      %v6343 = vadd.f32 %v6341, %v6342
      %v6344 = vsel %vm279, %v6295, 0.0
      %v6345 = vadd.f32 %v6343, %v6344
      %v6346 = vsel %vm279, %v6296, 0.0
      %v6347 = vadd.f32 %v6345, %v6346
      %v6348 = vsel %vm279, %v6297, 0.0
      %v6349 = vadd.f32 %v6347, %v6348
      %v6350 = vsel %vm279, %v6298, 0.0
      %v6351 = vadd.f32 %v6349, %v6350
      %v6352 = vsel %vm279, %v6299, 0.0
      %v6353 = vadd.f32 %v6351, %v6352
      %v6354 = vsel %vm279, %v6300, 0.0
      %v6355 = vadd.f32 %v6353, %v6354
      %v6356 = vsel %vm279, %v6301, 0.0
      %v6357 = vadd.f32 %v6355, %v6356
      %v6358 = vsel %vm279, %v6302, 0.0
      %v6359 = vadd.f32 %v6357, %v6358
      %v6360 = vsel %vm279, %v6303, 0.0
      %v6361 = vadd.f32 %v6359, %v6360
      %v6362 = vsel %vm279, %v6304, 0.0
      %v6363 = vadd.f32 %v6361, %v6362
      %v6364 = vsel %vm279, %v6305, 0.0
      %v6365 = vadd.f32 %v6363, %v6364
      %v6366 = vsel %vm279, %v6306, 0.0
      %v6367 = vadd.f32 %v6365, %v6366
      %v6368 = vsel %vm279, %v6307, 0.0
      %v6369 = vadd.f32 %v6367, %v6368
      %v6370 = vsel %vm279, %v6308, 0.0
      %v6371 = vadd.f32 %v6369, %v6370
      %v6372 = vrot.slane %v6371, 4
      %v6373 = vadd.f32 %v6371, %v6372
      %v6374 = vrot.slane %v6373, 2
      %v6375 = vadd.f32 %v6373, %v6374
      %v6376 = vrot.slane %v6375, 1
      %v6377 = vadd.f32 %v6375, %v6376
      %v6378 = vmul.f32 %v6377, 0.00390625
      %v6379 = vmul.f32 %v6277, %v6277
      %v6380 = vmul.f32 %v6278, %v6278
      %v6381 = vmul.f32 %v6279, %v6279
      %v6382 = vmul.f32 %v6280, %v6280
      %v6383 = vmul.f32 %v6281, %v6281
      %v6384 = vmul.f32 %v6282, %v6282
      %v6385 = vmul.f32 %v6283, %v6283
      %v6386 = vmul.f32 %v6284, %v6284
      %v6387 = vmul.f32 %v6285, %v6285
      %v6388 = vmul.f32 %v6286, %v6286
      %v6389 = vmul.f32 %v6287, %v6287
      %v6390 = vmul.f32 %v6288, %v6288
      %v6391 = vmul.f32 %v6289, %v6289
      %v6392 = vmul.f32 %v6290, %v6290
      %v6393 = vmul.f32 %v6291, %v6291
      %v6394 = vmul.f32 %v6292, %v6292
      %v6395 = vmul.f32 %v6293, %v6293
      %v6396 = vmul.f32 %v6294, %v6294
      %v6397 = vmul.f32 %v6295, %v6295
      %v6398 = vmul.f32 %v6296, %v6296
      %v6399 = vmul.f32 %v6297, %v6297
      %v6400 = vmul.f32 %v6298, %v6298
      %v6401 = vmul.f32 %v6299, %v6299
      %v6402 = vmul.f32 %v6300, %v6300
      %v6403 = vmul.f32 %v6301, %v6301
      %v6404 = vmul.f32 %v6302, %v6302
      %v6405 = vmul.f32 %v6303, %v6303
      %v6406 = vmul.f32 %v6304, %v6304
      %v6407 = vmul.f32 %v6305, %v6305
      %v6408 = vmul.f32 %v6306, %v6306
      %v6409 = vmul.f32 %v6307, %v6307
      %v6410 = vmul.f32 %v6308, %v6308
      %v6411 = vsel %vm279, %v6379, 0.0
      %v6412 = vsel %vm279, %v6380, 0.0
      %v6413 = vadd.f32 %v6411, %v6412
      %v6414 = vsel %vm279, %v6381, 0.0
      %v6415 = vadd.f32 %v6413, %v6414
      %v6416 = vsel %vm279, %v6382, 0.0
      %v6417 = vadd.f32 %v6415, %v6416
      %v6418 = vsel %vm279, %v6383, 0.0
      %v6419 = vadd.f32 %v6417, %v6418
      %v6420 = vsel %vm279, %v6384, 0.0
      %v6421 = vadd.f32 %v6419, %v6420
      %v6422 = vsel %vm279, %v6385, 0.0
      %v6423 = vadd.f32 %v6421, %v6422
      %v6424 = vsel %vm279, %v6386, 0.0
      %v6425 = vadd.f32 %v6423, %v6424
      %v6426 = vsel %vm279, %v6387, 0.0
      %v6427 = vadd.f32 %v6425, %v6426
      %v6428 = vsel %vm279, %v6388, 0.0
      %v6429 = vadd.f32 %v6427, %v6428
      %v6430 = vsel %vm279, %v6389, 0.0
      %v6431 = vadd.f32 %v6429, %v6430
      %v6432 = vsel %vm279, %v6390, 0.0
      %v6433 = vadd.f32 %v6431, %v6432
      %v6434 = vsel %vm279, %v6391, 0.0
      %v6435 = vadd.f32 %v6433, %v6434
      %v6436 = vsel %vm279, %v6392, 0.0
      %v6437 = vadd.f32 %v6435, %v6436
      %v6438 = vsel %vm279, %v6393, 0.0
      %v6439 = vadd.f32 %v6437, %v6438
      %v6440 = vsel %vm279, %v6394, 0.0
      %v6441 = vadd.f32 %v6439, %v6440
      %v6442 = vsel %vm279, %v6395, 0.0
      %v6443 = vadd.f32 %v6441, %v6442
      %v6444 = vsel %vm279, %v6396, 0.0
      %v6445 = vadd.f32 %v6443, %v6444
      %v6446 = vsel %vm279, %v6397, 0.0
      %v6447 = vadd.f32 %v6445, %v6446
      %v6448 = vsel %vm279, %v6398, 0.0
      %v6449 = vadd.f32 %v6447, %v6448
      %v6450 = vsel %vm279, %v6399, 0.0
      %v6451 = vadd.f32 %v6449, %v6450
      %v6452 = vsel %vm279, %v6400, 0.0
      %v6453 = vadd.f32 %v6451, %v6452
      %v6454 = vsel %vm279, %v6401, 0.0
      %v6455 = vadd.f32 %v6453, %v6454
      %v6456 = vsel %vm279, %v6402, 0.0
      %v6457 = vadd.f32 %v6455, %v6456
      %v6458 = vsel %vm279, %v6403, 0.0
      %v6459 = vadd.f32 %v6457, %v6458
      %v6460 = vsel %vm279, %v6404, 0.0
      %v6461 = vadd.f32 %v6459, %v6460
      %v6462 = vsel %vm279, %v6405, 0.0
      %v6463 = vadd.f32 %v6461, %v6462
      %v6464 = vsel %vm279, %v6406, 0.0
      %v6465 = vadd.f32 %v6463, %v6464
      %v6466 = vsel %vm279, %v6407, 0.0
      %v6467 = vadd.f32 %v6465, %v6466
      %v6468 = vsel %vm279, %v6408, 0.0
      %v6469 = vadd.f32 %v6467, %v6468
      %v6470 = vsel %vm279, %v6409, 0.0
      %v6471 = vadd.f32 %v6469, %v6470
      %v6472 = vsel %vm279, %v6410, 0.0
      %v6473 = vadd.f32 %v6471, %v6472
      %v6474 = vrot.slane %v6473, 4
      %v6475 = vadd.f32 %v6473, %v6474
      %v6476 = vrot.slane %v6475, 2
      %v6477 = vadd.f32 %v6475, %v6476
      %v6478 = vrot.slane %v6477, 1
      %v6479 = vadd.f32 %v6477, %v6478
      %v6480 = vmul.f32 %v6479, 0.00390625
      %v6481 = vmul.f32 %v6378, %v6378
      %v6482 = vsub.f32 %v6480, %v6481
      %v6483 = vmax.f32 %v6482, 0.0
      %v6484 = vld [vmem:[%s5] sm:$0x1]
      %v6485 = vadd.f32 %v6483, 1e-05
      %v6486 = vrsqrt.pop %v6485
      %v6487 = vmul.f32 %v6484, %v6486
      %v6488 = vld [vmem:[%s6] sm:$0x1]
      %v6489 = vmul.f32 %v6378, %v6487
      %v6490 = vsub.f32 %v6488, %v6489
      %v6492 = vlaneseq
      %v6493 = vshrl.u32 %v6492, 7
      %v6494 = vsub.s32 0, %v6493
      %v6495 = vrot.slane %v6487, %v6494
      %v6497 = vmul.f32 %v6277, %v6495
      %v6498 = vmul.f32 %v6278, %v6495
      %v6499 = vmul.f32 %v6279, %v6495
      %v6500 = vmul.f32 %v6280, %v6495
      %v6501 = vmul.f32 %v6281, %v6495
      %v6502 = vmul.f32 %v6282, %v6495
      %v6503 = vmul.f32 %v6283, %v6495
      %v6504 = vmul.f32 %v6284, %v6495
      %v6505 = vmul.f32 %v6285, %v6495
      %v6506 = vmul.f32 %v6286, %v6495
      %v6507 = vmul.f32 %v6287, %v6495
      %v6508 = vmul.f32 %v6288, %v6495
      %v6509 = vmul.f32 %v6289, %v6495
      %v6510 = vmul.f32 %v6290, %v6495
      %v6511 = vmul.f32 %v6291, %v6495
      %v6512 = vmul.f32 %v6292, %v6495
      %v6513 = vmul.f32 %v6293, %v6495
      %v6514 = vmul.f32 %v6294, %v6495
      %v6515 = vmul.f32 %v6295, %v6495
      %v6516 = vmul.f32 %v6296, %v6495
      %v6517 = vmul.f32 %v6297, %v6495
      %v6518 = vmul.f32 %v6298, %v6495
      %v6519 = vmul.f32 %v6299, %v6495
      %v6520 = vmul.f32 %v6300, %v6495
      %v6521 = vmul.f32 %v6301, %v6495
      %v6522 = vmul.f32 %v6302, %v6495
      %v6523 = vmul.f32 %v6303, %v6495
      %v6524 = vmul.f32 %v6304, %v6495
      %v6525 = vmul.f32 %v6305, %v6495
      %v6526 = vmul.f32 %v6306, %v6495
      %v6527 = vmul.f32 %v6307, %v6495
      %v6528 = vmul.f32 %v6308, %v6495
      %v6530 = vlaneseq
      %v6531 = vshrl.u32 %v6530, 7
      %v6532 = vsub.s32 0, %v6531
      %v6533 = vrot.slane %v6490, %v6532
      %v6535 = vadd.f32 %v6497, %v6533
      %v6536 = vadd.f32 %v6498, %v6533
      %v6537 = vadd.f32 %v6499, %v6533
      %v6538 = vadd.f32 %v6500, %v6533
      %v6539 = vadd.f32 %v6501, %v6533
      %v6540 = vadd.f32 %v6502, %v6533
      %v6541 = vadd.f32 %v6503, %v6533
      %v6542 = vadd.f32 %v6504, %v6533
      %v6543 = vadd.f32 %v6505, %v6533
      %v6544 = vadd.f32 %v6506, %v6533
      %v6545 = vadd.f32 %v6507, %v6533
      %v6546 = vadd.f32 %v6508, %v6533
      %v6547 = vadd.f32 %v6509, %v6533
      %v6548 = vadd.f32 %v6510, %v6533
      %v6549 = vadd.f32 %v6511, %v6533
      %v6550 = vadd.f32 %v6512, %v6533
      %v6551 = vadd.f32 %v6513, %v6533
      %v6552 = vadd.f32 %v6514, %v6533
      %v6553 = vadd.f32 %v6515, %v6533
      %v6554 = vadd.f32 %v6516, %v6533
      %v6555 = vadd.f32 %v6517, %v6533
      %v6556 = vadd.f32 %v6518, %v6533
      %v6557 = vadd.f32 %v6519, %v6533
      %v6558 = vadd.f32 %v6520, %v6533
      %v6559 = vadd.f32 %v6521, %v6533
      %v6560 = vadd.f32 %v6522, %v6533
      %v6561 = vadd.f32 %v6523, %v6533
      %v6562 = vadd.f32 %v6524, %v6533
      %v6563 = vadd.f32 %v6525, %v6533
      %v6564 = vadd.f32 %v6526, %v6533
      %v6565 = vadd.f32 %v6527, %v6533
      %v6566 = vadd.f32 %v6528, %v6533
      %v6567 = vadd.f32 %v325, %v6535
      %v6568 = vadd.f32 %v326, %v6536
      %v6569 = vadd.f32 %v327, %v6537
      %v6570 = vadd.f32 %v328, %v6538
      %v6571 = vadd.f32 %v329, %v6539
      %v6572 = vadd.f32 %v330, %v6540
      %v6573 = vadd.f32 %v331, %v6541
      %v6574 = vadd.f32 %v332, %v6542
      %v6575 = vadd.f32 %v333, %v6543
      %v6576 = vadd.f32 %v334, %v6544
      %v6577 = vadd.f32 %v335, %v6545
      %v6578 = vadd.f32 %v336, %v6546
      %v6579 = vadd.f32 %v337, %v6547
      %v6580 = vadd.f32 %v338, %v6548
      %v6581 = vadd.f32 %v339, %v6549
      %v6582 = vadd.f32 %v340, %v6550
      %v6583 = vadd.f32 %v341, %v6551
      %v6584 = vadd.f32 %v342, %v6552
      %v6585 = vadd.f32 %v343, %v6553
      %v6586 = vadd.f32 %v344, %v6554
      %v6587 = vadd.f32 %v345, %v6555
      %v6588 = vadd.f32 %v346, %v6556
      %v6589 = vadd.f32 %v347, %v6557
      %v6590 = vadd.f32 %v348, %v6558
      %v6591 = vadd.f32 %v349, %v6559
      %v6592 = vadd.f32 %v350, %v6560
      %v6593 = vadd.f32 %v351, %v6561
      %v6594 = vadd.f32 %v352, %v6562
      %v6595 = vadd.f32 %v353, %v6563
      %v6596 = vadd.f32 %v354, %v6564
      %v6597 = vadd.f32 %v355, %v6565
      %v6598 = vadd.f32 %v356, %v6566
      %6599 = vst.msk [vmem:[%s278] sm:$0xff] %vm279, %v6567
      %6600 = vst.msk [vmem:[%s278 + $0x8] sm:$0xff] %vm279, %v6568
      %6601 = vst.msk [vmem:[%s278 + $0x10] sm:$0xff] %vm279, %v6569
      %6602 = vst.msk [vmem:[%s278 + $0x18] sm:$0xff] %vm279, %v6570
      %6603 = vst.msk [vmem:[%s278 + $0x20] sm:$0xff] %vm279, %v6571
      %6604 = vst.msk [vmem:[%s278 + $0x28] sm:$0xff] %vm279, %v6572
      %6605 = vst.msk [vmem:[%s278 + $0x30] sm:$0xff] %vm279, %v6573
      %6606 = vst.msk [vmem:[%s278 + $0x38] sm:$0xff] %vm279, %v6574
      %6607 = vst.msk [vmem:[%s278 + $0x40] sm:$0xff] %vm279, %v6575
      %6608 = vst.msk [vmem:[%s278 + $0x48] sm:$0xff] %vm279, %v6576
      %6609 = vst.msk [vmem:[%s278 + $0x50] sm:$0xff] %vm279, %v6577
      %6610 = vst.msk [vmem:[%s278 + $0x58] sm:$0xff] %vm279, %v6578
      %6611 = vst.msk [vmem:[%s278 + $0x60] sm:$0xff] %vm279, %v6579
      %6612 = vst.msk [vmem:[%s278 + $0x68] sm:$0xff] %vm279, %v6580
      %6613 = vst.msk [vmem:[%s278 + $0x70] sm:$0xff] %vm279, %v6581
      %6614 = vst.msk [vmem:[%s278 + $0x78] sm:$0xff] %vm279, %v6582
      %6615 = vst.msk [vmem:[%s278 + $0x80] sm:$0xff] %vm279, %v6583
      %6616 = vst.msk [vmem:[%s278 + $0x88] sm:$0xff] %vm279, %v6584
      %6617 = vst.msk [vmem:[%s278 + $0x90] sm:$0xff] %vm279, %v6585
      %6618 = vst.msk [vmem:[%s278 + $0x98] sm:$0xff] %vm279, %v6586
      %6619 = vst.msk [vmem:[%s278 + $0xa0] sm:$0xff] %vm279, %v6587
      %6620 = vst.msk [vmem:[%s278 + $0xa8] sm:$0xff] %vm279, %v6588
      %6621 = vst.msk [vmem:[%s278 + $0xb0] sm:$0xff] %vm279, %v6589
      %6622 = vst.msk [vmem:[%s278 + $0xb8] sm:$0xff] %vm279, %v6590
      %6623 = vst.msk [vmem:[%s278 + $0xc0] sm:$0xff] %vm279, %v6591
      %6624 = vst.msk [vmem:[%s278 + $0xc8] sm:$0xff] %vm279, %v6592
      %6625 = vst.msk [vmem:[%s278 + $0xd0] sm:$0xff] %vm279, %v6593
      %6626 = vst.msk [vmem:[%s278 + $0xd8] sm:$0xff] %vm279, %v6594
      %6627 = vst.msk [vmem:[%s278 + $0xe0] sm:$0xff] %vm279, %v6595
      %6628 = vst.msk [vmem:[%s278 + $0xe8] sm:$0xff] %vm279, %v6596
      %6629 = vst.msk [vmem:[%s278 + $0xf0] sm:$0xff] %vm279, %v6597
      %6630 = vst.msk [vmem:[%s278 + $0xf8] sm:$0xff] %vm279, %v6598
      %p6631 = scmp.lt.s32.totalorder %s18, 1
      %s6632 = scalar_select %p6631, %s18, 1
      %s6633 = smul.addr %s6632, 32
      %s6634 = smul.addr %s6633, 8
      %s6635 = scalar_lea.vmem %s7, %s6634
      // Predicated region
      $region49: #{tpu_custom_call.1} parent=47 // pred_check
        %p6636 = pneg %p188
      $region50: #{tpu_custom_call.1} parent=47 // pred_check_branch
        %6638 = sbr.rel (%p6636) target = $region52
      $region51: #{tpu_custom_call.1} parent=47 // pred_region
        _
      $region52: #{tpu_custom_call.1} parent=47 // pred_fallthru
        _
    $region48: #{tpu_custom_call.1} parent=5 // pred_fallthru
      _
    %p6639 = scmp.le.s32.totalorder 2, %s13
    // Predicated region
    $region53: #{tpu_custom_call.1} parent=5 // pred_check
      %p6640 = pneg %p6639
    $region54: #{tpu_custom_call.1} parent=5 // pred_check_branch
      %6642 = sbr.rel (%p6640) target = $region56
    $region55: #{tpu_custom_call.1} parent=5 // pred_region
      %s6643 = ssub.s32 %s13, 2
      // Predicated region
      $region57: #{tpu_custom_call.1} parent=55 // pred_check
        %p6644 = pneg %p194
      $region58: #{tpu_custom_call.1} parent=55 // pred_check_branch
        %6646 = sbr.rel (%p6644) target = $region60
      $region59: #{tpu_custom_call.1} parent=55 // pred_region
        %p6647 = scmp.lt.s32.totalorder %s19, 1
        %s6648 = scalar_select %p6647, %s19, 1
        %s6649 = smul.addr %s6648, 32
        %s6650 = smul.addr %s6649, 8
        %s6651 = scalar_lea.vmem %s7, %s6650
      $region60: #{tpu_custom_call.1} parent=55 // pred_fallthru
        _
    $region56: #{tpu_custom_call.1} parent=5 // pred_fallthru
      _
  $region6: #{tpu_custom_call.1} parent=0 // loop_footer
    %s17 = sadd.s32 1, %s13
  $region7: #{tpu_custom_call.1} parent=0 // loop_footer_branch
    %12 = sbr.rel target = $region3
  $region8: #{tpu_custom_call.1} parent=0 // loop_exit
    _

</llo_original>
